<compile_context>
chip_gen: v7x
topology: tpu7x:2x2x1
jax: 0.10.0
libtpu: 0.0.40
codegen_flags: <defaults>
</compile_context>

<pallas_src>
import functools

import jax
import jax.numpy as jnp
from jax import lax
from jax.experimental import pallas as pl
from jax.experimental.pallas import tpu as pltpu


# ------------------------------- kernel ---------------------------------------

def _conv3x3_im2col(src_ref, w_ref, img_h):
    """3x3 'same' conv over a batch-folded, 1-px-padded VMEM scratch.

    src_ref : (GH+2, W+2, C) bf16  rows of G whole images with a global 1-row pad
                                   top/bottom and a 1-col zero pad left/right.
    w_ref   : (9*C, Cout)    bf16  HWIO weights reshaped (ky, kx, ci) -> K.
    returns : (GH, W, Cout)  f32
    """
    ghp2, wp2, c = src_ref.shape
    gh, w = ghp2 - 2, wp2 - 2

    # Row masks: zero the vertical taps that would read across an image boundary
    # inside the batch-folded row axis (equivalent to per-image zero padding).
    r = lax.broadcasted_iota(jnp.int32, (gh, wp2, c), 0) % img_h
    top = jnp.where(r != 0, src_ref[0:gh], 0)                    # ky = 0 rows
    mid = src_ref[1:gh + 1]                                      # ky = 1 rows
    bot = jnp.where(r != img_h - 1, src_ref[2:gh + 2], 0)        # ky = 2 rows

    # im2col: 9 shifted taps concatenated along the lane/K axis -> one MXU matmul
    # with K = 9*C.  (kx slices are sublane-offset and cost a small relayout each;
    # acceptable at these widths.  TODO(synk): express the kx shift via pltpu.roll.)
    taps = [rows[:, kx:kx + w, :] for rows in (top, mid, bot) for kx in range(3)]
    xcol = jnp.concatenate(taps, axis=-1)                        # (GH, W, 9*C) bf16
    return lax.dot_general(xcol, w_ref[...],
                           (((2,), (0,)), ((), ())),
                           preferred_element_type=jnp.float32)


def _fill_padded(dst_ref, interior):
    """Write `interior` into dst_ref[1:-1, 1:-1, :]; zero ONLY the border ring."""
    ghp2, wp2, c = dst_ref.shape
    gh, w = ghp2 - 2, wp2 - 2
    z_row = jnp.zeros((1, wp2, c), dst_ref.dtype)
    z_col = jnp.zeros((ghp2, 1, c), dst_ref.dtype)
    dst_ref[0:1] = z_row
    dst_ref[gh + 1:gh + 2] = z_row
    dst_ref[:, 0:1, :] = z_col
    dst_ref[:, w + 1:w + 2, :] = z_col
    dst_ref[1:gh + 1, 1:w + 1, :] = interior


def _residual_block_kernel(x_ref, w1_ref, b1_ref, w2_ref, b2_ref,
                           wsk_ref, bsk_ref, out_ref, xpad_ref, hpad_ref,
                           *, img_h):
    # x_ref : (GH, W, Cin)  bf16   batch-folded rows of G whole images
    # w1    : (9*Cin, Cout) bf16   BN-scale-folded 3x3 weights (im2col layout)
    # w2    : (9*Cout, Cout) bf16
    # wsk   : (Cin, Cout)   bf16   BN-scale-folded 1x1 skip weights
    # b*    : (1, Cout)     f32    conv bias folded with BN shift
    # out   : (GH, W, Cout) f32
    x = x_ref[...]

    # Skip path first (keeps few f32 intermediates live simultaneously).
    skip = lax.dot_general(x, wsk_ref[...], (((2,), (0,)), ((), ())),
                           preferred_element_type=jnp.float32) + bsk_ref[0]

    # conv1 -> (folded) BN -> ReLU
    _fill_padded(xpad_ref, x)
    h1 = jnp.maximum(_conv3x3_im2col(xpad_ref, w1_ref, img_h) + b1_ref[0], 0.0)

    # conv2 -> (folded) BN -> ReLU   (h1 re-padded in bf16 VMEM scratch)
    _fill_padded(hpad_ref, h1.astype(jnp.bfloat16))
    h2 = jnp.maximum(_conv3x3_im2col(hpad_ref, w2_ref, img_h) + b2_ref[0], 0.0)

    out_ref[...] = (h2 + skip).astype(out_ref.dtype)


# ------------------------------- wrappers --------------------------------------

def residual_block_nhwc(x_nhwc, kp, images_per_step=None):
    """x_nhwc: (N, H, W, Cin) (any float dtype).  Returns (N, H, W, Cout) f32."""
    N, H, W, Cin = x_nhwc.shape
    Cout = kp["b1"].shape[-1]
    G = N if images_per_step is None else images_per_step
    assert N % G == 0, "images_per_step must divide the batch"
    GH = G * H

    x2 = x_nhwc.astype(jnp.bfloat16).reshape(N * H, W, Cin)      # free reshape

    kernel = functools.partial(_residual_block_kernel, img_h=H)

    def full2(shape):   # whole small array resident in VMEM every step
        return pl.BlockSpec(shape, lambda g: (0, 0))

    out = pl.pallas_call(
        kernel,
        out_shape=jax.ShapeDtypeStruct((N * H, W, Cout), jnp.float32),
        grid_spec=pltpu.PrefetchScalarGridSpec(
            num_scalar_prefetch=0,
            grid=(N // G,),                      # one image-group per step (toy: 1 step)
            in_specs=[
                pl.BlockSpec((GH, W, Cin), lambda g: (g, 0, 0)),
                full2((9 * Cin, Cout)),          # w1 (BN-scaled, im2col layout)
                full2((1, Cout)),                # b1
                full2((9 * Cout, Cout)),         # w2
                full2((1, Cout)),                # b2
                full2((Cin, Cout)),              # wsk
                full2((1, Cout)),                # bsk
            ],
            out_specs=pl.BlockSpec((GH, W, Cout), lambda g: (g, 0, 0)),
            scratch_shapes=[
                pltpu.VMEM((GH + 2, W + 2, Cin), jnp.bfloat16),   # padded input
                pltpu.VMEM((GH + 2, W + 2, Cout), jnp.bfloat16),  # padded h1
            ],
        ),
        compiler_params=pltpu.CompilerParams(
            dimension_semantics=("parallel",),
            vmem_limit_bytes=32 * 1024 * 1024,
        ),
    )(x2, kp["w1"], kp["b1"], kp["w2"], kp["b2"], kp["wsk"], kp["bsk"])

    return out.reshape(N, H, W, Cout)


def residual_block(x_nchw, kp, images_per_step=None):
    """PyTorch-layout entry: (N, Cin, H, W) -> (N, Cout, H, W).

    The NCHW<->NHWC transposes (and the bf16 cast, which fuses into them under
    jit) are the only extra HBM passes; NHWC models should call
    residual_block_nhwc directly to avoid them.
    """
    x = jnp.transpose(x_nchw, (0, 2, 3, 1))
    y = residual_block_nhwc(x, kp, images_per_step)
    return jnp.transpose(y, (0, 3, 1, 2))


# ----------------------------- parameter setup ---------------------------------

def _fold_bn(gamma, beta, mean, var, eps=1e-5):
    scale = gamma / jnp.sqrt(var + eps)
    shift = beta - mean * scale
    return scale, shift


def make_params(key, ch_in, ch_out):
    """Returns (raw f32 params for the reference, BN-folded bf16 kernel params)."""
    ks = jax.random.split(key, 18)

    def uni(k, shape, fan_in):
        bound = 1.0 / (fan_in ** 0.5)
        return jax.random.uniform(k, shape, jnp.float32, -bound, bound)

    def bn(k0, k1, k2, k3):
        gamma = 1.0 + 0.1 * jax.random.normal(k0, (ch_out,), jnp.float32)
        beta = 0.1 * jax.random.normal(k1, (ch_out,), jnp.float32)
        mean = 0.1 * jax.random.normal(k2, (ch_out,), jnp.float32)
        var = jnp.abs(1.0 + 0.1 * jax.random.normal(k3, (ch_out,), jnp.float32))
        return gamma, beta, mean, var

    raw = dict(
        w1=uni(ks[0], (3, 3, ch_in, ch_out), 9 * ch_in),      # HWIO
        b1=uni(ks[1], (ch_out,), 9 * ch_in),
        w2=uni(ks[2], (3, 3, ch_out, ch_out), 9 * ch_out),
        b2=uni(ks[3], (ch_out,), 9 * ch_out),
        wsk=uni(ks[4], (ch_in, ch_out), ch_in),
        bsk=uni(ks[5], (ch_out,), ch_in),
        bn1=bn(ks[6], ks[7], ks[8], ks[9]),
        bn2=bn(ks[10], ks[11], ks[12], ks[13]),
        bnsk=bn(ks[14], ks[15], ks[16], ks[17]),
    )

    sc1, sh1 = _fold_bn(*raw["bn1"])
    sc2, sh2 = _fold_bn(*raw["bn2"])
    scs, shs = _fold_bn(*raw["bnsk"])

    # Fold the BN scale into the conv weights (per output channel) and the conv
    # bias into the BN shift; reshape 3x3 weights to im2col layout (9*C, Cout).
    kp = dict(
        w1=(raw["w1"] * sc1).reshape(9 * ch_in, ch_out).astype(jnp.bfloat16),
        b1=(raw["b1"] * sc1 + sh1).reshape(1, ch_out),
        w2=(raw["w2"] * sc2).reshape(9 * ch_out, ch_out).astype(jnp.bfloat16),
        b2=(raw["b2"] * sc2 + sh2).reshape(1, ch_out),
        wsk=(raw["wsk"] * scs).astype(jnp.bfloat16),
        bsk=(raw["bsk"] * scs + shs).reshape(1, ch_out),
    )
    return raw, kp


# ----------------------------- pure-JAX reference -------------------------------

def _conv_ref(x_nhwc, w_hwio, b, padding):
    y = lax.conv_general_dilated(x_nhwc, w_hwio, (1, 1), padding,
                                 dimension_numbers=("NHWC", "HWIO", "NHWC"))
    return y + b


def _bn_ref(x, gamma, beta, mean, var, eps=1e-5):
    return (x - mean) / jnp.sqrt(var + eps) * gamma + beta


def reference_forward(x_nchw, raw):
    x = jnp.transpose(x_nchw, (0, 2, 3, 1))
    h = _conv_ref(x, raw["w1"], raw["b1"], "SAME")
    h = jnp.maximum(_bn_ref(h, *raw["bn1"]), 0.0)
    h = _conv_ref(h, raw["w2"], raw["b2"], "SAME")
    h = jnp.maximum(_bn_ref(h, *raw["bn2"]), 0.0)
    s = _conv_ref(x, raw["wsk"][None, None], raw["bsk"], "VALID")
    s = _bn_ref(s, *raw["bnsk"])
    return jnp.transpose(h + s, (0, 3, 1, 2))


# ------------------------------------ main --------------------------------------

if __name__ == "__main__":
    key = jax.random.PRNGKey(0)
    k_x, k_p = jax.random.split(key)

    N, CH_IN, CH_OUT, H, W = 2, 4, 8, 16, 16
    x = jax.random.normal(k_x, (N, CH_IN, H, W), jnp.float32)    # NCHW like PyTorch

    raw, kp = make_params(k_p, CH_IN, CH_OUT)

    fwd = jax.jit(lambda xx: residual_block(xx, kp))
    out = jax.block_until_ready(fwd(x))

    ref = reference_forward(x, raw)
    assert out.shape == (N, CH_OUT, H, W)
    # bf16 activations/weights (f32 accumulation) vs the f32 reference.
    assert jnp.allclose(out, ref, rtol=5e-2, atol=5e-2), (
        "mismatch vs reference, max abs err = "
        f"{jnp.max(jnp.abs(out - ref))}")
    print("KERNEL_OK")
</pallas_src>

<mosaic_0001>
module attributes {stable_mosaic.version = 11 : i64} {
  func.func @_residual_block_kernel(%arg0: i32, %arg1: memref<32x16x4xbf16, #tpu.memory_space<vmem>>, %arg2: memref<36x8xbf16, #tpu.memory_space<vmem>>, %arg3: memref<1x8xf32, #tpu.memory_space<vmem>>, %arg4: memref<72x8xbf16, #tpu.memory_space<vmem>>, %arg5: memref<1x8xf32, #tpu.memory_space<vmem>>, %arg6: memref<4x8xbf16, #tpu.memory_space<vmem>>, %arg7: memref<1x8xf32, #tpu.memory_space<vmem>>, %arg8: memref<32x16x8xf32, #tpu.memory_space<vmem>>, %arg9: memref<34x18x4xbf16, #tpu.memory_space<vmem>>, %arg10: memref<34x18x8xbf16, #tpu.memory_space<vmem>>) attributes {dimension_semantics = [#tpu.dimension_semantics<parallel>], iteration_bounds = array<i64: 1>, scalar_prefetch = 0 : i64, scratch_operands = 2 : i64, tpu.core_type = #tpu.core_type<tc>, window_params = [{transform_indices = @transform_0, window_bounds = array<i64: 32, 16, 4>}, {pipeline_mode = #tpu.pipeline_mode<synchronous>, transform_indices = @transform_1, window_bounds = array<i64: 36, 8>}, {pipeline_mode = #tpu.pipeline_mode<synchronous>, transform_indices = @transform_2, window_bounds = array<i64: 1, 8>}, {pipeline_mode = #tpu.pipeline_mode<synchronous>, transform_indices = @transform_3, window_bounds = array<i64: 72, 8>}, {pipeline_mode = #tpu.pipeline_mode<synchronous>, transform_indices = @transform_4, window_bounds = array<i64: 1, 8>}, {pipeline_mode = #tpu.pipeline_mode<synchronous>, transform_indices = @transform_5, window_bounds = array<i64: 4, 8>}, {pipeline_mode = #tpu.pipeline_mode<synchronous>, transform_indices = @transform_6, window_bounds = array<i64: 1, 8>}, {transform_indices = @transform_7, window_bounds = array<i64: 32, 16, 8>}]} {
    %c0 = arith.constant 0 : index
    %c0_0 = arith.constant 0 : index
    %c0_1 = arith.constant 0 : index
    %0 = vector.load %arg1[%c0, %c0_0, %c0_1] : memref<32x16x4xbf16, #tpu.memory_space<vmem>>, vector<32x16x4xbf16>
    %c0_2 = arith.constant 0 : index
    %c0_3 = arith.constant 0 : index
    %1 = vector.load %arg6[%c0_2, %c0_3] : memref<4x8xbf16, #tpu.memory_space<vmem>>, vector<4x8xbf16>
    %cst = arith.constant dense<0.000000e+00> : vector<32x16x8xf32>
    %2 = tpu.matmul %0, %1, %cst {dimension_numbers = #tpu.dot_dimension_numbers<[2], [0], [0, 1], [1], [0, 0, 0, 1, 1, 1], [], []>} : vector<32x16x4xbf16>, vector<4x8xbf16>, vector<32x16x8xf32> -> vector<32x16x8xf32>
    %c0_4 = arith.constant 0 : index
    %c0_5 = arith.constant 0 : index
    %3 = vector.load %arg7[%c0_4, %c0_5] : memref<1x8xf32, #tpu.memory_space<vmem>>, vector<1x8xf32>
    %4 = vector.shape_cast %3 : vector<1x8xf32> to vector<8xf32>
    %5 = vector.shape_cast %4 : vector<8xf32> to vector<1x1x8xf32>
    %6 = vector.broadcast %5 : vector<1x1x8xf32> to vector<32x16x8xf32>
    %7 = arith.addf %2, %6 : vector<32x16x8xf32>
    %cst_6 = arith.constant 0.000000e+00 : bf16
    %8 = vector.broadcast %cst_6 : bf16 to vector<1x18x4xbf16>
    %cst_7 = arith.constant 0.000000e+00 : bf16
    %9 = vector.broadcast %cst_7 : bf16 to vector<34x1x4xbf16>
    %c0_8 = arith.constant 0 : index
    %c0_9 = arith.constant 0 : index
    %c0_10 = arith.constant 0 : index
    %10 = vector.load %arg9[%c0_8, %c0_9, %c0_10] : memref<34x18x4xbf16, #tpu.memory_space<vmem>>, vector<1x18x4xbf16>
    tpu.vector_store %arg9[%c0_8, %c0_9, %c0_10], %8 {strides = array<i32>} : memref<34x18x4xbf16, #tpu.memory_space<vmem>>, vector<1x18x4xbf16>,
    %c33 = arith.constant 33 : index
    %c0_11 = arith.constant 0 : index
    %c0_12 = arith.constant 0 : index
    %11 = vector.load %arg9[%c33, %c0_11, %c0_12] : memref<34x18x4xbf16, #tpu.memory_space<vmem>>, vector<1x18x4xbf16>
    tpu.vector_store %arg9[%c33, %c0_11, %c0_12], %8 {strides = array<i32>} : memref<34x18x4xbf16, #tpu.memory_space<vmem>>, vector<1x18x4xbf16>,
    %c0_13 = arith.constant 0 : index
    %c0_14 = arith.constant 0 : index
    %c0_15 = arith.constant 0 : index
    %12 = vector.load %arg9[%c0_13, %c0_14, %c0_15] : memref<34x18x4xbf16, #tpu.memory_space<vmem>>, vector<34x1x4xbf16>
    tpu.vector_store %arg9[%c0_13, %c0_14, %c0_15], %9 {strides = array<i32>} : memref<34x18x4xbf16, #tpu.memory_space<vmem>>, vector<34x1x4xbf16>,
    %c0_16 = arith.constant 0 : index
    %c17 = arith.constant 17 : index
    %c0_17 = arith.constant 0 : index
    %13 = vector.load %arg9[%c0_16, %c17, %c0_17] : memref<34x18x4xbf16, #tpu.memory_space<vmem>>, vector<34x1x4xbf16>
    tpu.vector_store %arg9[%c0_16, %c17, %c0_17], %9 {strides = array<i32>} : memref<34x18x4xbf16, #tpu.memory_space<vmem>>, vector<34x1x4xbf16>,
    %c1 = arith.constant 1 : index
    %c1_18 = arith.constant 1 : index
    %c0_19 = arith.constant 0 : index
    %14 = vector.load %arg9[%c1, %c1_18, %c0_19] : memref<34x18x4xbf16, #tpu.memory_space<vmem>>, vector<32x16x4xbf16>
    tpu.vector_store %arg9[%c1, %c1_18, %c0_19], %0 {strides = array<i32>} : memref<34x18x4xbf16, #tpu.memory_space<vmem>>, vector<32x16x4xbf16>,
    %15 = tpu.iota {dimensions = array<i32: 0>} : vector<32x18x4xi32>
    %c16_i32 = arith.constant 16 : i32
    %c0_i32 = arith.constant 0 : i32
    %16 = arith.cmpi eq, %c16_i32, %c0_i32 : i32
    %c1_i32 = arith.constant 1 : i32
    %17 = arith.select %16, %c1_i32, %c16_i32 : i32
    %18 = vector.broadcast %17 : i32 to vector<32x18x4xi32>
    %19 = arith.remsi %15, %18 : vector<32x18x4xi32>
    %c0_i32_20 = arith.constant 0 : i32
    %20 = vector.broadcast %c0_i32_20 : i32 to vector<32x18x4xi32>
    %21 = arith.cmpi ne, %19, %20 : vector<32x18x4xi32>
    %c0_i32_21 = arith.constant 0 : i32
    %22 = vector.broadcast %c0_i32_21 : i32 to vector<32x18x4xi32>
    %23 = arith.cmpi slt, %19, %22 : vector<32x18x4xi32>
    %c0_i32_22 = arith.constant 0 : i32
    %24 = arith.cmpi slt, %17, %c0_i32_22 : i32
    %25 = vector.broadcast %24 : i1 to vector<32x18x4xi1>
    %26 = vector.broadcast %25 : vector<32x18x4xi1> to vector<32x18x4xi1>
    %27 = arith.xori %23, %26 : vector<32x18x4xi1>
    %28 = arith.andi %27, %21 : vector<32x18x4xi1>
    %29 = vector.broadcast %17 : i32 to vector<32x18x4xi32>
    %30 = arith.addi %19, %29 : vector<32x18x4xi32>
    %31 = arith.select %28, %30, %19 : vector<32x18x4xi1>, vector<32x18x4xi32>
    %c0_i32_23 = arith.constant 0 : i32
    %32 = vector.broadcast %c0_i32_23 : i32 to vector<32x18x4xi32>
    %33 = arith.cmpi ne, %31, %32 : vector<32x18x4xi32>
    %c0_24 = arith.constant 0 : index
    %c0_25 = arith.constant 0 : index
    %c0_26 = arith.constant 0 : index
    %34 = vector.load %arg9[%c0_24, %c0_25, %c0_26] : memref<34x18x4xbf16, #tpu.memory_space<vmem>>, vector<32x18x4xbf16>
    %c0_i32_27 = arith.constant 0 : i32
    %35 = arith.sitofp %c0_i32_27 : i32 to bf16
    %36 = vector.broadcast %35 : bf16 to vector<32x18x4xbf16>
    %37 = arith.select %33, %34, %36 : vector<32x18x4xi1>, vector<32x18x4xbf16>
    %c1_28 = arith.constant 1 : index
    %c0_29 = arith.constant 0 : index
    %c0_30 = arith.constant 0 : index
    %38 = vector.load %arg9[%c1_28, %c0_29, %c0_30] : memref<34x18x4xbf16, #tpu.memory_space<vmem>>, vector<32x18x4xbf16>
    %c15_i32 = arith.constant 15 : i32
    %39 = vector.broadcast %c15_i32 : i32 to vector<32x18x4xi32>
    %40 = arith.cmpi ne, %31, %39 : vector<32x18x4xi32>
    %c2 = arith.constant 2 : index
    %c0_31 = arith.constant 0 : index
    %c0_32 = arith.constant 0 : index
    %41 = vector.load %arg9[%c2, %c0_31, %c0_32] : memref<34x18x4xbf16, #tpu.memory_space<vmem>>, vector<32x18x4xbf16>
    %c0_i32_33 = arith.constant 0 : i32
    %42 = arith.sitofp %c0_i32_33 : i32 to bf16
    %43 = vector.broadcast %42 : bf16 to vector<32x18x4xbf16>
    %44 = arith.select %40, %41, %43 : vector<32x18x4xi1>, vector<32x18x4xbf16>
    %45 = vector.extract_strided_slice %37 {offsets = [0, 0, 0], sizes = [32, 16, 4], strides = [1, 1, 1]} : vector<32x18x4xbf16> to vector<32x16x4xbf16>
    %46 = vector.extract_strided_slice %37 {offsets = [0, 1, 0], sizes = [32, 16, 4], strides = [1, 1, 1]} : vector<32x18x4xbf16> to vector<32x16x4xbf16>
    %47 = vector.extract_strided_slice %37 {offsets = [0, 2, 0], sizes = [32, 16, 4], strides = [1, 1, 1]} : vector<32x18x4xbf16> to vector<32x16x4xbf16>
    %48 = vector.extract_strided_slice %38 {offsets = [0, 0, 0], sizes = [32, 16, 4], strides = [1, 1, 1]} : vector<32x18x4xbf16> to vector<32x16x4xbf16>
    %49 = vector.extract_strided_slice %38 {offsets = [0, 1, 0], sizes = [32, 16, 4], strides = [1, 1, 1]} : vector<32x18x4xbf16> to vector<32x16x4xbf16>
    %50 = vector.extract_strided_slice %38 {offsets = [0, 2, 0], sizes = [32, 16, 4], strides = [1, 1, 1]} : vector<32x18x4xbf16> to vector<32x16x4xbf16>
    %51 = vector.extract_strided_slice %44 {offsets = [0, 0, 0], sizes = [32, 16, 4], strides = [1, 1, 1]} : vector<32x18x4xbf16> to vector<32x16x4xbf16>
    %52 = vector.extract_strided_slice %44 {offsets = [0, 1, 0], sizes = [32, 16, 4], strides = [1, 1, 1]} : vector<32x18x4xbf16> to vector<32x16x4xbf16>
    %53 = vector.extract_strided_slice %44 {offsets = [0, 2, 0], sizes = [32, 16, 4], strides = [1, 1, 1]} : vector<32x18x4xbf16> to vector<32x16x4xbf16>
    %54 = tpu.concatenate %45, %46, %47, %48, %49, %50, %51, %52, %53 in 2 : vector<32x16x4xbf16>, vector<32x16x4xbf16>, vector<32x16x4xbf16>, vector<32x16x4xbf16>, vector<32x16x4xbf16>, vector<32x16x4xbf16>, vector<32x16x4xbf16>, vector<32x16x4xbf16>, vector<32x16x4xbf16> -> vector<32x16x36xbf16>
    %c0_34 = arith.constant 0 : index
    %c0_35 = arith.constant 0 : index
    %55 = vector.load %arg2[%c0_34, %c0_35] : memref<36x8xbf16, #tpu.memory_space<vmem>>, vector<36x8xbf16>
    %cst_36 = arith.constant dense<0.000000e+00> : vector<32x16x8xf32>
    %56 = tpu.matmul %54, %55, %cst_36 {dimension_numbers = #tpu.dot_dimension_numbers<[2], [0], [0, 1], [1], [0, 0, 0, 1, 1, 1], [], []>} : vector<32x16x36xbf16>, vector<36x8xbf16>, vector<32x16x8xf32> -> vector<32x16x8xf32>
    %c0_37 = arith.constant 0 : index
    %c0_38 = arith.constant 0 : index
    %57 = vector.load %arg3[%c0_37, %c0_38] : memref<1x8xf32, #tpu.memory_space<vmem>>, vector<1x8xf32>
    %58 = vector.shape_cast %57 : vector<1x8xf32> to vector<8xf32>
    %59 = vector.shape_cast %58 : vector<8xf32> to vector<1x1x8xf32>
    %60 = vector.broadcast %59 : vector<1x1x8xf32> to vector<32x16x8xf32>
    %61 = arith.addf %56, %60 : vector<32x16x8xf32>
    %cst_39 = arith.constant 0.000000e+00 : f32
    %62 = vector.broadcast %cst_39 : f32 to vector<32x16x8xf32>
    %63 = arith.maximumf %61, %62 : vector<32x16x8xf32>
    %64 = arith.truncf %63 : vector<32x16x8xf32> to vector<32x16x8xbf16>
    %cst_40 = arith.constant 0.000000e+00 : bf16
    %65 = vector.broadcast %cst_40 : bf16 to vector<1x18x8xbf16>
    %cst_41 = arith.constant 0.000000e+00 : bf16
    %66 = vector.broadcast %cst_41 : bf16 to vector<34x1x8xbf16>
    %c0_42 = arith.constant 0 : index
    %c0_43 = arith.constant 0 : index
    %c0_44 = arith.constant 0 : index
    %67 = vector.load %arg10[%c0_42, %c0_43, %c0_44] : memref<34x18x8xbf16, #tpu.memory_space<vmem>>, vector<1x18x8xbf16>
    tpu.vector_store %arg10[%c0_42, %c0_43, %c0_44], %65 {strides = array<i32>} : memref<34x18x8xbf16, #tpu.memory_space<vmem>>, vector<1x18x8xbf16>,
    %c33_45 = arith.constant 33 : index
    %c0_46 = arith.constant 0 : index
    %c0_47 = arith.constant 0 : index
    %68 = vector.load %arg10[%c33_45, %c0_46, %c0_47] : memref<34x18x8xbf16, #tpu.memory_space<vmem>>, vector<1x18x8xbf16>
    tpu.vector_store %arg10[%c33_45, %c0_46, %c0_47], %65 {strides = array<i32>} : memref<34x18x8xbf16, #tpu.memory_space<vmem>>, vector<1x18x8xbf16>,
    %c0_48 = arith.constant 0 : index
    %c0_49 = arith.constant 0 : index
    %c0_50 = arith.constant 0 : index
    %69 = vector.load %arg10[%c0_48, %c0_49, %c0_50] : memref<34x18x8xbf16, #tpu.memory_space<vmem>>, vector<34x1x8xbf16>
    tpu.vector_store %arg10[%c0_48, %c0_49, %c0_50], %66 {strides = array<i32>} : memref<34x18x8xbf16, #tpu.memory_space<vmem>>, vector<34x1x8xbf16>,
    %c0_51 = arith.constant 0 : index
    %c17_52 = arith.constant 17 : index
    %c0_53 = arith.constant 0 : index
    %70 = vector.load %arg10[%c0_51, %c17_52, %c0_53] : memref<34x18x8xbf16, #tpu.memory_space<vmem>>, vector<34x1x8xbf16>
    tpu.vector_store %arg10[%c0_51, %c17_52, %c0_53], %66 {strides = array<i32>} : memref<34x18x8xbf16, #tpu.memory_space<vmem>>, vector<34x1x8xbf16>,
    %c1_54 = arith.constant 1 : index
    %c1_55 = arith.constant 1 : index
    %c0_56 = arith.constant 0 : index
    %71 = vector.load %arg10[%c1_54, %c1_55, %c0_56] : memref<34x18x8xbf16, #tpu.memory_space<vmem>>, vector<32x16x8xbf16>
    tpu.vector_store %arg10[%c1_54, %c1_55, %c0_56], %64 {strides = array<i32>} : memref<34x18x8xbf16, #tpu.memory_space<vmem>>, vector<32x16x8xbf16>,
    %72 = tpu.iota {dimensions = array<i32: 0>} : vector<32x18x8xi32>
    %c16_i32_57 = arith.constant 16 : i32
    %c0_i32_58 = arith.constant 0 : i32
    %73 = arith.cmpi eq, %c16_i32_57, %c0_i32_58 : i32
    %c1_i32_59 = arith.constant 1 : i32
    %74 = arith.select %73, %c1_i32_59, %c16_i32_57 : i32
    %75 = vector.broadcast %74 : i32 to vector<32x18x8xi32>
    %76 = arith.remsi %72, %75 : vector<32x18x8xi32>
    %c0_i32_60 = arith.constant 0 : i32
    %77 = vector.broadcast %c0_i32_60 : i32 to vector<32x18x8xi32>
    %78 = arith.cmpi ne, %76, %77 : vector<32x18x8xi32>
    %c0_i32_61 = arith.constant 0 : i32
    %79 = vector.broadcast %c0_i32_61 : i32 to vector<32x18x8xi32>
    %80 = arith.cmpi slt, %76, %79 : vector<32x18x8xi32>
    %c0_i32_62 = arith.constant 0 : i32
    %81 = arith.cmpi slt, %74, %c0_i32_62 : i32
    %82 = vector.broadcast %81 : i1 to vector<32x18x8xi1>
    %83 = vector.broadcast %82 : vector<32x18x8xi1> to vector<32x18x8xi1>
    %84 = arith.xori %80, %83 : vector<32x18x8xi1>
    %85 = arith.andi %84, %78 : vector<32x18x8xi1>
    %86 = vector.broadcast %74 : i32 to vector<32x18x8xi32>
    %87 = arith.addi %76, %86 : vector<32x18x8xi32>
    %88 = arith.select %85, %87, %76 : vector<32x18x8xi1>, vector<32x18x8xi32>
    %c0_i32_63 = arith.constant 0 : i32
    %89 = vector.broadcast %c0_i32_63 : i32 to vector<32x18x8xi32>
    %90 = arith.cmpi ne, %88, %89 : vector<32x18x8xi32>
    %c0_64 = arith.constant 0 : index
    %c0_65 = arith.constant 0 : index
    %c0_66 = arith.constant 0 : index
    %91 = vector.load %arg10[%c0_64, %c0_65, %c0_66] : memref<34x18x8xbf16, #tpu.memory_space<vmem>>, vector<32x18x8xbf16>
    %c0_i32_67 = arith.constant 0 : i32
    %92 = arith.sitofp %c0_i32_67 : i32 to bf16
    %93 = vector.broadcast %92 : bf16 to vector<32x18x8xbf16>
    %94 = arith.select %90, %91, %93 : vector<32x18x8xi1>, vector<32x18x8xbf16>
    %c1_68 = arith.constant 1 : index
    %c0_69 = arith.constant 0 : index
    %c0_70 = arith.constant 0 : index
    %95 = vector.load %arg10[%c1_68, %c0_69, %c0_70] : memref<34x18x8xbf16, #tpu.memory_space<vmem>>, vector<32x18x8xbf16>
    %c15_i32_71 = arith.constant 15 : i32
    %96 = vector.broadcast %c15_i32_71 : i32 to vector<32x18x8xi32>
    %97 = arith.cmpi ne, %88, %96 : vector<32x18x8xi32>
    %c2_72 = arith.constant 2 : index
    %c0_73 = arith.constant 0 : index
    %c0_74 = arith.constant 0 : index
    %98 = vector.load %arg10[%c2_72, %c0_73, %c0_74] : memref<34x18x8xbf16, #tpu.memory_space<vmem>>, vector<32x18x8xbf16>
    %c0_i32_75 = arith.constant 0 : i32
    %99 = arith.sitofp %c0_i32_75 : i32 to bf16
    %100 = vector.broadcast %99 : bf16 to vector<32x18x8xbf16>
    %101 = arith.select %97, %98, %100 : vector<32x18x8xi1>, vector<32x18x8xbf16>
    %102 = vector.extract_strided_slice %94 {offsets = [0, 0, 0], sizes = [32, 16, 8], strides = [1, 1, 1]} : vector<32x18x8xbf16> to vector<32x16x8xbf16>
    %103 = vector.extract_strided_slice %94 {offsets = [0, 1, 0], sizes = [32, 16, 8], strides = [1, 1, 1]} : vector<32x18x8xbf16> to vector<32x16x8xbf16>
    %104 = vector.extract_strided_slice %94 {offsets = [0, 2, 0], sizes = [32, 16, 8], strides = [1, 1, 1]} : vector<32x18x8xbf16> to vector<32x16x8xbf16>
    %105 = vector.extract_strided_slice %95 {offsets = [0, 0, 0], sizes = [32, 16, 8], strides = [1, 1, 1]} : vector<32x18x8xbf16> to vector<32x16x8xbf16>
    %106 = vector.extract_strided_slice %95 {offsets = [0, 1, 0], sizes = [32, 16, 8], strides = [1, 1, 1]} : vector<32x18x8xbf16> to vector<32x16x8xbf16>
    %107 = vector.extract_strided_slice %95 {offsets = [0, 2, 0], sizes = [32, 16, 8], strides = [1, 1, 1]} : vector<32x18x8xbf16> to vector<32x16x8xbf16>
    %108 = vector.extract_strided_slice %101 {offsets = [0, 0, 0], sizes = [32, 16, 8], strides = [1, 1, 1]} : vector<32x18x8xbf16> to vector<32x16x8xbf16>
    %109 = vector.extract_strided_slice %101 {offsets = [0, 1, 0], sizes = [32, 16, 8], strides = [1, 1, 1]} : vector<32x18x8xbf16> to vector<32x16x8xbf16>
    %110 = vector.extract_strided_slice %101 {offsets = [0, 2, 0], sizes = [32, 16, 8], strides = [1, 1, 1]} : vector<32x18x8xbf16> to vector<32x16x8xbf16>
    %111 = tpu.concatenate %102, %103, %104, %105, %106, %107, %108, %109, %110 in 2 : vector<32x16x8xbf16>, vector<32x16x8xbf16>, vector<32x16x8xbf16>, vector<32x16x8xbf16>, vector<32x16x8xbf16>, vector<32x16x8xbf16>, vector<32x16x8xbf16>, vector<32x16x8xbf16>, vector<32x16x8xbf16> -> vector<32x16x72xbf16>
    %c0_76 = arith.constant 0 : index
    %c0_77 = arith.constant 0 : index
    %112 = vector.load %arg4[%c0_76, %c0_77] : memref<72x8xbf16, #tpu.memory_space<vmem>>, vector<72x8xbf16>
    %cst_78 = arith.constant dense<0.000000e+00> : vector<32x16x8xf32>
    %113 = tpu.matmul %111, %112, %cst_78 {dimension_numbers = #tpu.dot_dimension_numbers<[2], [0], [0, 1], [1], [0, 0, 0, 1, 1, 1], [], []>} : vector<32x16x72xbf16>, vector<72x8xbf16>, vector<32x16x8xf32> -> vector<32x16x8xf32>
    %c0_79 = arith.constant 0 : index
    %c0_80 = arith.constant 0 : index
    %114 = vector.load %arg5[%c0_79, %c0_80] : memref<1x8xf32, #tpu.memory_space<vmem>>, vector<1x8xf32>
    %115 = vector.shape_cast %114 : vector<1x8xf32> to vector<8xf32>
    %116 = vector.shape_cast %115 : vector<8xf32> to vector<1x1x8xf32>
    %117 = vector.broadcast %116 : vector<1x1x8xf32> to vector<32x16x8xf32>
    %118 = arith.addf %113, %117 : vector<32x16x8xf32>
    %cst_81 = arith.constant 0.000000e+00 : f32
    %119 = vector.broadcast %cst_81 : f32 to vector<32x16x8xf32>
    %120 = arith.maximumf %118, %119 : vector<32x16x8xf32>
    %121 = arith.addf %120, %7 : vector<32x16x8xf32>
    %c0_82 = arith.constant 0 : index
    %c0_83 = arith.constant 0 : index
    %c0_84 = arith.constant 0 : index
    %122 = vector.load %arg8[%c0_82, %c0_83, %c0_84] : memref<32x16x8xf32, #tpu.memory_space<vmem>>, vector<32x16x8xf32>
    tpu.vector_store %arg8[%c0_82, %c0_83, %c0_84], %121 {strides = array<i32>} : memref<32x16x8xf32, #tpu.memory_space<vmem>>, vector<32x16x8xf32>,
    return
  }
  func.func @transform_0(%arg0: i32) -> (i32, i32, i32) {
    %c0_i32 = arith.constant 0 : i32
    %c0_i32_0 = arith.constant 0 : i32
    %c0_i32_1 = arith.constant 0 : i32
    return %arg0, %c0_i32, %c0_i32_0 : i32, i32, i32
  }
  func.func @transform_1(%arg0: i32) -> (i32, i32) {
    %c0_i32 = arith.constant 0 : i32
    %c0_i32_0 = arith.constant 0 : i32
    %c0_i32_1 = arith.constant 0 : i32
    return %c0_i32, %c0_i32_0 : i32, i32
  }
  func.func @transform_2(%arg0: i32) -> (i32, i32) {
    %c0_i32 = arith.constant 0 : i32
    %c0_i32_0 = arith.constant 0 : i32
    %c0_i32_1 = arith.constant 0 : i32
    return %c0_i32, %c0_i32_0 : i32, i32
  }
  func.func @transform_3(%arg0: i32) -> (i32, i32) {
    %c0_i32 = arith.constant 0 : i32
    %c0_i32_0 = arith.constant 0 : i32
    %c0_i32_1 = arith.constant 0 : i32
    return %c0_i32, %c0_i32_0 : i32, i32
  }
  func.func @transform_4(%arg0: i32) -> (i32, i32) {
    %c0_i32 = arith.constant 0 : i32
    %c0_i32_0 = arith.constant 0 : i32
    %c0_i32_1 = arith.constant 0 : i32
    return %c0_i32, %c0_i32_0 : i32, i32
  }
  func.func @transform_5(%arg0: i32) -> (i32, i32) {
    %c0_i32 = arith.constant 0 : i32
    %c0_i32_0 = arith.constant 0 : i32
    %c0_i32_1 = arith.constant 0 : i32
    return %c0_i32, %c0_i32_0 : i32, i32
  }
  func.func @transform_6(%arg0: i32) -> (i32, i32) {
    %c0_i32 = arith.constant 0 : i32
    %c0_i32_0 = arith.constant 0 : i32
    %c0_i32_1 = arith.constant 0 : i32
    return %c0_i32, %c0_i32_0 : i32, i32
  }
  func.func @transform_7(%arg0: i32) -> (i32, i32, i32) {
    %c0_i32 = arith.constant 0 : i32
    %c0_i32_0 = arith.constant 0 : i32
    %c0_i32_1 = arith.constant 0 : i32
    return %arg0, %c0_i32, %c0_i32_0 : i32, i32, i32
  }
}

</mosaic_0001>

<llo_original>
// kernel: _lambda_.1
$region0: #{_lambda_.1}
  #allocation0 [shape = 'u32[]', space=smem, size = 0x4, offset = 0x4, fixed_abs, tag = 'smem constant byte address 0x4 - core index']
  #allocation1 [shape = 'u32[144,128]{1,0:T(1,128)}', space=vmem, size = 0x12000, scoped, tag = 'internal scratch']
  #allocation2 [shape = 'bf16[34,18,4]{2,1,0:T(8,128)(2,1)}', space=vmem, size = 0x33000, scoped, tag = 'scratch operand']
  #allocation3 [shape = 'bf16[34,18,8]{2,1,0:T(8,128)(2,1)}', space=vmem, size = 0x33000, scoped, tag = 'scratch operand']
  %s0 = inlined_call_operand.vmem [shape: bf16[32,16,4], index: 0, kind: input, shape index: {}]
  %s1 = inlined_call_operand.vmem [shape: bf16[36,8], index: 1, kind: input, shape index: {}]
  %s2 = inlined_call_operand.vmem [shape: f32[1,8], index: 2, kind: input, shape index: {}]
  %s3 = inlined_call_operand.vmem [shape: bf16[72,8], index: 3, kind: input, shape index: {}]
  %s4 = inlined_call_operand.vmem [shape: f32[1,8], index: 4, kind: input, shape index: {}]
  %s5 = inlined_call_operand.vmem [shape: bf16[4,8], index: 5, kind: input, shape index: {}]
  %s6 = inlined_call_operand.vmem [shape: f32[1,8], index: 6, kind: input, shape index: {}]
  %s7 = inlined_call_operand.vmem [shape: f32[32,16,8], index: 7, kind: output, shape index: {}]
  %s8 = sld [smem:[#allocation0]]
  $region38: #{_lambda_.1} parent=0
    _
  %s10 = ssub.s32 1, %s8
  %s11 = scalar_select 0, %s10, %s8
  // Predicated region
  $region2: #{_lambda_.1} parent=0 // pred_check
    _
  $region3: #{_lambda_.1} parent=0 // pred_check_branch
    %13 = sbr.rel (0) target = $region5
  $region4: #{_lambda_.1} parent=0 // pred_region
    _
  $region5: #{_lambda_.1} parent=0 // pred_fallthru
    _
  // Predicated region
  $region6: #{_lambda_.1} parent=0 // pred_check
    _
  $region7: #{_lambda_.1} parent=0 // pred_check_branch
    %15 = sbr.rel (0) target = $region9
  $region8: #{_lambda_.1} parent=0 // pred_region
    _
  $region9: #{_lambda_.1} parent=0 // pred_fallthru
    _
  // Predicated region
  $region10: #{_lambda_.1} parent=0 // pred_check
    _
  $region11: #{_lambda_.1} parent=0 // pred_check_branch
    %17 = sbr.rel (0) target = $region13
  $region12: #{_lambda_.1} parent=0 // pred_region
    _
  $region13: #{_lambda_.1} parent=0 // pred_fallthru
    _
  // Predicated region
  $region14: #{_lambda_.1} parent=0 // pred_check
    _
  $region15: #{_lambda_.1} parent=0 // pred_check_branch
    %19 = sbr.rel (0) target = $region17
  $region16: #{_lambda_.1} parent=0 // pred_region
    _
  $region17: #{_lambda_.1} parent=0 // pred_fallthru
    _
  // Predicated region
  $region18: #{_lambda_.1} parent=0 // pred_check
    _
  $region19: #{_lambda_.1} parent=0 // pred_check_branch
    %21 = sbr.rel (0) target = $region21
  $region20: #{_lambda_.1} parent=0 // pred_region
    _
  $region21: #{_lambda_.1} parent=0 // pred_fallthru
    _
  // Predicated region
  $region22: #{_lambda_.1} parent=0 // pred_check
    _
  $region23: #{_lambda_.1} parent=0 // pred_check_branch
    %23 = sbr.rel (0) target = $region25
  $region24: #{_lambda_.1} parent=0 // pred_region
    _
  $region25: #{_lambda_.1} parent=0 // pred_fallthru
    _
  // Predicated region
  $region26: #{_lambda_.1} parent=0 // pred_check
    _
  $region27: #{_lambda_.1} parent=0 // pred_check_branch
    %25 = sbr.rel (0) target = $region29
  $region28: #{_lambda_.1} parent=0 // pred_region
    _
  $region29: #{_lambda_.1} parent=0 // pred_fallthru
    _
  %v27 = vld [vmem:[%s0] sm:$0xf]
  %v28 = vld [vmem:[%s0 + $0x4] sm:$0xf]
  %v29 = vld [vmem:[%s0 + $0x8] sm:$0xf]
  %v30 = vld [vmem:[%s0 + $0xc] sm:$0xf]
  %v31 = vld [vmem:[%s0 + $0x10] sm:$0xf]
  %v32 = vld [vmem:[%s0 + $0x14] sm:$0xf]
  %v33 = vld [vmem:[%s0 + $0x18] sm:$0xf]
  %v34 = vld [vmem:[%s0 + $0x1c] sm:$0xf]
  %v35 = vld [vmem:[%s0 + $0x20] sm:$0xf]
  %v36 = vld [vmem:[%s0 + $0x24] sm:$0xf]
  %v37 = vld [vmem:[%s0 + $0x28] sm:$0xf]
  %v38 = vld [vmem:[%s0 + $0x2c] sm:$0xf]
  %v39 = vld [vmem:[%s0 + $0x30] sm:$0xf]
  %v40 = vld [vmem:[%s0 + $0x34] sm:$0xf]
  %v41 = vld [vmem:[%s0 + $0x38] sm:$0xf]
  %v42 = vld [vmem:[%s0 + $0x3c] sm:$0xf]
  %v43 = vld [vmem:[%s0 + $0x40] sm:$0xf]
  %v44 = vld [vmem:[%s0 + $0x44] sm:$0xf]
  %v45 = vld [vmem:[%s0 + $0x48] sm:$0xf]
  %v46 = vld [vmem:[%s0 + $0x4c] sm:$0xf]
  %v47 = vld [vmem:[%s0 + $0x50] sm:$0xf]
  %v48 = vld [vmem:[%s0 + $0x54] sm:$0xf]
  %v49 = vld [vmem:[%s0 + $0x58] sm:$0xf]
  %v50 = vld [vmem:[%s0 + $0x5c] sm:$0xf]
  %v51 = vld [vmem:[%s0 + $0x60] sm:$0xf]
  %v52 = vld [vmem:[%s0 + $0x64] sm:$0xf]
  %v53 = vld [vmem:[%s0 + $0x68] sm:$0xf]
  %v54 = vld [vmem:[%s0 + $0x6c] sm:$0xf]
  %v55 = vld [vmem:[%s0 + $0x70] sm:$0xf]
  %v56 = vld [vmem:[%s0 + $0x74] sm:$0xf]
  %v57 = vld [vmem:[%s0 + $0x78] sm:$0xf]
  %v58 = vld [vmem:[%s0 + $0x7c] sm:$0xf]
  %v59 = vld [vmem:[%s0 + $0x80] sm:$0xf]
  %v60 = vld [vmem:[%s0 + $0x84] sm:$0xf]
  %v61 = vld [vmem:[%s0 + $0x88] sm:$0xf]
  %v62 = vld [vmem:[%s0 + $0x8c] sm:$0xf]
  %v63 = vld [vmem:[%s0 + $0x90] sm:$0xf]
  %v64 = vld [vmem:[%s0 + $0x94] sm:$0xf]
  %v65 = vld [vmem:[%s0 + $0x98] sm:$0xf]
  %v66 = vld [vmem:[%s0 + $0x9c] sm:$0xf]
  %v67 = vld [vmem:[%s0 + $0xa0] sm:$0xf]
  %v68 = vld [vmem:[%s0 + $0xa4] sm:$0xf]
  %v69 = vld [vmem:[%s0 + $0xa8] sm:$0xf]
  %v70 = vld [vmem:[%s0 + $0xac] sm:$0xf]
  %v71 = vld [vmem:[%s0 + $0xb0] sm:$0xf]
  %v72 = vld [vmem:[%s0 + $0xb4] sm:$0xf]
  %v73 = vld [vmem:[%s0 + $0xb8] sm:$0xf]
  %v74 = vld [vmem:[%s0 + $0xbc] sm:$0xf]
  %v75 = vld [vmem:[%s0 + $0xc0] sm:$0xf]
  %v76 = vld [vmem:[%s0 + $0xc4] sm:$0xf]
  %v77 = vld [vmem:[%s0 + $0xc8] sm:$0xf]
  %v78 = vld [vmem:[%s0 + $0xcc] sm:$0xf]
  %v79 = vld [vmem:[%s0 + $0xd0] sm:$0xf]
  %v80 = vld [vmem:[%s0 + $0xd4] sm:$0xf]
  %v81 = vld [vmem:[%s0 + $0xd8] sm:$0xf]
  %v82 = vld [vmem:[%s0 + $0xdc] sm:$0xf]
  %v83 = vld [vmem:[%s0 + $0xe0] sm:$0xf]
  %v84 = vld [vmem:[%s0 + $0xe4] sm:$0xf]
  %v85 = vld [vmem:[%s0 + $0xe8] sm:$0xf]
  %v86 = vld [vmem:[%s0 + $0xec] sm:$0xf]
  %v87 = vld [vmem:[%s0 + $0xf0] sm:$0xf]
  %v88 = vld [vmem:[%s0 + $0xf4] sm:$0xf]
  %v89 = vld [vmem:[%s0 + $0xf8] sm:$0xf]
  %v90 = vld [vmem:[%s0 + $0xfc] sm:$0xf]
  %v91 = vld [vmem:[%s5] sm:$0x3]
  %v92 = vld [vmem:[%s6] sm:$0x1]
  %v94 = vlaneseq
  %v95 = vshrl.u32 %v94, 7
  %v96 = vsub.s32 0, %v95
  %v97 = vrot.slane %v92, %v96
  %v163 = vunpack.c.l.b16 %v27
  %v164 = vunpack.c.l.b16 %v28
  %v165 = vunpack.c.l.b16 %v29
  %v166 = vunpack.c.l.b16 %v30
  %v167 = vunpack.c.l.b16 %v31
  %v168 = vunpack.c.l.b16 %v32
  %v169 = vunpack.c.l.b16 %v33
  %v170 = vunpack.c.l.b16 %v34
  %v171 = vunpack.c.l.b16 %v35
  %v172 = vunpack.c.l.b16 %v36
  %v173 = vunpack.c.l.b16 %v37
  %v174 = vunpack.c.l.b16 %v38
  %v175 = vunpack.c.l.b16 %v39
  %v176 = vunpack.c.l.b16 %v40
  %v177 = vunpack.c.l.b16 %v41
  %v178 = vunpack.c.l.b16 %v42
  %v179 = vunpack.c.l.b16 %v43
  %v180 = vunpack.c.l.b16 %v44
  %v181 = vunpack.c.l.b16 %v45
  %v182 = vunpack.c.l.b16 %v46
  %v183 = vunpack.c.l.b16 %v47
  %v184 = vunpack.c.l.b16 %v48
  %v185 = vunpack.c.l.b16 %v49
  %v186 = vunpack.c.l.b16 %v50
  %v187 = vunpack.c.l.b16 %v51
  %v188 = vunpack.c.l.b16 %v52
  %v189 = vunpack.c.l.b16 %v53
  %v190 = vunpack.c.l.b16 %v54
  %v191 = vunpack.c.l.b16 %v55
  %v192 = vunpack.c.l.b16 %v56
  %v193 = vunpack.c.l.b16 %v57
  %v194 = vunpack.c.l.b16 %v58
  %v195 = vunpack.c.l.b16 %v59
  %v196 = vunpack.c.l.b16 %v60
  %v197 = vunpack.c.l.b16 %v61
  %v198 = vunpack.c.l.b16 %v62
  %v199 = vunpack.c.l.b16 %v63
  %v200 = vunpack.c.l.b16 %v64
  %v201 = vunpack.c.l.b16 %v65
  %v202 = vunpack.c.l.b16 %v66
  %v203 = vunpack.c.l.b16 %v67
  %v204 = vunpack.c.l.b16 %v68
  %v205 = vunpack.c.l.b16 %v69
  %v206 = vunpack.c.l.b16 %v70
  %v207 = vunpack.c.l.b16 %v71
  %v208 = vunpack.c.l.b16 %v72
  %v209 = vunpack.c.l.b16 %v73
  %v210 = vunpack.c.l.b16 %v74
  %v211 = vunpack.c.l.b16 %v75
  %v212 = vunpack.c.l.b16 %v76
  %v213 = vunpack.c.l.b16 %v77
  %v214 = vunpack.c.l.b16 %v78
  %v215 = vunpack.c.l.b16 %v79
  %v216 = vunpack.c.l.b16 %v80
  %v217 = vunpack.c.l.b16 %v81
  %v218 = vunpack.c.l.b16 %v82
  %v219 = vunpack.c.l.b16 %v83
  %v220 = vunpack.c.l.b16 %v84
  %v221 = vunpack.c.l.b16 %v85
  %v222 = vunpack.c.l.b16 %v86
  %v223 = vunpack.c.l.b16 %v87
  %v224 = vunpack.c.l.b16 %v88
  %v225 = vunpack.c.l.b16 %v89
  %v226 = vunpack.c.l.b16 %v90
  %v227 = vpack.c.b16 %v164, %v163
  %v228 = vpack.c.b16 %v166, %v165
  %v229 = vpack.c.b16 %v168, %v167
  %v230 = vpack.c.b16 %v170, %v169
  %v231 = vpack.c.b16 %v172, %v171
  %v232 = vpack.c.b16 %v174, %v173
  %v233 = vpack.c.b16 %v176, %v175
  %v234 = vpack.c.b16 %v178, %v177
  %v235 = vpack.c.b16 %v180, %v179
  %v236 = vpack.c.b16 %v182, %v181
  %v237 = vpack.c.b16 %v184, %v183
  %v238 = vpack.c.b16 %v186, %v185
  %v239 = vpack.c.b16 %v188, %v187
  %v240 = vpack.c.b16 %v190, %v189
  %v241 = vpack.c.b16 %v192, %v191
  %v242 = vpack.c.b16 %v194, %v193
  %v243 = vpack.c.b16 %v196, %v195
  %v244 = vpack.c.b16 %v198, %v197
  %v245 = vpack.c.b16 %v200, %v199
  %v246 = vpack.c.b16 %v202, %v201
  %v247 = vpack.c.b16 %v204, %v203
  %v248 = vpack.c.b16 %v206, %v205
  %v249 = vpack.c.b16 %v208, %v207
  %v250 = vpack.c.b16 %v210, %v209
  %v251 = vpack.c.b16 %v212, %v211
  %v252 = vpack.c.b16 %v214, %v213
  %v253 = vpack.c.b16 %v216, %v215
  %v254 = vpack.c.b16 %v218, %v217
  %v255 = vpack.c.b16 %v220, %v219
  %v256 = vpack.c.b16 %v222, %v221
  %v257 = vpack.c.b16 %v224, %v223
  %v258 = vpack.c.b16 %v226, %v225
  %vm259 = vcmask 31744
  %v261 = vsel %vm259, %v227, 0
  %v264 = vsel %vm259, %v228, 0
  %v267 = vsel %vm259, %v229, 0
  %v270 = vsel %vm259, %v230, 0
  %v273 = vsel %vm259, %v231, 0
  %v276 = vsel %vm259, %v232, 0
  %v279 = vsel %vm259, %v233, 0
  %v282 = vsel %vm259, %v234, 0
  %v285 = vsel %vm259, %v235, 0
  %v288 = vsel %vm259, %v236, 0
  %v291 = vsel %vm259, %v237, 0
  %v294 = vsel %vm259, %v238, 0
  %v297 = vsel %vm259, %v239, 0
  %v300 = vsel %vm259, %v240, 0
  %v303 = vsel %vm259, %v241, 0
  %v306 = vsel %vm259, %v242, 0
  %v309 = vsel %vm259, %v243, 0
  %v312 = vsel %vm259, %v244, 0
  %v315 = vsel %vm259, %v245, 0
  %v318 = vsel %vm259, %v246, 0
  %v321 = vsel %vm259, %v247, 0
  %v324 = vsel %vm259, %v248, 0
  %v327 = vsel %vm259, %v249, 0
  %v330 = vsel %vm259, %v250, 0
  %v333 = vsel %vm259, %v251, 0
  %v336 = vsel %vm259, %v252, 0
  %v339 = vsel %vm259, %v253, 0
  %v342 = vsel %vm259, %v254, 0
  %v345 = vsel %vm259, %v255, 0
  %v348 = vsel %vm259, %v256, 0
  %v351 = vsel %vm259, %v257, 0
  %v354 = vsel %vm259, %v258, 0
  %vm356 = vcmask 1041408
  %v358 = vsel %vm356, %v91, 0
  %360 = vmatprep.subr.bf16.mxu0 0
  %361 = vmatpush1.bf16.msra.mxu0 %v358
  %362 = vmatprep.subr.bf16.mxu0 0
  %363 = vmatpush1.bf16.msra.mxu0 0
  %364 = vmatprep.subr.bf16.mxu0 0
  %365 = vmatpush1.bf16.msra.mxu0 0
  %366 = vmatprep.subr.bf16.mxu0 0
  %367 = vmatpush1.bf16.msra.mxu0 0
  %368 = vmatprep.subr.bf16.mxu0 0
  %369 = vmatpush1.bf16.msra.mxu0 0
  %370 = vmatprep.subr.bf16.mxu0 0
  %371 = vmatpush1.bf16.msra.mxu0 0
  %372 = vmatprep.subr.bf16.mxu0 0
  %373 = vmatpush1.bf16.msra.mxu0 0
  %374 = vmatprep.subr.bf16.mxu0 0
  %375 = vmatpush1.bf16.msra.mxu0 0
  %376 = vmatprep.subr.bf16.mxu0 0
  %377 = vmatpush1.bf16.msra.mxu0 0
  %378 = vmatprep.subr.bf16.mxu0 0
  %379 = vmatpush1.bf16.msra.mxu0 0
  %380 = vmatprep.subr.bf16.mxu0 0
  %381 = vmatpush1.bf16.msra.mxu0 0
  %382 = vmatprep.subr.bf16.mxu0 0
  %383 = vmatpush1.bf16.msra.mxu0 0
  %384 = vmatprep.subr.bf16.mxu0 0
  %385 = vmatpush1.bf16.msra.mxu0 0
  %386 = vmatprep.subr.bf16.mxu0 0
  %387 = vmatpush1.bf16.msra.mxu0 0
  %388 = vmatprep.subr.bf16.mxu0 0
  %389 = vmatpush1.bf16.msra.mxu0 0
  %390 = vmatprep.subr.bf16.mxu0 0
  %391 = vmatpush1.bf16.msra.mxu0 0
  %392 = vmatprep.mubr.bf16.mxu0 0
  %393 = vmatmul.mubr.bf16.gmra.mrb[0].mxu0 %v261
  %v394 = vpop.f32.mrb[0].mxu0
  %v395 = vadd.f32 %v97, %v394
  %v396 = vpop.f32.mrb[0].mxu0
  %v397 = vpop.f32.mrb[0].mxu0
  %v398 = vadd.f32 %v97, %v397
  %v399 = vpop.f32.mrb[0].mxu0
  %400 = vmatprep.mubr.bf16.mxu0 0
  %401 = vmatmul.mubr.bf16.gmra.mrb[0].mxu0 %v264
  %v402 = vpop.f32.mrb[0].mxu0
  %v403 = vadd.f32 %v97, %v402
  %v404 = vpop.f32.mrb[0].mxu0
  %v405 = vpop.f32.mrb[0].mxu0
  %v406 = vadd.f32 %v97, %v405
  %v407 = vpop.f32.mrb[0].mxu0
  %408 = vmatprep.mubr.bf16.mxu0 0
  %409 = vmatmul.mubr.bf16.gmra.mrb[0].mxu0 %v267
  %v410 = vpop.f32.mrb[0].mxu0
  %v411 = vadd.f32 %v97, %v410
  %v412 = vpop.f32.mrb[0].mxu0
  %v413 = vpop.f32.mrb[0].mxu0
  %v414 = vadd.f32 %v97, %v413
  %v415 = vpop.f32.mrb[0].mxu0
  %416 = vmatprep.mubr.bf16.mxu0 0
  %417 = vmatmul.mubr.bf16.gmra.mrb[0].mxu0 %v270
  %v418 = vpop.f32.mrb[0].mxu0
  %v419 = vadd.f32 %v97, %v418
  %v420 = vpop.f32.mrb[0].mxu0
  %v421 = vpop.f32.mrb[0].mxu0
  %v422 = vadd.f32 %v97, %v421
  %v423 = vpop.f32.mrb[0].mxu0
  %424 = vmatprep.mubr.bf16.mxu0 0
  %425 = vmatmul.mubr.bf16.gmra.mrb[0].mxu0 %v273
  %v426 = vpop.f32.mrb[0].mxu0
  %v427 = vadd.f32 %v97, %v426
  %v428 = vpop.f32.mrb[0].mxu0
  %v429 = vpop.f32.mrb[0].mxu0
  %v430 = vadd.f32 %v97, %v429
  %v431 = vpop.f32.mrb[0].mxu0
  %432 = vmatprep.mubr.bf16.mxu0 0
  %433 = vmatmul.mubr.bf16.gmra.mrb[0].mxu0 %v276
  %v434 = vpop.f32.mrb[0].mxu0
  %v435 = vadd.f32 %v97, %v434
  %v436 = vpop.f32.mrb[0].mxu0
  %v437 = vpop.f32.mrb[0].mxu0
  %v438 = vadd.f32 %v97, %v437
  %v439 = vpop.f32.mrb[0].mxu0
  %440 = vmatprep.mubr.bf16.mxu0 0
  %441 = vmatmul.mubr.bf16.gmra.mrb[0].mxu0 %v279
  %v442 = vpop.f32.mrb[0].mxu0
  %v443 = vadd.f32 %v97, %v442
  %v444 = vpop.f32.mrb[0].mxu0
  %v445 = vpop.f32.mrb[0].mxu0
  %v446 = vadd.f32 %v97, %v445
  %v447 = vpop.f32.mrb[0].mxu0
  %448 = vmatprep.mubr.bf16.mxu0 0
  %449 = vmatmul.mubr.bf16.gmra.mrb[0].mxu0 %v282
  %v450 = vpop.f32.mrb[0].mxu0
  %v451 = vadd.f32 %v97, %v450
  %v452 = vpop.f32.mrb[0].mxu0
  %v453 = vpop.f32.mrb[0].mxu0
  %v454 = vadd.f32 %v97, %v453
  %v455 = vpop.f32.mrb[0].mxu0
  %456 = vmatprep.mubr.bf16.mxu0 0
  %457 = vmatmul.mubr.bf16.gmra.mrb[0].mxu0 %v285
  %v458 = vpop.f32.mrb[0].mxu0
  %v459 = vadd.f32 %v97, %v458
  %v460 = vpop.f32.mrb[0].mxu0
  %v461 = vpop.f32.mrb[0].mxu0
  %v462 = vadd.f32 %v97, %v461
  %v463 = vpop.f32.mrb[0].mxu0
  %464 = vmatprep.mubr.bf16.mxu0 0
  %465 = vmatmul.mubr.bf16.gmra.mrb[0].mxu0 %v288
  %v466 = vpop.f32.mrb[0].mxu0
  %v467 = vadd.f32 %v97, %v466
  %v468 = vpop.f32.mrb[0].mxu0
  %v469 = vpop.f32.mrb[0].mxu0
  %v470 = vadd.f32 %v97, %v469
  %v471 = vpop.f32.mrb[0].mxu0
  %472 = vmatprep.mubr.bf16.mxu0 0
  %473 = vmatmul.mubr.bf16.gmra.mrb[0].mxu0 %v291
  %v474 = vpop.f32.mrb[0].mxu0
  %v475 = vadd.f32 %v97, %v474
  %v476 = vpop.f32.mrb[0].mxu0
  %v477 = vpop.f32.mrb[0].mxu0
  %v478 = vadd.f32 %v97, %v477
  %v479 = vpop.f32.mrb[0].mxu0
  %480 = vmatprep.mubr.bf16.mxu0 0
  %481 = vmatmul.mubr.bf16.gmra.mrb[0].mxu0 %v294
  %v482 = vpop.f32.mrb[0].mxu0
  %v483 = vadd.f32 %v97, %v482
  %v484 = vpop.f32.mrb[0].mxu0
  %v485 = vpop.f32.mrb[0].mxu0
  %v486 = vadd.f32 %v97, %v485
  %v487 = vpop.f32.mrb[0].mxu0
  %488 = vmatprep.mubr.bf16.mxu0 0
  %489 = vmatmul.mubr.bf16.gmra.mrb[0].mxu0 %v297
  %v490 = vpop.f32.mrb[0].mxu0
  %v491 = vadd.f32 %v97, %v490
  %v492 = vpop.f32.mrb[0].mxu0
  %v493 = vpop.f32.mrb[0].mxu0
  %v494 = vadd.f32 %v97, %v493
  %v495 = vpop.f32.mrb[0].mxu0
  %496 = vmatprep.mubr.bf16.mxu0 0
  %497 = vmatmul.mubr.bf16.gmra.mrb[0].mxu0 %v300
  %v498 = vpop.f32.mrb[0].mxu0
  %v499 = vadd.f32 %v97, %v498
  %v500 = vpop.f32.mrb[0].mxu0
  %v501 = vpop.f32.mrb[0].mxu0
  %v502 = vadd.f32 %v97, %v501
  %v503 = vpop.f32.mrb[0].mxu0
  %504 = vmatprep.mubr.bf16.mxu0 0
  %505 = vmatmul.mubr.bf16.gmra.mrb[0].mxu0 %v303
  %v506 = vpop.f32.mrb[0].mxu0
  %v507 = vadd.f32 %v97, %v506
  %v508 = vpop.f32.mrb[0].mxu0
  %v509 = vpop.f32.mrb[0].mxu0
  %v510 = vadd.f32 %v97, %v509
  %v511 = vpop.f32.mrb[0].mxu0
  %512 = vmatprep.mubr.bf16.mxu0 0
  %513 = vmatmul.mubr.bf16.gmra.mrb[0].mxu0 %v306
  %v514 = vpop.f32.mrb[0].mxu0
  %v515 = vadd.f32 %v97, %v514
  %v516 = vpop.f32.mrb[0].mxu0
  %v517 = vpop.f32.mrb[0].mxu0
  %v518 = vadd.f32 %v97, %v517
  %v519 = vpop.f32.mrb[0].mxu0
  %520 = vmatprep.mubr.bf16.mxu0 0
  %521 = vmatmul.mubr.bf16.gmra.mrb[0].mxu0 %v309
  %v522 = vpop.f32.mrb[0].mxu0
  %v523 = vadd.f32 %v97, %v522
  %v524 = vpop.f32.mrb[0].mxu0
  %v525 = vpop.f32.mrb[0].mxu0
  %v526 = vadd.f32 %v97, %v525
  %v527 = vpop.f32.mrb[0].mxu0
  %528 = vmatprep.mubr.bf16.mxu0 0
  %529 = vmatmul.mubr.bf16.gmra.mrb[0].mxu0 %v312
  %v530 = vpop.f32.mrb[0].mxu0
  %v531 = vadd.f32 %v97, %v530
  %v532 = vpop.f32.mrb[0].mxu0
  %v533 = vpop.f32.mrb[0].mxu0
  %v534 = vadd.f32 %v97, %v533
  %v535 = vpop.f32.mrb[0].mxu0
  %536 = vmatprep.mubr.bf16.mxu0 0
  %537 = vmatmul.mubr.bf16.gmra.mrb[0].mxu0 %v315
  %v538 = vpop.f32.mrb[0].mxu0
  %v539 = vadd.f32 %v97, %v538
  %v540 = vpop.f32.mrb[0].mxu0
  %v541 = vpop.f32.mrb[0].mxu0
  %v542 = vadd.f32 %v97, %v541
  %v543 = vpop.f32.mrb[0].mxu0
  %544 = vmatprep.mubr.bf16.mxu0 0
  %545 = vmatmul.mubr.bf16.gmra.mrb[0].mxu0 %v318
  %v546 = vpop.f32.mrb[0].mxu0
  %v547 = vadd.f32 %v97, %v546
  %v548 = vpop.f32.mrb[0].mxu0
  %v549 = vpop.f32.mrb[0].mxu0
  %v550 = vadd.f32 %v97, %v549
  %v551 = vpop.f32.mrb[0].mxu0
  %552 = vmatprep.mubr.bf16.mxu0 0
  %553 = vmatmul.mubr.bf16.gmra.mrb[0].mxu0 %v321
  %v554 = vpop.f32.mrb[0].mxu0
  %v555 = vadd.f32 %v97, %v554
  %v556 = vpop.f32.mrb[0].mxu0
  %v557 = vpop.f32.mrb[0].mxu0
  %v558 = vadd.f32 %v97, %v557
  %v559 = vpop.f32.mrb[0].mxu0
  %560 = vmatprep.mubr.bf16.mxu0 0
  %561 = vmatmul.mubr.bf16.gmra.mrb[0].mxu0 %v324
  %v562 = vpop.f32.mrb[0].mxu0
  %v563 = vadd.f32 %v97, %v562
  %v564 = vpop.f32.mrb[0].mxu0
  %v565 = vpop.f32.mrb[0].mxu0
  %v566 = vadd.f32 %v97, %v565
  %v567 = vpop.f32.mrb[0].mxu0
  %568 = vmatprep.mubr.bf16.mxu0 0
  %569 = vmatmul.mubr.bf16.gmra.mrb[0].mxu0 %v327
  %v570 = vpop.f32.mrb[0].mxu0
  %v571 = vadd.f32 %v97, %v570
  %v572 = vpop.f32.mrb[0].mxu0
  %v573 = vpop.f32.mrb[0].mxu0
  %v574 = vadd.f32 %v97, %v573
  %v575 = vpop.f32.mrb[0].mxu0
  %576 = vmatprep.mubr.bf16.mxu0 0
  %577 = vmatmul.mubr.bf16.gmra.mrb[0].mxu0 %v330
  %v578 = vpop.f32.mrb[0].mxu0
  %v579 = vadd.f32 %v97, %v578
  %v580 = vpop.f32.mrb[0].mxu0
  %v581 = vpop.f32.mrb[0].mxu0
  %v582 = vadd.f32 %v97, %v581
  %v583 = vpop.f32.mrb[0].mxu0
  %584 = vmatprep.mubr.bf16.mxu0 0
  %585 = vmatmul.mubr.bf16.gmra.mrb[0].mxu0 %v333
  %v586 = vpop.f32.mrb[0].mxu0
  %v587 = vadd.f32 %v97, %v586
  %v588 = vpop.f32.mrb[0].mxu0
  %v589 = vpop.f32.mrb[0].mxu0
  %v590 = vadd.f32 %v97, %v589
  %v591 = vpop.f32.mrb[0].mxu0
  %592 = vmatprep.mubr.bf16.mxu0 0
  %593 = vmatmul.mubr.bf16.gmra.mrb[0].mxu0 %v336
  %v594 = vpop.f32.mrb[0].mxu0
  %v595 = vadd.f32 %v97, %v594
  %v596 = vpop.f32.mrb[0].mxu0
  %v597 = vpop.f32.mrb[0].mxu0
  %v598 = vadd.f32 %v97, %v597
  %v599 = vpop.f32.mrb[0].mxu0
  %600 = vmatprep.mubr.bf16.mxu0 0
  %601 = vmatmul.mubr.bf16.gmra.mrb[0].mxu0 %v339
  %v602 = vpop.f32.mrb[0].mxu0
  %v603 = vadd.f32 %v97, %v602
  %v604 = vpop.f32.mrb[0].mxu0
  %v605 = vpop.f32.mrb[0].mxu0
  %v606 = vadd.f32 %v97, %v605
  %v607 = vpop.f32.mrb[0].mxu0
  %608 = vmatprep.mubr.bf16.mxu0 0
  %609 = vmatmul.mubr.bf16.gmra.mrb[0].mxu0 %v342
  %v610 = vpop.f32.mrb[0].mxu0
  %v611 = vadd.f32 %v97, %v610
  %v612 = vpop.f32.mrb[0].mxu0
  %v613 = vpop.f32.mrb[0].mxu0
  %v614 = vadd.f32 %v97, %v613
  %v615 = vpop.f32.mrb[0].mxu0
  %616 = vmatprep.mubr.bf16.mxu0 0
  %617 = vmatmul.mubr.bf16.gmra.mrb[0].mxu0 %v345
  %v618 = vpop.f32.mrb[0].mxu0
  %v619 = vadd.f32 %v97, %v618
  %v620 = vpop.f32.mrb[0].mxu0
  %v621 = vpop.f32.mrb[0].mxu0
  %v622 = vadd.f32 %v97, %v621
  %v623 = vpop.f32.mrb[0].mxu0
  %624 = vmatprep.mubr.bf16.mxu0 0
  %625 = vmatmul.mubr.bf16.gmra.mrb[0].mxu0 %v348
  %v626 = vpop.f32.mrb[0].mxu0
  %v627 = vadd.f32 %v97, %v626
  %v628 = vpop.f32.mrb[0].mxu0
  %v629 = vpop.f32.mrb[0].mxu0
  %v630 = vadd.f32 %v97, %v629
  %v631 = vpop.f32.mrb[0].mxu0
  %632 = vmatprep.mubr.bf16.mxu0 0
  %633 = vmatmul.mubr.bf16.gmra.mrb[0].mxu0 %v351
  %v634 = vpop.f32.mrb[0].mxu0
  %v635 = vadd.f32 %v97, %v634
  %v636 = vpop.f32.mrb[0].mxu0
  %v637 = vpop.f32.mrb[0].mxu0
  %v638 = vadd.f32 %v97, %v637
  %v639 = vpop.f32.mrb[0].mxu0
  %640 = vmatprep.mubr.bf16.mxu0 0
  %641 = vmatmul.mubr.bf16.gmra.mrb[0].mxu0 %v354
  %v642 = vpop.f32.mrb[0].mxu0
  %v643 = vadd.f32 %v97, %v642
  %v644 = vpop.f32.mrb[0].mxu0
  %v645 = vpop.f32.mrb[0].mxu0
  %v646 = vadd.f32 %v97, %v645
  %v647 = vpop.f32.mrb[0].mxu0
  %648 = vdwg.mxu0
  %vm649 = vcmask 27648
  %650 = vst.msk [vmem:[#allocation2] sm:$0xf] %vm649, 0
  %651 = vst.msk [vmem:[#allocation2 + $0x4] sm:$0xf] %vm649, 0
  %vm652 = vcmask 24576
  %653 = vst.msk [vmem:[#allocation2 + $0x8] sm:$0x1] %vm652, 0
  %s654 = scalar_lea.vmem [#allocation2], 396
  %655 = vst.msk [vmem:[%s654] sm:$0xf] %vm649, 0
  %656 = vst.msk [vmem:[%s654 + $0x4] sm:$0xf] %vm649, 0
  %657 = vst.msk [vmem:[%s654 + $0x8] sm:$0x1] %vm652, 0
  %vm658 = vcmask 24576
  %vm659 = vsmask.f32 256
  %vm660 = vmand %vm658, %vm659
  %v661 = vld [vmem:[#allocation2] sm:$0x1]
  %v662 = vsel %vm660, 0, %v661
  %663 = vst [vmem:[#allocation2] sm:$0x1] %v662
  %v664 = vld [vmem:[#allocation2 + $0xc] sm:$0x1]
  %v665 = vsel %vm660, 0, %v664
  %666 = vst [vmem:[#allocation2 + $0xc] sm:$0x1] %v665
  %v667 = vld [vmem:[#allocation2 + $0x18] sm:$0x1]
  %v668 = vsel %vm660, 0, %v667
  %669 = vst [vmem:[#allocation2 + $0x18] sm:$0x1] %v668
  %v670 = vld [vmem:[#allocation2 + $0x24] sm:$0x1]
  %v671 = vsel %vm660, 0, %v670
  %672 = vst [vmem:[#allocation2 + $0x24] sm:$0x1] %v671
  %v673 = vld [vmem:[#allocation2 + $0x30] sm:$0x1]
  %v674 = vsel %vm660, 0, %v673
  %675 = vst [vmem:[#allocation2 + $0x30] sm:$0x1] %v674
  %v676 = vld [vmem:[#allocation2 + $0x3c] sm:$0x1]
  %v677 = vsel %vm660, 0, %v676
  %678 = vst [vmem:[#allocation2 + $0x3c] sm:$0x1] %v677
  %v679 = vld [vmem:[#allocation2 + $0x48] sm:$0x1]
  %v680 = vsel %vm660, 0, %v679
  %681 = vst [vmem:[#allocation2 + $0x48] sm:$0x1] %v680
  %v682 = vld [vmem:[#allocation2 + $0x54] sm:$0x1]
  %v683 = vsel %vm660, 0, %v682
  %684 = vst [vmem:[#allocation2 + $0x54] sm:$0x1] %v683
  %v685 = vld [vmem:[#allocation2 + $0x60] sm:$0x1]
  %v686 = vsel %vm660, 0, %v685
  %687 = vst [vmem:[#allocation2 + $0x60] sm:$0x1] %v686
  %v688 = vld [vmem:[#allocation2 + $0x6c] sm:$0x1]
  %v689 = vsel %vm660, 0, %v688
  %690 = vst [vmem:[#allocation2 + $0x6c] sm:$0x1] %v689
  %v691 = vld [vmem:[#allocation2 + $0x78] sm:$0x1]
  %v692 = vsel %vm660, 0, %v691
  %693 = vst [vmem:[#allocation2 + $0x78] sm:$0x1] %v692
  %v694 = vld [vmem:[#allocation2 + $0x84] sm:$0x1]
  %v695 = vsel %vm660, 0, %v694
  %696 = vst [vmem:[#allocation2 + $0x84] sm:$0x1] %v695
  %v697 = vld [vmem:[#allocation2 + $0x90] sm:$0x1]
  %v698 = vsel %vm660, 0, %v697
  %699 = vst [vmem:[#allocation2 + $0x90] sm:$0x1] %v698
  %v700 = vld [vmem:[#allocation2 + $0x9c] sm:$0x1]
  %v701 = vsel %vm660, 0, %v700
  %702 = vst [vmem:[#allocation2 + $0x9c] sm:$0x1] %v701
  %v703 = vld [vmem:[#allocation2 + $0xa8] sm:$0x1]
  %v704 = vsel %vm660, 0, %v703
  %705 = vst [vmem:[#allocation2 + $0xa8] sm:$0x1] %v704
  %v706 = vld [vmem:[#allocation2 + $0xb4] sm:$0x1]
  %v707 = vsel %vm660, 0, %v706
  %708 = vst [vmem:[#allocation2 + $0xb4] sm:$0x1] %v707
  %v709 = vld [vmem:[#allocation2 + $0xc0] sm:$0x1]
  %v710 = vsel %vm660, 0, %v709
  %711 = vst [vmem:[#allocation2 + $0xc0] sm:$0x1] %v710
  %v712 = vld [vmem:[#allocation2 + $0xcc] sm:$0x1]
  %v713 = vsel %vm660, 0, %v712
  %714 = vst [vmem:[#allocation2 + $0xcc] sm:$0x1] %v713
  %v715 = vld [vmem:[#allocation2 + $0xd8] sm:$0x1]
  %v716 = vsel %vm660, 0, %v715
  %717 = vst [vmem:[#allocation2 + $0xd8] sm:$0x1] %v716
  %v718 = vld [vmem:[#allocation2 + $0xe4] sm:$0x1]
  %v719 = vsel %vm660, 0, %v718
  %720 = vst [vmem:[#allocation2 + $0xe4] sm:$0x1] %v719
  %v721 = vld [vmem:[#allocation2 + $0xf0] sm:$0x1]
  %v722 = vsel %vm660, 0, %v721
  %723 = vst [vmem:[#allocation2 + $0xf0] sm:$0x1] %v722
  %v724 = vld [vmem:[#allocation2 + $0xfc] sm:$0x1]
  %v725 = vsel %vm660, 0, %v724
  %726 = vst [vmem:[#allocation2 + $0xfc] sm:$0x1] %v725
  %v727 = vld [vmem:[#allocation2 + $0x108] sm:$0x1]
  %v728 = vsel %vm660, 0, %v727
  %729 = vst [vmem:[#allocation2 + $0x108] sm:$0x1] %v728
  %v730 = vld [vmem:[#allocation2 + $0x114] sm:$0x1]
  %v731 = vsel %vm660, 0, %v730
  %732 = vst [vmem:[#allocation2 + $0x114] sm:$0x1] %v731
  %v733 = vld [vmem:[#allocation2 + $0x120] sm:$0x1]
  %v734 = vsel %vm660, 0, %v733
  %735 = vst [vmem:[#allocation2 + $0x120] sm:$0x1] %v734
  %v736 = vld [vmem:[#allocation2 + $0x12c] sm:$0x1]
  %v737 = vsel %vm660, 0, %v736
  %738 = vst [vmem:[#allocation2 + $0x12c] sm:$0x1] %v737
  %v739 = vld [vmem:[#allocation2 + $0x138] sm:$0x1]
  %v740 = vsel %vm660, 0, %v739
  %741 = vst [vmem:[#allocation2 + $0x138] sm:$0x1] %v740
  %v742 = vld [vmem:[#allocation2 + $0x144] sm:$0x1]
  %v743 = vsel %vm660, 0, %v742
  %744 = vst [vmem:[#allocation2 + $0x144] sm:$0x1] %v743
  %v745 = vld [vmem:[#allocation2 + $0x150] sm:$0x1]
  %v746 = vsel %vm660, 0, %v745
  %747 = vst [vmem:[#allocation2 + $0x150] sm:$0x1] %v746
  %v748 = vld [vmem:[#allocation2 + $0x15c] sm:$0x1]
  %v749 = vsel %vm660, 0, %v748
  %750 = vst [vmem:[#allocation2 + $0x15c] sm:$0x1] %v749
  %v751 = vld [vmem:[#allocation2 + $0x168] sm:$0x1]
  %v752 = vsel %vm660, 0, %v751
  %753 = vst [vmem:[#allocation2 + $0x168] sm:$0x1] %v752
  %v754 = vld [vmem:[#allocation2 + $0x174] sm:$0x1]
  %v755 = vsel %vm660, 0, %v754
  %756 = vst [vmem:[#allocation2 + $0x174] sm:$0x1] %v755
  %v757 = vld [vmem:[#allocation2 + $0x180] sm:$0x1]
  %v758 = vsel %vm660, 0, %v757
  %759 = vst [vmem:[#allocation2 + $0x180] sm:$0x1] %v758
  %v760 = vld [vmem:[#allocation2 + $0x18c] sm:$0x1]
  %v761 = vsel %vm660, 0, %v760
  %762 = vst [vmem:[#allocation2 + $0x18c] sm:$0x1] %v761
  %vm763 = vsmask.f32 7938
  %vm764 = vmand %vm658, %vm763
  %v765 = vld [vmem:[#allocation2 + $0x8] sm:$0x1]
  %v766 = vsel %vm764, 0, %v765
  %767 = vst [vmem:[#allocation2 + $0x8] sm:$0x1] %v766
  %v768 = vld [vmem:[#allocation2 + $0x14] sm:$0x1]
  %v769 = vsel %vm764, 0, %v768
  %770 = vst [vmem:[#allocation2 + $0x14] sm:$0x1] %v769
  %v771 = vld [vmem:[#allocation2 + $0x20] sm:$0x1]
  %v772 = vsel %vm764, 0, %v771
  %773 = vst [vmem:[#allocation2 + $0x20] sm:$0x1] %v772
  %v774 = vld [vmem:[#allocation2 + $0x2c] sm:$0x1]
  %v775 = vsel %vm764, 0, %v774
  %776 = vst [vmem:[#allocation2 + $0x2c] sm:$0x1] %v775
  %v777 = vld [vmem:[#allocation2 + $0x38] sm:$0x1]
  %v778 = vsel %vm764, 0, %v777
  %779 = vst [vmem:[#allocation2 + $0x38] sm:$0x1] %v778
  %v780 = vld [vmem:[#allocation2 + $0x44] sm:$0x1]
  %v781 = vsel %vm764, 0, %v780
  %782 = vst [vmem:[#allocation2 + $0x44] sm:$0x1] %v781
  %v783 = vld [vmem:[#allocation2 + $0x50] sm:$0x1]
  %v784 = vsel %vm764, 0, %v783
  %785 = vst [vmem:[#allocation2 + $0x50] sm:$0x1] %v784
  %v786 = vld [vmem:[#allocation2 + $0x5c] sm:$0x1]
  %v787 = vsel %vm764, 0, %v786
  %788 = vst [vmem:[#allocation2 + $0x5c] sm:$0x1] %v787
  %v789 = vld [vmem:[#allocation2 + $0x68] sm:$0x1]
  %v790 = vsel %vm764, 0, %v789
  %791 = vst [vmem:[#allocation2 + $0x68] sm:$0x1] %v790
  %v792 = vld [vmem:[#allocation2 + $0x74] sm:$0x1]
  %v793 = vsel %vm764, 0, %v792
  %794 = vst [vmem:[#allocation2 + $0x74] sm:$0x1] %v793
  %v795 = vld [vmem:[#allocation2 + $0x80] sm:$0x1]
  %v796 = vsel %vm764, 0, %v795
  %797 = vst [vmem:[#allocation2 + $0x80] sm:$0x1] %v796
  %v798 = vld [vmem:[#allocation2 + $0x8c] sm:$0x1]
  %v799 = vsel %vm764, 0, %v798
  %800 = vst [vmem:[#allocation2 + $0x8c] sm:$0x1] %v799
  %v801 = vld [vmem:[#allocation2 + $0x98] sm:$0x1]
  %v802 = vsel %vm764, 0, %v801
  %803 = vst [vmem:[#allocation2 + $0x98] sm:$0x1] %v802
  %v804 = vld [vmem:[#allocation2 + $0xa4] sm:$0x1]
  %v805 = vsel %vm764, 0, %v804
  %806 = vst [vmem:[#allocation2 + $0xa4] sm:$0x1] %v805
  %v807 = vld [vmem:[#allocation2 + $0xb0] sm:$0x1]
  %v808 = vsel %vm764, 0, %v807
  %809 = vst [vmem:[#allocation2 + $0xb0] sm:$0x1] %v808
  %v810 = vld [vmem:[#allocation2 + $0xbc] sm:$0x1]
  %v811 = vsel %vm764, 0, %v810
  %812 = vst [vmem:[#allocation2 + $0xbc] sm:$0x1] %v811
  %v813 = vld [vmem:[#allocation2 + $0xc8] sm:$0x1]
  %v814 = vsel %vm764, 0, %v813
  %815 = vst [vmem:[#allocation2 + $0xc8] sm:$0x1] %v814
  %v816 = vld [vmem:[#allocation2 + $0xd4] sm:$0x1]
  %v817 = vsel %vm764, 0, %v816
  %818 = vst [vmem:[#allocation2 + $0xd4] sm:$0x1] %v817
  %v819 = vld [vmem:[#allocation2 + $0xe0] sm:$0x1]
  %v820 = vsel %vm764, 0, %v819
  %821 = vst [vmem:[#allocation2 + $0xe0] sm:$0x1] %v820
  %v822 = vld [vmem:[#allocation2 + $0xec] sm:$0x1]
  %v823 = vsel %vm764, 0, %v822
  %824 = vst [vmem:[#allocation2 + $0xec] sm:$0x1] %v823
  %v825 = vld [vmem:[#allocation2 + $0xf8] sm:$0x1]
  %v826 = vsel %vm764, 0, %v825
  %827 = vst [vmem:[#allocation2 + $0xf8] sm:$0x1] %v826
  %v828 = vld [vmem:[#allocation2 + $0x104] sm:$0x1]
  %v829 = vsel %vm764, 0, %v828
  %830 = vst [vmem:[#allocation2 + $0x104] sm:$0x1] %v829
  %v831 = vld [vmem:[#allocation2 + $0x110] sm:$0x1]
  %v832 = vsel %vm764, 0, %v831
  %833 = vst [vmem:[#allocation2 + $0x110] sm:$0x1] %v832
  %v834 = vld [vmem:[#allocation2 + $0x11c] sm:$0x1]
  %v835 = vsel %vm764, 0, %v834
  %836 = vst [vmem:[#allocation2 + $0x11c] sm:$0x1] %v835
  %v837 = vld [vmem:[#allocation2 + $0x128] sm:$0x1]
  %v838 = vsel %vm764, 0, %v837
  %839 = vst [vmem:[#allocation2 + $0x128] sm:$0x1] %v838
  %v840 = vld [vmem:[#allocation2 + $0x134] sm:$0x1]
  %v841 = vsel %vm764, 0, %v840
  %842 = vst [vmem:[#allocation2 + $0x134] sm:$0x1] %v841
  %v843 = vld [vmem:[#allocation2 + $0x140] sm:$0x1]
  %v844 = vsel %vm764, 0, %v843
  %845 = vst [vmem:[#allocation2 + $0x140] sm:$0x1] %v844
  %v846 = vld [vmem:[#allocation2 + $0x14c] sm:$0x1]
  %v847 = vsel %vm764, 0, %v846
  %848 = vst [vmem:[#allocation2 + $0x14c] sm:$0x1] %v847
  %v849 = vld [vmem:[#allocation2 + $0x158] sm:$0x1]
  %v850 = vsel %vm764, 0, %v849
  %851 = vst [vmem:[#allocation2 + $0x158] sm:$0x1] %v850
  %v852 = vld [vmem:[#allocation2 + $0x164] sm:$0x1]
  %v853 = vsel %vm764, 0, %v852
  %854 = vst [vmem:[#allocation2 + $0x164] sm:$0x1] %v853
  %v855 = vld [vmem:[#allocation2 + $0x170] sm:$0x1]
  %v856 = vsel %vm764, 0, %v855
  %857 = vst [vmem:[#allocation2 + $0x170] sm:$0x1] %v856
  %v858 = vld [vmem:[#allocation2 + $0x17c] sm:$0x1]
  %v859 = vsel %vm764, 0, %v858
  %860 = vst [vmem:[#allocation2 + $0x17c] sm:$0x1] %v859
  %v861 = vld [vmem:[#allocation2 + $0x188] sm:$0x1]
  %v862 = vsel %vm764, 0, %v861
  %863 = vst [vmem:[#allocation2 + $0x188] sm:$0x1] %v862
  %v864 = vld [vmem:[#allocation2 + $0x194] sm:$0x1]
  %v865 = vsel %vm764, 0, %v864
  %866 = vst [vmem:[#allocation2 + $0x194] sm:$0x1] %v865
  %vm867 = vsmask.f32 4368
  %vm868 = vmor %vm659, %vm867
  %v870 = vshrl.u32 %v27, 16
  %v872 = vrot.slane %v870, 7
  %v873 = vshll.u32 %v27, 16
  %v875 = vor.u32 %v872, %v873
  %v876 = vrot.slane %v872, 4
  %v878 = vshrl.u32 %v28, 16
  %v880 = vrot.slane %v878, 7
  %v881 = vshll.u32 %v28, 16
  %v883 = vor.u32 %v880, %v881
  %v884 = vsel %vm868, %v876, %v883
  %v885 = vrot.slane %v880, 4
  %v887 = vshrl.u32 %v29, 16
  %v889 = vrot.slane %v887, 7
  %v890 = vshll.u32 %v29, 16
  %v892 = vor.u32 %v889, %v890
  %v893 = vrot.slane %v889, 4
  %v895 = vshrl.u32 %v30, 16
  %v897 = vrot.slane %v895, 7
  %v898 = vshll.u32 %v30, 16
  %v900 = vor.u32 %v897, %v898
  %v901 = vsel %vm868, %v893, %v900
  %v902 = vrot.slane %v897, 4
  %v904 = vshrl.u32 %v31, 16
  %v906 = vrot.slane %v904, 7
  %v907 = vshll.u32 %v31, 16
  %v909 = vor.u32 %v906, %v907
  %v910 = vrot.slane %v906, 4
  %v912 = vshrl.u32 %v32, 16
  %v914 = vrot.slane %v912, 7
  %v915 = vshll.u32 %v32, 16
  %v917 = vor.u32 %v914, %v915
  %v918 = vsel %vm868, %v910, %v917
  %v919 = vrot.slane %v914, 4
  %v921 = vshrl.u32 %v33, 16
  %v923 = vrot.slane %v921, 7
  %v924 = vshll.u32 %v33, 16
  %v926 = vor.u32 %v923, %v924
  %v927 = vrot.slane %v923, 4
  %v929 = vshrl.u32 %v34, 16
  %v931 = vrot.slane %v929, 7
  %v932 = vshll.u32 %v34, 16
  %v934 = vor.u32 %v931, %v932
  %v935 = vsel %vm868, %v927, %v934
  %v936 = vrot.slane %v931, 4
  %v938 = vshrl.u32 %v35, 16
  %v940 = vrot.slane %v938, 7
  %v941 = vshll.u32 %v35, 16
  %v943 = vor.u32 %v940, %v941
  %v944 = vrot.slane %v940, 4
  %v946 = vshrl.u32 %v36, 16
  %v948 = vrot.slane %v946, 7
  %v949 = vshll.u32 %v36, 16
  %v951 = vor.u32 %v948, %v949
  %v952 = vsel %vm868, %v944, %v951
  %v953 = vrot.slane %v948, 4
  %v955 = vshrl.u32 %v37, 16
  %v957 = vrot.slane %v955, 7
  %v958 = vshll.u32 %v37, 16
  %v960 = vor.u32 %v957, %v958
  %v961 = vrot.slane %v957, 4
  %v963 = vshrl.u32 %v38, 16
  %v965 = vrot.slane %v963, 7
  %v966 = vshll.u32 %v38, 16
  %v968 = vor.u32 %v965, %v966
  %v969 = vsel %vm868, %v961, %v968
  %v970 = vrot.slane %v965, 4
  %v972 = vshrl.u32 %v39, 16
  %v974 = vrot.slane %v972, 7
  %v975 = vshll.u32 %v39, 16
  %v977 = vor.u32 %v974, %v975
  %v978 = vrot.slane %v974, 4
  %v980 = vshrl.u32 %v40, 16
  %v982 = vrot.slane %v980, 7
  %v983 = vshll.u32 %v40, 16
  %v985 = vor.u32 %v982, %v983
  %v986 = vsel %vm868, %v978, %v985
  %v987 = vrot.slane %v982, 4
  %v989 = vshrl.u32 %v41, 16
  %v991 = vrot.slane %v989, 7
  %v992 = vshll.u32 %v41, 16
  %v994 = vor.u32 %v991, %v992
  %v995 = vrot.slane %v991, 4
  %v997 = vshrl.u32 %v42, 16
  %v999 = vrot.slane %v997, 7
  %v1000 = vshll.u32 %v42, 16
  %v1002 = vor.u32 %v999, %v1000
  %v1003 = vsel %vm868, %v995, %v1002
  %v1004 = vrot.slane %v999, 4
  %v1006 = vshrl.u32 %v43, 16
  %v1008 = vrot.slane %v1006, 7
  %v1009 = vshll.u32 %v43, 16
  %v1011 = vor.u32 %v1008, %v1009
  %v1012 = vrot.slane %v1008, 4
  %v1014 = vshrl.u32 %v44, 16
  %v1016 = vrot.slane %v1014, 7
  %v1017 = vshll.u32 %v44, 16
  %v1019 = vor.u32 %v1016, %v1017
  %v1020 = vsel %vm868, %v1012, %v1019
  %v1021 = vrot.slane %v1016, 4
  %v1023 = vshrl.u32 %v45, 16
  %v1025 = vrot.slane %v1023, 7
  %v1026 = vshll.u32 %v45, 16
  %v1028 = vor.u32 %v1025, %v1026
  %v1029 = vrot.slane %v1025, 4
  %v1031 = vshrl.u32 %v46, 16
  %v1033 = vrot.slane %v1031, 7
  %v1034 = vshll.u32 %v46, 16
  %v1036 = vor.u32 %v1033, %v1034
  %v1037 = vsel %vm868, %v1029, %v1036
  %v1038 = vrot.slane %v1033, 4
  %v1040 = vshrl.u32 %v47, 16
  %v1042 = vrot.slane %v1040, 7
  %v1043 = vshll.u32 %v47, 16
  %v1045 = vor.u32 %v1042, %v1043
  %v1046 = vrot.slane %v1042, 4
  %v1048 = vshrl.u32 %v48, 16
  %v1050 = vrot.slane %v1048, 7
  %v1051 = vshll.u32 %v48, 16
  %v1053 = vor.u32 %v1050, %v1051
  %v1054 = vsel %vm868, %v1046, %v1053
  %v1055 = vrot.slane %v1050, 4
  %v1057 = vshrl.u32 %v49, 16
  %v1059 = vrot.slane %v1057, 7
  %v1060 = vshll.u32 %v49, 16
  %v1062 = vor.u32 %v1059, %v1060
  %v1063 = vrot.slane %v1059, 4
  %v1065 = vshrl.u32 %v50, 16
  %v1067 = vrot.slane %v1065, 7
  %v1068 = vshll.u32 %v50, 16
  %v1070 = vor.u32 %v1067, %v1068
  %v1071 = vsel %vm868, %v1063, %v1070
  %v1072 = vrot.slane %v1067, 4
  %v1074 = vshrl.u32 %v51, 16
  %v1076 = vrot.slane %v1074, 7
  %v1077 = vshll.u32 %v51, 16
  %v1079 = vor.u32 %v1076, %v1077
  %v1080 = vrot.slane %v1076, 4
  %v1082 = vshrl.u32 %v52, 16
  %v1084 = vrot.slane %v1082, 7
  %v1085 = vshll.u32 %v52, 16
  %v1087 = vor.u32 %v1084, %v1085
  %v1088 = vsel %vm868, %v1080, %v1087
  %v1089 = vrot.slane %v1084, 4
  %v1091 = vshrl.u32 %v53, 16
  %v1093 = vrot.slane %v1091, 7
  %v1094 = vshll.u32 %v53, 16
  %v1096 = vor.u32 %v1093, %v1094
  %v1097 = vrot.slane %v1093, 4
  %v1099 = vshrl.u32 %v54, 16
  %v1101 = vrot.slane %v1099, 7
  %v1102 = vshll.u32 %v54, 16
  %v1104 = vor.u32 %v1101, %v1102
  %v1105 = vsel %vm868, %v1097, %v1104
  %v1106 = vrot.slane %v1101, 4
  %v1108 = vshrl.u32 %v55, 16
  %v1110 = vrot.slane %v1108, 7
  %v1111 = vshll.u32 %v55, 16
  %v1113 = vor.u32 %v1110, %v1111
  %v1114 = vrot.slane %v1110, 4
  %v1116 = vshrl.u32 %v56, 16
  %v1118 = vrot.slane %v1116, 7
  %v1119 = vshll.u32 %v56, 16
  %v1121 = vor.u32 %v1118, %v1119
  %v1122 = vsel %vm868, %v1114, %v1121
  %v1123 = vrot.slane %v1118, 4
  %v1125 = vshrl.u32 %v57, 16
  %v1127 = vrot.slane %v1125, 7
  %v1128 = vshll.u32 %v57, 16
  %v1130 = vor.u32 %v1127, %v1128
  %v1131 = vrot.slane %v1127, 4
  %v1133 = vshrl.u32 %v58, 16
  %v1135 = vrot.slane %v1133, 7
  %v1136 = vshll.u32 %v58, 16
  %v1138 = vor.u32 %v1135, %v1136
  %v1139 = vsel %vm868, %v1131, %v1138
  %v1140 = vrot.slane %v1135, 4
  %v1142 = vshrl.u32 %v59, 16
  %v1144 = vrot.slane %v1142, 7
  %v1145 = vshll.u32 %v59, 16
  %v1147 = vor.u32 %v1144, %v1145
  %v1148 = vrot.slane %v1144, 4
  %v1150 = vshrl.u32 %v60, 16
  %v1152 = vrot.slane %v1150, 7
  %v1153 = vshll.u32 %v60, 16
  %v1155 = vor.u32 %v1152, %v1153
  %v1156 = vsel %vm868, %v1148, %v1155
  %v1157 = vrot.slane %v1152, 4
  %v1159 = vshrl.u32 %v61, 16
  %v1161 = vrot.slane %v1159, 7
  %v1162 = vshll.u32 %v61, 16
  %v1164 = vor.u32 %v1161, %v1162
  %v1165 = vrot.slane %v1161, 4
  %v1167 = vshrl.u32 %v62, 16
  %v1169 = vrot.slane %v1167, 7
  %v1170 = vshll.u32 %v62, 16
  %v1172 = vor.u32 %v1169, %v1170
  %v1173 = vsel %vm868, %v1165, %v1172
  %v1174 = vrot.slane %v1169, 4
  %v1176 = vshrl.u32 %v63, 16
  %v1178 = vrot.slane %v1176, 7
  %v1179 = vshll.u32 %v63, 16
  %v1181 = vor.u32 %v1178, %v1179
  %v1182 = vrot.slane %v1178, 4
  %v1184 = vshrl.u32 %v64, 16
  %v1186 = vrot.slane %v1184, 7
  %v1187 = vshll.u32 %v64, 16
  %v1189 = vor.u32 %v1186, %v1187
  %v1190 = vsel %vm868, %v1182, %v1189
  %v1191 = vrot.slane %v1186, 4
  %v1193 = vshrl.u32 %v65, 16
  %v1195 = vrot.slane %v1193, 7
  %v1196 = vshll.u32 %v65, 16
  %v1198 = vor.u32 %v1195, %v1196
  %v1199 = vrot.slane %v1195, 4
  %v1201 = vshrl.u32 %v66, 16
  %v1203 = vrot.slane %v1201, 7
  %v1204 = vshll.u32 %v66, 16
  %v1206 = vor.u32 %v1203, %v1204
  %v1207 = vsel %vm868, %v1199, %v1206
  %v1208 = vrot.slane %v1203, 4
  %v1210 = vshrl.u32 %v67, 16
  %v1212 = vrot.slane %v1210, 7
  %v1213 = vshll.u32 %v67, 16
  %v1215 = vor.u32 %v1212, %v1213
  %v1216 = vrot.slane %v1212, 4
  %v1218 = vshrl.u32 %v68, 16
  %v1220 = vrot.slane %v1218, 7
  %v1221 = vshll.u32 %v68, 16
  %v1223 = vor.u32 %v1220, %v1221
  %v1224 = vsel %vm868, %v1216, %v1223
  %v1225 = vrot.slane %v1220, 4
  %v1227 = vshrl.u32 %v69, 16
  %v1229 = vrot.slane %v1227, 7
  %v1230 = vshll.u32 %v69, 16
  %v1232 = vor.u32 %v1229, %v1230
  %v1233 = vrot.slane %v1229, 4
  %v1235 = vshrl.u32 %v70, 16
  %v1237 = vrot.slane %v1235, 7
  %v1238 = vshll.u32 %v70, 16
  %v1240 = vor.u32 %v1237, %v1238
  %v1241 = vsel %vm868, %v1233, %v1240
  %v1242 = vrot.slane %v1237, 4
  %v1244 = vshrl.u32 %v71, 16
  %v1246 = vrot.slane %v1244, 7
  %v1247 = vshll.u32 %v71, 16
  %v1249 = vor.u32 %v1246, %v1247
  %v1250 = vrot.slane %v1246, 4
  %v1252 = vshrl.u32 %v72, 16
  %v1254 = vrot.slane %v1252, 7
  %v1255 = vshll.u32 %v72, 16
  %v1257 = vor.u32 %v1254, %v1255
  %v1258 = vsel %vm868, %v1250, %v1257
  %v1259 = vrot.slane %v1254, 4
  %v1261 = vshrl.u32 %v73, 16
  %v1263 = vrot.slane %v1261, 7
  %v1264 = vshll.u32 %v73, 16
  %v1266 = vor.u32 %v1263, %v1264
  %v1267 = vrot.slane %v1263, 4
  %v1269 = vshrl.u32 %v74, 16
  %v1271 = vrot.slane %v1269, 7
  %v1272 = vshll.u32 %v74, 16
  %v1274 = vor.u32 %v1271, %v1272
  %v1275 = vsel %vm868, %v1267, %v1274
  %v1276 = vrot.slane %v1271, 4
  %v1278 = vshrl.u32 %v75, 16
  %v1280 = vrot.slane %v1278, 7
  %v1281 = vshll.u32 %v75, 16
  %v1283 = vor.u32 %v1280, %v1281
  %v1284 = vrot.slane %v1280, 4
  %v1286 = vshrl.u32 %v76, 16
  %v1288 = vrot.slane %v1286, 7
  %v1289 = vshll.u32 %v76, 16
  %v1291 = vor.u32 %v1288, %v1289
  %v1292 = vsel %vm868, %v1284, %v1291
  %v1293 = vrot.slane %v1288, 4
  %v1295 = vshrl.u32 %v77, 16
  %v1297 = vrot.slane %v1295, 7
  %v1298 = vshll.u32 %v77, 16
  %v1300 = vor.u32 %v1297, %v1298
  %v1301 = vrot.slane %v1297, 4
  %v1303 = vshrl.u32 %v78, 16
  %v1305 = vrot.slane %v1303, 7
  %v1306 = vshll.u32 %v78, 16
  %v1308 = vor.u32 %v1305, %v1306
  %v1309 = vsel %vm868, %v1301, %v1308
  %v1310 = vrot.slane %v1305, 4
  %v1312 = vshrl.u32 %v79, 16
  %v1314 = vrot.slane %v1312, 7
  %v1315 = vshll.u32 %v79, 16
  %v1317 = vor.u32 %v1314, %v1315
  %v1318 = vrot.slane %v1314, 4
  %v1320 = vshrl.u32 %v80, 16
  %v1322 = vrot.slane %v1320, 7
  %v1323 = vshll.u32 %v80, 16
  %v1325 = vor.u32 %v1322, %v1323
  %v1326 = vsel %vm868, %v1318, %v1325
  %v1327 = vrot.slane %v1322, 4
  %v1329 = vshrl.u32 %v81, 16
  %v1331 = vrot.slane %v1329, 7
  %v1332 = vshll.u32 %v81, 16
  %v1334 = vor.u32 %v1331, %v1332
  %v1335 = vrot.slane %v1331, 4
  %v1337 = vshrl.u32 %v82, 16
  %v1339 = vrot.slane %v1337, 7
  %v1340 = vshll.u32 %v82, 16
  %v1342 = vor.u32 %v1339, %v1340
  %v1343 = vsel %vm868, %v1335, %v1342
  %v1344 = vrot.slane %v1339, 4
  %v1346 = vshrl.u32 %v83, 16
  %v1348 = vrot.slane %v1346, 7
  %v1349 = vshll.u32 %v83, 16
  %v1351 = vor.u32 %v1348, %v1349
  %v1352 = vrot.slane %v1348, 4
  %v1354 = vshrl.u32 %v84, 16
  %v1356 = vrot.slane %v1354, 7
  %v1357 = vshll.u32 %v84, 16
  %v1359 = vor.u32 %v1356, %v1357
  %v1360 = vsel %vm868, %v1352, %v1359
  %v1361 = vrot.slane %v1356, 4
  %v1363 = vshrl.u32 %v85, 16
  %v1365 = vrot.slane %v1363, 7
  %v1366 = vshll.u32 %v85, 16
  %v1368 = vor.u32 %v1365, %v1366
  %v1369 = vrot.slane %v1365, 4
  %v1371 = vshrl.u32 %v86, 16
  %v1373 = vrot.slane %v1371, 7
  %v1374 = vshll.u32 %v86, 16
  %v1376 = vor.u32 %v1373, %v1374
  %v1377 = vsel %vm868, %v1369, %v1376
  %v1378 = vrot.slane %v1373, 4
  %v1380 = vshrl.u32 %v87, 16
  %v1382 = vrot.slane %v1380, 7
  %v1383 = vshll.u32 %v87, 16
  %v1385 = vor.u32 %v1382, %v1383
  %v1386 = vrot.slane %v1382, 4
  %v1388 = vshrl.u32 %v88, 16
  %v1390 = vrot.slane %v1388, 7
  %v1391 = vshll.u32 %v88, 16
  %v1393 = vor.u32 %v1390, %v1391
  %v1394 = vsel %vm868, %v1386, %v1393
  %v1395 = vrot.slane %v1390, 4
  %v1397 = vshrl.u32 %v89, 16
  %v1399 = vrot.slane %v1397, 7
  %v1400 = vshll.u32 %v89, 16
  %v1402 = vor.u32 %v1399, %v1400
  %v1403 = vrot.slane %v1399, 4
  %v1405 = vshrl.u32 %v90, 16
  %v1407 = vrot.slane %v1405, 7
  %v1408 = vshll.u32 %v90, 16
  %v1410 = vor.u32 %v1407, %v1408
  %v1411 = vsel %vm868, %v1403, %v1410
  %v1412 = vrot.slane %v1407, 4
  %s1509 = scalar_lea.vmem [#allocation2], 12
  %vm1510 = vcmask 27648
  %vm1511 = vmand %vm1510, %vm763
  %v1512 = vld [vmem:[%s1509] sm:$0xf]
  %v1513 = vsel %vm1511, %v875, %v1512
  %1514 = vst [vmem:[%s1509] sm:$0xf] %v1513
  %1515 = vst.msk [vmem:[%s1509 + $0x4] sm:$0xf] %vm649, %v884
  %v1516 = vld [vmem:[%s1509 + $0x8] sm:$0x1]
  %v1517 = vsel %vm660, %v885, %v1516
  %1518 = vst [vmem:[%s1509 + $0x8] sm:$0x1] %v1517
  %v1519 = vld [vmem:[%s1509 + $0xc] sm:$0xf]
  %v1520 = vsel %vm1511, %v892, %v1519
  %1521 = vst [vmem:[%s1509 + $0xc] sm:$0xf] %v1520
  %1522 = vst.msk [vmem:[%s1509 + $0x10] sm:$0xf] %vm649, %v901
  %v1523 = vld [vmem:[%s1509 + $0x14] sm:$0x1]
  %v1524 = vsel %vm660, %v902, %v1523
  %1525 = vst [vmem:[%s1509 + $0x14] sm:$0x1] %v1524
  %v1526 = vld [vmem:[%s1509 + $0x18] sm:$0xf]
  %v1527 = vsel %vm1511, %v909, %v1526
  %1528 = vst [vmem:[%s1509 + $0x18] sm:$0xf] %v1527
  %1529 = vst.msk [vmem:[%s1509 + $0x1c] sm:$0xf] %vm649, %v918
  %v1530 = vld [vmem:[%s1509 + $0x20] sm:$0x1]
  %v1531 = vsel %vm660, %v919, %v1530
  %1532 = vst [vmem:[%s1509 + $0x20] sm:$0x1] %v1531
  %v1533 = vld [vmem:[%s1509 + $0x24] sm:$0xf]
  %v1534 = vsel %vm1511, %v926, %v1533
  %1535 = vst [vmem:[%s1509 + $0x24] sm:$0xf] %v1534
  %1536 = vst.msk [vmem:[%s1509 + $0x28] sm:$0xf] %vm649, %v935
  %v1537 = vld [vmem:[%s1509 + $0x2c] sm:$0x1]
  %v1538 = vsel %vm660, %v936, %v1537
  %1539 = vst [vmem:[%s1509 + $0x2c] sm:$0x1] %v1538
  %v1540 = vld [vmem:[%s1509 + $0x30] sm:$0xf]
  %v1541 = vsel %vm1511, %v943, %v1540
  %1542 = vst [vmem:[%s1509 + $0x30] sm:$0xf] %v1541
  %1543 = vst.msk [vmem:[%s1509 + $0x34] sm:$0xf] %vm649, %v952
  %v1544 = vld [vmem:[%s1509 + $0x38] sm:$0x1]
  %v1545 = vsel %vm660, %v953, %v1544
  %1546 = vst [vmem:[%s1509 + $0x38] sm:$0x1] %v1545
  %v1547 = vld [vmem:[%s1509 + $0x3c] sm:$0xf]
  %v1548 = vsel %vm1511, %v960, %v1547
  %1549 = vst [vmem:[%s1509 + $0x3c] sm:$0xf] %v1548
  %1550 = vst.msk [vmem:[%s1509 + $0x40] sm:$0xf] %vm649, %v969
  %v1551 = vld [vmem:[%s1509 + $0x44] sm:$0x1]
  %v1552 = vsel %vm660, %v970, %v1551
  %1553 = vst [vmem:[%s1509 + $0x44] sm:$0x1] %v1552
  %v1554 = vld [vmem:[%s1509 + $0x48] sm:$0xf]
  %v1555 = vsel %vm1511, %v977, %v1554
  %1556 = vst [vmem:[%s1509 + $0x48] sm:$0xf] %v1555
  %1557 = vst.msk [vmem:[%s1509 + $0x4c] sm:$0xf] %vm649, %v986
  %v1558 = vld [vmem:[%s1509 + $0x50] sm:$0x1]
  %v1559 = vsel %vm660, %v987, %v1558
  %1560 = vst [vmem:[%s1509 + $0x50] sm:$0x1] %v1559
  %v1561 = vld [vmem:[%s1509 + $0x54] sm:$0xf]
  %v1562 = vsel %vm1511, %v994, %v1561
  %1563 = vst [vmem:[%s1509 + $0x54] sm:$0xf] %v1562
  %1564 = vst.msk [vmem:[%s1509 + $0x58] sm:$0xf] %vm649, %v1003
  %v1565 = vld [vmem:[%s1509 + $0x5c] sm:$0x1]
  %v1566 = vsel %vm660, %v1004, %v1565
  %1567 = vst [vmem:[%s1509 + $0x5c] sm:$0x1] %v1566
  %v1568 = vld [vmem:[%s1509 + $0x60] sm:$0xf]
  %v1569 = vsel %vm1511, %v1011, %v1568
  %1570 = vst [vmem:[%s1509 + $0x60] sm:$0xf] %v1569
  %1571 = vst.msk [vmem:[%s1509 + $0x64] sm:$0xf] %vm649, %v1020
  %v1572 = vld [vmem:[%s1509 + $0x68] sm:$0x1]
  %v1573 = vsel %vm660, %v1021, %v1572
  %1574 = vst [vmem:[%s1509 + $0x68] sm:$0x1] %v1573
  %v1575 = vld [vmem:[%s1509 + $0x6c] sm:$0xf]
  %v1576 = vsel %vm1511, %v1028, %v1575
  %1577 = vst [vmem:[%s1509 + $0x6c] sm:$0xf] %v1576
  %1578 = vst.msk [vmem:[%s1509 + $0x70] sm:$0xf] %vm649, %v1037
  %v1579 = vld [vmem:[%s1509 + $0x74] sm:$0x1]
  %v1580 = vsel %vm660, %v1038, %v1579
  %1581 = vst [vmem:[%s1509 + $0x74] sm:$0x1] %v1580
  %v1582 = vld [vmem:[%s1509 + $0x78] sm:$0xf]
  %v1583 = vsel %vm1511, %v1045, %v1582
  %1584 = vst [vmem:[%s1509 + $0x78] sm:$0xf] %v1583
  %1585 = vst.msk [vmem:[%s1509 + $0x7c] sm:$0xf] %vm649, %v1054
  %v1586 = vld [vmem:[%s1509 + $0x80] sm:$0x1]
  %v1587 = vsel %vm660, %v1055, %v1586
  %1588 = vst [vmem:[%s1509 + $0x80] sm:$0x1] %v1587
  %v1589 = vld [vmem:[%s1509 + $0x84] sm:$0xf]
  %v1590 = vsel %vm1511, %v1062, %v1589
  %1591 = vst [vmem:[%s1509 + $0x84] sm:$0xf] %v1590
  %1592 = vst.msk [vmem:[%s1509 + $0x88] sm:$0xf] %vm649, %v1071
  %v1593 = vld [vmem:[%s1509 + $0x8c] sm:$0x1]
  %v1594 = vsel %vm660, %v1072, %v1593
  %1595 = vst [vmem:[%s1509 + $0x8c] sm:$0x1] %v1594
  %v1596 = vld [vmem:[%s1509 + $0x90] sm:$0xf]
  %v1597 = vsel %vm1511, %v1079, %v1596
  %1598 = vst [vmem:[%s1509 + $0x90] sm:$0xf] %v1597
  %1599 = vst.msk [vmem:[%s1509 + $0x94] sm:$0xf] %vm649, %v1088
  %v1600 = vld [vmem:[%s1509 + $0x98] sm:$0x1]
  %v1601 = vsel %vm660, %v1089, %v1600
  %1602 = vst [vmem:[%s1509 + $0x98] sm:$0x1] %v1601
  %v1603 = vld [vmem:[%s1509 + $0x9c] sm:$0xf]
  %v1604 = vsel %vm1511, %v1096, %v1603
  %1605 = vst [vmem:[%s1509 + $0x9c] sm:$0xf] %v1604
  %1606 = vst.msk [vmem:[%s1509 + $0xa0] sm:$0xf] %vm649, %v1105
  %v1607 = vld [vmem:[%s1509 + $0xa4] sm:$0x1]
  %v1608 = vsel %vm660, %v1106, %v1607
  %1609 = vst [vmem:[%s1509 + $0xa4] sm:$0x1] %v1608
  %v1610 = vld [vmem:[%s1509 + $0xa8] sm:$0xf]
  %v1611 = vsel %vm1511, %v1113, %v1610
  %1612 = vst [vmem:[%s1509 + $0xa8] sm:$0xf] %v1611
  %1613 = vst.msk [vmem:[%s1509 + $0xac] sm:$0xf] %vm649, %v1122
  %v1614 = vld [vmem:[%s1509 + $0xb0] sm:$0x1]
  %v1615 = vsel %vm660, %v1123, %v1614
  %1616 = vst [vmem:[%s1509 + $0xb0] sm:$0x1] %v1615
  %v1617 = vld [vmem:[%s1509 + $0xb4] sm:$0xf]
  %v1618 = vsel %vm1511, %v1130, %v1617
  %1619 = vst [vmem:[%s1509 + $0xb4] sm:$0xf] %v1618
  %1620 = vst.msk [vmem:[%s1509 + $0xb8] sm:$0xf] %vm649, %v1139
  %v1621 = vld [vmem:[%s1509 + $0xbc] sm:$0x1]
  %v1622 = vsel %vm660, %v1140, %v1621
  %1623 = vst [vmem:[%s1509 + $0xbc] sm:$0x1] %v1622
  %v1624 = vld [vmem:[%s1509 + $0xc0] sm:$0xf]
  %v1625 = vsel %vm1511, %v1147, %v1624
  %1626 = vst [vmem:[%s1509 + $0xc0] sm:$0xf] %v1625
  %1627 = vst.msk [vmem:[%s1509 + $0xc4] sm:$0xf] %vm649, %v1156
  %v1628 = vld [vmem:[%s1509 + $0xc8] sm:$0x1]
  %v1629 = vsel %vm660, %v1157, %v1628
  %1630 = vst [vmem:[%s1509 + $0xc8] sm:$0x1] %v1629
  %v1631 = vld [vmem:[%s1509 + $0xcc] sm:$0xf]
  %v1632 = vsel %vm1511, %v1164, %v1631
  %1633 = vst [vmem:[%s1509 + $0xcc] sm:$0xf] %v1632
  %1634 = vst.msk [vmem:[%s1509 + $0xd0] sm:$0xf] %vm649, %v1173
  %v1635 = vld [vmem:[%s1509 + $0xd4] sm:$0x1]
  %v1636 = vsel %vm660, %v1174, %v1635
  %1637 = vst [vmem:[%s1509 + $0xd4] sm:$0x1] %v1636
  %v1638 = vld [vmem:[%s1509 + $0xd8] sm:$0xf]
  %v1639 = vsel %vm1511, %v1181, %v1638
  %1640 = vst [vmem:[%s1509 + $0xd8] sm:$0xf] %v1639
  %1641 = vst.msk [vmem:[%s1509 + $0xdc] sm:$0xf] %vm649, %v1190
  %v1642 = vld [vmem:[%s1509 + $0xe0] sm:$0x1]
  %v1643 = vsel %vm660, %v1191, %v1642
  %1644 = vst [vmem:[%s1509 + $0xe0] sm:$0x1] %v1643
  %v1645 = vld [vmem:[%s1509 + $0xe4] sm:$0xf]
  %v1646 = vsel %vm1511, %v1198, %v1645
  %1647 = vst [vmem:[%s1509 + $0xe4] sm:$0xf] %v1646
  %1648 = vst.msk [vmem:[%s1509 + $0xe8] sm:$0xf] %vm649, %v1207
  %v1649 = vld [vmem:[%s1509 + $0xec] sm:$0x1]
  %v1650 = vsel %vm660, %v1208, %v1649
  %1651 = vst [vmem:[%s1509 + $0xec] sm:$0x1] %v1650
  %v1652 = vld [vmem:[%s1509 + $0xf0] sm:$0xf]
  %v1653 = vsel %vm1511, %v1215, %v1652
  %1654 = vst [vmem:[%s1509 + $0xf0] sm:$0xf] %v1653
  %1655 = vst.msk [vmem:[%s1509 + $0xf4] sm:$0xf] %vm649, %v1224
  %v1656 = vld [vmem:[%s1509 + $0xf8] sm:$0x1]
  %v1657 = vsel %vm660, %v1225, %v1656
  %1658 = vst [vmem:[%s1509 + $0xf8] sm:$0x1] %v1657
  %v1659 = vld [vmem:[%s1509 + $0xfc] sm:$0xf]
  %v1660 = vsel %vm1511, %v1232, %v1659
  %1661 = vst [vmem:[%s1509 + $0xfc] sm:$0xf] %v1660
  %1662 = vst.msk [vmem:[%s1509 + $0x100] sm:$0xf] %vm649, %v1241
  %v1663 = vld [vmem:[%s1509 + $0x104] sm:$0x1]
  %v1664 = vsel %vm660, %v1242, %v1663
  %1665 = vst [vmem:[%s1509 + $0x104] sm:$0x1] %v1664
  %v1666 = vld [vmem:[%s1509 + $0x108] sm:$0xf]
  %v1667 = vsel %vm1511, %v1249, %v1666
  %1668 = vst [vmem:[%s1509 + $0x108] sm:$0xf] %v1667
  %1669 = vst.msk [vmem:[%s1509 + $0x10c] sm:$0xf] %vm649, %v1258
  %v1670 = vld [vmem:[%s1509 + $0x110] sm:$0x1]
  %v1671 = vsel %vm660, %v1259, %v1670
  %1672 = vst [vmem:[%s1509 + $0x110] sm:$0x1] %v1671
  %v1673 = vld [vmem:[%s1509 + $0x114] sm:$0xf]
  %v1674 = vsel %vm1511, %v1266, %v1673
  %1675 = vst [vmem:[%s1509 + $0x114] sm:$0xf] %v1674
  %1676 = vst.msk [vmem:[%s1509 + $0x118] sm:$0xf] %vm649, %v1275
  %v1677 = vld [vmem:[%s1509 + $0x11c] sm:$0x1]
  %v1678 = vsel %vm660, %v1276, %v1677
  %1679 = vst [vmem:[%s1509 + $0x11c] sm:$0x1] %v1678
  %v1680 = vld [vmem:[%s1509 + $0x120] sm:$0xf]
  %v1681 = vsel %vm1511, %v1283, %v1680
  %1682 = vst [vmem:[%s1509 + $0x120] sm:$0xf] %v1681
  %1683 = vst.msk [vmem:[%s1509 + $0x124] sm:$0xf] %vm649, %v1292
  %v1684 = vld [vmem:[%s1509 + $0x128] sm:$0x1]
  %v1685 = vsel %vm660, %v1293, %v1684
  %1686 = vst [vmem:[%s1509 + $0x128] sm:$0x1] %v1685
  %v1687 = vld [vmem:[%s1509 + $0x12c] sm:$0xf]
  %v1688 = vsel %vm1511, %v1300, %v1687
  %1689 = vst [vmem:[%s1509 + $0x12c] sm:$0xf] %v1688
  %1690 = vst.msk [vmem:[%s1509 + $0x130] sm:$0xf] %vm649, %v1309
  %v1691 = vld [vmem:[%s1509 + $0x134] sm:$0x1]
  %v1692 = vsel %vm660, %v1310, %v1691
  %1693 = vst [vmem:[%s1509 + $0x134] sm:$0x1] %v1692
  %v1694 = vld [vmem:[%s1509 + $0x138] sm:$0xf]
  %v1695 = vsel %vm1511, %v1317, %v1694
  %1696 = vst [vmem:[%s1509 + $0x138] sm:$0xf] %v1695
  %1697 = vst.msk [vmem:[%s1509 + $0x13c] sm:$0xf] %vm649, %v1326
  %v1698 = vld [vmem:[%s1509 + $0x140] sm:$0x1]
  %v1699 = vsel %vm660, %v1327, %v1698
  %1700 = vst [vmem:[%s1509 + $0x140] sm:$0x1] %v1699
  %v1701 = vld [vmem:[%s1509 + $0x144] sm:$0xf]
  %v1702 = vsel %vm1511, %v1334, %v1701
  %1703 = vst [vmem:[%s1509 + $0x144] sm:$0xf] %v1702
  %1704 = vst.msk [vmem:[%s1509 + $0x148] sm:$0xf] %vm649, %v1343
  %v1705 = vld [vmem:[%s1509 + $0x14c] sm:$0x1]
  %v1706 = vsel %vm660, %v1344, %v1705
  %1707 = vst [vmem:[%s1509 + $0x14c] sm:$0x1] %v1706
  %v1708 = vld [vmem:[%s1509 + $0x150] sm:$0xf]
  %v1709 = vsel %vm1511, %v1351, %v1708
  %1710 = vst [vmem:[%s1509 + $0x150] sm:$0xf] %v1709
  %1711 = vst.msk [vmem:[%s1509 + $0x154] sm:$0xf] %vm649, %v1360
  %v1712 = vld [vmem:[%s1509 + $0x158] sm:$0x1]
  %v1713 = vsel %vm660, %v1361, %v1712
  %1714 = vst [vmem:[%s1509 + $0x158] sm:$0x1] %v1713
  %v1715 = vld [vmem:[%s1509 + $0x15c] sm:$0xf]
  %v1716 = vsel %vm1511, %v1368, %v1715
  %1717 = vst [vmem:[%s1509 + $0x15c] sm:$0xf] %v1716
  %1718 = vst.msk [vmem:[%s1509 + $0x160] sm:$0xf] %vm649, %v1377
  %v1719 = vld [vmem:[%s1509 + $0x164] sm:$0x1]
  %v1720 = vsel %vm660, %v1378, %v1719
  %1721 = vst [vmem:[%s1509 + $0x164] sm:$0x1] %v1720
  %v1722 = vld [vmem:[%s1509 + $0x168] sm:$0xf]
  %v1723 = vsel %vm1511, %v1385, %v1722
  %1724 = vst [vmem:[%s1509 + $0x168] sm:$0xf] %v1723
  %1725 = vst.msk [vmem:[%s1509 + $0x16c] sm:$0xf] %vm649, %v1394
  %v1726 = vld [vmem:[%s1509 + $0x170] sm:$0x1]
  %v1727 = vsel %vm660, %v1395, %v1726
  %1728 = vst [vmem:[%s1509 + $0x170] sm:$0x1] %v1727
  %v1729 = vld [vmem:[%s1509 + $0x174] sm:$0xf]
  %v1730 = vsel %vm1511, %v1402, %v1729
  %1731 = vst [vmem:[%s1509 + $0x174] sm:$0xf] %v1730
  %1732 = vst.msk [vmem:[%s1509 + $0x178] sm:$0xf] %vm649, %v1411
  %v1733 = vld [vmem:[%s1509 + $0x17c] sm:$0x1]
  %v1734 = vsel %vm660, %v1412, %v1733
  %1735 = vst [vmem:[%s1509 + $0x17c] sm:$0x1] %v1734
  %v1736 = vld [vmem:[#allocation2] sm:$0xf]
  %v1737 = vld [vmem:[#allocation2 + $0x4] sm:$0xf]
  %v1738 = vld [vmem:[#allocation2 + $0x8] sm:$0x1]
  %v1739 = vld [vmem:[#allocation2 + $0xc] sm:$0xf]
  %v1740 = vld [vmem:[#allocation2 + $0x10] sm:$0xf]
  %v1741 = vld [vmem:[#allocation2 + $0x14] sm:$0x1]
  %v1742 = vld [vmem:[#allocation2 + $0x18] sm:$0xf]
  %v1743 = vld [vmem:[#allocation2 + $0x1c] sm:$0xf]
  %v1744 = vld [vmem:[#allocation2 + $0x20] sm:$0x1]
  %v1745 = vld [vmem:[#allocation2 + $0x24] sm:$0xf]
  %v1746 = vld [vmem:[#allocation2 + $0x28] sm:$0xf]
  %v1747 = vld [vmem:[#allocation2 + $0x2c] sm:$0x1]
  %v1748 = vld [vmem:[#allocation2 + $0x30] sm:$0xf]
  %v1749 = vld [vmem:[#allocation2 + $0x34] sm:$0xf]
  %v1750 = vld [vmem:[#allocation2 + $0x38] sm:$0x1]
  %v1751 = vld [vmem:[#allocation2 + $0x3c] sm:$0xf]
  %v1752 = vld [vmem:[#allocation2 + $0x40] sm:$0xf]
  %v1753 = vld [vmem:[#allocation2 + $0x44] sm:$0x1]
  %v1754 = vld [vmem:[#allocation2 + $0x48] sm:$0xf]
  %v1755 = vld [vmem:[#allocation2 + $0x4c] sm:$0xf]
  %v1756 = vld [vmem:[#allocation2 + $0x50] sm:$0x1]
  %v1757 = vld [vmem:[#allocation2 + $0x54] sm:$0xf]
  %v1758 = vld [vmem:[#allocation2 + $0x58] sm:$0xf]
  %v1759 = vld [vmem:[#allocation2 + $0x5c] sm:$0x1]
  %v1760 = vld [vmem:[#allocation2 + $0x60] sm:$0xf]
  %v1761 = vld [vmem:[#allocation2 + $0x64] sm:$0xf]
  %v1762 = vld [vmem:[#allocation2 + $0x68] sm:$0x1]
  %v1763 = vld [vmem:[#allocation2 + $0x6c] sm:$0xf]
  %v1764 = vld [vmem:[#allocation2 + $0x70] sm:$0xf]
  %v1765 = vld [vmem:[#allocation2 + $0x74] sm:$0x1]
  %v1766 = vld [vmem:[#allocation2 + $0x78] sm:$0xf]
  %v1767 = vld [vmem:[#allocation2 + $0x7c] sm:$0xf]
  %v1768 = vld [vmem:[#allocation2 + $0x80] sm:$0x1]
  %v1769 = vld [vmem:[#allocation2 + $0x84] sm:$0xf]
  %v1770 = vld [vmem:[#allocation2 + $0x88] sm:$0xf]
  %v1771 = vld [vmem:[#allocation2 + $0x8c] sm:$0x1]
  %v1772 = vld [vmem:[#allocation2 + $0x90] sm:$0xf]
  %v1773 = vld [vmem:[#allocation2 + $0x94] sm:$0xf]
  %v1774 = vld [vmem:[#allocation2 + $0x98] sm:$0x1]
  %v1775 = vld [vmem:[#allocation2 + $0x9c] sm:$0xf]
  %v1776 = vld [vmem:[#allocation2 + $0xa0] sm:$0xf]
  %v1777 = vld [vmem:[#allocation2 + $0xa4] sm:$0x1]
  %v1778 = vld [vmem:[#allocation2 + $0xa8] sm:$0xf]
  %v1779 = vld [vmem:[#allocation2 + $0xac] sm:$0xf]
  %v1780 = vld [vmem:[#allocation2 + $0xb0] sm:$0x1]
  %v1781 = vld [vmem:[#allocation2 + $0xb4] sm:$0xf]
  %v1782 = vld [vmem:[#allocation2 + $0xb8] sm:$0xf]
  %v1783 = vld [vmem:[#allocation2 + $0xbc] sm:$0x1]
  %v1784 = vld [vmem:[#allocation2 + $0xc0] sm:$0xf]
  %v1785 = vld [vmem:[#allocation2 + $0xc4] sm:$0xf]
  %v1786 = vld [vmem:[#allocation2 + $0xc8] sm:$0x1]
  %v1787 = vld [vmem:[#allocation2 + $0xcc] sm:$0xf]
  %v1788 = vld [vmem:[#allocation2 + $0xd0] sm:$0xf]
  %v1789 = vld [vmem:[#allocation2 + $0xd4] sm:$0x1]
  %v1790 = vld [vmem:[#allocation2 + $0xd8] sm:$0xf]
  %v1791 = vld [vmem:[#allocation2 + $0xdc] sm:$0xf]
  %v1792 = vld [vmem:[#allocation2 + $0xe0] sm:$0x1]
  %v1793 = vld [vmem:[#allocation2 + $0xe4] sm:$0xf]
  %v1794 = vld [vmem:[#allocation2 + $0xe8] sm:$0xf]
  %v1795 = vld [vmem:[#allocation2 + $0xec] sm:$0x1]
  %v1796 = vld [vmem:[#allocation2 + $0xf0] sm:$0xf]
  %v1797 = vld [vmem:[#allocation2 + $0xf4] sm:$0xf]
  %v1798 = vld [vmem:[#allocation2 + $0xf8] sm:$0x1]
  %v1799 = vld [vmem:[#allocation2 + $0xfc] sm:$0xf]
  %v1800 = vld [vmem:[#allocation2 + $0x100] sm:$0xf]
  %v1801 = vld [vmem:[#allocation2 + $0x104] sm:$0x1]
  %v1802 = vld [vmem:[#allocation2 + $0x108] sm:$0xf]
  %v1803 = vld [vmem:[#allocation2 + $0x10c] sm:$0xf]
  %v1804 = vld [vmem:[#allocation2 + $0x110] sm:$0x1]
  %v1805 = vld [vmem:[#allocation2 + $0x114] sm:$0xf]
  %v1806 = vld [vmem:[#allocation2 + $0x118] sm:$0xf]
  %v1807 = vld [vmem:[#allocation2 + $0x11c] sm:$0x1]
  %v1808 = vld [vmem:[#allocation2 + $0x120] sm:$0xf]
  %v1809 = vld [vmem:[#allocation2 + $0x124] sm:$0xf]
  %v1810 = vld [vmem:[#allocation2 + $0x128] sm:$0x1]
  %v1811 = vld [vmem:[#allocation2 + $0x12c] sm:$0xf]
  %v1812 = vld [vmem:[#allocation2 + $0x130] sm:$0xf]
  %v1813 = vld [vmem:[#allocation2 + $0x134] sm:$0x1]
  %v1814 = vld [vmem:[#allocation2 + $0x138] sm:$0xf]
  %v1815 = vld [vmem:[#allocation2 + $0x13c] sm:$0xf]
  %v1816 = vld [vmem:[#allocation2 + $0x140] sm:$0x1]
  %v1817 = vld [vmem:[#allocation2 + $0x144] sm:$0xf]
  %v1818 = vld [vmem:[#allocation2 + $0x148] sm:$0xf]
  %v1819 = vld [vmem:[#allocation2 + $0x14c] sm:$0x1]
  %v1820 = vld [vmem:[#allocation2 + $0x150] sm:$0xf]
  %v1821 = vld [vmem:[#allocation2 + $0x154] sm:$0xf]
  %v1822 = vld [vmem:[#allocation2 + $0x158] sm:$0x1]
  %v1823 = vld [vmem:[#allocation2 + $0x15c] sm:$0xf]
  %v1824 = vld [vmem:[#allocation2 + $0x160] sm:$0xf]
  %v1825 = vld [vmem:[#allocation2 + $0x164] sm:$0x1]
  %v1826 = vld [vmem:[#allocation2 + $0x168] sm:$0xf]
  %v1827 = vld [vmem:[#allocation2 + $0x16c] sm:$0xf]
  %v1828 = vld [vmem:[#allocation2 + $0x170] sm:$0x1]
  %v1829 = vld [vmem:[#allocation2 + $0x174] sm:$0xf]
  %v1830 = vld [vmem:[#allocation2 + $0x178] sm:$0xf]
  %v1831 = vld [vmem:[#allocation2 + $0x17c] sm:$0x1]
  %v1832 = vsel 0, %v1736, 0
  %v1833 = vsel 0, %v1737, 0
  %v1834 = vsel 0, %v1738, 0
  %v1835 = vsel 1, %v1739, 0
  %v1836 = vsel 1, %v1740, 0
  %v1837 = vsel 1, %v1741, 0
  %v1838 = vsel 1, %v1742, 0
  %v1839 = vsel 1, %v1743, 0
  %v1840 = vsel 1, %v1744, 0
  %v1841 = vsel 1, %v1745, 0
  %v1842 = vsel 1, %v1746, 0
  %v1843 = vsel 1, %v1747, 0
  %v1844 = vsel 1, %v1748, 0
  %v1845 = vsel 1, %v1749, 0
  %v1846 = vsel 1, %v1750, 0
  %v1847 = vsel 1, %v1751, 0
  %v1848 = vsel 1, %v1752, 0
  %v1849 = vsel 1, %v1753, 0
  %v1850 = vsel 1, %v1754, 0
  %v1851 = vsel 1, %v1755, 0
  %v1852 = vsel 1, %v1756, 0
  %v1853 = vsel 1, %v1757, 0
  %v1854 = vsel 1, %v1758, 0
  %v1855 = vsel 1, %v1759, 0
  %v1856 = vsel 1, %v1760, 0
  %v1857 = vsel 1, %v1761, 0
  %v1858 = vsel 1, %v1762, 0
  %v1859 = vsel 1, %v1763, 0
  %v1860 = vsel 1, %v1764, 0
  %v1861 = vsel 1, %v1765, 0
  %v1862 = vsel 1, %v1766, 0
  %v1863 = vsel 1, %v1767, 0
  %v1864 = vsel 1, %v1768, 0
  %v1865 = vsel 1, %v1769, 0
  %v1866 = vsel 1, %v1770, 0
  %v1867 = vsel 1, %v1771, 0
  %v1868 = vsel 1, %v1772, 0
  %v1869 = vsel 1, %v1773, 0
  %v1870 = vsel 1, %v1774, 0
  %v1871 = vsel 1, %v1775, 0
  %v1872 = vsel 1, %v1776, 0
  %v1873 = vsel 1, %v1777, 0
  %v1874 = vsel 1, %v1778, 0
  %v1875 = vsel 1, %v1779, 0
  %v1876 = vsel 1, %v1780, 0
  %v1877 = vsel 1, %v1781, 0
  %v1878 = vsel 1, %v1782, 0
  %v1879 = vsel 1, %v1783, 0
  %v1880 = vsel 0, %v1784, 0
  %v1881 = vsel 0, %v1785, 0
  %v1882 = vsel 0, %v1786, 0
  %v1883 = vsel 1, %v1787, 0
  %v1884 = vsel 1, %v1788, 0
  %v1885 = vsel 1, %v1789, 0
  %v1886 = vsel 1, %v1790, 0
  %v1887 = vsel 1, %v1791, 0
  %v1888 = vsel 1, %v1792, 0
  %v1889 = vsel 1, %v1793, 0
  %v1890 = vsel 1, %v1794, 0
  %v1891 = vsel 1, %v1795, 0
  %v1892 = vsel 1, %v1796, 0
  %v1893 = vsel 1, %v1797, 0
  %v1894 = vsel 1, %v1798, 0
  %v1895 = vsel 1, %v1799, 0
  %v1896 = vsel 1, %v1800, 0
  %v1897 = vsel 1, %v1801, 0
  %v1898 = vsel 1, %v1802, 0
  %v1899 = vsel 1, %v1803, 0
  %v1900 = vsel 1, %v1804, 0
  %v1901 = vsel 1, %v1805, 0
  %v1902 = vsel 1, %v1806, 0
  %v1903 = vsel 1, %v1807, 0
  %v1904 = vsel 1, %v1808, 0
  %v1905 = vsel 1, %v1809, 0
  %v1906 = vsel 1, %v1810, 0
  %v1907 = vsel 1, %v1811, 0
  %v1908 = vsel 1, %v1812, 0
  %v1909 = vsel 1, %v1813, 0
  %v1910 = vsel 1, %v1814, 0
  %v1911 = vsel 1, %v1815, 0
  %v1912 = vsel 1, %v1816, 0
  %v1913 = vsel 1, %v1817, 0
  %v1914 = vsel 1, %v1818, 0
  %v1915 = vsel 1, %v1819, 0
  %v1916 = vsel 1, %v1820, 0
  %v1917 = vsel 1, %v1821, 0
  %v1918 = vsel 1, %v1822, 0
  %v1919 = vsel 1, %v1823, 0
  %v1920 = vsel 1, %v1824, 0
  %v1921 = vsel 1, %v1825, 0
  %v1922 = vsel 1, %v1826, 0
  %v1923 = vsel 1, %v1827, 0
  %v1924 = vsel 1, %v1828, 0
  %v1925 = vsel 1, %v1829, 0
  %v1926 = vsel 1, %v1830, 0
  %v1927 = vsel 1, %v1831, 0
  %v1928 = vld [vmem:[%s1509] sm:$0xf]
  %v1929 = vld [vmem:[%s1509 + $0x4] sm:$0xf]
  %v1930 = vld [vmem:[%s1509 + $0x8] sm:$0x1]
  %v1931 = vld [vmem:[%s1509 + $0xc] sm:$0xf]
  %v1932 = vld [vmem:[%s1509 + $0x10] sm:$0xf]
  %v1933 = vld [vmem:[%s1509 + $0x14] sm:$0x1]
  %v1934 = vld [vmem:[%s1509 + $0x18] sm:$0xf]
  %v1935 = vld [vmem:[%s1509 + $0x1c] sm:$0xf]
  %v1936 = vld [vmem:[%s1509 + $0x20] sm:$0x1]
  %v1937 = vld [vmem:[%s1509 + $0x24] sm:$0xf]
  %v1938 = vld [vmem:[%s1509 + $0x28] sm:$0xf]
  %v1939 = vld [vmem:[%s1509 + $0x2c] sm:$0x1]
  %v1940 = vld [vmem:[%s1509 + $0x30] sm:$0xf]
  %v1941 = vld [vmem:[%s1509 + $0x34] sm:$0xf]
  %v1942 = vld [vmem:[%s1509 + $0x38] sm:$0x1]
  %v1943 = vld [vmem:[%s1509 + $0x3c] sm:$0xf]
  %v1944 = vld [vmem:[%s1509 + $0x40] sm:$0xf]
  %v1945 = vld [vmem:[%s1509 + $0x44] sm:$0x1]
  %v1946 = vld [vmem:[%s1509 + $0x48] sm:$0xf]
  %v1947 = vld [vmem:[%s1509 + $0x4c] sm:$0xf]
  %v1948 = vld [vmem:[%s1509 + $0x50] sm:$0x1]
  %v1949 = vld [vmem:[%s1509 + $0x54] sm:$0xf]
  %v1950 = vld [vmem:[%s1509 + $0x58] sm:$0xf]
  %v1951 = vld [vmem:[%s1509 + $0x5c] sm:$0x1]
  %v1952 = vld [vmem:[%s1509 + $0x60] sm:$0xf]
  %v1953 = vld [vmem:[%s1509 + $0x64] sm:$0xf]
  %v1954 = vld [vmem:[%s1509 + $0x68] sm:$0x1]
  %v1955 = vld [vmem:[%s1509 + $0x6c] sm:$0xf]
  %v1956 = vld [vmem:[%s1509 + $0x70] sm:$0xf]
  %v1957 = vld [vmem:[%s1509 + $0x74] sm:$0x1]
  %v1958 = vld [vmem:[%s1509 + $0x78] sm:$0xf]
  %v1959 = vld [vmem:[%s1509 + $0x7c] sm:$0xf]
  %v1960 = vld [vmem:[%s1509 + $0x80] sm:$0x1]
  %v1961 = vld [vmem:[%s1509 + $0x84] sm:$0xf]
  %v1962 = vld [vmem:[%s1509 + $0x88] sm:$0xf]
  %v1963 = vld [vmem:[%s1509 + $0x8c] sm:$0x1]
  %v1964 = vld [vmem:[%s1509 + $0x90] sm:$0xf]
  %v1965 = vld [vmem:[%s1509 + $0x94] sm:$0xf]
  %v1966 = vld [vmem:[%s1509 + $0x98] sm:$0x1]
  %v1967 = vld [vmem:[%s1509 + $0x9c] sm:$0xf]
  %v1968 = vld [vmem:[%s1509 + $0xa0] sm:$0xf]
  %v1969 = vld [vmem:[%s1509 + $0xa4] sm:$0x1]
  %v1970 = vld [vmem:[%s1509 + $0xa8] sm:$0xf]
  %v1971 = vld [vmem:[%s1509 + $0xac] sm:$0xf]
  %v1972 = vld [vmem:[%s1509 + $0xb0] sm:$0x1]
  %v1973 = vld [vmem:[%s1509 + $0xb4] sm:$0xf]
  %v1974 = vld [vmem:[%s1509 + $0xb8] sm:$0xf]
  %v1975 = vld [vmem:[%s1509 + $0xbc] sm:$0x1]
  %v1976 = vld [vmem:[%s1509 + $0xc0] sm:$0xf]
  %v1977 = vld [vmem:[%s1509 + $0xc4] sm:$0xf]
  %v1978 = vld [vmem:[%s1509 + $0xc8] sm:$0x1]
  %v1979 = vld [vmem:[%s1509 + $0xcc] sm:$0xf]
  %v1980 = vld [vmem:[%s1509 + $0xd0] sm:$0xf]
  %v1981 = vld [vmem:[%s1509 + $0xd4] sm:$0x1]
  %v1982 = vld [vmem:[%s1509 + $0xd8] sm:$0xf]
  %v1983 = vld [vmem:[%s1509 + $0xdc] sm:$0xf]
  %v1984 = vld [vmem:[%s1509 + $0xe0] sm:$0x1]
  %v1985 = vld [vmem:[%s1509 + $0xe4] sm:$0xf]
  %v1986 = vld [vmem:[%s1509 + $0xe8] sm:$0xf]
  %v1987 = vld [vmem:[%s1509 + $0xec] sm:$0x1]
  %v1988 = vld [vmem:[%s1509 + $0xf0] sm:$0xf]
  %v1989 = vld [vmem:[%s1509 + $0xf4] sm:$0xf]
  %v1990 = vld [vmem:[%s1509 + $0xf8] sm:$0x1]
  %v1991 = vld [vmem:[%s1509 + $0xfc] sm:$0xf]
  %v1992 = vld [vmem:[%s1509 + $0x100] sm:$0xf]
  %v1993 = vld [vmem:[%s1509 + $0x104] sm:$0x1]
  %v1994 = vld [vmem:[%s1509 + $0x108] sm:$0xf]
  %v1995 = vld [vmem:[%s1509 + $0x10c] sm:$0xf]
  %v1996 = vld [vmem:[%s1509 + $0x110] sm:$0x1]
  %v1997 = vld [vmem:[%s1509 + $0x114] sm:$0xf]
  %v1998 = vld [vmem:[%s1509 + $0x118] sm:$0xf]
  %v1999 = vld [vmem:[%s1509 + $0x11c] sm:$0x1]
  %v2000 = vld [vmem:[%s1509 + $0x120] sm:$0xf]
  %v2001 = vld [vmem:[%s1509 + $0x124] sm:$0xf]
  %v2002 = vld [vmem:[%s1509 + $0x128] sm:$0x1]
  %v2003 = vld [vmem:[%s1509 + $0x12c] sm:$0xf]
  %v2004 = vld [vmem:[%s1509 + $0x130] sm:$0xf]
  %v2005 = vld [vmem:[%s1509 + $0x134] sm:$0x1]
  %v2006 = vld [vmem:[%s1509 + $0x138] sm:$0xf]
  %v2007 = vld [vmem:[%s1509 + $0x13c] sm:$0xf]
  %v2008 = vld [vmem:[%s1509 + $0x140] sm:$0x1]
  %v2009 = vld [vmem:[%s1509 + $0x144] sm:$0xf]
  %v2010 = vld [vmem:[%s1509 + $0x148] sm:$0xf]
  %v2011 = vld [vmem:[%s1509 + $0x14c] sm:$0x1]
  %v2012 = vld [vmem:[%s1509 + $0x150] sm:$0xf]
  %v2013 = vld [vmem:[%s1509 + $0x154] sm:$0xf]
  %v2014 = vld [vmem:[%s1509 + $0x158] sm:$0x1]
  %v2015 = vld [vmem:[%s1509 + $0x15c] sm:$0xf]
  %v2016 = vld [vmem:[%s1509 + $0x160] sm:$0xf]
  %v2017 = vld [vmem:[%s1509 + $0x164] sm:$0x1]
  %v2018 = vld [vmem:[%s1509 + $0x168] sm:$0xf]
  %v2019 = vld [vmem:[%s1509 + $0x16c] sm:$0xf]
  %v2020 = vld [vmem:[%s1509 + $0x170] sm:$0x1]
  %v2021 = vld [vmem:[%s1509 + $0x174] sm:$0xf]
  %v2022 = vld [vmem:[%s1509 + $0x178] sm:$0xf]
  %v2023 = vld [vmem:[%s1509 + $0x17c] sm:$0x1]
  %s2024 = scalar_lea.vmem [#allocation2], 24
  %v2025 = vld [vmem:[%s2024] sm:$0xf]
  %v2026 = vld [vmem:[%s2024 + $0x4] sm:$0xf]
  %v2027 = vld [vmem:[%s2024 + $0x8] sm:$0x1]
  %v2028 = vld [vmem:[%s2024 + $0xc] sm:$0xf]
  %v2029 = vld [vmem:[%s2024 + $0x10] sm:$0xf]
  %v2030 = vld [vmem:[%s2024 + $0x14] sm:$0x1]
  %v2031 = vld [vmem:[%s2024 + $0x18] sm:$0xf]
  %v2032 = vld [vmem:[%s2024 + $0x1c] sm:$0xf]
  %v2033 = vld [vmem:[%s2024 + $0x20] sm:$0x1]
  %v2034 = vld [vmem:[%s2024 + $0x24] sm:$0xf]
  %v2035 = vld [vmem:[%s2024 + $0x28] sm:$0xf]
  %v2036 = vld [vmem:[%s2024 + $0x2c] sm:$0x1]
  %v2037 = vld [vmem:[%s2024 + $0x30] sm:$0xf]
  %v2038 = vld [vmem:[%s2024 + $0x34] sm:$0xf]
  %v2039 = vld [vmem:[%s2024 + $0x38] sm:$0x1]
  %v2040 = vld [vmem:[%s2024 + $0x3c] sm:$0xf]
  %v2041 = vld [vmem:[%s2024 + $0x40] sm:$0xf]
  %v2042 = vld [vmem:[%s2024 + $0x44] sm:$0x1]
  %v2043 = vld [vmem:[%s2024 + $0x48] sm:$0xf]
  %v2044 = vld [vmem:[%s2024 + $0x4c] sm:$0xf]
  %v2045 = vld [vmem:[%s2024 + $0x50] sm:$0x1]
  %v2046 = vld [vmem:[%s2024 + $0x54] sm:$0xf]
  %v2047 = vld [vmem:[%s2024 + $0x58] sm:$0xf]
  %v2048 = vld [vmem:[%s2024 + $0x5c] sm:$0x1]
  %v2049 = vld [vmem:[%s2024 + $0x60] sm:$0xf]
  %v2050 = vld [vmem:[%s2024 + $0x64] sm:$0xf]
  %v2051 = vld [vmem:[%s2024 + $0x68] sm:$0x1]
  %v2052 = vld [vmem:[%s2024 + $0x6c] sm:$0xf]
  %v2053 = vld [vmem:[%s2024 + $0x70] sm:$0xf]
  %v2054 = vld [vmem:[%s2024 + $0x74] sm:$0x1]
  %v2055 = vld [vmem:[%s2024 + $0x78] sm:$0xf]
  %v2056 = vld [vmem:[%s2024 + $0x7c] sm:$0xf]
  %v2057 = vld [vmem:[%s2024 + $0x80] sm:$0x1]
  %v2058 = vld [vmem:[%s2024 + $0x84] sm:$0xf]
  %v2059 = vld [vmem:[%s2024 + $0x88] sm:$0xf]
  %v2060 = vld [vmem:[%s2024 + $0x8c] sm:$0x1]
  %v2061 = vld [vmem:[%s2024 + $0x90] sm:$0xf]
  %v2062 = vld [vmem:[%s2024 + $0x94] sm:$0xf]
  %v2063 = vld [vmem:[%s2024 + $0x98] sm:$0x1]
  %v2064 = vld [vmem:[%s2024 + $0x9c] sm:$0xf]
  %v2065 = vld [vmem:[%s2024 + $0xa0] sm:$0xf]
  %v2066 = vld [vmem:[%s2024 + $0xa4] sm:$0x1]
  %v2067 = vld [vmem:[%s2024 + $0xa8] sm:$0xf]
  %v2068 = vld [vmem:[%s2024 + $0xac] sm:$0xf]
  %v2069 = vld [vmem:[%s2024 + $0xb0] sm:$0x1]
  %v2070 = vld [vmem:[%s2024 + $0xb4] sm:$0xf]
  %v2071 = vld [vmem:[%s2024 + $0xb8] sm:$0xf]
  %v2072 = vld [vmem:[%s2024 + $0xbc] sm:$0x1]
  %v2073 = vld [vmem:[%s2024 + $0xc0] sm:$0xf]
  %v2074 = vld [vmem:[%s2024 + $0xc4] sm:$0xf]
  %v2075 = vld [vmem:[%s2024 + $0xc8] sm:$0x1]
  %v2076 = vld [vmem:[%s2024 + $0xcc] sm:$0xf]
  %v2077 = vld [vmem:[%s2024 + $0xd0] sm:$0xf]
  %v2078 = vld [vmem:[%s2024 + $0xd4] sm:$0x1]
  %v2079 = vld [vmem:[%s2024 + $0xd8] sm:$0xf]
  %v2080 = vld [vmem:[%s2024 + $0xdc] sm:$0xf]
  %v2081 = vld [vmem:[%s2024 + $0xe0] sm:$0x1]
  %v2082 = vld [vmem:[%s2024 + $0xe4] sm:$0xf]
  %v2083 = vld [vmem:[%s2024 + $0xe8] sm:$0xf]
  %v2084 = vld [vmem:[%s2024 + $0xec] sm:$0x1]
  %v2085 = vld [vmem:[%s2024 + $0xf0] sm:$0xf]
  %v2086 = vld [vmem:[%s2024 + $0xf4] sm:$0xf]
  %v2087 = vld [vmem:[%s2024 + $0xf8] sm:$0x1]
  %v2088 = vld [vmem:[%s2024 + $0xfc] sm:$0xf]
  %v2089 = vld [vmem:[%s2024 + $0x100] sm:$0xf]
  %v2090 = vld [vmem:[%s2024 + $0x104] sm:$0x1]
  %v2091 = vld [vmem:[%s2024 + $0x108] sm:$0xf]
  %v2092 = vld [vmem:[%s2024 + $0x10c] sm:$0xf]
  %v2093 = vld [vmem:[%s2024 + $0x110] sm:$0x1]
  %v2094 = vld [vmem:[%s2024 + $0x114] sm:$0xf]
  %v2095 = vld [vmem:[%s2024 + $0x118] sm:$0xf]
  %v2096 = vld [vmem:[%s2024 + $0x11c] sm:$0x1]
  %v2097 = vld [vmem:[%s2024 + $0x120] sm:$0xf]
  %v2098 = vld [vmem:[%s2024 + $0x124] sm:$0xf]
  %v2099 = vld [vmem:[%s2024 + $0x128] sm:$0x1]
  %v2100 = vld [vmem:[%s2024 + $0x12c] sm:$0xf]
  %v2101 = vld [vmem:[%s2024 + $0x130] sm:$0xf]
  %v2102 = vld [vmem:[%s2024 + $0x134] sm:$0x1]
  %v2103 = vld [vmem:[%s2024 + $0x138] sm:$0xf]
  %v2104 = vld [vmem:[%s2024 + $0x13c] sm:$0xf]
  %v2105 = vld [vmem:[%s2024 + $0x140] sm:$0x1]
  %v2106 = vld [vmem:[%s2024 + $0x144] sm:$0xf]
  %v2107 = vld [vmem:[%s2024 + $0x148] sm:$0xf]
  %v2108 = vld [vmem:[%s2024 + $0x14c] sm:$0x1]
  %v2109 = vld [vmem:[%s2024 + $0x150] sm:$0xf]
  %v2110 = vld [vmem:[%s2024 + $0x154] sm:$0xf]
  %v2111 = vld [vmem:[%s2024 + $0x158] sm:$0x1]
  %v2112 = vld [vmem:[%s2024 + $0x15c] sm:$0xf]
  %v2113 = vld [vmem:[%s2024 + $0x160] sm:$0xf]
  %v2114 = vld [vmem:[%s2024 + $0x164] sm:$0x1]
  %v2115 = vld [vmem:[%s2024 + $0x168] sm:$0xf]
  %v2116 = vld [vmem:[%s2024 + $0x16c] sm:$0xf]
  %v2117 = vld [vmem:[%s2024 + $0x170] sm:$0x1]
  %v2118 = vld [vmem:[%s2024 + $0x174] sm:$0xf]
  %v2119 = vld [vmem:[%s2024 + $0x178] sm:$0xf]
  %v2120 = vld [vmem:[%s2024 + $0x17c] sm:$0x1]
  %v2121 = vsel 1, %v2025, 0
  %v2122 = vsel 1, %v2026, 0
  %v2123 = vsel 1, %v2027, 0
  %v2124 = vsel 1, %v2028, 0
  %v2125 = vsel 1, %v2029, 0
  %v2126 = vsel 1, %v2030, 0
  %v2127 = vsel 1, %v2031, 0
  %v2128 = vsel 1, %v2032, 0
  %v2129 = vsel 1, %v2033, 0
  %v2130 = vsel 1, %v2034, 0
  %v2131 = vsel 1, %v2035, 0
  %v2132 = vsel 1, %v2036, 0
  %v2133 = vsel 1, %v2037, 0
  %v2134 = vsel 1, %v2038, 0
  %v2135 = vsel 1, %v2039, 0
  %v2136 = vsel 1, %v2040, 0
  %v2137 = vsel 1, %v2041, 0
  %v2138 = vsel 1, %v2042, 0
  %v2139 = vsel 1, %v2043, 0
  %v2140 = vsel 1, %v2044, 0
  %v2141 = vsel 1, %v2045, 0
  %v2142 = vsel 1, %v2046, 0
  %v2143 = vsel 1, %v2047, 0
  %v2144 = vsel 1, %v2048, 0
  %v2145 = vsel 1, %v2049, 0
  %v2146 = vsel 1, %v2050, 0
  %v2147 = vsel 1, %v2051, 0
  %v2148 = vsel 1, %v2052, 0
  %v2149 = vsel 1, %v2053, 0
  %v2150 = vsel 1, %v2054, 0
  %v2151 = vsel 1, %v2055, 0
  %v2152 = vsel 1, %v2056, 0
  %v2153 = vsel 1, %v2057, 0
  %v2154 = vsel 1, %v2058, 0
  %v2155 = vsel 1, %v2059, 0
  %v2156 = vsel 1, %v2060, 0
  %v2157 = vsel 1, %v2061, 0
  %v2158 = vsel 1, %v2062, 0
  %v2159 = vsel 1, %v2063, 0
  %v2160 = vsel 1, %v2064, 0
  %v2161 = vsel 1, %v2065, 0
  %v2162 = vsel 1, %v2066, 0
  %v2163 = vsel 1, %v2067, 0
  %v2164 = vsel 1, %v2068, 0
  %v2165 = vsel 1, %v2069, 0
  %v2166 = vsel 0, %v2070, 0
  %v2167 = vsel 0, %v2071, 0
  %v2168 = vsel 0, %v2072, 0
  %v2169 = vsel 1, %v2073, 0
  %v2170 = vsel 1, %v2074, 0
  %v2171 = vsel 1, %v2075, 0
  %v2172 = vsel 1, %v2076, 0
  %v2173 = vsel 1, %v2077, 0
  %v2174 = vsel 1, %v2078, 0
  %v2175 = vsel 1, %v2079, 0
  %v2176 = vsel 1, %v2080, 0
  %v2177 = vsel 1, %v2081, 0
  %v2178 = vsel 1, %v2082, 0
  %v2179 = vsel 1, %v2083, 0
  %v2180 = vsel 1, %v2084, 0
  %v2181 = vsel 1, %v2085, 0
  %v2182 = vsel 1, %v2086, 0
  %v2183 = vsel 1, %v2087, 0
  %v2184 = vsel 1, %v2088, 0
  %v2185 = vsel 1, %v2089, 0
  %v2186 = vsel 1, %v2090, 0
  %v2187 = vsel 1, %v2091, 0
  %v2188 = vsel 1, %v2092, 0
  %v2189 = vsel 1, %v2093, 0
  %v2190 = vsel 1, %v2094, 0
  %v2191 = vsel 1, %v2095, 0
  %v2192 = vsel 1, %v2096, 0
  %v2193 = vsel 1, %v2097, 0
  %v2194 = vsel 1, %v2098, 0
  %v2195 = vsel 1, %v2099, 0
  %v2196 = vsel 1, %v2100, 0
  %v2197 = vsel 1, %v2101, 0
  %v2198 = vsel 1, %v2102, 0
  %v2199 = vsel 1, %v2103, 0
  %v2200 = vsel 1, %v2104, 0
  %v2201 = vsel 1, %v2105, 0
  %v2202 = vsel 1, %v2106, 0
  %v2203 = vsel 1, %v2107, 0
  %v2204 = vsel 1, %v2108, 0
  %v2205 = vsel 1, %v2109, 0
  %v2206 = vsel 1, %v2110, 0
  %v2207 = vsel 1, %v2111, 0
  %v2208 = vsel 1, %v2112, 0
  %v2209 = vsel 1, %v2113, 0
  %v2210 = vsel 1, %v2114, 0
  %v2211 = vsel 1, %v2115, 0
  %v2212 = vsel 1, %v2116, 0
  %v2213 = vsel 1, %v2117, 0
  %v2214 = vsel 0, %v2118, 0
  %v2215 = vsel 0, %v2119, 0
  %v2216 = vsel 0, %v2120, 0
  %v2281 = vunpack.c.l.b16 %v1832
  %v2282 = vunpack.c.l.b16 %v1833
  %v2283 = vunpack.c.l.b16 %v1835
  %v2284 = vunpack.c.l.b16 %v1836
  %v2285 = vunpack.c.l.b16 %v1838
  %v2286 = vunpack.c.l.b16 %v1839
  %v2287 = vunpack.c.l.b16 %v1841
  %v2288 = vunpack.c.l.b16 %v1842
  %v2289 = vunpack.c.l.b16 %v1844
  %v2290 = vunpack.c.l.b16 %v1845
  %v2291 = vunpack.c.l.b16 %v1847
  %v2292 = vunpack.c.l.b16 %v1848
  %v2293 = vunpack.c.l.b16 %v1850
  %v2294 = vunpack.c.l.b16 %v1851
  %v2295 = vunpack.c.l.b16 %v1853
  %v2296 = vunpack.c.l.b16 %v1854
  %v2297 = vunpack.c.l.b16 %v1856
  %v2298 = vunpack.c.l.b16 %v1857
  %v2299 = vunpack.c.l.b16 %v1859
  %v2300 = vunpack.c.l.b16 %v1860
  %v2301 = vunpack.c.l.b16 %v1862
  %v2302 = vunpack.c.l.b16 %v1863
  %v2303 = vunpack.c.l.b16 %v1865
  %v2304 = vunpack.c.l.b16 %v1866
  %v2305 = vunpack.c.l.b16 %v1868
  %v2306 = vunpack.c.l.b16 %v1869
  %v2307 = vunpack.c.l.b16 %v1871
  %v2308 = vunpack.c.l.b16 %v1872
  %v2309 = vunpack.c.l.b16 %v1874
  %v2310 = vunpack.c.l.b16 %v1875
  %v2311 = vunpack.c.l.b16 %v1877
  %v2312 = vunpack.c.l.b16 %v1878
  %v2313 = vunpack.c.l.b16 %v1880
  %v2314 = vunpack.c.l.b16 %v1881
  %v2315 = vunpack.c.l.b16 %v1883
  %v2316 = vunpack.c.l.b16 %v1884
  %v2317 = vunpack.c.l.b16 %v1886
  %v2318 = vunpack.c.l.b16 %v1887
  %v2319 = vunpack.c.l.b16 %v1889
  %v2320 = vunpack.c.l.b16 %v1890
  %v2321 = vunpack.c.l.b16 %v1892
  %v2322 = vunpack.c.l.b16 %v1893
  %v2323 = vunpack.c.l.b16 %v1895
  %v2324 = vunpack.c.l.b16 %v1896
  %v2325 = vunpack.c.l.b16 %v1898
  %v2326 = vunpack.c.l.b16 %v1899
  %v2327 = vunpack.c.l.b16 %v1901
  %v2328 = vunpack.c.l.b16 %v1902
  %v2329 = vunpack.c.l.b16 %v1904
  %v2330 = vunpack.c.l.b16 %v1905
  %v2331 = vunpack.c.l.b16 %v1907
  %v2332 = vunpack.c.l.b16 %v1908
  %v2333 = vunpack.c.l.b16 %v1910
  %v2334 = vunpack.c.l.b16 %v1911
  %v2335 = vunpack.c.l.b16 %v1913
  %v2336 = vunpack.c.l.b16 %v1914
  %v2337 = vunpack.c.l.b16 %v1916
  %v2338 = vunpack.c.l.b16 %v1917
  %v2339 = vunpack.c.l.b16 %v1919
  %v2340 = vunpack.c.l.b16 %v1920
  %v2341 = vunpack.c.l.b16 %v1922
  %v2342 = vunpack.c.l.b16 %v1923
  %v2343 = vunpack.c.l.b16 %v1925
  %v2344 = vunpack.c.l.b16 %v1926
  %v2345 = vpack.c.b16 %v2282, %v2281
  %v2346 = vpack.c.b16 %v2284, %v2283
  %v2347 = vpack.c.b16 %v2286, %v2285
  %v2348 = vpack.c.b16 %v2288, %v2287
  %v2349 = vpack.c.b16 %v2290, %v2289
  %v2350 = vpack.c.b16 %v2292, %v2291
  %v2351 = vpack.c.b16 %v2294, %v2293
  %v2352 = vpack.c.b16 %v2296, %v2295
  %v2353 = vpack.c.b16 %v2298, %v2297
  %v2354 = vpack.c.b16 %v2300, %v2299
  %v2355 = vpack.c.b16 %v2302, %v2301
  %v2356 = vpack.c.b16 %v2304, %v2303
  %v2357 = vpack.c.b16 %v2306, %v2305
  %v2358 = vpack.c.b16 %v2308, %v2307
  %v2359 = vpack.c.b16 %v2310, %v2309
  %v2360 = vpack.c.b16 %v2312, %v2311
  %v2361 = vpack.c.b16 %v2314, %v2313
  %v2362 = vpack.c.b16 %v2316, %v2315
  %v2363 = vpack.c.b16 %v2318, %v2317
  %v2364 = vpack.c.b16 %v2320, %v2319
  %v2365 = vpack.c.b16 %v2322, %v2321
  %v2366 = vpack.c.b16 %v2324, %v2323
  %v2367 = vpack.c.b16 %v2326, %v2325
  %v2368 = vpack.c.b16 %v2328, %v2327
  %v2369 = vpack.c.b16 %v2330, %v2329
  %v2370 = vpack.c.b16 %v2332, %v2331
  %v2371 = vpack.c.b16 %v2334, %v2333
  %v2372 = vpack.c.b16 %v2336, %v2335
  %v2373 = vpack.c.b16 %v2338, %v2337
  %v2374 = vpack.c.b16 %v2340, %v2339
  %v2375 = vpack.c.b16 %v2342, %v2341
  %v2376 = vpack.c.b16 %v2344, %v2343
  %v2409 = vunpack.c.l.b16 %v1834
  %v2410 = vunpack.c.l.b16 %v1837
  %v2411 = vunpack.c.l.b16 %v1840
  %v2412 = vunpack.c.l.b16 %v1843
  %v2413 = vunpack.c.l.b16 %v1846
  %v2414 = vunpack.c.l.b16 %v1849
  %v2415 = vunpack.c.l.b16 %v1852
  %v2416 = vunpack.c.l.b16 %v1855
  %v2417 = vunpack.c.l.b16 %v1858
  %v2418 = vunpack.c.l.b16 %v1861
  %v2419 = vunpack.c.l.b16 %v1864
  %v2420 = vunpack.c.l.b16 %v1867
  %v2421 = vunpack.c.l.b16 %v1870
  %v2422 = vunpack.c.l.b16 %v1873
  %v2423 = vunpack.c.l.b16 %v1876
  %v2424 = vunpack.c.l.b16 %v1879
  %v2425 = vunpack.c.l.b16 %v1882
  %v2426 = vunpack.c.l.b16 %v1885
  %v2427 = vunpack.c.l.b16 %v1888
  %v2428 = vunpack.c.l.b16 %v1891
  %v2429 = vunpack.c.l.b16 %v1894
  %v2430 = vunpack.c.l.b16 %v1897
  %v2431 = vunpack.c.l.b16 %v1900
  %v2432 = vunpack.c.l.b16 %v1903
  %v2433 = vunpack.c.l.b16 %v1906
  %v2434 = vunpack.c.l.b16 %v1909
  %v2435 = vunpack.c.l.b16 %v1912
  %v2436 = vunpack.c.l.b16 %v1915
  %v2437 = vunpack.c.l.b16 %v1918
  %v2438 = vunpack.c.l.b16 %v1921
  %v2439 = vunpack.c.l.b16 %v1924
  %v2440 = vunpack.c.l.b16 %v1927
  %v2441 = vpack.c.b16 %v2409, %v2409
  %v2442 = vpack.c.b16 %v2410, %v2410
  %v2443 = vpack.c.b16 %v2411, %v2411
  %v2444 = vpack.c.b16 %v2412, %v2412
  %v2445 = vpack.c.b16 %v2413, %v2413
  %v2446 = vpack.c.b16 %v2414, %v2414
  %v2447 = vpack.c.b16 %v2415, %v2415
  %v2448 = vpack.c.b16 %v2416, %v2416
  %v2449 = vpack.c.b16 %v2417, %v2417
  %v2450 = vpack.c.b16 %v2418, %v2418
  %v2451 = vpack.c.b16 %v2419, %v2419
  %v2452 = vpack.c.b16 %v2420, %v2420
  %v2453 = vpack.c.b16 %v2421, %v2421
  %v2454 = vpack.c.b16 %v2422, %v2422
  %v2455 = vpack.c.b16 %v2423, %v2423
  %v2456 = vpack.c.b16 %v2424, %v2424
  %v2457 = vpack.c.b16 %v2425, %v2425
  %v2458 = vpack.c.b16 %v2426, %v2426
  %v2459 = vpack.c.b16 %v2427, %v2427
  %v2460 = vpack.c.b16 %v2428, %v2428
  %v2461 = vpack.c.b16 %v2429, %v2429
  %v2462 = vpack.c.b16 %v2430, %v2430
  %v2463 = vpack.c.b16 %v2431, %v2431
  %v2464 = vpack.c.b16 %v2432, %v2432
  %v2465 = vpack.c.b16 %v2433, %v2433
  %v2466 = vpack.c.b16 %v2434, %v2434
  %v2467 = vpack.c.b16 %v2435, %v2435
  %v2468 = vpack.c.b16 %v2436, %v2436
  %v2469 = vpack.c.b16 %v2437, %v2437
  %v2470 = vpack.c.b16 %v2438, %v2438
  %v2471 = vpack.c.b16 %v2439, %v2439
  %v2472 = vpack.c.b16 %v2440, %v2440
  %vm2473 = vsmask.f32 7424
  %v2475 = vshrl.u32 %v2345, 16
  %v2477 = vshll.u32 %v2345, 16
  %v2479 = vrot.slane %v2477, 1
  %v2480 = vor.u32 %v2475, %v2479
  %v2482 = vshll.u32 %v2441, 16
  %v2484 = vrot.slane %v2482, 1
  %v2485 = vsel %vm2473, %v2480, %v2484
  %v2487 = vshrl.u32 %v2346, 16
  %v2489 = vshll.u32 %v2346, 16
  %v2491 = vrot.slane %v2489, 1
  %v2492 = vor.u32 %v2487, %v2491
  %v2494 = vshll.u32 %v2442, 16
  %v2496 = vrot.slane %v2494, 1
  %v2497 = vsel %vm2473, %v2492, %v2496
  %v2499 = vshrl.u32 %v2347, 16
  %v2501 = vshll.u32 %v2347, 16
  %v2503 = vrot.slane %v2501, 1
  %v2504 = vor.u32 %v2499, %v2503
  %v2506 = vshll.u32 %v2443, 16
  %v2508 = vrot.slane %v2506, 1
  %v2509 = vsel %vm2473, %v2504, %v2508
  %v2511 = vshrl.u32 %v2348, 16
  %v2513 = vshll.u32 %v2348, 16
  %v2515 = vrot.slane %v2513, 1
  %v2516 = vor.u32 %v2511, %v2515
  %v2518 = vshll.u32 %v2444, 16
  %v2520 = vrot.slane %v2518, 1
  %v2521 = vsel %vm2473, %v2516, %v2520
  %v2523 = vshrl.u32 %v2349, 16
  %v2525 = vshll.u32 %v2349, 16
  %v2527 = vrot.slane %v2525, 1
  %v2528 = vor.u32 %v2523, %v2527
  %v2530 = vshll.u32 %v2445, 16
  %v2532 = vrot.slane %v2530, 1
  %v2533 = vsel %vm2473, %v2528, %v2532
  %v2535 = vshrl.u32 %v2350, 16
  %v2537 = vshll.u32 %v2350, 16
  %v2539 = vrot.slane %v2537, 1
  %v2540 = vor.u32 %v2535, %v2539
  %v2542 = vshll.u32 %v2446, 16
  %v2544 = vrot.slane %v2542, 1
  %v2545 = vsel %vm2473, %v2540, %v2544
  %v2547 = vshrl.u32 %v2351, 16
  %v2549 = vshll.u32 %v2351, 16
  %v2551 = vrot.slane %v2549, 1
  %v2552 = vor.u32 %v2547, %v2551
  %v2554 = vshll.u32 %v2447, 16
  %v2556 = vrot.slane %v2554, 1
  %v2557 = vsel %vm2473, %v2552, %v2556
  %v2559 = vshrl.u32 %v2352, 16
  %v2561 = vshll.u32 %v2352, 16
  %v2563 = vrot.slane %v2561, 1
  %v2564 = vor.u32 %v2559, %v2563
  %v2566 = vshll.u32 %v2448, 16
  %v2568 = vrot.slane %v2566, 1
  %v2569 = vsel %vm2473, %v2564, %v2568
  %v2571 = vshrl.u32 %v2353, 16
  %v2573 = vshll.u32 %v2353, 16
  %v2575 = vrot.slane %v2573, 1
  %v2576 = vor.u32 %v2571, %v2575
  %v2578 = vshll.u32 %v2449, 16
  %v2580 = vrot.slane %v2578, 1
  %v2581 = vsel %vm2473, %v2576, %v2580
  %v2583 = vshrl.u32 %v2354, 16
  %v2585 = vshll.u32 %v2354, 16
  %v2587 = vrot.slane %v2585, 1
  %v2588 = vor.u32 %v2583, %v2587
  %v2590 = vshll.u32 %v2450, 16
  %v2592 = vrot.slane %v2590, 1
  %v2593 = vsel %vm2473, %v2588, %v2592
  %v2595 = vshrl.u32 %v2355, 16
  %v2597 = vshll.u32 %v2355, 16
  %v2599 = vrot.slane %v2597, 1
  %v2600 = vor.u32 %v2595, %v2599
  %v2602 = vshll.u32 %v2451, 16
  %v2604 = vrot.slane %v2602, 1
  %v2605 = vsel %vm2473, %v2600, %v2604
  %v2607 = vshrl.u32 %v2356, 16
  %v2609 = vshll.u32 %v2356, 16
  %v2611 = vrot.slane %v2609, 1
  %v2612 = vor.u32 %v2607, %v2611
  %v2614 = vshll.u32 %v2452, 16
  %v2616 = vrot.slane %v2614, 1
  %v2617 = vsel %vm2473, %v2612, %v2616
  %v2619 = vshrl.u32 %v2357, 16
  %v2621 = vshll.u32 %v2357, 16
  %v2623 = vrot.slane %v2621, 1
  %v2624 = vor.u32 %v2619, %v2623
  %v2626 = vshll.u32 %v2453, 16
  %v2628 = vrot.slane %v2626, 1
  %v2629 = vsel %vm2473, %v2624, %v2628
  %v2631 = vshrl.u32 %v2358, 16
  %v2633 = vshll.u32 %v2358, 16
  %v2635 = vrot.slane %v2633, 1
  %v2636 = vor.u32 %v2631, %v2635
  %v2638 = vshll.u32 %v2454, 16
  %v2640 = vrot.slane %v2638, 1
  %v2641 = vsel %vm2473, %v2636, %v2640
  %v2643 = vshrl.u32 %v2359, 16
  %v2645 = vshll.u32 %v2359, 16
  %v2647 = vrot.slane %v2645, 1
  %v2648 = vor.u32 %v2643, %v2647
  %v2650 = vshll.u32 %v2455, 16
  %v2652 = vrot.slane %v2650, 1
  %v2653 = vsel %vm2473, %v2648, %v2652
  %v2655 = vshrl.u32 %v2360, 16
  %v2657 = vshll.u32 %v2360, 16
  %v2659 = vrot.slane %v2657, 1
  %v2660 = vor.u32 %v2655, %v2659
  %v2662 = vshll.u32 %v2456, 16
  %v2664 = vrot.slane %v2662, 1
  %v2665 = vsel %vm2473, %v2660, %v2664
  %v2667 = vshrl.u32 %v2361, 16
  %v2669 = vshll.u32 %v2361, 16
  %v2671 = vrot.slane %v2669, 1
  %v2672 = vor.u32 %v2667, %v2671
  %v2674 = vshll.u32 %v2457, 16
  %v2676 = vrot.slane %v2674, 1
  %v2677 = vsel %vm2473, %v2672, %v2676
  %v2679 = vshrl.u32 %v2362, 16
  %v2681 = vshll.u32 %v2362, 16
  %v2683 = vrot.slane %v2681, 1
  %v2684 = vor.u32 %v2679, %v2683
  %v2686 = vshll.u32 %v2458, 16
  %v2688 = vrot.slane %v2686, 1
  %v2689 = vsel %vm2473, %v2684, %v2688
  %v2691 = vshrl.u32 %v2363, 16
  %v2693 = vshll.u32 %v2363, 16
  %v2695 = vrot.slane %v2693, 1
  %v2696 = vor.u32 %v2691, %v2695
  %v2698 = vshll.u32 %v2459, 16
  %v2700 = vrot.slane %v2698, 1
  %v2701 = vsel %vm2473, %v2696, %v2700
  %v2703 = vshrl.u32 %v2364, 16
  %v2705 = vshll.u32 %v2364, 16
  %v2707 = vrot.slane %v2705, 1
  %v2708 = vor.u32 %v2703, %v2707
  %v2710 = vshll.u32 %v2460, 16
  %v2712 = vrot.slane %v2710, 1
  %v2713 = vsel %vm2473, %v2708, %v2712
  %v2715 = vshrl.u32 %v2365, 16
  %v2717 = vshll.u32 %v2365, 16
  %v2719 = vrot.slane %v2717, 1
  %v2720 = vor.u32 %v2715, %v2719
  %v2722 = vshll.u32 %v2461, 16
  %v2724 = vrot.slane %v2722, 1
  %v2725 = vsel %vm2473, %v2720, %v2724
  %v2727 = vshrl.u32 %v2366, 16
  %v2729 = vshll.u32 %v2366, 16
  %v2731 = vrot.slane %v2729, 1
  %v2732 = vor.u32 %v2727, %v2731
  %v2734 = vshll.u32 %v2462, 16
  %v2736 = vrot.slane %v2734, 1
  %v2737 = vsel %vm2473, %v2732, %v2736
  %v2739 = vshrl.u32 %v2367, 16
  %v2741 = vshll.u32 %v2367, 16
  %v2743 = vrot.slane %v2741, 1
  %v2744 = vor.u32 %v2739, %v2743
  %v2746 = vshll.u32 %v2463, 16
  %v2748 = vrot.slane %v2746, 1
  %v2749 = vsel %vm2473, %v2744, %v2748
  %v2751 = vshrl.u32 %v2368, 16
  %v2753 = vshll.u32 %v2368, 16
  %v2755 = vrot.slane %v2753, 1
  %v2756 = vor.u32 %v2751, %v2755
  %v2758 = vshll.u32 %v2464, 16
  %v2760 = vrot.slane %v2758, 1
  %v2761 = vsel %vm2473, %v2756, %v2760
  %v2763 = vshrl.u32 %v2369, 16
  %v2765 = vshll.u32 %v2369, 16
  %v2767 = vrot.slane %v2765, 1
  %v2768 = vor.u32 %v2763, %v2767
  %v2770 = vshll.u32 %v2465, 16
  %v2772 = vrot.slane %v2770, 1
  %v2773 = vsel %vm2473, %v2768, %v2772
  %v2775 = vshrl.u32 %v2370, 16
  %v2777 = vshll.u32 %v2370, 16
  %v2779 = vrot.slane %v2777, 1
  %v2780 = vor.u32 %v2775, %v2779
  %v2782 = vshll.u32 %v2466, 16
  %v2784 = vrot.slane %v2782, 1
  %v2785 = vsel %vm2473, %v2780, %v2784
  %v2787 = vshrl.u32 %v2371, 16
  %v2789 = vshll.u32 %v2371, 16
  %v2791 = vrot.slane %v2789, 1
  %v2792 = vor.u32 %v2787, %v2791
  %v2794 = vshll.u32 %v2467, 16
  %v2796 = vrot.slane %v2794, 1
  %v2797 = vsel %vm2473, %v2792, %v2796
  %v2799 = vshrl.u32 %v2372, 16
  %v2801 = vshll.u32 %v2372, 16
  %v2803 = vrot.slane %v2801, 1
  %v2804 = vor.u32 %v2799, %v2803
  %v2806 = vshll.u32 %v2468, 16
  %v2808 = vrot.slane %v2806, 1
  %v2809 = vsel %vm2473, %v2804, %v2808
  %v2811 = vshrl.u32 %v2373, 16
  %v2813 = vshll.u32 %v2373, 16
  %v2815 = vrot.slane %v2813, 1
  %v2816 = vor.u32 %v2811, %v2815
  %v2818 = vshll.u32 %v2469, 16
  %v2820 = vrot.slane %v2818, 1
  %v2821 = vsel %vm2473, %v2816, %v2820
  %v2823 = vshrl.u32 %v2374, 16
  %v2825 = vshll.u32 %v2374, 16
  %v2827 = vrot.slane %v2825, 1
  %v2828 = vor.u32 %v2823, %v2827
  %v2830 = vshll.u32 %v2470, 16
  %v2832 = vrot.slane %v2830, 1
  %v2833 = vsel %vm2473, %v2828, %v2832
  %v2835 = vshrl.u32 %v2375, 16
  %v2837 = vshll.u32 %v2375, 16
  %v2839 = vrot.slane %v2837, 1
  %v2840 = vor.u32 %v2835, %v2839
  %v2842 = vshll.u32 %v2471, 16
  %v2844 = vrot.slane %v2842, 1
  %v2845 = vsel %vm2473, %v2840, %v2844
  %v2847 = vshrl.u32 %v2376, 16
  %v2849 = vshll.u32 %v2376, 16
  %v2851 = vrot.slane %v2849, 1
  %v2852 = vor.u32 %v2847, %v2851
  %v2854 = vshll.u32 %v2472, 16
  %v2856 = vrot.slane %v2854, 1
  %v2857 = vsel %vm2473, %v2852, %v2856
  %2858 = vrot.lane.b32.xlu0 %v2485, 4
  %v2859 = vpop.permute.xlu0 %2858
  %2860 = vrot.lane.b32.xlu0 %v2497, 4
  %v2861 = vpop.permute.xlu0 %2860
  %2862 = vrot.lane.b32.xlu0 %v2509, 4
  %v2863 = vpop.permute.xlu0 %2862
  %2864 = vrot.lane.b32.xlu0 %v2521, 4
  %v2865 = vpop.permute.xlu0 %2864
  %2866 = vrot.lane.b32.xlu0 %v2533, 4
  %v2867 = vpop.permute.xlu0 %2866
  %2868 = vrot.lane.b32.xlu0 %v2545, 4
  %v2869 = vpop.permute.xlu0 %2868
  %2870 = vrot.lane.b32.xlu0 %v2557, 4
  %v2871 = vpop.permute.xlu0 %2870
  %2872 = vrot.lane.b32.xlu0 %v2569, 4
  %v2873 = vpop.permute.xlu0 %2872
  %2874 = vrot.lane.b32.xlu0 %v2581, 4
  %v2875 = vpop.permute.xlu0 %2874
  %2876 = vrot.lane.b32.xlu0 %v2593, 4
  %v2877 = vpop.permute.xlu0 %2876
  %2878 = vrot.lane.b32.xlu0 %v2605, 4
  %v2879 = vpop.permute.xlu0 %2878
  %2880 = vrot.lane.b32.xlu0 %v2617, 4
  %v2881 = vpop.permute.xlu0 %2880
  %2882 = vrot.lane.b32.xlu0 %v2629, 4
  %v2883 = vpop.permute.xlu0 %2882
  %2884 = vrot.lane.b32.xlu0 %v2641, 4
  %v2885 = vpop.permute.xlu0 %2884
  %2886 = vrot.lane.b32.xlu0 %v2653, 4
  %v2887 = vpop.permute.xlu0 %2886
  %2888 = vrot.lane.b32.xlu0 %v2665, 4
  %v2889 = vpop.permute.xlu0 %2888
  %2890 = vrot.lane.b32.xlu0 %v2677, 4
  %v2891 = vpop.permute.xlu0 %2890
  %2892 = vrot.lane.b32.xlu0 %v2689, 4
  %v2893 = vpop.permute.xlu0 %2892
  %2894 = vrot.lane.b32.xlu0 %v2701, 4
  %v2895 = vpop.permute.xlu0 %2894
  %2896 = vrot.lane.b32.xlu0 %v2713, 4
  %v2897 = vpop.permute.xlu0 %2896
  %2898 = vrot.lane.b32.xlu0 %v2725, 4
  %v2899 = vpop.permute.xlu0 %2898
  %2900 = vrot.lane.b32.xlu0 %v2737, 4
  %v2901 = vpop.permute.xlu0 %2900
  %2902 = vrot.lane.b32.xlu0 %v2749, 4
  %v2903 = vpop.permute.xlu0 %2902
  %2904 = vrot.lane.b32.xlu0 %v2761, 4
  %v2905 = vpop.permute.xlu0 %2904
  %2906 = vrot.lane.b32.xlu0 %v2773, 4
  %v2907 = vpop.permute.xlu0 %2906
  %2908 = vrot.lane.b32.xlu0 %v2785, 4
  %v2909 = vpop.permute.xlu0 %2908
  %2910 = vrot.lane.b32.xlu0 %v2797, 4
  %v2911 = vpop.permute.xlu0 %2910
  %2912 = vrot.lane.b32.xlu0 %v2809, 4
  %v2913 = vpop.permute.xlu0 %2912
  %2914 = vrot.lane.b32.xlu0 %v2821, 4
  %v2915 = vpop.permute.xlu0 %2914
  %2916 = vrot.lane.b32.xlu0 %v2833, 4
  %v2917 = vpop.permute.xlu0 %2916
  %2918 = vrot.lane.b32.xlu0 %v2845, 4
  %v2919 = vpop.permute.xlu0 %2918
  %2920 = vrot.lane.b32.xlu0 %v2857, 4
  %v2921 = vpop.permute.xlu0 %2920
  %vm2922 = vcmask 1046528
  %v2923 = vrot.slane %v2345, 1
  %v2924 = vrot.slane %v2441, 1
  %v2925 = vsel %vm2922, %v2923, %v2924
  %v2926 = vrot.slane %v2346, 1
  %v2927 = vrot.slane %v2442, 1
  %v2928 = vsel %vm2922, %v2926, %v2927
  %v2929 = vrot.slane %v2347, 1
  %v2930 = vrot.slane %v2443, 1
  %v2931 = vsel %vm2922, %v2929, %v2930
  %v2932 = vrot.slane %v2348, 1
  %v2933 = vrot.slane %v2444, 1
  %v2934 = vsel %vm2922, %v2932, %v2933
  %v2935 = vrot.slane %v2349, 1
  %v2936 = vrot.slane %v2445, 1
  %v2937 = vsel %vm2922, %v2935, %v2936
  %v2938 = vrot.slane %v2350, 1
  %v2939 = vrot.slane %v2446, 1
  %v2940 = vsel %vm2922, %v2938, %v2939
  %v2941 = vrot.slane %v2351, 1
  %v2942 = vrot.slane %v2447, 1
  %v2943 = vsel %vm2922, %v2941, %v2942
  %v2944 = vrot.slane %v2352, 1
  %v2945 = vrot.slane %v2448, 1
  %v2946 = vsel %vm2922, %v2944, %v2945
  %v2947 = vrot.slane %v2353, 1
  %v2948 = vrot.slane %v2449, 1
  %v2949 = vsel %vm2922, %v2947, %v2948
  %v2950 = vrot.slane %v2354, 1
  %v2951 = vrot.slane %v2450, 1
  %v2952 = vsel %vm2922, %v2950, %v2951
  %v2953 = vrot.slane %v2355, 1
  %v2954 = vrot.slane %v2451, 1
  %v2955 = vsel %vm2922, %v2953, %v2954
  %v2956 = vrot.slane %v2356, 1
  %v2957 = vrot.slane %v2452, 1
  %v2958 = vsel %vm2922, %v2956, %v2957
  %v2959 = vrot.slane %v2357, 1
  %v2960 = vrot.slane %v2453, 1
  %v2961 = vsel %vm2922, %v2959, %v2960
  %v2962 = vrot.slane %v2358, 1
  %v2963 = vrot.slane %v2454, 1
  %v2964 = vsel %vm2922, %v2962, %v2963
  %v2965 = vrot.slane %v2359, 1
  %v2966 = vrot.slane %v2455, 1
  %v2967 = vsel %vm2922, %v2965, %v2966
  %v2968 = vrot.slane %v2360, 1
  %v2969 = vrot.slane %v2456, 1
  %v2970 = vsel %vm2922, %v2968, %v2969
  %v2971 = vrot.slane %v2361, 1
  %v2972 = vrot.slane %v2457, 1
  %v2973 = vsel %vm2922, %v2971, %v2972
  %v2974 = vrot.slane %v2362, 1
  %v2975 = vrot.slane %v2458, 1
  %v2976 = vsel %vm2922, %v2974, %v2975
  %v2977 = vrot.slane %v2363, 1
  %v2978 = vrot.slane %v2459, 1
  %v2979 = vsel %vm2922, %v2977, %v2978
  %v2980 = vrot.slane %v2364, 1
  %v2981 = vrot.slane %v2460, 1
  %v2982 = vsel %vm2922, %v2980, %v2981
  %v2983 = vrot.slane %v2365, 1
  %v2984 = vrot.slane %v2461, 1
  %v2985 = vsel %vm2922, %v2983, %v2984
  %v2986 = vrot.slane %v2366, 1
  %v2987 = vrot.slane %v2462, 1
  %v2988 = vsel %vm2922, %v2986, %v2987
  %v2989 = vrot.slane %v2367, 1
  %v2990 = vrot.slane %v2463, 1
  %v2991 = vsel %vm2922, %v2989, %v2990
  %v2992 = vrot.slane %v2368, 1
  %v2993 = vrot.slane %v2464, 1
  %v2994 = vsel %vm2922, %v2992, %v2993
  %v2995 = vrot.slane %v2369, 1
  %v2996 = vrot.slane %v2465, 1
  %v2997 = vsel %vm2922, %v2995, %v2996
  %v2998 = vrot.slane %v2370, 1
  %v2999 = vrot.slane %v2466, 1
  %v3000 = vsel %vm2922, %v2998, %v2999
  %v3001 = vrot.slane %v2371, 1
  %v3002 = vrot.slane %v2467, 1
  %v3003 = vsel %vm2922, %v3001, %v3002
  %v3004 = vrot.slane %v2372, 1
  %v3005 = vrot.slane %v2468, 1
  %v3006 = vsel %vm2922, %v3004, %v3005
  %v3007 = vrot.slane %v2373, 1
  %v3008 = vrot.slane %v2469, 1
  %v3009 = vsel %vm2922, %v3007, %v3008
  %v3010 = vrot.slane %v2374, 1
  %v3011 = vrot.slane %v2470, 1
  %v3012 = vsel %vm2922, %v3010, %v3011
  %v3013 = vrot.slane %v2375, 1
  %v3014 = vrot.slane %v2471, 1
  %v3015 = vsel %vm2922, %v3013, %v3014
  %v3016 = vrot.slane %v2376, 1
  %v3017 = vrot.slane %v2472, 1
  %v3018 = vsel %vm2922, %v3016, %v3017
  %3019 = vrot.lane.b32.xlu0 %v2925, 8
  %v3020 = vpop.permute.xlu0 %3019
  %3021 = vrot.lane.b32.xlu0 %v2928, 8
  %v3022 = vpop.permute.xlu0 %3021
  %3023 = vrot.lane.b32.xlu0 %v2931, 8
  %v3024 = vpop.permute.xlu0 %3023
  %3025 = vrot.lane.b32.xlu0 %v2934, 8
  %v3026 = vpop.permute.xlu0 %3025
  %3027 = vrot.lane.b32.xlu0 %v2937, 8
  %v3028 = vpop.permute.xlu0 %3027
  %3029 = vrot.lane.b32.xlu0 %v2940, 8
  %v3030 = vpop.permute.xlu0 %3029
  %3031 = vrot.lane.b32.xlu0 %v2943, 8
  %v3032 = vpop.permute.xlu0 %3031
  %3033 = vrot.lane.b32.xlu0 %v2946, 8
  %v3034 = vpop.permute.xlu0 %3033
  %3035 = vrot.lane.b32.xlu0 %v2949, 8
  %v3036 = vpop.permute.xlu0 %3035
  %3037 = vrot.lane.b32.xlu0 %v2952, 8
  %v3038 = vpop.permute.xlu0 %3037
  %3039 = vrot.lane.b32.xlu0 %v2955, 8
  %v3040 = vpop.permute.xlu0 %3039
  %3041 = vrot.lane.b32.xlu0 %v2958, 8
  %v3042 = vpop.permute.xlu0 %3041
  %3043 = vrot.lane.b32.xlu0 %v2961, 8
  %v3044 = vpop.permute.xlu0 %3043
  %3045 = vrot.lane.b32.xlu0 %v2964, 8
  %v3046 = vpop.permute.xlu0 %3045
  %3047 = vrot.lane.b32.xlu0 %v2967, 8
  %v3048 = vpop.permute.xlu0 %3047
  %3049 = vrot.lane.b32.xlu0 %v2970, 8
  %v3050 = vpop.permute.xlu0 %3049
  %3051 = vrot.lane.b32.xlu0 %v2973, 8
  %v3052 = vpop.permute.xlu0 %3051
  %3053 = vrot.lane.b32.xlu0 %v2976, 8
  %v3054 = vpop.permute.xlu0 %3053
  %3055 = vrot.lane.b32.xlu0 %v2979, 8
  %v3056 = vpop.permute.xlu0 %3055
  %3057 = vrot.lane.b32.xlu0 %v2982, 8
  %v3058 = vpop.permute.xlu0 %3057
  %3059 = vrot.lane.b32.xlu0 %v2985, 8
  %v3060 = vpop.permute.xlu0 %3059
  %3061 = vrot.lane.b32.xlu0 %v2988, 8
  %v3062 = vpop.permute.xlu0 %3061
  %3063 = vrot.lane.b32.xlu0 %v2991, 8
  %v3064 = vpop.permute.xlu0 %3063
  %3065 = vrot.lane.b32.xlu0 %v2994, 8
  %v3066 = vpop.permute.xlu0 %3065
  %3067 = vrot.lane.b32.xlu0 %v2997, 8
  %v3068 = vpop.permute.xlu0 %3067
  %3069 = vrot.lane.b32.xlu0 %v3000, 8
  %v3070 = vpop.permute.xlu0 %3069
  %3071 = vrot.lane.b32.xlu0 %v3003, 8
  %v3072 = vpop.permute.xlu0 %3071
  %3073 = vrot.lane.b32.xlu0 %v3006, 8
  %v3074 = vpop.permute.xlu0 %3073
  %3075 = vrot.lane.b32.xlu0 %v3009, 8
  %v3076 = vpop.permute.xlu0 %3075
  %3077 = vrot.lane.b32.xlu0 %v3012, 8
  %v3078 = vpop.permute.xlu0 %3077
  %3079 = vrot.lane.b32.xlu0 %v3015, 8
  %v3080 = vpop.permute.xlu0 %3079
  %3081 = vrot.lane.b32.xlu0 %v3018, 8
  %v3082 = vpop.permute.xlu0 %3081
  %v3147 = vunpack.c.l.b16 %v1928
  %v3148 = vunpack.c.l.b16 %v1929
  %v3149 = vunpack.c.l.b16 %v1931
  %v3150 = vunpack.c.l.b16 %v1932
  %v3151 = vunpack.c.l.b16 %v1934
  %v3152 = vunpack.c.l.b16 %v1935
  %v3153 = vunpack.c.l.b16 %v1937
  %v3154 = vunpack.c.l.b16 %v1938
  %v3155 = vunpack.c.l.b16 %v1940
  %v3156 = vunpack.c.l.b16 %v1941
  %v3157 = vunpack.c.l.b16 %v1943
  %v3158 = vunpack.c.l.b16 %v1944
  %v3159 = vunpack.c.l.b16 %v1946
  %v3160 = vunpack.c.l.b16 %v1947
  %v3161 = vunpack.c.l.b16 %v1949
  %v3162 = vunpack.c.l.b16 %v1950
  %v3163 = vunpack.c.l.b16 %v1952
  %v3164 = vunpack.c.l.b16 %v1953
  %v3165 = vunpack.c.l.b16 %v1955
  %v3166 = vunpack.c.l.b16 %v1956
  %v3167 = vunpack.c.l.b16 %v1958
  %v3168 = vunpack.c.l.b16 %v1959
  %v3169 = vunpack.c.l.b16 %v1961
  %v3170 = vunpack.c.l.b16 %v1962
  %v3171 = vunpack.c.l.b16 %v1964
  %v3172 = vunpack.c.l.b16 %v1965
  %v3173 = vunpack.c.l.b16 %v1967
  %v3174 = vunpack.c.l.b16 %v1968
  %v3175 = vunpack.c.l.b16 %v1970
  %v3176 = vunpack.c.l.b16 %v1971
  %v3177 = vunpack.c.l.b16 %v1973
  %v3178 = vunpack.c.l.b16 %v1974
  %v3179 = vunpack.c.l.b16 %v1976
  %v3180 = vunpack.c.l.b16 %v1977
  %v3181 = vunpack.c.l.b16 %v1979
  %v3182 = vunpack.c.l.b16 %v1980
  %v3183 = vunpack.c.l.b16 %v1982
  %v3184 = vunpack.c.l.b16 %v1983
  %v3185 = vunpack.c.l.b16 %v1985
  %v3186 = vunpack.c.l.b16 %v1986
  %v3187 = vunpack.c.l.b16 %v1988
  %v3188 = vunpack.c.l.b16 %v1989
  %v3189 = vunpack.c.l.b16 %v1991
  %v3190 = vunpack.c.l.b16 %v1992
  %v3191 = vunpack.c.l.b16 %v1994
  %v3192 = vunpack.c.l.b16 %v1995
  %v3193 = vunpack.c.l.b16 %v1997
  %v3194 = vunpack.c.l.b16 %v1998
  %v3195 = vunpack.c.l.b16 %v2000
  %v3196 = vunpack.c.l.b16 %v2001
  %v3197 = vunpack.c.l.b16 %v2003
  %v3198 = vunpack.c.l.b16 %v2004
  %v3199 = vunpack.c.l.b16 %v2006
  %v3200 = vunpack.c.l.b16 %v2007
  %v3201 = vunpack.c.l.b16 %v2009
  %v3202 = vunpack.c.l.b16 %v2010
  %v3203 = vunpack.c.l.b16 %v2012
  %v3204 = vunpack.c.l.b16 %v2013
  %v3205 = vunpack.c.l.b16 %v2015
  %v3206 = vunpack.c.l.b16 %v2016
  %v3207 = vunpack.c.l.b16 %v2018
  %v3208 = vunpack.c.l.b16 %v2019
  %v3209 = vunpack.c.l.b16 %v2021
  %v3210 = vunpack.c.l.b16 %v2022
  %v3211 = vpack.c.b16 %v3148, %v3147
  %v3212 = vpack.c.b16 %v3150, %v3149
  %v3213 = vpack.c.b16 %v3152, %v3151
  %v3214 = vpack.c.b16 %v3154, %v3153
  %v3215 = vpack.c.b16 %v3156, %v3155
  %v3216 = vpack.c.b16 %v3158, %v3157
  %v3217 = vpack.c.b16 %v3160, %v3159
  %v3218 = vpack.c.b16 %v3162, %v3161
  %v3219 = vpack.c.b16 %v3164, %v3163
  %v3220 = vpack.c.b16 %v3166, %v3165
  %v3221 = vpack.c.b16 %v3168, %v3167
  %v3222 = vpack.c.b16 %v3170, %v3169
  %v3223 = vpack.c.b16 %v3172, %v3171
  %v3224 = vpack.c.b16 %v3174, %v3173
  %v3225 = vpack.c.b16 %v3176, %v3175
  %v3226 = vpack.c.b16 %v3178, %v3177
  %v3227 = vpack.c.b16 %v3180, %v3179
  %v3228 = vpack.c.b16 %v3182, %v3181
  %v3229 = vpack.c.b16 %v3184, %v3183
  %v3230 = vpack.c.b16 %v3186, %v3185
  %v3231 = vpack.c.b16 %v3188, %v3187
  %v3232 = vpack.c.b16 %v3190, %v3189
  %v3233 = vpack.c.b16 %v3192, %v3191
  %v3234 = vpack.c.b16 %v3194, %v3193
  %v3235 = vpack.c.b16 %v3196, %v3195
  %v3236 = vpack.c.b16 %v3198, %v3197
  %v3237 = vpack.c.b16 %v3200, %v3199
  %v3238 = vpack.c.b16 %v3202, %v3201
  %v3239 = vpack.c.b16 %v3204, %v3203
  %v3240 = vpack.c.b16 %v3206, %v3205
  %v3241 = vpack.c.b16 %v3208, %v3207
  %v3242 = vpack.c.b16 %v3210, %v3209
  %3243 = vrot.lane.b32.xlu0 %v3211, 12
  %v3244 = vpop.permute.xlu0 %3243
  %3245 = vrot.lane.b32.xlu0 %v3212, 12
  %v3246 = vpop.permute.xlu0 %3245
  %3247 = vrot.lane.b32.xlu0 %v3213, 12
  %v3248 = vpop.permute.xlu0 %3247
  %3249 = vrot.lane.b32.xlu0 %v3214, 12
  %v3250 = vpop.permute.xlu0 %3249
  %3251 = vrot.lane.b32.xlu0 %v3215, 12
  %v3252 = vpop.permute.xlu0 %3251
  %3253 = vrot.lane.b32.xlu0 %v3216, 12
  %v3254 = vpop.permute.xlu0 %3253
  %3255 = vrot.lane.b32.xlu0 %v3217, 12
  %v3256 = vpop.permute.xlu0 %3255
  %3257 = vrot.lane.b32.xlu0 %v3218, 12
  %v3258 = vpop.permute.xlu0 %3257
  %3259 = vrot.lane.b32.xlu0 %v3219, 12
  %v3260 = vpop.permute.xlu0 %3259
  %3261 = vrot.lane.b32.xlu0 %v3220, 12
  %v3262 = vpop.permute.xlu0 %3261
  %3263 = vrot.lane.b32.xlu0 %v3221, 12
  %v3264 = vpop.permute.xlu0 %3263
  %3265 = vrot.lane.b32.xlu0 %v3222, 12
  %v3266 = vpop.permute.xlu0 %3265
  %3267 = vrot.lane.b32.xlu0 %v3223, 12
  %v3268 = vpop.permute.xlu0 %3267
  %3269 = vrot.lane.b32.xlu0 %v3224, 12
  %v3270 = vpop.permute.xlu0 %3269
  %3271 = vrot.lane.b32.xlu0 %v3225, 12
  %v3272 = vpop.permute.xlu0 %3271
  %3273 = vrot.lane.b32.xlu0 %v3226, 12
  %v3274 = vpop.permute.xlu0 %3273
  %3275 = vrot.lane.b32.xlu0 %v3227, 12
  %v3276 = vpop.permute.xlu0 %3275
  %3277 = vrot.lane.b32.xlu0 %v3228, 12
  %v3278 = vpop.permute.xlu0 %3277
  %3279 = vrot.lane.b32.xlu0 %v3229, 12
  %v3280 = vpop.permute.xlu0 %3279
  %3281 = vrot.lane.b32.xlu0 %v3230, 12
  %v3282 = vpop.permute.xlu0 %3281
  %3283 = vrot.lane.b32.xlu0 %v3231, 12
  %v3284 = vpop.permute.xlu0 %3283
  %3285 = vrot.lane.b32.xlu0 %v3232, 12
  %v3286 = vpop.permute.xlu0 %3285
  %3287 = vrot.lane.b32.xlu0 %v3233, 12
  %v3288 = vpop.permute.xlu0 %3287
  %3289 = vrot.lane.b32.xlu0 %v3234, 12
  %v3290 = vpop.permute.xlu0 %3289
  %3291 = vrot.lane.b32.xlu0 %v3235, 12
  %v3292 = vpop.permute.xlu0 %3291
  %3293 = vrot.lane.b32.xlu0 %v3236, 12
  %v3294 = vpop.permute.xlu0 %3293
  %3295 = vrot.lane.b32.xlu0 %v3237, 12
  %v3296 = vpop.permute.xlu0 %3295
  %3297 = vrot.lane.b32.xlu0 %v3238, 12
  %v3298 = vpop.permute.xlu0 %3297
  %3299 = vrot.lane.b32.xlu0 %v3239, 12
  %v3300 = vpop.permute.xlu0 %3299
  %3301 = vrot.lane.b32.xlu0 %v3240, 12
  %v3302 = vpop.permute.xlu0 %3301
  %3303 = vrot.lane.b32.xlu0 %v3241, 12
  %v3304 = vpop.permute.xlu0 %3303
  %3305 = vrot.lane.b32.xlu0 %v3242, 12
  %v3306 = vpop.permute.xlu0 %3305
  %v3339 = vunpack.c.l.b16 %v1930
  %v3340 = vunpack.c.l.b16 %v1933
  %v3341 = vunpack.c.l.b16 %v1936
  %v3342 = vunpack.c.l.b16 %v1939
  %v3343 = vunpack.c.l.b16 %v1942
  %v3344 = vunpack.c.l.b16 %v1945
  %v3345 = vunpack.c.l.b16 %v1948
  %v3346 = vunpack.c.l.b16 %v1951
  %v3347 = vunpack.c.l.b16 %v1954
  %v3348 = vunpack.c.l.b16 %v1957
  %v3349 = vunpack.c.l.b16 %v1960
  %v3350 = vunpack.c.l.b16 %v1963
  %v3351 = vunpack.c.l.b16 %v1966
  %v3352 = vunpack.c.l.b16 %v1969
  %v3353 = vunpack.c.l.b16 %v1972
  %v3354 = vunpack.c.l.b16 %v1975
  %v3355 = vunpack.c.l.b16 %v1978
  %v3356 = vunpack.c.l.b16 %v1981
  %v3357 = vunpack.c.l.b16 %v1984
  %v3358 = vunpack.c.l.b16 %v1987
  %v3359 = vunpack.c.l.b16 %v1990
  %v3360 = vunpack.c.l.b16 %v1993
  %v3361 = vunpack.c.l.b16 %v1996
  %v3362 = vunpack.c.l.b16 %v1999
  %v3363 = vunpack.c.l.b16 %v2002
  %v3364 = vunpack.c.l.b16 %v2005
  %v3365 = vunpack.c.l.b16 %v2008
  %v3366 = vunpack.c.l.b16 %v2011
  %v3367 = vunpack.c.l.b16 %v2014
  %v3368 = vunpack.c.l.b16 %v2017
  %v3369 = vunpack.c.l.b16 %v2020
  %v3370 = vunpack.c.l.b16 %v2023
  %v3371 = vpack.c.b16 %v3339, %v3339
  %v3372 = vpack.c.b16 %v3340, %v3340
  %v3373 = vpack.c.b16 %v3341, %v3341
  %v3374 = vpack.c.b16 %v3342, %v3342
  %v3375 = vpack.c.b16 %v3343, %v3343
  %v3376 = vpack.c.b16 %v3344, %v3344
  %v3377 = vpack.c.b16 %v3345, %v3345
  %v3378 = vpack.c.b16 %v3346, %v3346
  %v3379 = vpack.c.b16 %v3347, %v3347
  %v3380 = vpack.c.b16 %v3348, %v3348
  %v3381 = vpack.c.b16 %v3349, %v3349
  %v3382 = vpack.c.b16 %v3350, %v3350
  %v3383 = vpack.c.b16 %v3351, %v3351
  %v3384 = vpack.c.b16 %v3352, %v3352
  %v3385 = vpack.c.b16 %v3353, %v3353
  %v3386 = vpack.c.b16 %v3354, %v3354
  %v3387 = vpack.c.b16 %v3355, %v3355
  %v3388 = vpack.c.b16 %v3356, %v3356
  %v3389 = vpack.c.b16 %v3357, %v3357
  %v3390 = vpack.c.b16 %v3358, %v3358
  %v3391 = vpack.c.b16 %v3359, %v3359
  %v3392 = vpack.c.b16 %v3360, %v3360
  %v3393 = vpack.c.b16 %v3361, %v3361
  %v3394 = vpack.c.b16 %v3362, %v3362
  %v3395 = vpack.c.b16 %v3363, %v3363
  %v3396 = vpack.c.b16 %v3364, %v3364
  %v3397 = vpack.c.b16 %v3365, %v3365
  %v3398 = vpack.c.b16 %v3366, %v3366
  %v3399 = vpack.c.b16 %v3367, %v3367
  %v3400 = vpack.c.b16 %v3368, %v3368
  %v3401 = vpack.c.b16 %v3369, %v3369
  %v3402 = vpack.c.b16 %v3370, %v3370
  %v3404 = vshrl.u32 %v3211, 16
  %v3406 = vshll.u32 %v3211, 16
  %v3408 = vrot.slane %v3406, 1
  %v3409 = vor.u32 %v3404, %v3408
  %v3411 = vshll.u32 %v3371, 16
  %v3413 = vrot.slane %v3411, 1
  %v3414 = vsel %vm2473, %v3409, %v3413
  %v3416 = vshrl.u32 %v3212, 16
  %v3418 = vshll.u32 %v3212, 16
  %v3420 = vrot.slane %v3418, 1
  %v3421 = vor.u32 %v3416, %v3420
  %v3423 = vshll.u32 %v3372, 16
  %v3425 = vrot.slane %v3423, 1
  %v3426 = vsel %vm2473, %v3421, %v3425
  %v3428 = vshrl.u32 %v3213, 16
  %v3430 = vshll.u32 %v3213, 16
  %v3432 = vrot.slane %v3430, 1
  %v3433 = vor.u32 %v3428, %v3432
  %v3435 = vshll.u32 %v3373, 16
  %v3437 = vrot.slane %v3435, 1
  %v3438 = vsel %vm2473, %v3433, %v3437
  %v3440 = vshrl.u32 %v3214, 16
  %v3442 = vshll.u32 %v3214, 16
  %v3444 = vrot.slane %v3442, 1
  %v3445 = vor.u32 %v3440, %v3444
  %v3447 = vshll.u32 %v3374, 16
  %v3449 = vrot.slane %v3447, 1
  %v3450 = vsel %vm2473, %v3445, %v3449
  %v3452 = vshrl.u32 %v3215, 16
  %v3454 = vshll.u32 %v3215, 16
  %v3456 = vrot.slane %v3454, 1
  %v3457 = vor.u32 %v3452, %v3456
  %v3459 = vshll.u32 %v3375, 16
  %v3461 = vrot.slane %v3459, 1
  %v3462 = vsel %vm2473, %v3457, %v3461
  %v3464 = vshrl.u32 %v3216, 16
  %v3466 = vshll.u32 %v3216, 16
  %v3468 = vrot.slane %v3466, 1
  %v3469 = vor.u32 %v3464, %v3468
  %v3471 = vshll.u32 %v3376, 16
  %v3473 = vrot.slane %v3471, 1
  %v3474 = vsel %vm2473, %v3469, %v3473
  %v3476 = vshrl.u32 %v3217, 16
  %v3478 = vshll.u32 %v3217, 16
  %v3480 = vrot.slane %v3478, 1
  %v3481 = vor.u32 %v3476, %v3480
  %v3483 = vshll.u32 %v3377, 16
  %v3485 = vrot.slane %v3483, 1
  %v3486 = vsel %vm2473, %v3481, %v3485
  %v3488 = vshrl.u32 %v3218, 16
  %v3490 = vshll.u32 %v3218, 16
  %v3492 = vrot.slane %v3490, 1
  %v3493 = vor.u32 %v3488, %v3492
  %v3495 = vshll.u32 %v3378, 16
  %v3497 = vrot.slane %v3495, 1
  %v3498 = vsel %vm2473, %v3493, %v3497
  %v3500 = vshrl.u32 %v3219, 16
  %v3502 = vshll.u32 %v3219, 16
  %v3504 = vrot.slane %v3502, 1
  %v3505 = vor.u32 %v3500, %v3504
  %v3507 = vshll.u32 %v3379, 16
  %v3509 = vrot.slane %v3507, 1
  %v3510 = vsel %vm2473, %v3505, %v3509
  %v3512 = vshrl.u32 %v3220, 16
  %v3514 = vshll.u32 %v3220, 16
  %v3516 = vrot.slane %v3514, 1
  %v3517 = vor.u32 %v3512, %v3516
  %v3519 = vshll.u32 %v3380, 16
  %v3521 = vrot.slane %v3519, 1
  %v3522 = vsel %vm2473, %v3517, %v3521
  %v3524 = vshrl.u32 %v3221, 16
  %v3526 = vshll.u32 %v3221, 16
  %v3528 = vrot.slane %v3526, 1
  %v3529 = vor.u32 %v3524, %v3528
  %v3531 = vshll.u32 %v3381, 16
  %v3533 = vrot.slane %v3531, 1
  %v3534 = vsel %vm2473, %v3529, %v3533
  %v3536 = vshrl.u32 %v3222, 16
  %v3538 = vshll.u32 %v3222, 16
  %v3540 = vrot.slane %v3538, 1
  %v3541 = vor.u32 %v3536, %v3540
  %v3543 = vshll.u32 %v3382, 16
  %v3545 = vrot.slane %v3543, 1
  %v3546 = vsel %vm2473, %v3541, %v3545
  %v3548 = vshrl.u32 %v3223, 16
  %v3550 = vshll.u32 %v3223, 16
  %v3552 = vrot.slane %v3550, 1
  %v3553 = vor.u32 %v3548, %v3552
  %v3555 = vshll.u32 %v3383, 16
  %v3557 = vrot.slane %v3555, 1
  %v3558 = vsel %vm2473, %v3553, %v3557
  %v3560 = vshrl.u32 %v3224, 16
  %v3562 = vshll.u32 %v3224, 16
  %v3564 = vrot.slane %v3562, 1
  %v3565 = vor.u32 %v3560, %v3564
  %v3567 = vshll.u32 %v3384, 16
  %v3569 = vrot.slane %v3567, 1
  %v3570 = vsel %vm2473, %v3565, %v3569
  %v3572 = vshrl.u32 %v3225, 16
  %v3574 = vshll.u32 %v3225, 16
  %v3576 = vrot.slane %v3574, 1
  %v3577 = vor.u32 %v3572, %v3576
  %v3579 = vshll.u32 %v3385, 16
  %v3581 = vrot.slane %v3579, 1
  %v3582 = vsel %vm2473, %v3577, %v3581
  %v3584 = vshrl.u32 %v3226, 16
  %v3586 = vshll.u32 %v3226, 16
  %v3588 = vrot.slane %v3586, 1
  %v3589 = vor.u32 %v3584, %v3588
  %v3591 = vshll.u32 %v3386, 16
  %v3593 = vrot.slane %v3591, 1
  %v3594 = vsel %vm2473, %v3589, %v3593
  %v3596 = vshrl.u32 %v3227, 16
  %v3598 = vshll.u32 %v3227, 16
  %v3600 = vrot.slane %v3598, 1
  %v3601 = vor.u32 %v3596, %v3600
  %v3603 = vshll.u32 %v3387, 16
  %v3605 = vrot.slane %v3603, 1
  %v3606 = vsel %vm2473, %v3601, %v3605
  %v3608 = vshrl.u32 %v3228, 16
  %v3610 = vshll.u32 %v3228, 16
  %v3612 = vrot.slane %v3610, 1
  %v3613 = vor.u32 %v3608, %v3612
  %v3615 = vshll.u32 %v3388, 16
  %v3617 = vrot.slane %v3615, 1
  %v3618 = vsel %vm2473, %v3613, %v3617
  %v3620 = vshrl.u32 %v3229, 16
  %v3622 = vshll.u32 %v3229, 16
  %v3624 = vrot.slane %v3622, 1
  %v3625 = vor.u32 %v3620, %v3624
  %v3627 = vshll.u32 %v3389, 16
  %v3629 = vrot.slane %v3627, 1
  %v3630 = vsel %vm2473, %v3625, %v3629
  %v3632 = vshrl.u32 %v3230, 16
  %v3634 = vshll.u32 %v3230, 16
  %v3636 = vrot.slane %v3634, 1
  %v3637 = vor.u32 %v3632, %v3636
  %v3639 = vshll.u32 %v3390, 16
  %v3641 = vrot.slane %v3639, 1
  %v3642 = vsel %vm2473, %v3637, %v3641
  %v3644 = vshrl.u32 %v3231, 16
  %v3646 = vshll.u32 %v3231, 16
  %v3648 = vrot.slane %v3646, 1
  %v3649 = vor.u32 %v3644, %v3648
  %v3651 = vshll.u32 %v3391, 16
  %v3653 = vrot.slane %v3651, 1
  %v3654 = vsel %vm2473, %v3649, %v3653
  %v3656 = vshrl.u32 %v3232, 16
  %v3658 = vshll.u32 %v3232, 16
  %v3660 = vrot.slane %v3658, 1
  %v3661 = vor.u32 %v3656, %v3660
  %v3663 = vshll.u32 %v3392, 16
  %v3665 = vrot.slane %v3663, 1
  %v3666 = vsel %vm2473, %v3661, %v3665
  %v3668 = vshrl.u32 %v3233, 16
  %v3670 = vshll.u32 %v3233, 16
  %v3672 = vrot.slane %v3670, 1
  %v3673 = vor.u32 %v3668, %v3672
  %v3675 = vshll.u32 %v3393, 16
  %v3677 = vrot.slane %v3675, 1
  %v3678 = vsel %vm2473, %v3673, %v3677
  %v3680 = vshrl.u32 %v3234, 16
  %v3682 = vshll.u32 %v3234, 16
  %v3684 = vrot.slane %v3682, 1
  %v3685 = vor.u32 %v3680, %v3684
  %v3687 = vshll.u32 %v3394, 16
  %v3689 = vrot.slane %v3687, 1
  %v3690 = vsel %vm2473, %v3685, %v3689
  %v3692 = vshrl.u32 %v3235, 16
  %v3694 = vshll.u32 %v3235, 16
  %v3696 = vrot.slane %v3694, 1
  %v3697 = vor.u32 %v3692, %v3696
  %v3699 = vshll.u32 %v3395, 16
  %v3701 = vrot.slane %v3699, 1
  %v3702 = vsel %vm2473, %v3697, %v3701
  %v3704 = vshrl.u32 %v3236, 16
  %v3706 = vshll.u32 %v3236, 16
  %v3708 = vrot.slane %v3706, 1
  %v3709 = vor.u32 %v3704, %v3708
  %v3711 = vshll.u32 %v3396, 16
  %v3713 = vrot.slane %v3711, 1
  %v3714 = vsel %vm2473, %v3709, %v3713
  %v3716 = vshrl.u32 %v3237, 16
  %v3718 = vshll.u32 %v3237, 16
  %v3720 = vrot.slane %v3718, 1
  %v3721 = vor.u32 %v3716, %v3720
  %v3723 = vshll.u32 %v3397, 16
  %v3725 = vrot.slane %v3723, 1
  %v3726 = vsel %vm2473, %v3721, %v3725
  %v3728 = vshrl.u32 %v3238, 16
  %v3730 = vshll.u32 %v3238, 16
  %v3732 = vrot.slane %v3730, 1
  %v3733 = vor.u32 %v3728, %v3732
  %v3735 = vshll.u32 %v3398, 16
  %v3737 = vrot.slane %v3735, 1
  %v3738 = vsel %vm2473, %v3733, %v3737
  %v3740 = vshrl.u32 %v3239, 16
  %v3742 = vshll.u32 %v3239, 16
  %v3744 = vrot.slane %v3742, 1
  %v3745 = vor.u32 %v3740, %v3744
  %v3747 = vshll.u32 %v3399, 16
  %v3749 = vrot.slane %v3747, 1
  %v3750 = vsel %vm2473, %v3745, %v3749
  %v3752 = vshrl.u32 %v3240, 16
  %v3754 = vshll.u32 %v3240, 16
  %v3756 = vrot.slane %v3754, 1
  %v3757 = vor.u32 %v3752, %v3756
  %v3759 = vshll.u32 %v3400, 16
  %v3761 = vrot.slane %v3759, 1
  %v3762 = vsel %vm2473, %v3757, %v3761
  %v3764 = vshrl.u32 %v3241, 16
  %v3766 = vshll.u32 %v3241, 16
  %v3768 = vrot.slane %v3766, 1
  %v3769 = vor.u32 %v3764, %v3768
  %v3771 = vshll.u32 %v3401, 16
  %v3773 = vrot.slane %v3771, 1
  %v3774 = vsel %vm2473, %v3769, %v3773
  %v3776 = vshrl.u32 %v3242, 16
  %v3778 = vshll.u32 %v3242, 16
  %v3780 = vrot.slane %v3778, 1
  %v3781 = vor.u32 %v3776, %v3780
  %v3783 = vshll.u32 %v3402, 16
  %v3785 = vrot.slane %v3783, 1
  %v3786 = vsel %vm2473, %v3781, %v3785
  %3787 = vrot.lane.b32.xlu0 %v3414, 16
  %v3788 = vpop.permute.xlu0 %3787
  %3789 = vrot.lane.b32.xlu0 %v3426, 16
  %v3790 = vpop.permute.xlu0 %3789
  %3791 = vrot.lane.b32.xlu0 %v3438, 16
  %v3792 = vpop.permute.xlu0 %3791
  %3793 = vrot.lane.b32.xlu0 %v3450, 16
  %v3794 = vpop.permute.xlu0 %3793
  %3795 = vrot.lane.b32.xlu0 %v3462, 16
  %v3796 = vpop.permute.xlu0 %3795
  %3797 = vrot.lane.b32.xlu0 %v3474, 16
  %v3798 = vpop.permute.xlu0 %3797
  %3799 = vrot.lane.b32.xlu0 %v3486, 16
  %v3800 = vpop.permute.xlu0 %3799
  %3801 = vrot.lane.b32.xlu0 %v3498, 16
  %v3802 = vpop.permute.xlu0 %3801
  %3803 = vrot.lane.b32.xlu0 %v3510, 16
  %v3804 = vpop.permute.xlu0 %3803
  %3805 = vrot.lane.b32.xlu0 %v3522, 16
  %v3806 = vpop.permute.xlu0 %3805
  %3807 = vrot.lane.b32.xlu0 %v3534, 16
  %v3808 = vpop.permute.xlu0 %3807
  %3809 = vrot.lane.b32.xlu0 %v3546, 16
  %v3810 = vpop.permute.xlu0 %3809
  %3811 = vrot.lane.b32.xlu0 %v3558, 16
  %v3812 = vpop.permute.xlu0 %3811
  %3813 = vrot.lane.b32.xlu0 %v3570, 16
  %v3814 = vpop.permute.xlu0 %3813
  %3815 = vrot.lane.b32.xlu0 %v3582, 16
  %v3816 = vpop.permute.xlu0 %3815
  %3817 = vrot.lane.b32.xlu0 %v3594, 16
  %v3818 = vpop.permute.xlu0 %3817
  %3819 = vrot.lane.b32.xlu0 %v3606, 16
  %v3820 = vpop.permute.xlu0 %3819
  %3821 = vrot.lane.b32.xlu0 %v3618, 16
  %v3822 = vpop.permute.xlu0 %3821
  %3823 = vrot.lane.b32.xlu0 %v3630, 16
  %v3824 = vpop.permute.xlu0 %3823
  %3825 = vrot.lane.b32.xlu0 %v3642, 16
  %v3826 = vpop.permute.xlu0 %3825
  %3827 = vrot.lane.b32.xlu0 %v3654, 16
  %v3828 = vpop.permute.xlu0 %3827
  %3829 = vrot.lane.b32.xlu0 %v3666, 16
  %v3830 = vpop.permute.xlu0 %3829
  %3831 = vrot.lane.b32.xlu0 %v3678, 16
  %v3832 = vpop.permute.xlu0 %3831
  %3833 = vrot.lane.b32.xlu0 %v3690, 16
  %v3834 = vpop.permute.xlu0 %3833
  %3835 = vrot.lane.b32.xlu0 %v3702, 16
  %v3836 = vpop.permute.xlu0 %3835
  %3837 = vrot.lane.b32.xlu0 %v3714, 16
  %v3838 = vpop.permute.xlu0 %3837
  %3839 = vrot.lane.b32.xlu0 %v3726, 16
  %v3840 = vpop.permute.xlu0 %3839
  %3841 = vrot.lane.b32.xlu0 %v3738, 16
  %v3842 = vpop.permute.xlu0 %3841
  %3843 = vrot.lane.b32.xlu0 %v3750, 16
  %v3844 = vpop.permute.xlu0 %3843
  %3845 = vrot.lane.b32.xlu0 %v3762, 16
  %v3846 = vpop.permute.xlu0 %3845
  %3847 = vrot.lane.b32.xlu0 %v3774, 16
  %v3848 = vpop.permute.xlu0 %3847
  %3849 = vrot.lane.b32.xlu0 %v3786, 16
  %v3850 = vpop.permute.xlu0 %3849
  %v3851 = vrot.slane %v3211, 1
  %v3852 = vrot.slane %v3371, 1
  %v3853 = vsel %vm2922, %v3851, %v3852
  %v3854 = vrot.slane %v3212, 1
  %v3855 = vrot.slane %v3372, 1
  %v3856 = vsel %vm2922, %v3854, %v3855
  %v3857 = vrot.slane %v3213, 1
  %v3858 = vrot.slane %v3373, 1
  %v3859 = vsel %vm2922, %v3857, %v3858
  %v3860 = vrot.slane %v3214, 1
  %v3861 = vrot.slane %v3374, 1
  %v3862 = vsel %vm2922, %v3860, %v3861
  %v3863 = vrot.slane %v3215, 1
  %v3864 = vrot.slane %v3375, 1
  %v3865 = vsel %vm2922, %v3863, %v3864
  %v3866 = vrot.slane %v3216, 1
  %v3867 = vrot.slane %v3376, 1
  %v3868 = vsel %vm2922, %v3866, %v3867
  %v3869 = vrot.slane %v3217, 1
  %v3870 = vrot.slane %v3377, 1
  %v3871 = vsel %vm2922, %v3869, %v3870
  %v3872 = vrot.slane %v3218, 1
  %v3873 = vrot.slane %v3378, 1
  %v3874 = vsel %vm2922, %v3872, %v3873
  %v3875 = vrot.slane %v3219, 1
  %v3876 = vrot.slane %v3379, 1
  %v3877 = vsel %vm2922, %v3875, %v3876
  %v3878 = vrot.slane %v3220, 1
  %v3879 = vrot.slane %v3380, 1
  %v3880 = vsel %vm2922, %v3878, %v3879
  %v3881 = vrot.slane %v3221, 1
  %v3882 = vrot.slane %v3381, 1
  %v3883 = vsel %vm2922, %v3881, %v3882
  %v3884 = vrot.slane %v3222, 1
  %v3885 = vrot.slane %v3382, 1
  %v3886 = vsel %vm2922, %v3884, %v3885
  %v3887 = vrot.slane %v3223, 1
  %v3888 = vrot.slane %v3383, 1
  %v3889 = vsel %vm2922, %v3887, %v3888
  %v3890 = vrot.slane %v3224, 1
  %v3891 = vrot.slane %v3384, 1
  %v3892 = vsel %vm2922, %v3890, %v3891
  %v3893 = vrot.slane %v3225, 1
  %v3894 = vrot.slane %v3385, 1
  %v3895 = vsel %vm2922, %v3893, %v3894
  %v3896 = vrot.slane %v3226, 1
  %v3897 = vrot.slane %v3386, 1
  %v3898 = vsel %vm2922, %v3896, %v3897
  %v3899 = vrot.slane %v3227, 1
  %v3900 = vrot.slane %v3387, 1
  %v3901 = vsel %vm2922, %v3899, %v3900
  %v3902 = vrot.slane %v3228, 1
  %v3903 = vrot.slane %v3388, 1
  %v3904 = vsel %vm2922, %v3902, %v3903
  %v3905 = vrot.slane %v3229, 1
  %v3906 = vrot.slane %v3389, 1
  %v3907 = vsel %vm2922, %v3905, %v3906
  %v3908 = vrot.slane %v3230, 1
  %v3909 = vrot.slane %v3390, 1
  %v3910 = vsel %vm2922, %v3908, %v3909
  %v3911 = vrot.slane %v3231, 1
  %v3912 = vrot.slane %v3391, 1
  %v3913 = vsel %vm2922, %v3911, %v3912
  %v3914 = vrot.slane %v3232, 1
  %v3915 = vrot.slane %v3392, 1
  %v3916 = vsel %vm2922, %v3914, %v3915
  %v3917 = vrot.slane %v3233, 1
  %v3918 = vrot.slane %v3393, 1
  %v3919 = vsel %vm2922, %v3917, %v3918
  %v3920 = vrot.slane %v3234, 1
  %v3921 = vrot.slane %v3394, 1
  %v3922 = vsel %vm2922, %v3920, %v3921
  %v3923 = vrot.slane %v3235, 1
  %v3924 = vrot.slane %v3395, 1
  %v3925 = vsel %vm2922, %v3923, %v3924
  %v3926 = vrot.slane %v3236, 1
  %v3927 = vrot.slane %v3396, 1
  %v3928 = vsel %vm2922, %v3926, %v3927
  %v3929 = vrot.slane %v3237, 1
  %v3930 = vrot.slane %v3397, 1
  %v3931 = vsel %vm2922, %v3929, %v3930
  %v3932 = vrot.slane %v3238, 1
  %v3933 = vrot.slane %v3398, 1
  %v3934 = vsel %vm2922, %v3932, %v3933
  %v3935 = vrot.slane %v3239, 1
  %v3936 = vrot.slane %v3399, 1
  %v3937 = vsel %vm2922, %v3935, %v3936
  %v3938 = vrot.slane %v3240, 1
  %v3939 = vrot.slane %v3400, 1
  %v3940 = vsel %vm2922, %v3938, %v3939
  %v3941 = vrot.slane %v3241, 1
  %v3942 = vrot.slane %v3401, 1
  %v3943 = vsel %vm2922, %v3941, %v3942
  %v3944 = vrot.slane %v3242, 1
  %v3945 = vrot.slane %v3402, 1
  %v3946 = vsel %vm2922, %v3944, %v3945
  %3947 = vrot.lane.b32.xlu0 %v3853, 20
  %v3948 = vpop.permute.xlu0 %3947
  %3949 = vrot.lane.b32.xlu0 %v3856, 20
  %v3950 = vpop.permute.xlu0 %3949
  %3951 = vrot.lane.b32.xlu0 %v3859, 20
  %v3952 = vpop.permute.xlu0 %3951
  %3953 = vrot.lane.b32.xlu0 %v3862, 20
  %v3954 = vpop.permute.xlu0 %3953
  %3955 = vrot.lane.b32.xlu0 %v3865, 20
  %v3956 = vpop.permute.xlu0 %3955
  %3957 = vrot.lane.b32.xlu0 %v3868, 20
  %v3958 = vpop.permute.xlu0 %3957
  %3959 = vrot.lane.b32.xlu0 %v3871, 20
  %v3960 = vpop.permute.xlu0 %3959
  %3961 = vrot.lane.b32.xlu0 %v3874, 20
  %v3962 = vpop.permute.xlu0 %3961
  %3963 = vrot.lane.b32.xlu0 %v3877, 20
  %v3964 = vpop.permute.xlu0 %3963
  %3965 = vrot.lane.b32.xlu0 %v3880, 20
  %v3966 = vpop.permute.xlu0 %3965
  %3967 = vrot.lane.b32.xlu0 %v3883, 20
  %v3968 = vpop.permute.xlu0 %3967
  %3969 = vrot.lane.b32.xlu0 %v3886, 20
  %v3970 = vpop.permute.xlu0 %3969
  %3971 = vrot.lane.b32.xlu0 %v3889, 20
  %v3972 = vpop.permute.xlu0 %3971
  %3973 = vrot.lane.b32.xlu0 %v3892, 20
  %v3974 = vpop.permute.xlu0 %3973
  %3975 = vrot.lane.b32.xlu0 %v3895, 20
  %v3976 = vpop.permute.xlu0 %3975
  %3977 = vrot.lane.b32.xlu0 %v3898, 20
  %v3978 = vpop.permute.xlu0 %3977
  %3979 = vrot.lane.b32.xlu0 %v3901, 20
  %v3980 = vpop.permute.xlu0 %3979
  %3981 = vrot.lane.b32.xlu0 %v3904, 20
  %v3982 = vpop.permute.xlu0 %3981
  %3983 = vrot.lane.b32.xlu0 %v3907, 20
  %v3984 = vpop.permute.xlu0 %3983
  %3985 = vrot.lane.b32.xlu0 %v3910, 20
  %v3986 = vpop.permute.xlu0 %3985
  %3987 = vrot.lane.b32.xlu0 %v3913, 20
  %v3988 = vpop.permute.xlu0 %3987
  %3989 = vrot.lane.b32.xlu0 %v3916, 20
  %v3990 = vpop.permute.xlu0 %3989
  %3991 = vrot.lane.b32.xlu0 %v3919, 20
  %v3992 = vpop.permute.xlu0 %3991
  %3993 = vrot.lane.b32.xlu0 %v3922, 20
  %v3994 = vpop.permute.xlu0 %3993
  %3995 = vrot.lane.b32.xlu0 %v3925, 20
  %v3996 = vpop.permute.xlu0 %3995
  %3997 = vrot.lane.b32.xlu0 %v3928, 20
  %v3998 = vpop.permute.xlu0 %3997
  %3999 = vrot.lane.b32.xlu0 %v3931, 20
  %v4000 = vpop.permute.xlu0 %3999
  %4001 = vrot.lane.b32.xlu0 %v3934, 20
  %v4002 = vpop.permute.xlu0 %4001
  %4003 = vrot.lane.b32.xlu0 %v3937, 20
  %v4004 = vpop.permute.xlu0 %4003
  %4005 = vrot.lane.b32.xlu0 %v3940, 20
  %v4006 = vpop.permute.xlu0 %4005
  %4007 = vrot.lane.b32.xlu0 %v3943, 20
  %v4008 = vpop.permute.xlu0 %4007
  %4009 = vrot.lane.b32.xlu0 %v3946, 20
  %v4010 = vpop.permute.xlu0 %4009
  %v4075 = vunpack.c.l.b16 %v2121
  %v4076 = vunpack.c.l.b16 %v2122
  %v4077 = vunpack.c.l.b16 %v2124
  %v4078 = vunpack.c.l.b16 %v2125
  %v4079 = vunpack.c.l.b16 %v2127
  %v4080 = vunpack.c.l.b16 %v2128
  %v4081 = vunpack.c.l.b16 %v2130
  %v4082 = vunpack.c.l.b16 %v2131
  %v4083 = vunpack.c.l.b16 %v2133
  %v4084 = vunpack.c.l.b16 %v2134
  %v4085 = vunpack.c.l.b16 %v2136
  %v4086 = vunpack.c.l.b16 %v2137
  %v4087 = vunpack.c.l.b16 %v2139
  %v4088 = vunpack.c.l.b16 %v2140
  %v4089 = vunpack.c.l.b16 %v2142
  %v4090 = vunpack.c.l.b16 %v2143
  %v4091 = vunpack.c.l.b16 %v2145
  %v4092 = vunpack.c.l.b16 %v2146
  %v4093 = vunpack.c.l.b16 %v2148
  %v4094 = vunpack.c.l.b16 %v2149
  %v4095 = vunpack.c.l.b16 %v2151
  %v4096 = vunpack.c.l.b16 %v2152
  %v4097 = vunpack.c.l.b16 %v2154
  %v4098 = vunpack.c.l.b16 %v2155
  %v4099 = vunpack.c.l.b16 %v2157
  %v4100 = vunpack.c.l.b16 %v2158
  %v4101 = vunpack.c.l.b16 %v2160
  %v4102 = vunpack.c.l.b16 %v2161
  %v4103 = vunpack.c.l.b16 %v2163
  %v4104 = vunpack.c.l.b16 %v2164
  %v4105 = vunpack.c.l.b16 %v2166
  %v4106 = vunpack.c.l.b16 %v2167
  %v4107 = vunpack.c.l.b16 %v2169
  %v4108 = vunpack.c.l.b16 %v2170
  %v4109 = vunpack.c.l.b16 %v2172
  %v4110 = vunpack.c.l.b16 %v2173
  %v4111 = vunpack.c.l.b16 %v2175
  %v4112 = vunpack.c.l.b16 %v2176
  %v4113 = vunpack.c.l.b16 %v2178
  %v4114 = vunpack.c.l.b16 %v2179
  %v4115 = vunpack.c.l.b16 %v2181
  %v4116 = vunpack.c.l.b16 %v2182
  %v4117 = vunpack.c.l.b16 %v2184
  %v4118 = vunpack.c.l.b16 %v2185
  %v4119 = vunpack.c.l.b16 %v2187
  %v4120 = vunpack.c.l.b16 %v2188
  %v4121 = vunpack.c.l.b16 %v2190
  %v4122 = vunpack.c.l.b16 %v2191
  %v4123 = vunpack.c.l.b16 %v2193
  %v4124 = vunpack.c.l.b16 %v2194
  %v4125 = vunpack.c.l.b16 %v2196
  %v4126 = vunpack.c.l.b16 %v2197
  %v4127 = vunpack.c.l.b16 %v2199
  %v4128 = vunpack.c.l.b16 %v2200
  %v4129 = vunpack.c.l.b16 %v2202
  %v4130 = vunpack.c.l.b16 %v2203
  %v4131 = vunpack.c.l.b16 %v2205
  %v4132 = vunpack.c.l.b16 %v2206
  %v4133 = vunpack.c.l.b16 %v2208
  %v4134 = vunpack.c.l.b16 %v2209
  %v4135 = vunpack.c.l.b16 %v2211
  %v4136 = vunpack.c.l.b16 %v2212
  %v4137 = vunpack.c.l.b16 %v2214
  %v4138 = vunpack.c.l.b16 %v2215
  %v4139 = vpack.c.b16 %v4076, %v4075
  %v4140 = vpack.c.b16 %v4078, %v4077
  %v4141 = vpack.c.b16 %v4080, %v4079
  %v4142 = vpack.c.b16 %v4082, %v4081
  %v4143 = vpack.c.b16 %v4084, %v4083
  %v4144 = vpack.c.b16 %v4086, %v4085
  %v4145 = vpack.c.b16 %v4088, %v4087
  %v4146 = vpack.c.b16 %v4090, %v4089
  %v4147 = vpack.c.b16 %v4092, %v4091
  %v4148 = vpack.c.b16 %v4094, %v4093
  %v4149 = vpack.c.b16 %v4096, %v4095
  %v4150 = vpack.c.b16 %v4098, %v4097
  %v4151 = vpack.c.b16 %v4100, %v4099
  %v4152 = vpack.c.b16 %v4102, %v4101
  %v4153 = vpack.c.b16 %v4104, %v4103
  %v4154 = vpack.c.b16 %v4106, %v4105
  %v4155 = vpack.c.b16 %v4108, %v4107
  %v4156 = vpack.c.b16 %v4110, %v4109
  %v4157 = vpack.c.b16 %v4112, %v4111
  %v4158 = vpack.c.b16 %v4114, %v4113
  %v4159 = vpack.c.b16 %v4116, %v4115
  %v4160 = vpack.c.b16 %v4118, %v4117
  %v4161 = vpack.c.b16 %v4120, %v4119
  %v4162 = vpack.c.b16 %v4122, %v4121
  %v4163 = vpack.c.b16 %v4124, %v4123
  %v4164 = vpack.c.b16 %v4126, %v4125
  %v4165 = vpack.c.b16 %v4128, %v4127
  %v4166 = vpack.c.b16 %v4130, %v4129
  %v4167 = vpack.c.b16 %v4132, %v4131
  %v4168 = vpack.c.b16 %v4134, %v4133
  %v4169 = vpack.c.b16 %v4136, %v4135
  %v4170 = vpack.c.b16 %v4138, %v4137
  %4171 = vrot.lane.b32.xlu0 %v4139, 24
  %v4172 = vpop.permute.xlu0 %4171
  %4173 = vrot.lane.b32.xlu0 %v4140, 24
  %v4174 = vpop.permute.xlu0 %4173
  %4175 = vrot.lane.b32.xlu0 %v4141, 24
  %v4176 = vpop.permute.xlu0 %4175
  %4177 = vrot.lane.b32.xlu0 %v4142, 24
  %v4178 = vpop.permute.xlu0 %4177
  %4179 = vrot.lane.b32.xlu0 %v4143, 24
  %v4180 = vpop.permute.xlu0 %4179
  %4181 = vrot.lane.b32.xlu0 %v4144, 24
  %v4182 = vpop.permute.xlu0 %4181
  %4183 = vrot.lane.b32.xlu0 %v4145, 24
  %v4184 = vpop.permute.xlu0 %4183
  %4185 = vrot.lane.b32.xlu0 %v4146, 24
  %v4186 = vpop.permute.xlu0 %4185
  %4187 = vrot.lane.b32.xlu0 %v4147, 24
  %v4188 = vpop.permute.xlu0 %4187
  %4189 = vrot.lane.b32.xlu0 %v4148, 24
  %v4190 = vpop.permute.xlu0 %4189
  %4191 = vrot.lane.b32.xlu0 %v4149, 24
  %v4192 = vpop.permute.xlu0 %4191
  %4193 = vrot.lane.b32.xlu0 %v4150, 24
  %v4194 = vpop.permute.xlu0 %4193
  %4195 = vrot.lane.b32.xlu0 %v4151, 24
  %v4196 = vpop.permute.xlu0 %4195
  %4197 = vrot.lane.b32.xlu0 %v4152, 24
  %v4198 = vpop.permute.xlu0 %4197
  %4199 = vrot.lane.b32.xlu0 %v4153, 24
  %v4200 = vpop.permute.xlu0 %4199
  %4201 = vrot.lane.b32.xlu0 %v4154, 24
  %v4202 = vpop.permute.xlu0 %4201
  %4203 = vrot.lane.b32.xlu0 %v4155, 24
  %v4204 = vpop.permute.xlu0 %4203
  %4205 = vrot.lane.b32.xlu0 %v4156, 24
  %v4206 = vpop.permute.xlu0 %4205
  %4207 = vrot.lane.b32.xlu0 %v4157, 24
  %v4208 = vpop.permute.xlu0 %4207
  %4209 = vrot.lane.b32.xlu0 %v4158, 24
  %v4210 = vpop.permute.xlu0 %4209
  %4211 = vrot.lane.b32.xlu0 %v4159, 24
  %v4212 = vpop.permute.xlu0 %4211
  %4213 = vrot.lane.b32.xlu0 %v4160, 24
  %v4214 = vpop.permute.xlu0 %4213
  %4215 = vrot.lane.b32.xlu0 %v4161, 24
  %v4216 = vpop.permute.xlu0 %4215
  %4217 = vrot.lane.b32.xlu0 %v4162, 24
  %v4218 = vpop.permute.xlu0 %4217
  %4219 = vrot.lane.b32.xlu0 %v4163, 24
  %v4220 = vpop.permute.xlu0 %4219
  %4221 = vrot.lane.b32.xlu0 %v4164, 24
  %v4222 = vpop.permute.xlu0 %4221
  %4223 = vrot.lane.b32.xlu0 %v4165, 24
  %v4224 = vpop.permute.xlu0 %4223
  %4225 = vrot.lane.b32.xlu0 %v4166, 24
  %v4226 = vpop.permute.xlu0 %4225
  %4227 = vrot.lane.b32.xlu0 %v4167, 24
  %v4228 = vpop.permute.xlu0 %4227
  %4229 = vrot.lane.b32.xlu0 %v4168, 24
  %v4230 = vpop.permute.xlu0 %4229
  %4231 = vrot.lane.b32.xlu0 %v4169, 24
  %v4232 = vpop.permute.xlu0 %4231
  %4233 = vrot.lane.b32.xlu0 %v4170, 24
  %v4234 = vpop.permute.xlu0 %4233
  %v4267 = vunpack.c.l.b16 %v2123
  %v4268 = vunpack.c.l.b16 %v2126
  %v4269 = vunpack.c.l.b16 %v2129
  %v4270 = vunpack.c.l.b16 %v2132
  %v4271 = vunpack.c.l.b16 %v2135
  %v4272 = vunpack.c.l.b16 %v2138
  %v4273 = vunpack.c.l.b16 %v2141
  %v4274 = vunpack.c.l.b16 %v2144
  %v4275 = vunpack.c.l.b16 %v2147
  %v4276 = vunpack.c.l.b16 %v2150
  %v4277 = vunpack.c.l.b16 %v2153
  %v4278 = vunpack.c.l.b16 %v2156
  %v4279 = vunpack.c.l.b16 %v2159
  %v4280 = vunpack.c.l.b16 %v2162
  %v4281 = vunpack.c.l.b16 %v2165
  %v4282 = vunpack.c.l.b16 %v2168
  %v4283 = vunpack.c.l.b16 %v2171
  %v4284 = vunpack.c.l.b16 %v2174
  %v4285 = vunpack.c.l.b16 %v2177
  %v4286 = vunpack.c.l.b16 %v2180
  %v4287 = vunpack.c.l.b16 %v2183
  %v4288 = vunpack.c.l.b16 %v2186
  %v4289 = vunpack.c.l.b16 %v2189
  %v4290 = vunpack.c.l.b16 %v2192
  %v4291 = vunpack.c.l.b16 %v2195
  %v4292 = vunpack.c.l.b16 %v2198
  %v4293 = vunpack.c.l.b16 %v2201
  %v4294 = vunpack.c.l.b16 %v2204
  %v4295 = vunpack.c.l.b16 %v2207
  %v4296 = vunpack.c.l.b16 %v2210
  %v4297 = vunpack.c.l.b16 %v2213
  %v4298 = vunpack.c.l.b16 %v2216
  %v4299 = vpack.c.b16 %v4267, %v4267
  %v4300 = vpack.c.b16 %v4268, %v4268
  %v4301 = vpack.c.b16 %v4269, %v4269
  %v4302 = vpack.c.b16 %v4270, %v4270
  %v4303 = vpack.c.b16 %v4271, %v4271
  %v4304 = vpack.c.b16 %v4272, %v4272
  %v4305 = vpack.c.b16 %v4273, %v4273
  %v4306 = vpack.c.b16 %v4274, %v4274
  %v4307 = vpack.c.b16 %v4275, %v4275
  %v4308 = vpack.c.b16 %v4276, %v4276
  %v4309 = vpack.c.b16 %v4277, %v4277
  %v4310 = vpack.c.b16 %v4278, %v4278
  %v4311 = vpack.c.b16 %v4279, %v4279
  %v4312 = vpack.c.b16 %v4280, %v4280
  %v4313 = vpack.c.b16 %v4281, %v4281
  %v4314 = vpack.c.b16 %v4282, %v4282
  %v4315 = vpack.c.b16 %v4283, %v4283
  %v4316 = vpack.c.b16 %v4284, %v4284
  %v4317 = vpack.c.b16 %v4285, %v4285
  %v4318 = vpack.c.b16 %v4286, %v4286
  %v4319 = vpack.c.b16 %v4287, %v4287
  %v4320 = vpack.c.b16 %v4288, %v4288
  %v4321 = vpack.c.b16 %v4289, %v4289
  %v4322 = vpack.c.b16 %v4290, %v4290
  %v4323 = vpack.c.b16 %v4291, %v4291
  %v4324 = vpack.c.b16 %v4292, %v4292
  %v4325 = vpack.c.b16 %v4293, %v4293
  %v4326 = vpack.c.b16 %v4294, %v4294
  %v4327 = vpack.c.b16 %v4295, %v4295
  %v4328 = vpack.c.b16 %v4296, %v4296
  %v4329 = vpack.c.b16 %v4297, %v4297
  %v4330 = vpack.c.b16 %v4298, %v4298
  %v4332 = vshrl.u32 %v4139, 16
  %v4334 = vshll.u32 %v4139, 16
  %v4336 = vrot.slane %v4334, 1
  %v4337 = vor.u32 %v4332, %v4336
  %v4339 = vshll.u32 %v4299, 16
  %v4341 = vrot.slane %v4339, 1
  %v4342 = vsel %vm2473, %v4337, %v4341
  %v4344 = vshrl.u32 %v4140, 16
  %v4346 = vshll.u32 %v4140, 16
  %v4348 = vrot.slane %v4346, 1
  %v4349 = vor.u32 %v4344, %v4348
  %v4351 = vshll.u32 %v4300, 16
  %v4353 = vrot.slane %v4351, 1
  %v4354 = vsel %vm2473, %v4349, %v4353
  %v4356 = vshrl.u32 %v4141, 16
  %v4358 = vshll.u32 %v4141, 16
  %v4360 = vrot.slane %v4358, 1
  %v4361 = vor.u32 %v4356, %v4360
  %v4363 = vshll.u32 %v4301, 16
  %v4365 = vrot.slane %v4363, 1
  %v4366 = vsel %vm2473, %v4361, %v4365
  %v4368 = vshrl.u32 %v4142, 16
  %v4370 = vshll.u32 %v4142, 16
  %v4372 = vrot.slane %v4370, 1
  %v4373 = vor.u32 %v4368, %v4372
  %v4375 = vshll.u32 %v4302, 16
  %v4377 = vrot.slane %v4375, 1
  %v4378 = vsel %vm2473, %v4373, %v4377
  %v4380 = vshrl.u32 %v4143, 16
  %v4382 = vshll.u32 %v4143, 16
  %v4384 = vrot.slane %v4382, 1
  %v4385 = vor.u32 %v4380, %v4384
  %v4387 = vshll.u32 %v4303, 16
  %v4389 = vrot.slane %v4387, 1
  %v4390 = vsel %vm2473, %v4385, %v4389
  %v4392 = vshrl.u32 %v4144, 16
  %v4394 = vshll.u32 %v4144, 16
  %v4396 = vrot.slane %v4394, 1
  %v4397 = vor.u32 %v4392, %v4396
  %v4399 = vshll.u32 %v4304, 16
  %v4401 = vrot.slane %v4399, 1
  %v4402 = vsel %vm2473, %v4397, %v4401
  %v4404 = vshrl.u32 %v4145, 16
  %v4406 = vshll.u32 %v4145, 16
  %v4408 = vrot.slane %v4406, 1
  %v4409 = vor.u32 %v4404, %v4408
  %v4411 = vshll.u32 %v4305, 16
  %v4413 = vrot.slane %v4411, 1
  %v4414 = vsel %vm2473, %v4409, %v4413
  %v4416 = vshrl.u32 %v4146, 16
  %v4418 = vshll.u32 %v4146, 16
  %v4420 = vrot.slane %v4418, 1
  %v4421 = vor.u32 %v4416, %v4420
  %v4423 = vshll.u32 %v4306, 16
  %v4425 = vrot.slane %v4423, 1
  %v4426 = vsel %vm2473, %v4421, %v4425
  %v4428 = vshrl.u32 %v4147, 16
  %v4430 = vshll.u32 %v4147, 16
  %v4432 = vrot.slane %v4430, 1
  %v4433 = vor.u32 %v4428, %v4432
  %v4435 = vshll.u32 %v4307, 16
  %v4437 = vrot.slane %v4435, 1
  %v4438 = vsel %vm2473, %v4433, %v4437
  %v4440 = vshrl.u32 %v4148, 16
  %v4442 = vshll.u32 %v4148, 16
  %v4444 = vrot.slane %v4442, 1
  %v4445 = vor.u32 %v4440, %v4444
  %v4447 = vshll.u32 %v4308, 16
  %v4449 = vrot.slane %v4447, 1
  %v4450 = vsel %vm2473, %v4445, %v4449
  %v4452 = vshrl.u32 %v4149, 16
  %v4454 = vshll.u32 %v4149, 16
  %v4456 = vrot.slane %v4454, 1
  %v4457 = vor.u32 %v4452, %v4456
  %v4459 = vshll.u32 %v4309, 16
  %v4461 = vrot.slane %v4459, 1
  %v4462 = vsel %vm2473, %v4457, %v4461
  %v4464 = vshrl.u32 %v4150, 16
  %v4466 = vshll.u32 %v4150, 16
  %v4468 = vrot.slane %v4466, 1
  %v4469 = vor.u32 %v4464, %v4468
  %v4471 = vshll.u32 %v4310, 16
  %v4473 = vrot.slane %v4471, 1
  %v4474 = vsel %vm2473, %v4469, %v4473
  %v4476 = vshrl.u32 %v4151, 16
  %v4478 = vshll.u32 %v4151, 16
  %v4480 = vrot.slane %v4478, 1
  %v4481 = vor.u32 %v4476, %v4480
  %v4483 = vshll.u32 %v4311, 16
  %v4485 = vrot.slane %v4483, 1
  %v4486 = vsel %vm2473, %v4481, %v4485
  %v4488 = vshrl.u32 %v4152, 16
  %v4490 = vshll.u32 %v4152, 16
  %v4492 = vrot.slane %v4490, 1
  %v4493 = vor.u32 %v4488, %v4492
  %v4495 = vshll.u32 %v4312, 16
  %v4497 = vrot.slane %v4495, 1
  %v4498 = vsel %vm2473, %v4493, %v4497
  %v4500 = vshrl.u32 %v4153, 16
  %v4502 = vshll.u32 %v4153, 16
  %v4504 = vrot.slane %v4502, 1
  %v4505 = vor.u32 %v4500, %v4504
  %v4507 = vshll.u32 %v4313, 16
  %v4509 = vrot.slane %v4507, 1
  %v4510 = vsel %vm2473, %v4505, %v4509
  %v4512 = vshrl.u32 %v4154, 16
  %v4514 = vshll.u32 %v4154, 16
  %v4516 = vrot.slane %v4514, 1
  %v4517 = vor.u32 %v4512, %v4516
  %v4519 = vshll.u32 %v4314, 16
  %v4521 = vrot.slane %v4519, 1
  %v4522 = vsel %vm2473, %v4517, %v4521
  %v4524 = vshrl.u32 %v4155, 16
  %v4526 = vshll.u32 %v4155, 16
  %v4528 = vrot.slane %v4526, 1
  %v4529 = vor.u32 %v4524, %v4528
  %v4531 = vshll.u32 %v4315, 16
  %v4533 = vrot.slane %v4531, 1
  %v4534 = vsel %vm2473, %v4529, %v4533
  %v4536 = vshrl.u32 %v4156, 16
  %v4538 = vshll.u32 %v4156, 16
  %v4540 = vrot.slane %v4538, 1
  %v4541 = vor.u32 %v4536, %v4540
  %v4543 = vshll.u32 %v4316, 16
  %v4545 = vrot.slane %v4543, 1
  %v4546 = vsel %vm2473, %v4541, %v4545
  %v4548 = vshrl.u32 %v4157, 16
  %v4550 = vshll.u32 %v4157, 16
  %v4552 = vrot.slane %v4550, 1
  %v4553 = vor.u32 %v4548, %v4552
  %v4555 = vshll.u32 %v4317, 16
  %v4557 = vrot.slane %v4555, 1
  %v4558 = vsel %vm2473, %v4553, %v4557
  %v4560 = vshrl.u32 %v4158, 16
  %v4562 = vshll.u32 %v4158, 16
  %v4564 = vrot.slane %v4562, 1
  %v4565 = vor.u32 %v4560, %v4564
  %v4567 = vshll.u32 %v4318, 16
  %v4569 = vrot.slane %v4567, 1
  %v4570 = vsel %vm2473, %v4565, %v4569
  %v4572 = vshrl.u32 %v4159, 16
  %v4574 = vshll.u32 %v4159, 16
  %v4576 = vrot.slane %v4574, 1
  %v4577 = vor.u32 %v4572, %v4576
  %v4579 = vshll.u32 %v4319, 16
  %v4581 = vrot.slane %v4579, 1
  %v4582 = vsel %vm2473, %v4577, %v4581
  %v4584 = vshrl.u32 %v4160, 16
  %v4586 = vshll.u32 %v4160, 16
  %v4588 = vrot.slane %v4586, 1
  %v4589 = vor.u32 %v4584, %v4588
  %v4591 = vshll.u32 %v4320, 16
  %v4593 = vrot.slane %v4591, 1
  %v4594 = vsel %vm2473, %v4589, %v4593
  %v4596 = vshrl.u32 %v4161, 16
  %v4598 = vshll.u32 %v4161, 16
  %v4600 = vrot.slane %v4598, 1
  %v4601 = vor.u32 %v4596, %v4600
  %v4603 = vshll.u32 %v4321, 16
  %v4605 = vrot.slane %v4603, 1
  %v4606 = vsel %vm2473, %v4601, %v4605
  %v4608 = vshrl.u32 %v4162, 16
  %v4610 = vshll.u32 %v4162, 16
  %v4612 = vrot.slane %v4610, 1
  %v4613 = vor.u32 %v4608, %v4612
  %v4615 = vshll.u32 %v4322, 16
  %v4617 = vrot.slane %v4615, 1
  %v4618 = vsel %vm2473, %v4613, %v4617
  %v4620 = vshrl.u32 %v4163, 16
  %v4622 = vshll.u32 %v4163, 16
  %v4624 = vrot.slane %v4622, 1
  %v4625 = vor.u32 %v4620, %v4624
  %v4627 = vshll.u32 %v4323, 16
  %v4629 = vrot.slane %v4627, 1
  %v4630 = vsel %vm2473, %v4625, %v4629
  %v4632 = vshrl.u32 %v4164, 16
  %v4634 = vshll.u32 %v4164, 16
  %v4636 = vrot.slane %v4634, 1
  %v4637 = vor.u32 %v4632, %v4636
  %v4639 = vshll.u32 %v4324, 16
  %v4641 = vrot.slane %v4639, 1
  %v4642 = vsel %vm2473, %v4637, %v4641
  %v4644 = vshrl.u32 %v4165, 16
  %v4646 = vshll.u32 %v4165, 16
  %v4648 = vrot.slane %v4646, 1
  %v4649 = vor.u32 %v4644, %v4648
  %v4651 = vshll.u32 %v4325, 16
  %v4653 = vrot.slane %v4651, 1
  %v4654 = vsel %vm2473, %v4649, %v4653
  %v4656 = vshrl.u32 %v4166, 16
  %v4658 = vshll.u32 %v4166, 16
  %v4660 = vrot.slane %v4658, 1
  %v4661 = vor.u32 %v4656, %v4660
  %v4663 = vshll.u32 %v4326, 16
  %v4665 = vrot.slane %v4663, 1
  %v4666 = vsel %vm2473, %v4661, %v4665
  %v4668 = vshrl.u32 %v4167, 16
  %v4670 = vshll.u32 %v4167, 16
  %v4672 = vrot.slane %v4670, 1
  %v4673 = vor.u32 %v4668, %v4672
  %v4675 = vshll.u32 %v4327, 16
  %v4677 = vrot.slane %v4675, 1
  %v4678 = vsel %vm2473, %v4673, %v4677
  %v4680 = vshrl.u32 %v4168, 16
  %v4682 = vshll.u32 %v4168, 16
  %v4684 = vrot.slane %v4682, 1
  %v4685 = vor.u32 %v4680, %v4684
  %v4687 = vshll.u32 %v4328, 16
  %v4689 = vrot.slane %v4687, 1
  %v4690 = vsel %vm2473, %v4685, %v4689
  %v4692 = vshrl.u32 %v4169, 16
  %v4694 = vshll.u32 %v4169, 16
  %v4696 = vrot.slane %v4694, 1
  %v4697 = vor.u32 %v4692, %v4696
  %v4699 = vshll.u32 %v4329, 16
  %v4701 = vrot.slane %v4699, 1
  %v4702 = vsel %vm2473, %v4697, %v4701
  %v4704 = vshrl.u32 %v4170, 16
  %v4706 = vshll.u32 %v4170, 16
  %v4708 = vrot.slane %v4706, 1
  %v4709 = vor.u32 %v4704, %v4708
  %v4711 = vshll.u32 %v4330, 16
  %v4713 = vrot.slane %v4711, 1
  %v4714 = vsel %vm2473, %v4709, %v4713
  %4715 = vrot.lane.b32.xlu0 %v4342, 28
  %v4716 = vpop.permute.xlu0 %4715
  %4717 = vrot.lane.b32.xlu0 %v4354, 28
  %v4718 = vpop.permute.xlu0 %4717
  %4719 = vrot.lane.b32.xlu0 %v4366, 28
  %v4720 = vpop.permute.xlu0 %4719
  %4721 = vrot.lane.b32.xlu0 %v4378, 28
  %v4722 = vpop.permute.xlu0 %4721
  %4723 = vrot.lane.b32.xlu0 %v4390, 28
  %v4724 = vpop.permute.xlu0 %4723
  %4725 = vrot.lane.b32.xlu0 %v4402, 28
  %v4726 = vpop.permute.xlu0 %4725
  %4727 = vrot.lane.b32.xlu0 %v4414, 28
  %v4728 = vpop.permute.xlu0 %4727
  %4729 = vrot.lane.b32.xlu0 %v4426, 28
  %v4730 = vpop.permute.xlu0 %4729
  %4731 = vrot.lane.b32.xlu0 %v4438, 28
  %v4732 = vpop.permute.xlu0 %4731
  %4733 = vrot.lane.b32.xlu0 %v4450, 28
  %v4734 = vpop.permute.xlu0 %4733
  %4735 = vrot.lane.b32.xlu0 %v4462, 28
  %v4736 = vpop.permute.xlu0 %4735
  %4737 = vrot.lane.b32.xlu0 %v4474, 28
  %v4738 = vpop.permute.xlu0 %4737
  %4739 = vrot.lane.b32.xlu0 %v4486, 28
  %v4740 = vpop.permute.xlu0 %4739
  %4741 = vrot.lane.b32.xlu0 %v4498, 28
  %v4742 = vpop.permute.xlu0 %4741
  %4743 = vrot.lane.b32.xlu0 %v4510, 28
  %v4744 = vpop.permute.xlu0 %4743
  %4745 = vrot.lane.b32.xlu0 %v4522, 28
  %v4746 = vpop.permute.xlu0 %4745
  %4747 = vrot.lane.b32.xlu0 %v4534, 28
  %v4748 = vpop.permute.xlu0 %4747
  %4749 = vrot.lane.b32.xlu0 %v4546, 28
  %v4750 = vpop.permute.xlu0 %4749
  %4751 = vrot.lane.b32.xlu0 %v4558, 28
  %v4752 = vpop.permute.xlu0 %4751
  %4753 = vrot.lane.b32.xlu0 %v4570, 28
  %v4754 = vpop.permute.xlu0 %4753
  %4755 = vrot.lane.b32.xlu0 %v4582, 28
  %v4756 = vpop.permute.xlu0 %4755
  %4757 = vrot.lane.b32.xlu0 %v4594, 28
  %v4758 = vpop.permute.xlu0 %4757
  %4759 = vrot.lane.b32.xlu0 %v4606, 28
  %v4760 = vpop.permute.xlu0 %4759
  %4761 = vrot.lane.b32.xlu0 %v4618, 28
  %v4762 = vpop.permute.xlu0 %4761
  %4763 = vrot.lane.b32.xlu0 %v4630, 28
  %v4764 = vpop.permute.xlu0 %4763
  %4765 = vrot.lane.b32.xlu0 %v4642, 28
  %v4766 = vpop.permute.xlu0 %4765
  %4767 = vrot.lane.b32.xlu0 %v4654, 28
  %v4768 = vpop.permute.xlu0 %4767
  %4769 = vrot.lane.b32.xlu0 %v4666, 28
  %v4770 = vpop.permute.xlu0 %4769
  %4771 = vrot.lane.b32.xlu0 %v4678, 28
  %v4772 = vpop.permute.xlu0 %4771
  %4773 = vrot.lane.b32.xlu0 %v4690, 28
  %v4774 = vpop.permute.xlu0 %4773
  %4775 = vrot.lane.b32.xlu0 %v4702, 28
  %v4776 = vpop.permute.xlu0 %4775
  %4777 = vrot.lane.b32.xlu0 %v4714, 28
  %v4778 = vpop.permute.xlu0 %4777
  %v4779 = vrot.slane %v4139, 1
  %v4780 = vrot.slane %v4299, 1
  %v4781 = vsel %vm2922, %v4779, %v4780
  %v4782 = vrot.slane %v4140, 1
  %v4783 = vrot.slane %v4300, 1
  %v4784 = vsel %vm2922, %v4782, %v4783
  %v4785 = vrot.slane %v4141, 1
  %v4786 = vrot.slane %v4301, 1
  %v4787 = vsel %vm2922, %v4785, %v4786
  %v4788 = vrot.slane %v4142, 1
  %v4789 = vrot.slane %v4302, 1
  %v4790 = vsel %vm2922, %v4788, %v4789
  %v4791 = vrot.slane %v4143, 1
  %v4792 = vrot.slane %v4303, 1
  %v4793 = vsel %vm2922, %v4791, %v4792
  %v4794 = vrot.slane %v4144, 1
  %v4795 = vrot.slane %v4304, 1
  %v4796 = vsel %vm2922, %v4794, %v4795
  %v4797 = vrot.slane %v4145, 1
  %v4798 = vrot.slane %v4305, 1
  %v4799 = vsel %vm2922, %v4797, %v4798
  %v4800 = vrot.slane %v4146, 1
  %v4801 = vrot.slane %v4306, 1
  %v4802 = vsel %vm2922, %v4800, %v4801
  %v4803 = vrot.slane %v4147, 1
  %v4804 = vrot.slane %v4307, 1
  %v4805 = vsel %vm2922, %v4803, %v4804
  %v4806 = vrot.slane %v4148, 1
  %v4807 = vrot.slane %v4308, 1
  %v4808 = vsel %vm2922, %v4806, %v4807
  %v4809 = vrot.slane %v4149, 1
  %v4810 = vrot.slane %v4309, 1
  %v4811 = vsel %vm2922, %v4809, %v4810
  %v4812 = vrot.slane %v4150, 1
  %v4813 = vrot.slane %v4310, 1
  %v4814 = vsel %vm2922, %v4812, %v4813
  %v4815 = vrot.slane %v4151, 1
  %v4816 = vrot.slane %v4311, 1
  %v4817 = vsel %vm2922, %v4815, %v4816
  %v4818 = vrot.slane %v4152, 1
  %v4819 = vrot.slane %v4312, 1
  %v4820 = vsel %vm2922, %v4818, %v4819
  %v4821 = vrot.slane %v4153, 1
  %v4822 = vrot.slane %v4313, 1
  %v4823 = vsel %vm2922, %v4821, %v4822
  %v4824 = vrot.slane %v4154, 1
  %v4825 = vrot.slane %v4314, 1
  %v4826 = vsel %vm2922, %v4824, %v4825
  %v4827 = vrot.slane %v4155, 1
  %v4828 = vrot.slane %v4315, 1
  %v4829 = vsel %vm2922, %v4827, %v4828
  %v4830 = vrot.slane %v4156, 1
  %v4831 = vrot.slane %v4316, 1
  %v4832 = vsel %vm2922, %v4830, %v4831
  %v4833 = vrot.slane %v4157, 1
  %v4834 = vrot.slane %v4317, 1
  %v4835 = vsel %vm2922, %v4833, %v4834
  %v4836 = vrot.slane %v4158, 1
  %v4837 = vrot.slane %v4318, 1
  %v4838 = vsel %vm2922, %v4836, %v4837
  %v4839 = vrot.slane %v4159, 1
  %v4840 = vrot.slane %v4319, 1
  %v4841 = vsel %vm2922, %v4839, %v4840
  %v4842 = vrot.slane %v4160, 1
  %v4843 = vrot.slane %v4320, 1
  %v4844 = vsel %vm2922, %v4842, %v4843
  %v4845 = vrot.slane %v4161, 1
  %v4846 = vrot.slane %v4321, 1
  %v4847 = vsel %vm2922, %v4845, %v4846
  %v4848 = vrot.slane %v4162, 1
  %v4849 = vrot.slane %v4322, 1
  %v4850 = vsel %vm2922, %v4848, %v4849
  %v4851 = vrot.slane %v4163, 1
  %v4852 = vrot.slane %v4323, 1
  %v4853 = vsel %vm2922, %v4851, %v4852
  %v4854 = vrot.slane %v4164, 1
  %v4855 = vrot.slane %v4324, 1
  %v4856 = vsel %vm2922, %v4854, %v4855
  %v4857 = vrot.slane %v4165, 1
  %v4858 = vrot.slane %v4325, 1
  %v4859 = vsel %vm2922, %v4857, %v4858
  %v4860 = vrot.slane %v4166, 1
  %v4861 = vrot.slane %v4326, 1
  %v4862 = vsel %vm2922, %v4860, %v4861
  %v4863 = vrot.slane %v4167, 1
  %v4864 = vrot.slane %v4327, 1
  %v4865 = vsel %vm2922, %v4863, %v4864
  %v4866 = vrot.slane %v4168, 1
  %v4867 = vrot.slane %v4328, 1
  %v4868 = vsel %vm2922, %v4866, %v4867
  %v4869 = vrot.slane %v4169, 1
  %v4870 = vrot.slane %v4329, 1
  %v4871 = vsel %vm2922, %v4869, %v4870
  %v4872 = vrot.slane %v4170, 1
  %v4873 = vrot.slane %v4330, 1
  %v4874 = vsel %vm2922, %v4872, %v4873
  %4875 = vrot.lane.b32.xlu0 %v4781, 32
  %v4876 = vpop.permute.xlu0 %4875
  %4877 = vrot.lane.b32.xlu0 %v4784, 32
  %v4878 = vpop.permute.xlu0 %4877
  %4879 = vrot.lane.b32.xlu0 %v4787, 32
  %v4880 = vpop.permute.xlu0 %4879
  %4881 = vrot.lane.b32.xlu0 %v4790, 32
  %v4882 = vpop.permute.xlu0 %4881
  %4883 = vrot.lane.b32.xlu0 %v4793, 32
  %v4884 = vpop.permute.xlu0 %4883
  %4885 = vrot.lane.b32.xlu0 %v4796, 32
  %v4886 = vpop.permute.xlu0 %4885
  %4887 = vrot.lane.b32.xlu0 %v4799, 32
  %v4888 = vpop.permute.xlu0 %4887
  %4889 = vrot.lane.b32.xlu0 %v4802, 32
  %v4890 = vpop.permute.xlu0 %4889
  %4891 = vrot.lane.b32.xlu0 %v4805, 32
  %v4892 = vpop.permute.xlu0 %4891
  %4893 = vrot.lane.b32.xlu0 %v4808, 32
  %v4894 = vpop.permute.xlu0 %4893
  %4895 = vrot.lane.b32.xlu0 %v4811, 32
  %v4896 = vpop.permute.xlu0 %4895
  %4897 = vrot.lane.b32.xlu0 %v4814, 32
  %v4898 = vpop.permute.xlu0 %4897
  %4899 = vrot.lane.b32.xlu0 %v4817, 32
  %v4900 = vpop.permute.xlu0 %4899
  %4901 = vrot.lane.b32.xlu0 %v4820, 32
  %v4902 = vpop.permute.xlu0 %4901
  %4903 = vrot.lane.b32.xlu0 %v4823, 32
  %v4904 = vpop.permute.xlu0 %4903
  %4905 = vrot.lane.b32.xlu0 %v4826, 32
  %v4906 = vpop.permute.xlu0 %4905
  %4907 = vrot.lane.b32.xlu0 %v4829, 32
  %v4908 = vpop.permute.xlu0 %4907
  %4909 = vrot.lane.b32.xlu0 %v4832, 32
  %v4910 = vpop.permute.xlu0 %4909
  %4911 = vrot.lane.b32.xlu0 %v4835, 32
  %v4912 = vpop.permute.xlu0 %4911
  %4913 = vrot.lane.b32.xlu0 %v4838, 32
  %v4914 = vpop.permute.xlu0 %4913
  %4915 = vrot.lane.b32.xlu0 %v4841, 32
  %v4916 = vpop.permute.xlu0 %4915
  %4917 = vrot.lane.b32.xlu0 %v4844, 32
  %v4918 = vpop.permute.xlu0 %4917
  %4919 = vrot.lane.b32.xlu0 %v4847, 32
  %v4920 = vpop.permute.xlu0 %4919
  %4921 = vrot.lane.b32.xlu0 %v4850, 32
  %v4922 = vpop.permute.xlu0 %4921
  %4923 = vrot.lane.b32.xlu0 %v4853, 32
  %v4924 = vpop.permute.xlu0 %4923
  %4925 = vrot.lane.b32.xlu0 %v4856, 32
  %v4926 = vpop.permute.xlu0 %4925
  %4927 = vrot.lane.b32.xlu0 %v4859, 32
  %v4928 = vpop.permute.xlu0 %4927
  %4929 = vrot.lane.b32.xlu0 %v4862, 32
  %v4930 = vpop.permute.xlu0 %4929
  %4931 = vrot.lane.b32.xlu0 %v4865, 32
  %v4932 = vpop.permute.xlu0 %4931
  %4933 = vrot.lane.b32.xlu0 %v4868, 32
  %v4934 = vpop.permute.xlu0 %4933
  %4935 = vrot.lane.b32.xlu0 %v4871, 32
  %v4936 = vpop.permute.xlu0 %4935
  %4937 = vrot.lane.b32.xlu0 %v4874, 32
  %v4938 = vpop.permute.xlu0 %4937
  %v4940 = vsel %vm259, %v2345, %v2859
  %v4942 = vsel %vm259, %v2346, %v2861
  %v4944 = vsel %vm259, %v2347, %v2863
  %v4946 = vsel %vm259, %v2348, %v2865
  %v4948 = vsel %vm259, %v2349, %v2867
  %v4950 = vsel %vm259, %v2350, %v2869
  %v4952 = vsel %vm259, %v2351, %v2871
  %v4954 = vsel %vm259, %v2352, %v2873
  %v4956 = vsel %vm259, %v2353, %v2875
  %v4958 = vsel %vm259, %v2354, %v2877
  %v4960 = vsel %vm259, %v2355, %v2879
  %v4962 = vsel %vm259, %v2356, %v2881
  %v4964 = vsel %vm259, %v2357, %v2883
  %v4966 = vsel %vm259, %v2358, %v2885
  %v4968 = vsel %vm259, %v2359, %v2887
  %v4970 = vsel %vm259, %v2360, %v2889
  %v4972 = vsel %vm259, %v2361, %v2891
  %v4974 = vsel %vm259, %v2362, %v2893
  %v4976 = vsel %vm259, %v2363, %v2895
  %v4978 = vsel %vm259, %v2364, %v2897
  %v4980 = vsel %vm259, %v2365, %v2899
  %v4982 = vsel %vm259, %v2366, %v2901
  %v4984 = vsel %vm259, %v2367, %v2903
  %v4986 = vsel %vm259, %v2368, %v2905
  %v4988 = vsel %vm259, %v2369, %v2907
  %v4990 = vsel %vm259, %v2370, %v2909
  %v4992 = vsel %vm259, %v2371, %v2911
  %v4994 = vsel %vm259, %v2372, %v2913
  %v4996 = vsel %vm259, %v2373, %v2915
  %v4998 = vsel %vm259, %v2374, %v2917
  %v5000 = vsel %vm259, %v2375, %v2919
  %v5002 = vsel %vm259, %v2376, %v2921
  %vm5003 = vcmask 64512
  %v5005 = vsel %vm5003, %v4940, %v3020
  %v5007 = vsel %vm5003, %v4942, %v3022
  %v5009 = vsel %vm5003, %v4944, %v3024
  %v5011 = vsel %vm5003, %v4946, %v3026
  %v5013 = vsel %vm5003, %v4948, %v3028
  %v5015 = vsel %vm5003, %v4950, %v3030
  %v5017 = vsel %vm5003, %v4952, %v3032
  %v5019 = vsel %vm5003, %v4954, %v3034
  %v5021 = vsel %vm5003, %v4956, %v3036
  %v5023 = vsel %vm5003, %v4958, %v3038
  %v5025 = vsel %vm5003, %v4960, %v3040
  %v5027 = vsel %vm5003, %v4962, %v3042
  %v5029 = vsel %vm5003, %v4964, %v3044
  %v5031 = vsel %vm5003, %v4966, %v3046
  %v5033 = vsel %vm5003, %v4968, %v3048
  %v5035 = vsel %vm5003, %v4970, %v3050
  %v5037 = vsel %vm5003, %v4972, %v3052
  %v5039 = vsel %vm5003, %v4974, %v3054
  %v5041 = vsel %vm5003, %v4976, %v3056
  %v5043 = vsel %vm5003, %v4978, %v3058
  %v5045 = vsel %vm5003, %v4980, %v3060
  %v5047 = vsel %vm5003, %v4982, %v3062
  %v5049 = vsel %vm5003, %v4984, %v3064
  %v5051 = vsel %vm5003, %v4986, %v3066
  %v5053 = vsel %vm5003, %v4988, %v3068
  %v5055 = vsel %vm5003, %v4990, %v3070
  %v5057 = vsel %vm5003, %v4992, %v3072
  %v5059 = vsel %vm5003, %v4994, %v3074
  %v5061 = vsel %vm5003, %v4996, %v3076
  %v5063 = vsel %vm5003, %v4998, %v3078
  %v5065 = vsel %vm5003, %v5000, %v3080
  %v5067 = vsel %vm5003, %v5002, %v3082
  %vm5068 = vcmask 97280
  %v5070 = vsel %vm5068, %v5005, %v3244
  %v5072 = vsel %vm5068, %v5007, %v3246
  %v5074 = vsel %vm5068, %v5009, %v3248
  %v5076 = vsel %vm5068, %v5011, %v3250
  %v5078 = vsel %vm5068, %v5013, %v3252
  %v5080 = vsel %vm5068, %v5015, %v3254
  %v5082 = vsel %vm5068, %v5017, %v3256
  %v5084 = vsel %vm5068, %v5019, %v3258
  %v5086 = vsel %vm5068, %v5021, %v3260
  %v5088 = vsel %vm5068, %v5023, %v3262
  %v5090 = vsel %vm5068, %v5025, %v3264
  %v5092 = vsel %vm5068, %v5027, %v3266
  %v5094 = vsel %vm5068, %v5029, %v3268
  %v5096 = vsel %vm5068, %v5031, %v3270
  %v5098 = vsel %vm5068, %v5033, %v3272
  %v5100 = vsel %vm5068, %v5035, %v3274
  %v5102 = vsel %vm5068, %v5037, %v3276
  %v5104 = vsel %vm5068, %v5039, %v3278
  %v5106 = vsel %vm5068, %v5041, %v3280
  %v5108 = vsel %vm5068, %v5043, %v3282
  %v5110 = vsel %vm5068, %v5045, %v3284
  %v5112 = vsel %vm5068, %v5047, %v3286
  %v5114 = vsel %vm5068, %v5049, %v3288
  %v5116 = vsel %vm5068, %v5051, %v3290
  %v5118 = vsel %vm5068, %v5053, %v3292
  %v5120 = vsel %vm5068, %v5055, %v3294
  %v5122 = vsel %vm5068, %v5057, %v3296
  %v5124 = vsel %vm5068, %v5059, %v3298
  %v5126 = vsel %vm5068, %v5061, %v3300
  %v5128 = vsel %vm5068, %v5063, %v3302
  %v5130 = vsel %vm5068, %v5065, %v3304
  %v5132 = vsel %vm5068, %v5067, %v3306
  %vm5133 = vcmask 130048
  %v5135 = vsel %vm5133, %v5070, %v3788
  %v5137 = vsel %vm5133, %v5072, %v3790
  %v5139 = vsel %vm5133, %v5074, %v3792
  %v5141 = vsel %vm5133, %v5076, %v3794
  %v5143 = vsel %vm5133, %v5078, %v3796
  %v5145 = vsel %vm5133, %v5080, %v3798
  %v5147 = vsel %vm5133, %v5082, %v3800
  %v5149 = vsel %vm5133, %v5084, %v3802
  %v5151 = vsel %vm5133, %v5086, %v3804
  %v5153 = vsel %vm5133, %v5088, %v3806
  %v5155 = vsel %vm5133, %v5090, %v3808
  %v5157 = vsel %vm5133, %v5092, %v3810
  %v5159 = vsel %vm5133, %v5094, %v3812
  %v5161 = vsel %vm5133, %v5096, %v3814
  %v5163 = vsel %vm5133, %v5098, %v3816
  %v5165 = vsel %vm5133, %v5100, %v3818
  %v5167 = vsel %vm5133, %v5102, %v3820
  %v5169 = vsel %vm5133, %v5104, %v3822
  %v5171 = vsel %vm5133, %v5106, %v3824
  %v5173 = vsel %vm5133, %v5108, %v3826
  %v5175 = vsel %vm5133, %v5110, %v3828
  %v5177 = vsel %vm5133, %v5112, %v3830
  %v5179 = vsel %vm5133, %v5114, %v3832
  %v5181 = vsel %vm5133, %v5116, %v3834
  %v5183 = vsel %vm5133, %v5118, %v3836
  %v5185 = vsel %vm5133, %v5120, %v3838
  %v5187 = vsel %vm5133, %v5122, %v3840
  %v5189 = vsel %vm5133, %v5124, %v3842
  %v5191 = vsel %vm5133, %v5126, %v3844
  %v5193 = vsel %vm5133, %v5128, %v3846
  %v5195 = vsel %vm5133, %v5130, %v3848
  %v5197 = vsel %vm5133, %v5132, %v3850
  %vm5198 = vcmask 162816
  %v5200 = vsel %vm5198, %v5135, %v3948
  %v5202 = vsel %vm5198, %v5137, %v3950
  %v5204 = vsel %vm5198, %v5139, %v3952
  %v5206 = vsel %vm5198, %v5141, %v3954
  %v5208 = vsel %vm5198, %v5143, %v3956
  %v5210 = vsel %vm5198, %v5145, %v3958
  %v5212 = vsel %vm5198, %v5147, %v3960
  %v5214 = vsel %vm5198, %v5149, %v3962
  %v5216 = vsel %vm5198, %v5151, %v3964
  %v5218 = vsel %vm5198, %v5153, %v3966
  %v5220 = vsel %vm5198, %v5155, %v3968
  %v5222 = vsel %vm5198, %v5157, %v3970
  %v5224 = vsel %vm5198, %v5159, %v3972
  %v5226 = vsel %vm5198, %v5161, %v3974
  %v5228 = vsel %vm5198, %v5163, %v3976
  %v5230 = vsel %vm5198, %v5165, %v3978
  %v5232 = vsel %vm5198, %v5167, %v3980
  %v5234 = vsel %vm5198, %v5169, %v3982
  %v5236 = vsel %vm5198, %v5171, %v3984
  %v5238 = vsel %vm5198, %v5173, %v3986
  %v5240 = vsel %vm5198, %v5175, %v3988
  %v5242 = vsel %vm5198, %v5177, %v3990
  %v5244 = vsel %vm5198, %v5179, %v3992
  %v5246 = vsel %vm5198, %v5181, %v3994
  %v5248 = vsel %vm5198, %v5183, %v3996
  %v5250 = vsel %vm5198, %v5185, %v3998
  %v5252 = vsel %vm5198, %v5187, %v4000
  %v5254 = vsel %vm5198, %v5189, %v4002
  %v5256 = vsel %vm5198, %v5191, %v4004
  %v5258 = vsel %vm5198, %v5193, %v4006
  %v5260 = vsel %vm5198, %v5195, %v4008
  %v5262 = vsel %vm5198, %v5197, %v4010
  %vm5263 = vcmask 195584
  %v5265 = vsel %vm5263, %v5200, %v4172
  %v5267 = vsel %vm5263, %v5202, %v4174
  %v5269 = vsel %vm5263, %v5204, %v4176
  %v5271 = vsel %vm5263, %v5206, %v4178
  %v5273 = vsel %vm5263, %v5208, %v4180
  %v5275 = vsel %vm5263, %v5210, %v4182
  %v5277 = vsel %vm5263, %v5212, %v4184
  %v5279 = vsel %vm5263, %v5214, %v4186
  %v5281 = vsel %vm5263, %v5216, %v4188
  %v5283 = vsel %vm5263, %v5218, %v4190
  %v5285 = vsel %vm5263, %v5220, %v4192
  %v5287 = vsel %vm5263, %v5222, %v4194
  %v5289 = vsel %vm5263, %v5224, %v4196
  %v5291 = vsel %vm5263, %v5226, %v4198
  %v5293 = vsel %vm5263, %v5228, %v4200
  %v5295 = vsel %vm5263, %v5230, %v4202
  %v5297 = vsel %vm5263, %v5232, %v4204
  %v5299 = vsel %vm5263, %v5234, %v4206
  %v5301 = vsel %vm5263, %v5236, %v4208
  %v5303 = vsel %vm5263, %v5238, %v4210
  %v5305 = vsel %vm5263, %v5240, %v4212
  %v5307 = vsel %vm5263, %v5242, %v4214
  %v5309 = vsel %vm5263, %v5244, %v4216
  %v5311 = vsel %vm5263, %v5246, %v4218
  %v5313 = vsel %vm5263, %v5248, %v4220
  %v5315 = vsel %vm5263, %v5250, %v4222
  %v5317 = vsel %vm5263, %v5252, %v4224
  %v5319 = vsel %vm5263, %v5254, %v4226
  %v5321 = vsel %vm5263, %v5256, %v4228
  %v5323 = vsel %vm5263, %v5258, %v4230
  %v5325 = vsel %vm5263, %v5260, %v4232
  %v5327 = vsel %vm5263, %v5262, %v4234
  %vm5328 = vcmask 228352
  %v5330 = vsel %vm5328, %v5265, %v4716
  %v5332 = vsel %vm5328, %v5267, %v4718
  %v5334 = vsel %vm5328, %v5269, %v4720
  %v5336 = vsel %vm5328, %v5271, %v4722
  %v5338 = vsel %vm5328, %v5273, %v4724
  %v5340 = vsel %vm5328, %v5275, %v4726
  %v5342 = vsel %vm5328, %v5277, %v4728
  %v5344 = vsel %vm5328, %v5279, %v4730
  %v5346 = vsel %vm5328, %v5281, %v4732
  %v5348 = vsel %vm5328, %v5283, %v4734
  %v5350 = vsel %vm5328, %v5285, %v4736
  %v5352 = vsel %vm5328, %v5287, %v4738
  %v5354 = vsel %vm5328, %v5289, %v4740
  %v5356 = vsel %vm5328, %v5291, %v4742
  %v5358 = vsel %vm5328, %v5293, %v4744
  %v5360 = vsel %vm5328, %v5295, %v4746
  %v5362 = vsel %vm5328, %v5297, %v4748
  %v5364 = vsel %vm5328, %v5299, %v4750
  %v5366 = vsel %vm5328, %v5301, %v4752
  %v5368 = vsel %vm5328, %v5303, %v4754
  %v5370 = vsel %vm5328, %v5305, %v4756
  %v5372 = vsel %vm5328, %v5307, %v4758
  %v5374 = vsel %vm5328, %v5309, %v4760
  %v5376 = vsel %vm5328, %v5311, %v4762
  %v5378 = vsel %vm5328, %v5313, %v4764
  %v5380 = vsel %vm5328, %v5315, %v4766
  %v5382 = vsel %vm5328, %v5317, %v4768
  %v5384 = vsel %vm5328, %v5319, %v4770
  %v5386 = vsel %vm5328, %v5321, %v4772
  %v5388 = vsel %vm5328, %v5323, %v4774
  %v5390 = vsel %vm5328, %v5325, %v4776
  %v5392 = vsel %vm5328, %v5327, %v4778
  %vm5393 = vcmask 261120
  %v5395 = vsel %vm5393, %v5330, %v4876
  %v5397 = vsel %vm5393, %v5332, %v4878
  %v5399 = vsel %vm5393, %v5334, %v4880
  %v5401 = vsel %vm5393, %v5336, %v4882
  %v5403 = vsel %vm5393, %v5338, %v4884
  %v5405 = vsel %vm5393, %v5340, %v4886
  %v5407 = vsel %vm5393, %v5342, %v4888
  %v5409 = vsel %vm5393, %v5344, %v4890
  %v5411 = vsel %vm5393, %v5346, %v4892
  %v5413 = vsel %vm5393, %v5348, %v4894
  %v5415 = vsel %vm5393, %v5350, %v4896
  %v5417 = vsel %vm5393, %v5352, %v4898
  %v5419 = vsel %vm5393, %v5354, %v4900
  %v5421 = vsel %vm5393, %v5356, %v4902
  %v5423 = vsel %vm5393, %v5358, %v4904
  %v5425 = vsel %vm5393, %v5360, %v4906
  %v5427 = vsel %vm5393, %v5362, %v4908
  %v5429 = vsel %vm5393, %v5364, %v4910
  %v5431 = vsel %vm5393, %v5366, %v4912
  %v5433 = vsel %vm5393, %v5368, %v4914
  %v5435 = vsel %vm5393, %v5370, %v4916
  %v5437 = vsel %vm5393, %v5372, %v4918
  %v5439 = vsel %vm5393, %v5374, %v4920
  %v5441 = vsel %vm5393, %v5376, %v4922
  %v5443 = vsel %vm5393, %v5378, %v4924
  %v5445 = vsel %vm5393, %v5380, %v4926
  %v5447 = vsel %vm5393, %v5382, %v4928
  %v5449 = vsel %vm5393, %v5384, %v4930
  %v5451 = vsel %vm5393, %v5386, %v4932
  %v5453 = vsel %vm5393, %v5388, %v4934
  %v5455 = vsel %vm5393, %v5390, %v4936
  %v5457 = vsel %vm5393, %v5392, %v4938
  %v5458 = vld [vmem:[%s1] sm:$0xf]
  %v5459 = vld [vmem:[%s1 + $0x4] sm:$0xf]
  %v5460 = vld [vmem:[%s1 + $0x8] sm:$0xf]
  %v5461 = vld [vmem:[%s1 + $0xc] sm:$0xf]
  %v5462 = vld [vmem:[%s1 + $0x10] sm:$0x3]
  %v5463 = vld [vmem:[%s2] sm:$0x1]
  %v5465 = vlaneseq
  %v5466 = vshrl.u32 %v5465, 7
  %v5467 = vsub.s32 0, %v5466
  %v5468 = vrot.slane %v5463, %v5467
  %v5475 = vunpack.c.l.b16 %v5458
  %v5476 = vunpack.c.l.b16 %v5459
  %v5477 = vunpack.c.l.b16 %v5460
  %v5478 = vunpack.c.l.b16 %v5461
  %v5479 = vunpack.c.l.b16 %v5462
  %v5480 = vpack.c.b16 %v5476, %v5475
  %v5481 = vpack.c.b16 %v5478, %v5477
  %v5482 = vpack.c.b16 %v5479, %v5479
  %vm5485 = vcmask 293888
  %v5486 = vsel %vm5485, %v5395, 0
  %v5488 = vsel %vm5485, %v5397, 0
  %v5490 = vsel %vm5485, %v5399, 0
  %v5492 = vsel %vm5485, %v5401, 0
  %v5494 = vsel %vm5485, %v5403, 0
  %v5496 = vsel %vm5485, %v5405, 0
  %v5498 = vsel %vm5485, %v5407, 0
  %v5500 = vsel %vm5485, %v5409, 0
  %v5502 = vsel %vm5485, %v5411, 0
  %v5504 = vsel %vm5485, %v5413, 0
  %v5506 = vsel %vm5485, %v5415, 0
  %v5508 = vsel %vm5485, %v5417, 0
  %v5510 = vsel %vm5485, %v5419, 0
  %v5512 = vsel %vm5485, %v5421, 0
  %v5514 = vsel %vm5485, %v5423, 0
  %v5516 = vsel %vm5485, %v5425, 0
  %v5518 = vsel %vm5485, %v5427, 0
  %v5520 = vsel %vm5485, %v5429, 0
  %v5522 = vsel %vm5485, %v5431, 0
  %v5524 = vsel %vm5485, %v5433, 0
  %v5526 = vsel %vm5485, %v5435, 0
  %v5528 = vsel %vm5485, %v5437, 0
  %v5530 = vsel %vm5485, %v5439, 0
  %v5532 = vsel %vm5485, %v5441, 0
  %v5534 = vsel %vm5485, %v5443, 0
  %v5536 = vsel %vm5485, %v5445, 0
  %v5538 = vsel %vm5485, %v5447, 0
  %v5540 = vsel %vm5485, %v5449, 0
  %v5542 = vsel %vm5485, %v5451, 0
  %v5544 = vsel %vm5485, %v5453, 0
  %v5546 = vsel %vm5485, %v5455, 0
  %v5548 = vsel %vm5485, %v5457, 0
  %v5551 = vsel %vm356, %v5482, 0
  %5553 = vmatprep.subr.bf16.mxu0 0
  %5554 = vmatpush1.bf16.msra.mxu0 %v5480
  %5555 = vmatprep.subr.bf16.mxu0 0
  %5556 = vmatpush1.bf16.msra.mxu0 %v5481
  %5557 = vmatprep.subr.bf16.mxu0 0
  %5558 = vmatpush1.bf16.msra.mxu0 %v5551
  %5559 = vmatprep.subr.bf16.mxu0 0
  %5560 = vmatpush1.bf16.msra.mxu0 0
  %5561 = vmatprep.subr.bf16.mxu0 0
  %5562 = vmatpush1.bf16.msra.mxu0 0
  %5563 = vmatprep.subr.bf16.mxu0 0
  %5564 = vmatpush1.bf16.msra.mxu0 0
  %5565 = vmatprep.subr.bf16.mxu0 0
  %5566 = vmatpush1.bf16.msra.mxu0 0
  %5567 = vmatprep.subr.bf16.mxu0 0
  %5568 = vmatpush1.bf16.msra.mxu0 0
  %5569 = vmatprep.subr.bf16.mxu0 0
  %5570 = vmatpush1.bf16.msra.mxu0 0
  %5571 = vmatprep.subr.bf16.mxu0 0
  %5572 = vmatpush1.bf16.msra.mxu0 0
  %5573 = vmatprep.subr.bf16.mxu0 0
  %5574 = vmatpush1.bf16.msra.mxu0 0
  %5575 = vmatprep.subr.bf16.mxu0 0
  %5576 = vmatpush1.bf16.msra.mxu0 0
  %5577 = vmatprep.subr.bf16.mxu0 0
  %5578 = vmatpush1.bf16.msra.mxu0 0
  %5579 = vmatprep.subr.bf16.mxu0 0
  %5580 = vmatpush1.bf16.msra.mxu0 0
  %5581 = vmatprep.subr.bf16.mxu0 0
  %5582 = vmatpush1.bf16.msra.mxu0 0
  %5583 = vmatprep.subr.bf16.mxu0 0
  %5584 = vmatpush1.bf16.msra.mxu0 0
  %5585 = vmatprep.mubr.bf16.mxu0 0
  %5586 = vmatmul.mubr.bf16.gmra.mrb[0].mxu0 %v5486
  %v5587 = vpop.f32.mrb[0].mxu0
  %v5588 = vadd.f32 %v5468, %v5587
  %v5589 = vpop.f32.mrb[0].mxu0
  %v5590 = vpop.f32.mrb[0].mxu0
  %v5591 = vadd.f32 %v5468, %v5590
  %v5592 = vpop.f32.mrb[0].mxu0
  %5593 = vmatprep.mubr.bf16.mxu0 0
  %5594 = vmatmul.mubr.bf16.gmra.mrb[0].mxu0 %v5488
  %v5595 = vpop.f32.mrb[0].mxu0
  %v5596 = vadd.f32 %v5468, %v5595
  %v5597 = vpop.f32.mrb[0].mxu0
  %v5598 = vpop.f32.mrb[0].mxu0
  %v5599 = vadd.f32 %v5468, %v5598
  %v5600 = vpop.f32.mrb[0].mxu0
  %5601 = vmatprep.mubr.bf16.mxu0 0
  %5602 = vmatmul.mubr.bf16.gmra.mrb[0].mxu0 %v5490
  %v5603 = vpop.f32.mrb[0].mxu0
  %v5604 = vadd.f32 %v5468, %v5603
  %v5605 = vpop.f32.mrb[0].mxu0
  %v5606 = vpop.f32.mrb[0].mxu0
  %v5607 = vadd.f32 %v5468, %v5606
  %v5608 = vpop.f32.mrb[0].mxu0
  %5609 = vmatprep.mubr.bf16.mxu0 0
  %5610 = vmatmul.mubr.bf16.gmra.mrb[0].mxu0 %v5492
  %v5611 = vpop.f32.mrb[0].mxu0
  %v5612 = vadd.f32 %v5468, %v5611
  %v5613 = vpop.f32.mrb[0].mxu0
  %v5614 = vpop.f32.mrb[0].mxu0
  %v5615 = vadd.f32 %v5468, %v5614
  %v5616 = vpop.f32.mrb[0].mxu0
  %5617 = vmatprep.mubr.bf16.mxu0 0
  %5618 = vmatmul.mubr.bf16.gmra.mrb[0].mxu0 %v5494
  %v5619 = vpop.f32.mrb[0].mxu0
  %v5620 = vadd.f32 %v5468, %v5619
  %v5621 = vpop.f32.mrb[0].mxu0
  %v5622 = vpop.f32.mrb[0].mxu0
  %v5623 = vadd.f32 %v5468, %v5622
  %v5624 = vpop.f32.mrb[0].mxu0
  %5625 = vmatprep.mubr.bf16.mxu0 0
  %5626 = vmatmul.mubr.bf16.gmra.mrb[0].mxu0 %v5496
  %v5627 = vpop.f32.mrb[0].mxu0
  %v5628 = vadd.f32 %v5468, %v5627
  %v5629 = vpop.f32.mrb[0].mxu0
  %v5630 = vpop.f32.mrb[0].mxu0
  %v5631 = vadd.f32 %v5468, %v5630
  %v5632 = vpop.f32.mrb[0].mxu0
  %5633 = vmatprep.mubr.bf16.mxu0 0
  %5634 = vmatmul.mubr.bf16.gmra.mrb[0].mxu0 %v5498
  %v5635 = vpop.f32.mrb[0].mxu0
  %v5636 = vadd.f32 %v5468, %v5635
  %v5637 = vpop.f32.mrb[0].mxu0
  %v5638 = vpop.f32.mrb[0].mxu0
  %v5639 = vadd.f32 %v5468, %v5638
  %v5640 = vpop.f32.mrb[0].mxu0
  %5641 = vmatprep.mubr.bf16.mxu0 0
  %5642 = vmatmul.mubr.bf16.gmra.mrb[0].mxu0 %v5500
  %v5643 = vpop.f32.mrb[0].mxu0
  %v5644 = vadd.f32 %v5468, %v5643
  %v5645 = vpop.f32.mrb[0].mxu0
  %v5646 = vpop.f32.mrb[0].mxu0
  %v5647 = vadd.f32 %v5468, %v5646
  %v5648 = vpop.f32.mrb[0].mxu0
  %5649 = vmatprep.mubr.bf16.mxu0 0
  %5650 = vmatmul.mubr.bf16.gmra.mrb[0].mxu0 %v5502
  %v5651 = vpop.f32.mrb[0].mxu0
  %v5652 = vadd.f32 %v5468, %v5651
  %v5653 = vpop.f32.mrb[0].mxu0
  %v5654 = vpop.f32.mrb[0].mxu0
  %v5655 = vadd.f32 %v5468, %v5654
  %v5656 = vpop.f32.mrb[0].mxu0
  %5657 = vmatprep.mubr.bf16.mxu0 0
  %5658 = vmatmul.mubr.bf16.gmra.mrb[0].mxu0 %v5504
  %v5659 = vpop.f32.mrb[0].mxu0
  %v5660 = vadd.f32 %v5468, %v5659
  %v5661 = vpop.f32.mrb[0].mxu0
  %v5662 = vpop.f32.mrb[0].mxu0
  %v5663 = vadd.f32 %v5468, %v5662
  %v5664 = vpop.f32.mrb[0].mxu0
  %5665 = vmatprep.mubr.bf16.mxu0 0
  %5666 = vmatmul.mubr.bf16.gmra.mrb[0].mxu0 %v5506
  %v5667 = vpop.f32.mrb[0].mxu0
  %v5668 = vadd.f32 %v5468, %v5667
  %v5669 = vpop.f32.mrb[0].mxu0
  %v5670 = vpop.f32.mrb[0].mxu0
  %v5671 = vadd.f32 %v5468, %v5670
  %v5672 = vpop.f32.mrb[0].mxu0
  %5673 = vmatprep.mubr.bf16.mxu0 0
  %5674 = vmatmul.mubr.bf16.gmra.mrb[0].mxu0 %v5508
  %v5675 = vpop.f32.mrb[0].mxu0
  %v5676 = vadd.f32 %v5468, %v5675
  %v5677 = vpop.f32.mrb[0].mxu0
  %v5678 = vpop.f32.mrb[0].mxu0
  %v5679 = vadd.f32 %v5468, %v5678
  %v5680 = vpop.f32.mrb[0].mxu0
  %5681 = vmatprep.mubr.bf16.mxu0 0
  %5682 = vmatmul.mubr.bf16.gmra.mrb[0].mxu0 %v5510
  %v5683 = vpop.f32.mrb[0].mxu0
  %v5684 = vadd.f32 %v5468, %v5683
  %v5685 = vpop.f32.mrb[0].mxu0
  %v5686 = vpop.f32.mrb[0].mxu0
  %v5687 = vadd.f32 %v5468, %v5686
  %v5688 = vpop.f32.mrb[0].mxu0
  %5689 = vmatprep.mubr.bf16.mxu0 0
  %5690 = vmatmul.mubr.bf16.gmra.mrb[0].mxu0 %v5512
  %v5691 = vpop.f32.mrb[0].mxu0
  %v5692 = vadd.f32 %v5468, %v5691
  %v5693 = vpop.f32.mrb[0].mxu0
  %v5694 = vpop.f32.mrb[0].mxu0
  %v5695 = vadd.f32 %v5468, %v5694
  %v5696 = vpop.f32.mrb[0].mxu0
  %5697 = vmatprep.mubr.bf16.mxu0 0
  %5698 = vmatmul.mubr.bf16.gmra.mrb[0].mxu0 %v5514
  %v5699 = vpop.f32.mrb[0].mxu0
  %v5700 = vadd.f32 %v5468, %v5699
  %v5701 = vpop.f32.mrb[0].mxu0
  %v5702 = vpop.f32.mrb[0].mxu0
  %v5703 = vadd.f32 %v5468, %v5702
  %v5704 = vpop.f32.mrb[0].mxu0
  %5705 = vmatprep.mubr.bf16.mxu0 0
  %5706 = vmatmul.mubr.bf16.gmra.mrb[0].mxu0 %v5516
  %v5707 = vpop.f32.mrb[0].mxu0
  %v5708 = vadd.f32 %v5468, %v5707
  %v5709 = vpop.f32.mrb[0].mxu0
  %v5710 = vpop.f32.mrb[0].mxu0
  %v5711 = vadd.f32 %v5468, %v5710
  %v5712 = vpop.f32.mrb[0].mxu0
  %5713 = vmatprep.mubr.bf16.mxu0 0
  %5714 = vmatmul.mubr.bf16.gmra.mrb[0].mxu0 %v5518
  %v5715 = vpop.f32.mrb[0].mxu0
  %v5716 = vadd.f32 %v5468, %v5715
  %v5717 = vpop.f32.mrb[0].mxu0
  %v5718 = vpop.f32.mrb[0].mxu0
  %v5719 = vadd.f32 %v5468, %v5718
  %v5720 = vpop.f32.mrb[0].mxu0
  %5721 = vmatprep.mubr.bf16.mxu0 0
  %5722 = vmatmul.mubr.bf16.gmra.mrb[0].mxu0 %v5520
  %v5723 = vpop.f32.mrb[0].mxu0
  %v5724 = vadd.f32 %v5468, %v5723
  %v5725 = vpop.f32.mrb[0].mxu0
  %v5726 = vpop.f32.mrb[0].mxu0
  %v5727 = vadd.f32 %v5468, %v5726
  %v5728 = vpop.f32.mrb[0].mxu0
  %5729 = vmatprep.mubr.bf16.mxu0 0
  %5730 = vmatmul.mubr.bf16.gmra.mrb[0].mxu0 %v5522
  %v5731 = vpop.f32.mrb[0].mxu0
  %v5732 = vadd.f32 %v5468, %v5731
  %v5733 = vpop.f32.mrb[0].mxu0
  %v5734 = vpop.f32.mrb[0].mxu0
  %v5735 = vadd.f32 %v5468, %v5734
  %v5736 = vpop.f32.mrb[0].mxu0
  %5737 = vmatprep.mubr.bf16.mxu0 0
  %5738 = vmatmul.mubr.bf16.gmra.mrb[0].mxu0 %v5524
  %v5739 = vpop.f32.mrb[0].mxu0
  %v5740 = vadd.f32 %v5468, %v5739
  %v5741 = vpop.f32.mrb[0].mxu0
  %v5742 = vpop.f32.mrb[0].mxu0
  %v5743 = vadd.f32 %v5468, %v5742
  %v5744 = vpop.f32.mrb[0].mxu0
  %5745 = vmatprep.mubr.bf16.mxu0 0
  %5746 = vmatmul.mubr.bf16.gmra.mrb[0].mxu0 %v5526
  %v5747 = vpop.f32.mrb[0].mxu0
  %v5748 = vadd.f32 %v5468, %v5747
  %v5749 = vpop.f32.mrb[0].mxu0
  %v5750 = vpop.f32.mrb[0].mxu0
  %v5751 = vadd.f32 %v5468, %v5750
  %v5752 = vpop.f32.mrb[0].mxu0
  %5753 = vmatprep.mubr.bf16.mxu0 0
  %5754 = vmatmul.mubr.bf16.gmra.mrb[0].mxu0 %v5528
  %v5755 = vpop.f32.mrb[0].mxu0
  %v5756 = vadd.f32 %v5468, %v5755
  %v5757 = vpop.f32.mrb[0].mxu0
  %v5758 = vpop.f32.mrb[0].mxu0
  %v5759 = vadd.f32 %v5468, %v5758
  %v5760 = vpop.f32.mrb[0].mxu0
  %5761 = vmatprep.mubr.bf16.mxu0 0
  %5762 = vmatmul.mubr.bf16.gmra.mrb[0].mxu0 %v5530
  %v5763 = vpop.f32.mrb[0].mxu0
  %v5764 = vadd.f32 %v5468, %v5763
  %v5765 = vpop.f32.mrb[0].mxu0
  %v5766 = vpop.f32.mrb[0].mxu0
  %v5767 = vadd.f32 %v5468, %v5766
  %v5768 = vpop.f32.mrb[0].mxu0
  %5769 = vmatprep.mubr.bf16.mxu0 0
  %5770 = vmatmul.mubr.bf16.gmra.mrb[0].mxu0 %v5532
  %v5771 = vpop.f32.mrb[0].mxu0
  %v5772 = vadd.f32 %v5468, %v5771
  %v5773 = vpop.f32.mrb[0].mxu0
  %v5774 = vpop.f32.mrb[0].mxu0
  %v5775 = vadd.f32 %v5468, %v5774
  %v5776 = vpop.f32.mrb[0].mxu0
  %5777 = vmatprep.mubr.bf16.mxu0 0
  %5778 = vmatmul.mubr.bf16.gmra.mrb[0].mxu0 %v5534
  %v5779 = vpop.f32.mrb[0].mxu0
  %v5780 = vadd.f32 %v5468, %v5779
  %v5781 = vpop.f32.mrb[0].mxu0
  %v5782 = vpop.f32.mrb[0].mxu0
  %v5783 = vadd.f32 %v5468, %v5782
  %v5784 = vpop.f32.mrb[0].mxu0
  %5785 = vmatprep.mubr.bf16.mxu0 0
  %5786 = vmatmul.mubr.bf16.gmra.mrb[0].mxu0 %v5536
  %v5787 = vpop.f32.mrb[0].mxu0
  %v5788 = vadd.f32 %v5468, %v5787
  %v5789 = vpop.f32.mrb[0].mxu0
  %v5790 = vpop.f32.mrb[0].mxu0
  %v5791 = vadd.f32 %v5468, %v5790
  %v5792 = vpop.f32.mrb[0].mxu0
  %5793 = vmatprep.mubr.bf16.mxu0 0
  %5794 = vmatmul.mubr.bf16.gmra.mrb[0].mxu0 %v5538
  %v5795 = vpop.f32.mrb[0].mxu0
  %v5796 = vadd.f32 %v5468, %v5795
  %v5797 = vpop.f32.mrb[0].mxu0
  %v5798 = vpop.f32.mrb[0].mxu0
  %v5799 = vadd.f32 %v5468, %v5798
  %v5800 = vpop.f32.mrb[0].mxu0
  %5801 = vmatprep.mubr.bf16.mxu0 0
  %5802 = vmatmul.mubr.bf16.gmra.mrb[0].mxu0 %v5540
  %v5803 = vpop.f32.mrb[0].mxu0
  %v5804 = vadd.f32 %v5468, %v5803
  %v5805 = vpop.f32.mrb[0].mxu0
  %v5806 = vpop.f32.mrb[0].mxu0
  %v5807 = vadd.f32 %v5468, %v5806
  %v5808 = vpop.f32.mrb[0].mxu0
  %5809 = vmatprep.mubr.bf16.mxu0 0
  %5810 = vmatmul.mubr.bf16.gmra.mrb[0].mxu0 %v5542
  %v5811 = vpop.f32.mrb[0].mxu0
  %v5812 = vadd.f32 %v5468, %v5811
  %v5813 = vpop.f32.mrb[0].mxu0
  %v5814 = vpop.f32.mrb[0].mxu0
  %v5815 = vadd.f32 %v5468, %v5814
  %v5816 = vpop.f32.mrb[0].mxu0
  %5817 = vmatprep.mubr.bf16.mxu0 0
  %5818 = vmatmul.mubr.bf16.gmra.mrb[0].mxu0 %v5544
  %v5819 = vpop.f32.mrb[0].mxu0
  %v5820 = vadd.f32 %v5468, %v5819
  %v5821 = vpop.f32.mrb[0].mxu0
  %v5822 = vpop.f32.mrb[0].mxu0
  %v5823 = vadd.f32 %v5468, %v5822
  %v5824 = vpop.f32.mrb[0].mxu0
  %5825 = vmatprep.mubr.bf16.mxu0 0
  %5826 = vmatmul.mubr.bf16.gmra.mrb[0].mxu0 %v5546
  %v5827 = vpop.f32.mrb[0].mxu0
  %v5828 = vadd.f32 %v5468, %v5827
  %v5829 = vpop.f32.mrb[0].mxu0
  %v5830 = vpop.f32.mrb[0].mxu0
  %v5831 = vadd.f32 %v5468, %v5830
  %v5832 = vpop.f32.mrb[0].mxu0
  %5833 = vmatprep.mubr.bf16.mxu0 0
  %5834 = vmatmul.mubr.bf16.gmra.mrb[0].mxu0 %v5548
  %v5835 = vpop.f32.mrb[0].mxu0
  %v5836 = vadd.f32 %v5468, %v5835
  %v5837 = vpop.f32.mrb[0].mxu0
  %v5838 = vpop.f32.mrb[0].mxu0
  %v5839 = vadd.f32 %v5468, %v5838
  %v5840 = vpop.f32.mrb[0].mxu0
  %5841 = vdwg.mxu0
  %v5842 = vmax.f32 %v5588, 0.0
  %v5843 = vmax.f32 %v5591, 0.0
  %v5844 = vmax.f32 %v5596, 0.0
  %v5845 = vmax.f32 %v5599, 0.0
  %v5846 = vmax.f32 %v5604, 0.0
  %v5847 = vmax.f32 %v5607, 0.0
  %v5848 = vmax.f32 %v5612, 0.0
  %v5849 = vmax.f32 %v5615, 0.0
  %v5850 = vmax.f32 %v5620, 0.0
  %v5851 = vmax.f32 %v5623, 0.0
  %v5852 = vmax.f32 %v5628, 0.0
  %v5853 = vmax.f32 %v5631, 0.0
  %v5854 = vmax.f32 %v5636, 0.0
  %v5855 = vmax.f32 %v5639, 0.0
  %v5856 = vmax.f32 %v5644, 0.0
  %v5857 = vmax.f32 %v5647, 0.0
  %v5858 = vmax.f32 %v5652, 0.0
  %v5859 = vmax.f32 %v5655, 0.0
  %v5860 = vmax.f32 %v5660, 0.0
  %v5861 = vmax.f32 %v5663, 0.0
  %v5862 = vmax.f32 %v5668, 0.0
  %v5863 = vmax.f32 %v5671, 0.0
  %v5864 = vmax.f32 %v5676, 0.0
  %v5865 = vmax.f32 %v5679, 0.0
  %v5866 = vmax.f32 %v5684, 0.0
  %v5867 = vmax.f32 %v5687, 0.0
  %v5868 = vmax.f32 %v5692, 0.0
  %v5869 = vmax.f32 %v5695, 0.0
  %v5870 = vmax.f32 %v5700, 0.0
  %v5871 = vmax.f32 %v5703, 0.0
  %v5872 = vmax.f32 %v5708, 0.0
  %v5873 = vmax.f32 %v5711, 0.0
  %v5874 = vmax.f32 %v5716, 0.0
  %v5875 = vmax.f32 %v5719, 0.0
  %v5876 = vmax.f32 %v5724, 0.0
  %v5877 = vmax.f32 %v5727, 0.0
  %v5878 = vmax.f32 %v5732, 0.0
  %v5879 = vmax.f32 %v5735, 0.0
  %v5880 = vmax.f32 %v5740, 0.0
  %v5881 = vmax.f32 %v5743, 0.0
  %v5882 = vmax.f32 %v5748, 0.0
  %v5883 = vmax.f32 %v5751, 0.0
  %v5884 = vmax.f32 %v5756, 0.0
  %v5885 = vmax.f32 %v5759, 0.0
  %v5886 = vmax.f32 %v5764, 0.0
  %v5887 = vmax.f32 %v5767, 0.0
  %v5888 = vmax.f32 %v5772, 0.0
  %v5889 = vmax.f32 %v5775, 0.0
  %v5890 = vmax.f32 %v5780, 0.0
  %v5891 = vmax.f32 %v5783, 0.0
  %v5892 = vmax.f32 %v5788, 0.0
  %v5893 = vmax.f32 %v5791, 0.0
  %v5894 = vmax.f32 %v5796, 0.0
  %v5895 = vmax.f32 %v5799, 0.0
  %v5896 = vmax.f32 %v5804, 0.0
  %v5897 = vmax.f32 %v5807, 0.0
  %v5898 = vmax.f32 %v5812, 0.0
  %v5899 = vmax.f32 %v5815, 0.0
  %v5900 = vmax.f32 %v5820, 0.0
  %v5901 = vmax.f32 %v5823, 0.0
  %v5902 = vmax.f32 %v5828, 0.0
  %v5903 = vmax.f32 %v5831, 0.0
  %v5904 = vmax.f32 %v5836, 0.0
  %v5905 = vmax.f32 %v5839, 0.0
  %v5906 = vpack.c.bf16 %v5843, %v5842
  %v5907 = vpack.c.bf16 %v5845, %v5844
  %v5908 = vpack.c.bf16 %v5847, %v5846
  %v5909 = vpack.c.bf16 %v5849, %v5848
  %v5910 = vpack.c.bf16 %v5851, %v5850
  %v5911 = vpack.c.bf16 %v5853, %v5852
  %v5912 = vpack.c.bf16 %v5855, %v5854
  %v5913 = vpack.c.bf16 %v5857, %v5856
  %v5914 = vpack.c.bf16 %v5859, %v5858
  %v5915 = vpack.c.bf16 %v5861, %v5860
  %v5916 = vpack.c.bf16 %v5863, %v5862
  %v5917 = vpack.c.bf16 %v5865, %v5864
  %v5918 = vpack.c.bf16 %v5867, %v5866
  %v5919 = vpack.c.bf16 %v5869, %v5868
  %v5920 = vpack.c.bf16 %v5871, %v5870
  %v5921 = vpack.c.bf16 %v5873, %v5872
  %v5922 = vpack.c.bf16 %v5875, %v5874
  %v5923 = vpack.c.bf16 %v5877, %v5876
  %v5924 = vpack.c.bf16 %v5879, %v5878
  %v5925 = vpack.c.bf16 %v5881, %v5880
  %v5926 = vpack.c.bf16 %v5883, %v5882
  %v5927 = vpack.c.bf16 %v5885, %v5884
  %v5928 = vpack.c.bf16 %v5887, %v5886
  %v5929 = vpack.c.bf16 %v5889, %v5888
  %v5930 = vpack.c.bf16 %v5891, %v5890
  %v5931 = vpack.c.bf16 %v5893, %v5892
  %v5932 = vpack.c.bf16 %v5895, %v5894
  %v5933 = vpack.c.bf16 %v5897, %v5896
  %v5934 = vpack.c.bf16 %v5899, %v5898
  %v5935 = vpack.c.bf16 %v5901, %v5900
  %v5936 = vpack.c.bf16 %v5903, %v5902
  %v5937 = vpack.c.bf16 %v5905, %v5904
  %vm5938 = vcmask 60416
  %5939 = vst.msk [vmem:[#allocation3] sm:$0xf] %vm5938, 0
  %5940 = vst.msk [vmem:[#allocation3 + $0x4] sm:$0xf] %vm5938, 0
  %vm5941 = vcmask 57344
  %5942 = vst.msk [vmem:[#allocation3 + $0x8] sm:$0x1] %vm5941, 0
  %s5943 = scalar_lea.vmem [#allocation3], 396
  %5944 = vst.msk [vmem:[%s5943] sm:$0xf] %vm5938, 0
  %5945 = vst.msk [vmem:[%s5943 + $0x4] sm:$0xf] %vm5938, 0
  %5946 = vst.msk [vmem:[%s5943 + $0x8] sm:$0x1] %vm5941, 0
  %vm5947 = vcmask 57344
  %vm5948 = vmand %vm5947, %vm659
  %v5949 = vld [vmem:[#allocation3] sm:$0x1]
  %v5950 = vsel %vm5948, 0, %v5949
  %5951 = vst [vmem:[#allocation3] sm:$0x1] %v5950
  %v5952 = vld [vmem:[#allocation3 + $0xc] sm:$0x1]
  %v5953 = vsel %vm5948, 0, %v5952
  %5954 = vst [vmem:[#allocation3 + $0xc] sm:$0x1] %v5953
  %v5955 = vld [vmem:[#allocation3 + $0x18] sm:$0x1]
  %v5956 = vsel %vm5948, 0, %v5955
  %5957 = vst [vmem:[#allocation3 + $0x18] sm:$0x1] %v5956
  %v5958 = vld [vmem:[#allocation3 + $0x24] sm:$0x1]
  %v5959 = vsel %vm5948, 0, %v5958
  %5960 = vst [vmem:[#allocation3 + $0x24] sm:$0x1] %v5959
  %v5961 = vld [vmem:[#allocation3 + $0x30] sm:$0x1]
  %v5962 = vsel %vm5948, 0, %v5961
  %5963 = vst [vmem:[#allocation3 + $0x30] sm:$0x1] %v5962
  %v5964 = vld [vmem:[#allocation3 + $0x3c] sm:$0x1]
  %v5965 = vsel %vm5948, 0, %v5964
  %5966 = vst [vmem:[#allocation3 + $0x3c] sm:$0x1] %v5965
  %v5967 = vld [vmem:[#allocation3 + $0x48] sm:$0x1]
  %v5968 = vsel %vm5948, 0, %v5967
  %5969 = vst [vmem:[#allocation3 + $0x48] sm:$0x1] %v5968
  %v5970 = vld [vmem:[#allocation3 + $0x54] sm:$0x1]
  %v5971 = vsel %vm5948, 0, %v5970
  %5972 = vst [vmem:[#allocation3 + $0x54] sm:$0x1] %v5971
  %v5973 = vld [vmem:[#allocation3 + $0x60] sm:$0x1]
  %v5974 = vsel %vm5948, 0, %v5973
  %5975 = vst [vmem:[#allocation3 + $0x60] sm:$0x1] %v5974
  %v5976 = vld [vmem:[#allocation3 + $0x6c] sm:$0x1]
  %v5977 = vsel %vm5948, 0, %v5976
  %5978 = vst [vmem:[#allocation3 + $0x6c] sm:$0x1] %v5977
  %v5979 = vld [vmem:[#allocation3 + $0x78] sm:$0x1]
  %v5980 = vsel %vm5948, 0, %v5979
  %5981 = vst [vmem:[#allocation3 + $0x78] sm:$0x1] %v5980
  %v5982 = vld [vmem:[#allocation3 + $0x84] sm:$0x1]
  %v5983 = vsel %vm5948, 0, %v5982
  %5984 = vst [vmem:[#allocation3 + $0x84] sm:$0x1] %v5983
  %v5985 = vld [vmem:[#allocation3 + $0x90] sm:$0x1]
  %v5986 = vsel %vm5948, 0, %v5985
  %5987 = vst [vmem:[#allocation3 + $0x90] sm:$0x1] %v5986
  %v5988 = vld [vmem:[#allocation3 + $0x9c] sm:$0x1]
  %v5989 = vsel %vm5948, 0, %v5988
  %5990 = vst [vmem:[#allocation3 + $0x9c] sm:$0x1] %v5989
  %v5991 = vld [vmem:[#allocation3 + $0xa8] sm:$0x1]
  %v5992 = vsel %vm5948, 0, %v5991
  %5993 = vst [vmem:[#allocation3 + $0xa8] sm:$0x1] %v5992
  %v5994 = vld [vmem:[#allocation3 + $0xb4] sm:$0x1]
  %v5995 = vsel %vm5948, 0, %v5994
  %5996 = vst [vmem:[#allocation3 + $0xb4] sm:$0x1] %v5995
  %v5997 = vld [vmem:[#allocation3 + $0xc0] sm:$0x1]
  %v5998 = vsel %vm5948, 0, %v5997
  %5999 = vst [vmem:[#allocation3 + $0xc0] sm:$0x1] %v5998
  %v6000 = vld [vmem:[#allocation3 + $0xcc] sm:$0x1]
  %v6001 = vsel %vm5948, 0, %v6000
  %6002 = vst [vmem:[#allocation3 + $0xcc] sm:$0x1] %v6001
  %v6003 = vld [vmem:[#allocation3 + $0xd8] sm:$0x1]
  %v6004 = vsel %vm5948, 0, %v6003
  %6005 = vst [vmem:[#allocation3 + $0xd8] sm:$0x1] %v6004
  %v6006 = vld [vmem:[#allocation3 + $0xe4] sm:$0x1]
  %v6007 = vsel %vm5948, 0, %v6006
  %6008 = vst [vmem:[#allocation3 + $0xe4] sm:$0x1] %v6007
  %v6009 = vld [vmem:[#allocation3 + $0xf0] sm:$0x1]
  %v6010 = vsel %vm5948, 0, %v6009
  %6011 = vst [vmem:[#allocation3 + $0xf0] sm:$0x1] %v6010
  %v6012 = vld [vmem:[#allocation3 + $0xfc] sm:$0x1]
  %v6013 = vsel %vm5948, 0, %v6012
  %6014 = vst [vmem:[#allocation3 + $0xfc] sm:$0x1] %v6013
  %v6015 = vld [vmem:[#allocation3 + $0x108] sm:$0x1]
  %v6016 = vsel %vm5948, 0, %v6015
  %6017 = vst [vmem:[#allocation3 + $0x108] sm:$0x1] %v6016
  %v6018 = vld [vmem:[#allocation3 + $0x114] sm:$0x1]
  %v6019 = vsel %vm5948, 0, %v6018
  %6020 = vst [vmem:[#allocation3 + $0x114] sm:$0x1] %v6019
  %v6021 = vld [vmem:[#allocation3 + $0x120] sm:$0x1]
  %v6022 = vsel %vm5948, 0, %v6021
  %6023 = vst [vmem:[#allocation3 + $0x120] sm:$0x1] %v6022
  %v6024 = vld [vmem:[#allocation3 + $0x12c] sm:$0x1]
  %v6025 = vsel %vm5948, 0, %v6024
  %6026 = vst [vmem:[#allocation3 + $0x12c] sm:$0x1] %v6025
  %v6027 = vld [vmem:[#allocation3 + $0x138] sm:$0x1]
  %v6028 = vsel %vm5948, 0, %v6027
  %6029 = vst [vmem:[#allocation3 + $0x138] sm:$0x1] %v6028
  %v6030 = vld [vmem:[#allocation3 + $0x144] sm:$0x1]
  %v6031 = vsel %vm5948, 0, %v6030
  %6032 = vst [vmem:[#allocation3 + $0x144] sm:$0x1] %v6031
  %v6033 = vld [vmem:[#allocation3 + $0x150] sm:$0x1]
  %v6034 = vsel %vm5948, 0, %v6033
  %6035 = vst [vmem:[#allocation3 + $0x150] sm:$0x1] %v6034
  %v6036 = vld [vmem:[#allocation3 + $0x15c] sm:$0x1]
  %v6037 = vsel %vm5948, 0, %v6036
  %6038 = vst [vmem:[#allocation3 + $0x15c] sm:$0x1] %v6037
  %v6039 = vld [vmem:[#allocation3 + $0x168] sm:$0x1]
  %v6040 = vsel %vm5948, 0, %v6039
  %6041 = vst [vmem:[#allocation3 + $0x168] sm:$0x1] %v6040
  %v6042 = vld [vmem:[#allocation3 + $0x174] sm:$0x1]
  %v6043 = vsel %vm5948, 0, %v6042
  %6044 = vst [vmem:[#allocation3 + $0x174] sm:$0x1] %v6043
  %v6045 = vld [vmem:[#allocation3 + $0x180] sm:$0x1]
  %v6046 = vsel %vm5948, 0, %v6045
  %6047 = vst [vmem:[#allocation3 + $0x180] sm:$0x1] %v6046
  %v6048 = vld [vmem:[#allocation3 + $0x18c] sm:$0x1]
  %v6049 = vsel %vm5948, 0, %v6048
  %6050 = vst [vmem:[#allocation3 + $0x18c] sm:$0x1] %v6049
  %vm6051 = vmand %vm5947, %vm763
  %v6052 = vld [vmem:[#allocation3 + $0x8] sm:$0x1]
  %v6053 = vsel %vm6051, 0, %v6052
  %6054 = vst [vmem:[#allocation3 + $0x8] sm:$0x1] %v6053
  %v6055 = vld [vmem:[#allocation3 + $0x14] sm:$0x1]
  %v6056 = vsel %vm6051, 0, %v6055
  %6057 = vst [vmem:[#allocation3 + $0x14] sm:$0x1] %v6056
  %v6058 = vld [vmem:[#allocation3 + $0x20] sm:$0x1]
  %v6059 = vsel %vm6051, 0, %v6058
  %6060 = vst [vmem:[#allocation3 + $0x20] sm:$0x1] %v6059
  %v6061 = vld [vmem:[#allocation3 + $0x2c] sm:$0x1]
  %v6062 = vsel %vm6051, 0, %v6061
  %6063 = vst [vmem:[#allocation3 + $0x2c] sm:$0x1] %v6062
  %v6064 = vld [vmem:[#allocation3 + $0x38] sm:$0x1]
  %v6065 = vsel %vm6051, 0, %v6064
  %6066 = vst [vmem:[#allocation3 + $0x38] sm:$0x1] %v6065
  %v6067 = vld [vmem:[#allocation3 + $0x44] sm:$0x1]
  %v6068 = vsel %vm6051, 0, %v6067
  %6069 = vst [vmem:[#allocation3 + $0x44] sm:$0x1] %v6068
  %v6070 = vld [vmem:[#allocation3 + $0x50] sm:$0x1]
  %v6071 = vsel %vm6051, 0, %v6070
  %6072 = vst [vmem:[#allocation3 + $0x50] sm:$0x1] %v6071
  %v6073 = vld [vmem:[#allocation3 + $0x5c] sm:$0x1]
  %v6074 = vsel %vm6051, 0, %v6073
  %6075 = vst [vmem:[#allocation3 + $0x5c] sm:$0x1] %v6074
  %v6076 = vld [vmem:[#allocation3 + $0x68] sm:$0x1]
  %v6077 = vsel %vm6051, 0, %v6076
  %6078 = vst [vmem:[#allocation3 + $0x68] sm:$0x1] %v6077
  %v6079 = vld [vmem:[#allocation3 + $0x74] sm:$0x1]
  %v6080 = vsel %vm6051, 0, %v6079
  %6081 = vst [vmem:[#allocation3 + $0x74] sm:$0x1] %v6080
  %v6082 = vld [vmem:[#allocation3 + $0x80] sm:$0x1]
  %v6083 = vsel %vm6051, 0, %v6082
  %6084 = vst [vmem:[#allocation3 + $0x80] sm:$0x1] %v6083
  %v6085 = vld [vmem:[#allocation3 + $0x8c] sm:$0x1]
  %v6086 = vsel %vm6051, 0, %v6085
  %6087 = vst [vmem:[#allocation3 + $0x8c] sm:$0x1] %v6086
  %v6088 = vld [vmem:[#allocation3 + $0x98] sm:$0x1]
  %v6089 = vsel %vm6051, 0, %v6088
  %6090 = vst [vmem:[#allocation3 + $0x98] sm:$0x1] %v6089
  %v6091 = vld [vmem:[#allocation3 + $0xa4] sm:$0x1]
  %v6092 = vsel %vm6051, 0, %v6091
  %6093 = vst [vmem:[#allocation3 + $0xa4] sm:$0x1] %v6092
  %v6094 = vld [vmem:[#allocation3 + $0xb0] sm:$0x1]
  %v6095 = vsel %vm6051, 0, %v6094
  %6096 = vst [vmem:[#allocation3 + $0xb0] sm:$0x1] %v6095
  %v6097 = vld [vmem:[#allocation3 + $0xbc] sm:$0x1]
  %v6098 = vsel %vm6051, 0, %v6097
  %6099 = vst [vmem:[#allocation3 + $0xbc] sm:$0x1] %v6098
  %v6100 = vld [vmem:[#allocation3 + $0xc8] sm:$0x1]
  %v6101 = vsel %vm6051, 0, %v6100
  %6102 = vst [vmem:[#allocation3 + $0xc8] sm:$0x1] %v6101
  %v6103 = vld [vmem:[#allocation3 + $0xd4] sm:$0x1]
  %v6104 = vsel %vm6051, 0, %v6103
  %6105 = vst [vmem:[#allocation3 + $0xd4] sm:$0x1] %v6104
  %v6106 = vld [vmem:[#allocation3 + $0xe0] sm:$0x1]
  %v6107 = vsel %vm6051, 0, %v6106
  %6108 = vst [vmem:[#allocation3 + $0xe0] sm:$0x1] %v6107
  %v6109 = vld [vmem:[#allocation3 + $0xec] sm:$0x1]
  %v6110 = vsel %vm6051, 0, %v6109
  %6111 = vst [vmem:[#allocation3 + $0xec] sm:$0x1] %v6110
  %v6112 = vld [vmem:[#allocation3 + $0xf8] sm:$0x1]
  %v6113 = vsel %vm6051, 0, %v6112
  %6114 = vst [vmem:[#allocation3 + $0xf8] sm:$0x1] %v6113
  %v6115 = vld [vmem:[#allocation3 + $0x104] sm:$0x1]
  %v6116 = vsel %vm6051, 0, %v6115
  %6117 = vst [vmem:[#allocation3 + $0x104] sm:$0x1] %v6116
  %v6118 = vld [vmem:[#allocation3 + $0x110] sm:$0x1]
  %v6119 = vsel %vm6051, 0, %v6118
  %6120 = vst [vmem:[#allocation3 + $0x110] sm:$0x1] %v6119
  %v6121 = vld [vmem:[#allocation3 + $0x11c] sm:$0x1]
  %v6122 = vsel %vm6051, 0, %v6121
  %6123 = vst [vmem:[#allocation3 + $0x11c] sm:$0x1] %v6122
  %v6124 = vld [vmem:[#allocation3 + $0x128] sm:$0x1]
  %v6125 = vsel %vm6051, 0, %v6124
  %6126 = vst [vmem:[#allocation3 + $0x128] sm:$0x1] %v6125
  %v6127 = vld [vmem:[#allocation3 + $0x134] sm:$0x1]
  %v6128 = vsel %vm6051, 0, %v6127
  %6129 = vst [vmem:[#allocation3 + $0x134] sm:$0x1] %v6128
  %v6130 = vld [vmem:[#allocation3 + $0x140] sm:$0x1]
  %v6131 = vsel %vm6051, 0, %v6130
  %6132 = vst [vmem:[#allocation3 + $0x140] sm:$0x1] %v6131
  %v6133 = vld [vmem:[#allocation3 + $0x14c] sm:$0x1]
  %v6134 = vsel %vm6051, 0, %v6133
  %6135 = vst [vmem:[#allocation3 + $0x14c] sm:$0x1] %v6134
  %v6136 = vld [vmem:[#allocation3 + $0x158] sm:$0x1]
  %v6137 = vsel %vm6051, 0, %v6136
  %6138 = vst [vmem:[#allocation3 + $0x158] sm:$0x1] %v6137
  %v6139 = vld [vmem:[#allocation3 + $0x164] sm:$0x1]
  %v6140 = vsel %vm6051, 0, %v6139
  %6141 = vst [vmem:[#allocation3 + $0x164] sm:$0x1] %v6140
  %v6142 = vld [vmem:[#allocation3 + $0x170] sm:$0x1]
  %v6143 = vsel %vm6051, 0, %v6142
  %6144 = vst [vmem:[#allocation3 + $0x170] sm:$0x1] %v6143
  %v6145 = vld [vmem:[#allocation3 + $0x17c] sm:$0x1]
  %v6146 = vsel %vm6051, 0, %v6145
  %6147 = vst [vmem:[#allocation3 + $0x17c] sm:$0x1] %v6146
  %v6148 = vld [vmem:[#allocation3 + $0x188] sm:$0x1]
  %v6149 = vsel %vm6051, 0, %v6148
  %6150 = vst [vmem:[#allocation3 + $0x188] sm:$0x1] %v6149
  %v6151 = vld [vmem:[#allocation3 + $0x194] sm:$0x1]
  %v6152 = vsel %vm6051, 0, %v6151
  %6153 = vst [vmem:[#allocation3 + $0x194] sm:$0x1] %v6152
  %v6186 = vunpack.c.l.b16 %v5906
  %v6187 = vunpack.c.h.b16 %v5906
  %v6188 = vunpack.c.l.b16 %v5907
  %v6189 = vunpack.c.h.b16 %v5907
  %v6190 = vunpack.c.l.b16 %v5908
  %v6191 = vunpack.c.h.b16 %v5908
  %v6192 = vunpack.c.l.b16 %v5909
  %v6193 = vunpack.c.h.b16 %v5909
  %v6194 = vunpack.c.l.b16 %v5910
  %v6195 = vunpack.c.h.b16 %v5910
  %v6196 = vunpack.c.l.b16 %v5911
  %v6197 = vunpack.c.h.b16 %v5911
  %v6198 = vunpack.c.l.b16 %v5912
  %v6199 = vunpack.c.h.b16 %v5912
  %v6200 = vunpack.c.l.b16 %v5913
  %v6201 = vunpack.c.h.b16 %v5913
  %v6202 = vunpack.c.l.b16 %v5914
  %v6203 = vunpack.c.h.b16 %v5914
  %v6204 = vunpack.c.l.b16 %v5915
  %v6205 = vunpack.c.h.b16 %v5915
  %v6206 = vunpack.c.l.b16 %v5916
  %v6207 = vunpack.c.h.b16 %v5916
  %v6208 = vunpack.c.l.b16 %v5917
  %v6209 = vunpack.c.h.b16 %v5917
  %v6210 = vunpack.c.l.b16 %v5918
  %v6211 = vunpack.c.h.b16 %v5918
  %v6212 = vunpack.c.l.b16 %v5919
  %v6213 = vunpack.c.h.b16 %v5919
  %v6214 = vunpack.c.l.b16 %v5920
  %v6215 = vunpack.c.h.b16 %v5920
  %v6216 = vunpack.c.l.b16 %v5921
  %v6217 = vunpack.c.h.b16 %v5921
  %v6218 = vunpack.c.l.b16 %v5922
  %v6219 = vunpack.c.h.b16 %v5922
  %v6220 = vunpack.c.l.b16 %v5923
  %v6221 = vunpack.c.h.b16 %v5923
  %v6222 = vunpack.c.l.b16 %v5924
  %v6223 = vunpack.c.h.b16 %v5924
  %v6224 = vunpack.c.l.b16 %v5925
  %v6225 = vunpack.c.h.b16 %v5925
  %v6226 = vunpack.c.l.b16 %v5926
  %v6227 = vunpack.c.h.b16 %v5926
  %v6228 = vunpack.c.l.b16 %v5927
  %v6229 = vunpack.c.h.b16 %v5927
  %v6230 = vunpack.c.l.b16 %v5928
  %v6231 = vunpack.c.h.b16 %v5928
  %v6232 = vunpack.c.l.b16 %v5929
  %v6233 = vunpack.c.h.b16 %v5929
  %v6234 = vunpack.c.l.b16 %v5930
  %v6235 = vunpack.c.h.b16 %v5930
  %v6236 = vunpack.c.l.b16 %v5931
  %v6237 = vunpack.c.h.b16 %v5931
  %v6238 = vunpack.c.l.b16 %v5932
  %v6239 = vunpack.c.h.b16 %v5932
  %v6240 = vunpack.c.l.b16 %v5933
  %v6241 = vunpack.c.h.b16 %v5933
  %v6242 = vunpack.c.l.b16 %v5934
  %v6243 = vunpack.c.h.b16 %v5934
  %v6244 = vunpack.c.l.b16 %v5935
  %v6245 = vunpack.c.h.b16 %v5935
  %v6246 = vunpack.c.l.b16 %v5936
  %v6247 = vunpack.c.h.b16 %v5936
  %v6248 = vunpack.c.l.b16 %v5937
  %v6249 = vunpack.c.h.b16 %v5937
  %v6250 = vpack.c.b16 %v6186, %v6186
  %v6251 = vpack.c.b16 %v6187, %v6187
  %v6252 = vpack.c.b16 %v6188, %v6188
  %v6253 = vpack.c.b16 %v6189, %v6189
  %v6254 = vpack.c.b16 %v6190, %v6190
  %v6255 = vpack.c.b16 %v6191, %v6191
  %v6256 = vpack.c.b16 %v6192, %v6192
  %v6257 = vpack.c.b16 %v6193, %v6193
  %v6258 = vpack.c.b16 %v6194, %v6194
  %v6259 = vpack.c.b16 %v6195, %v6195
  %v6260 = vpack.c.b16 %v6196, %v6196
  %v6261 = vpack.c.b16 %v6197, %v6197
  %v6262 = vpack.c.b16 %v6198, %v6198
  %v6263 = vpack.c.b16 %v6199, %v6199
  %v6264 = vpack.c.b16 %v6200, %v6200
  %v6265 = vpack.c.b16 %v6201, %v6201
  %v6266 = vpack.c.b16 %v6202, %v6202
  %v6267 = vpack.c.b16 %v6203, %v6203
  %v6268 = vpack.c.b16 %v6204, %v6204
  %v6269 = vpack.c.b16 %v6205, %v6205
  %v6270 = vpack.c.b16 %v6206, %v6206
  %v6271 = vpack.c.b16 %v6207, %v6207
  %v6272 = vpack.c.b16 %v6208, %v6208
  %v6273 = vpack.c.b16 %v6209, %v6209
  %v6274 = vpack.c.b16 %v6210, %v6210
  %v6275 = vpack.c.b16 %v6211, %v6211
  %v6276 = vpack.c.b16 %v6212, %v6212
  %v6277 = vpack.c.b16 %v6213, %v6213
  %v6278 = vpack.c.b16 %v6214, %v6214
  %v6279 = vpack.c.b16 %v6215, %v6215
  %v6280 = vpack.c.b16 %v6216, %v6216
  %v6281 = vpack.c.b16 %v6217, %v6217
  %v6282 = vpack.c.b16 %v6218, %v6218
  %v6283 = vpack.c.b16 %v6219, %v6219
  %v6284 = vpack.c.b16 %v6220, %v6220
  %v6285 = vpack.c.b16 %v6221, %v6221
  %v6286 = vpack.c.b16 %v6222, %v6222
  %v6287 = vpack.c.b16 %v6223, %v6223
  %v6288 = vpack.c.b16 %v6224, %v6224
  %v6289 = vpack.c.b16 %v6225, %v6225
  %v6290 = vpack.c.b16 %v6226, %v6226
  %v6291 = vpack.c.b16 %v6227, %v6227
  %v6292 = vpack.c.b16 %v6228, %v6228
  %v6293 = vpack.c.b16 %v6229, %v6229
  %v6294 = vpack.c.b16 %v6230, %v6230
  %v6295 = vpack.c.b16 %v6231, %v6231
  %v6296 = vpack.c.b16 %v6232, %v6232
  %v6297 = vpack.c.b16 %v6233, %v6233
  %v6298 = vpack.c.b16 %v6234, %v6234
  %v6299 = vpack.c.b16 %v6235, %v6235
  %v6300 = vpack.c.b16 %v6236, %v6236
  %v6301 = vpack.c.b16 %v6237, %v6237
  %v6302 = vpack.c.b16 %v6238, %v6238
  %v6303 = vpack.c.b16 %v6239, %v6239
  %v6304 = vpack.c.b16 %v6240, %v6240
  %v6305 = vpack.c.b16 %v6241, %v6241
  %v6306 = vpack.c.b16 %v6242, %v6242
  %v6307 = vpack.c.b16 %v6243, %v6243
  %v6308 = vpack.c.b16 %v6244, %v6244
  %v6309 = vpack.c.b16 %v6245, %v6245
  %v6310 = vpack.c.b16 %v6246, %v6246
  %v6311 = vpack.c.b16 %v6247, %v6247
  %v6312 = vpack.c.b16 %v6248, %v6248
  %v6313 = vpack.c.b16 %v6249, %v6249
  %v6315 = vshrl.u32 %v6250, 16
  %v6317 = vrot.slane %v6315, 7
  %v6318 = vshll.u32 %v6250, 16
  %v6320 = vor.u32 %v6317, %v6318
  %v6321 = vrot.slane %v6317, 4
  %v6323 = vshrl.u32 %v6251, 16
  %v6325 = vrot.slane %v6323, 7
  %v6326 = vshll.u32 %v6251, 16
  %v6328 = vor.u32 %v6325, %v6326
  %v6329 = vsel %vm868, %v6321, %v6328
  %v6330 = vrot.slane %v6325, 4
  %v6332 = vshrl.u32 %v6252, 16
  %v6334 = vrot.slane %v6332, 7
  %v6335 = vshll.u32 %v6252, 16
  %v6337 = vor.u32 %v6334, %v6335
  %v6338 = vrot.slane %v6334, 4
  %v6340 = vshrl.u32 %v6253, 16
  %v6342 = vrot.slane %v6340, 7
  %v6343 = vshll.u32 %v6253, 16
  %v6345 = vor.u32 %v6342, %v6343
  %v6346 = vsel %vm868, %v6338, %v6345
  %v6347 = vrot.slane %v6342, 4
  %v6349 = vshrl.u32 %v6254, 16
  %v6351 = vrot.slane %v6349, 7
  %v6352 = vshll.u32 %v6254, 16
  %v6354 = vor.u32 %v6351, %v6352
  %v6355 = vrot.slane %v6351, 4
  %v6357 = vshrl.u32 %v6255, 16
  %v6359 = vrot.slane %v6357, 7
  %v6360 = vshll.u32 %v6255, 16
  %v6362 = vor.u32 %v6359, %v6360
  %v6363 = vsel %vm868, %v6355, %v6362
  %v6364 = vrot.slane %v6359, 4
  %v6366 = vshrl.u32 %v6256, 16
  %v6368 = vrot.slane %v6366, 7
  %v6369 = vshll.u32 %v6256, 16
  %v6371 = vor.u32 %v6368, %v6369
  %v6372 = vrot.slane %v6368, 4
  %v6374 = vshrl.u32 %v6257, 16
  %v6376 = vrot.slane %v6374, 7
  %v6377 = vshll.u32 %v6257, 16
  %v6379 = vor.u32 %v6376, %v6377
  %v6380 = vsel %vm868, %v6372, %v6379
  %v6381 = vrot.slane %v6376, 4
  %v6383 = vshrl.u32 %v6258, 16
  %v6385 = vrot.slane %v6383, 7
  %v6386 = vshll.u32 %v6258, 16
  %v6388 = vor.u32 %v6385, %v6386
  %v6389 = vrot.slane %v6385, 4
  %v6391 = vshrl.u32 %v6259, 16
  %v6393 = vrot.slane %v6391, 7
  %v6394 = vshll.u32 %v6259, 16
  %v6396 = vor.u32 %v6393, %v6394
  %v6397 = vsel %vm868, %v6389, %v6396
  %v6398 = vrot.slane %v6393, 4
  %v6400 = vshrl.u32 %v6260, 16
  %v6402 = vrot.slane %v6400, 7
  %v6403 = vshll.u32 %v6260, 16
  %v6405 = vor.u32 %v6402, %v6403
  %v6406 = vrot.slane %v6402, 4
  %v6408 = vshrl.u32 %v6261, 16
  %v6410 = vrot.slane %v6408, 7
  %v6411 = vshll.u32 %v6261, 16
  %v6413 = vor.u32 %v6410, %v6411
  %v6414 = vsel %vm868, %v6406, %v6413
  %v6415 = vrot.slane %v6410, 4
  %v6417 = vshrl.u32 %v6262, 16
  %v6419 = vrot.slane %v6417, 7
  %v6420 = vshll.u32 %v6262, 16
  %v6422 = vor.u32 %v6419, %v6420
  %v6423 = vrot.slane %v6419, 4
  %v6425 = vshrl.u32 %v6263, 16
  %v6427 = vrot.slane %v6425, 7
  %v6428 = vshll.u32 %v6263, 16
  %v6430 = vor.u32 %v6427, %v6428
  %v6431 = vsel %vm868, %v6423, %v6430
  %v6432 = vrot.slane %v6427, 4
  %v6434 = vshrl.u32 %v6264, 16
  %v6436 = vrot.slane %v6434, 7
  %v6437 = vshll.u32 %v6264, 16
  %v6439 = vor.u32 %v6436, %v6437
  %v6440 = vrot.slane %v6436, 4
  %v6442 = vshrl.u32 %v6265, 16
  %v6444 = vrot.slane %v6442, 7
  %v6445 = vshll.u32 %v6265, 16
  %v6447 = vor.u32 %v6444, %v6445
  %v6448 = vsel %vm868, %v6440, %v6447
  %v6449 = vrot.slane %v6444, 4
  %v6451 = vshrl.u32 %v6266, 16
  %v6453 = vrot.slane %v6451, 7
  %v6454 = vshll.u32 %v6266, 16
  %v6456 = vor.u32 %v6453, %v6454
  %v6457 = vrot.slane %v6453, 4
  %v6459 = vshrl.u32 %v6267, 16
  %v6461 = vrot.slane %v6459, 7
  %v6462 = vshll.u32 %v6267, 16
  %v6464 = vor.u32 %v6461, %v6462
  %v6465 = vsel %vm868, %v6457, %v6464
  %v6466 = vrot.slane %v6461, 4
  %v6468 = vshrl.u32 %v6268, 16
  %v6470 = vrot.slane %v6468, 7
  %v6471 = vshll.u32 %v6268, 16
  %v6473 = vor.u32 %v6470, %v6471
  %v6474 = vrot.slane %v6470, 4
  %v6476 = vshrl.u32 %v6269, 16
  %v6478 = vrot.slane %v6476, 7
  %v6479 = vshll.u32 %v6269, 16
  %v6481 = vor.u32 %v6478, %v6479
  %v6482 = vsel %vm868, %v6474, %v6481
  %v6483 = vrot.slane %v6478, 4
  %v6485 = vshrl.u32 %v6270, 16
  %v6487 = vrot.slane %v6485, 7
  %v6488 = vshll.u32 %v6270, 16
  %v6490 = vor.u32 %v6487, %v6488
  %v6491 = vrot.slane %v6487, 4
  %v6493 = vshrl.u32 %v6271, 16
  %v6495 = vrot.slane %v6493, 7
  %v6496 = vshll.u32 %v6271, 16
  %v6498 = vor.u32 %v6495, %v6496
  %v6499 = vsel %vm868, %v6491, %v6498
  %v6500 = vrot.slane %v6495, 4
  %v6502 = vshrl.u32 %v6272, 16
  %v6504 = vrot.slane %v6502, 7
  %v6505 = vshll.u32 %v6272, 16
  %v6507 = vor.u32 %v6504, %v6505
  %v6508 = vrot.slane %v6504, 4
  %v6510 = vshrl.u32 %v6273, 16
  %v6512 = vrot.slane %v6510, 7
  %v6513 = vshll.u32 %v6273, 16
  %v6515 = vor.u32 %v6512, %v6513
  %v6516 = vsel %vm868, %v6508, %v6515
  %v6517 = vrot.slane %v6512, 4
  %v6519 = vshrl.u32 %v6274, 16
  %v6521 = vrot.slane %v6519, 7
  %v6522 = vshll.u32 %v6274, 16
  %v6524 = vor.u32 %v6521, %v6522
  %v6525 = vrot.slane %v6521, 4
  %v6527 = vshrl.u32 %v6275, 16
  %v6529 = vrot.slane %v6527, 7
  %v6530 = vshll.u32 %v6275, 16
  %v6532 = vor.u32 %v6529, %v6530
  %v6533 = vsel %vm868, %v6525, %v6532
  %v6534 = vrot.slane %v6529, 4
  %v6536 = vshrl.u32 %v6276, 16
  %v6538 = vrot.slane %v6536, 7
  %v6539 = vshll.u32 %v6276, 16
  %v6541 = vor.u32 %v6538, %v6539
  %v6542 = vrot.slane %v6538, 4
  %v6544 = vshrl.u32 %v6277, 16
  %v6546 = vrot.slane %v6544, 7
  %v6547 = vshll.u32 %v6277, 16
  %v6549 = vor.u32 %v6546, %v6547
  %v6550 = vsel %vm868, %v6542, %v6549
  %v6551 = vrot.slane %v6546, 4
  %v6553 = vshrl.u32 %v6278, 16
  %v6555 = vrot.slane %v6553, 7
  %v6556 = vshll.u32 %v6278, 16
  %v6558 = vor.u32 %v6555, %v6556
  %v6559 = vrot.slane %v6555, 4
  %v6561 = vshrl.u32 %v6279, 16
  %v6563 = vrot.slane %v6561, 7
  %v6564 = vshll.u32 %v6279, 16
  %v6566 = vor.u32 %v6563, %v6564
  %v6567 = vsel %vm868, %v6559, %v6566
  %v6568 = vrot.slane %v6563, 4
  %v6570 = vshrl.u32 %v6280, 16
  %v6572 = vrot.slane %v6570, 7
  %v6573 = vshll.u32 %v6280, 16
  %v6575 = vor.u32 %v6572, %v6573
  %v6576 = vrot.slane %v6572, 4
  %v6578 = vshrl.u32 %v6281, 16
  %v6580 = vrot.slane %v6578, 7
  %v6581 = vshll.u32 %v6281, 16
  %v6583 = vor.u32 %v6580, %v6581
  %v6584 = vsel %vm868, %v6576, %v6583
  %v6585 = vrot.slane %v6580, 4
  %v6587 = vshrl.u32 %v6282, 16
  %v6589 = vrot.slane %v6587, 7
  %v6590 = vshll.u32 %v6282, 16
  %v6592 = vor.u32 %v6589, %v6590
  %v6593 = vrot.slane %v6589, 4
  %v6595 = vshrl.u32 %v6283, 16
  %v6597 = vrot.slane %v6595, 7
  %v6598 = vshll.u32 %v6283, 16
  %v6600 = vor.u32 %v6597, %v6598
  %v6601 = vsel %vm868, %v6593, %v6600
  %v6602 = vrot.slane %v6597, 4
  %v6604 = vshrl.u32 %v6284, 16
  %v6606 = vrot.slane %v6604, 7
  %v6607 = vshll.u32 %v6284, 16
  %v6609 = vor.u32 %v6606, %v6607
  %v6610 = vrot.slane %v6606, 4
  %v6612 = vshrl.u32 %v6285, 16
  %v6614 = vrot.slane %v6612, 7
  %v6615 = vshll.u32 %v6285, 16
  %v6617 = vor.u32 %v6614, %v6615
  %v6618 = vsel %vm868, %v6610, %v6617
  %v6619 = vrot.slane %v6614, 4
  %v6621 = vshrl.u32 %v6286, 16
  %v6623 = vrot.slane %v6621, 7
  %v6624 = vshll.u32 %v6286, 16
  %v6626 = vor.u32 %v6623, %v6624
  %v6627 = vrot.slane %v6623, 4
  %v6629 = vshrl.u32 %v6287, 16
  %v6631 = vrot.slane %v6629, 7
  %v6632 = vshll.u32 %v6287, 16
  %v6634 = vor.u32 %v6631, %v6632
  %v6635 = vsel %vm868, %v6627, %v6634
  %v6636 = vrot.slane %v6631, 4
  %v6638 = vshrl.u32 %v6288, 16
  %v6640 = vrot.slane %v6638, 7
  %v6641 = vshll.u32 %v6288, 16
  %v6643 = vor.u32 %v6640, %v6641
  %v6644 = vrot.slane %v6640, 4
  %v6646 = vshrl.u32 %v6289, 16
  %v6648 = vrot.slane %v6646, 7
  %v6649 = vshll.u32 %v6289, 16
  %v6651 = vor.u32 %v6648, %v6649
  %v6652 = vsel %vm868, %v6644, %v6651
  %v6653 = vrot.slane %v6648, 4
  %v6655 = vshrl.u32 %v6290, 16
  %v6657 = vrot.slane %v6655, 7
  %v6658 = vshll.u32 %v6290, 16
  %v6660 = vor.u32 %v6657, %v6658
  %v6661 = vrot.slane %v6657, 4
  %v6663 = vshrl.u32 %v6291, 16
  %v6665 = vrot.slane %v6663, 7
  %v6666 = vshll.u32 %v6291, 16
  %v6668 = vor.u32 %v6665, %v6666
  %v6669 = vsel %vm868, %v6661, %v6668
  %v6670 = vrot.slane %v6665, 4
  %v6672 = vshrl.u32 %v6292, 16
  %v6674 = vrot.slane %v6672, 7
  %v6675 = vshll.u32 %v6292, 16
  %v6677 = vor.u32 %v6674, %v6675
  %v6678 = vrot.slane %v6674, 4
  %v6680 = vshrl.u32 %v6293, 16
  %v6682 = vrot.slane %v6680, 7
  %v6683 = vshll.u32 %v6293, 16
  %v6685 = vor.u32 %v6682, %v6683
  %v6686 = vsel %vm868, %v6678, %v6685
  %v6687 = vrot.slane %v6682, 4
  %v6689 = vshrl.u32 %v6294, 16
  %v6691 = vrot.slane %v6689, 7
  %v6692 = vshll.u32 %v6294, 16
  %v6694 = vor.u32 %v6691, %v6692
  %v6695 = vrot.slane %v6691, 4
  %v6697 = vshrl.u32 %v6295, 16
  %v6699 = vrot.slane %v6697, 7
  %v6700 = vshll.u32 %v6295, 16
  %v6702 = vor.u32 %v6699, %v6700
  %v6703 = vsel %vm868, %v6695, %v6702
  %v6704 = vrot.slane %v6699, 4
  %v6706 = vshrl.u32 %v6296, 16
  %v6708 = vrot.slane %v6706, 7
  %v6709 = vshll.u32 %v6296, 16
  %v6711 = vor.u32 %v6708, %v6709
  %v6712 = vrot.slane %v6708, 4
  %v6714 = vshrl.u32 %v6297, 16
  %v6716 = vrot.slane %v6714, 7
  %v6717 = vshll.u32 %v6297, 16
  %v6719 = vor.u32 %v6716, %v6717
  %v6720 = vsel %vm868, %v6712, %v6719
  %v6721 = vrot.slane %v6716, 4
  %v6723 = vshrl.u32 %v6298, 16
  %v6725 = vrot.slane %v6723, 7
  %v6726 = vshll.u32 %v6298, 16
  %v6728 = vor.u32 %v6725, %v6726
  %v6729 = vrot.slane %v6725, 4
  %v6731 = vshrl.u32 %v6299, 16
  %v6733 = vrot.slane %v6731, 7
  %v6734 = vshll.u32 %v6299, 16
  %v6736 = vor.u32 %v6733, %v6734
  %v6737 = vsel %vm868, %v6729, %v6736
  %v6738 = vrot.slane %v6733, 4
  %v6740 = vshrl.u32 %v6300, 16
  %v6742 = vrot.slane %v6740, 7
  %v6743 = vshll.u32 %v6300, 16
  %v6745 = vor.u32 %v6742, %v6743
  %v6746 = vrot.slane %v6742, 4
  %v6748 = vshrl.u32 %v6301, 16
  %v6750 = vrot.slane %v6748, 7
  %v6751 = vshll.u32 %v6301, 16
  %v6753 = vor.u32 %v6750, %v6751
  %v6754 = vsel %vm868, %v6746, %v6753
  %v6755 = vrot.slane %v6750, 4
  %v6757 = vshrl.u32 %v6302, 16
  %v6759 = vrot.slane %v6757, 7
  %v6760 = vshll.u32 %v6302, 16
  %v6762 = vor.u32 %v6759, %v6760
  %v6763 = vrot.slane %v6759, 4
  %v6765 = vshrl.u32 %v6303, 16
  %v6767 = vrot.slane %v6765, 7
  %v6768 = vshll.u32 %v6303, 16
  %v6770 = vor.u32 %v6767, %v6768
  %v6771 = vsel %vm868, %v6763, %v6770
  %v6772 = vrot.slane %v6767, 4
  %v6774 = vshrl.u32 %v6304, 16
  %v6776 = vrot.slane %v6774, 7
  %v6777 = vshll.u32 %v6304, 16
  %v6779 = vor.u32 %v6776, %v6777
  %v6780 = vrot.slane %v6776, 4
  %v6782 = vshrl.u32 %v6305, 16
  %v6784 = vrot.slane %v6782, 7
  %v6785 = vshll.u32 %v6305, 16
  %v6787 = vor.u32 %v6784, %v6785
  %v6788 = vsel %vm868, %v6780, %v6787
  %v6789 = vrot.slane %v6784, 4
  %v6791 = vshrl.u32 %v6306, 16
  %v6793 = vrot.slane %v6791, 7
  %v6794 = vshll.u32 %v6306, 16
  %v6796 = vor.u32 %v6793, %v6794
  %v6797 = vrot.slane %v6793, 4
  %v6799 = vshrl.u32 %v6307, 16
  %v6801 = vrot.slane %v6799, 7
  %v6802 = vshll.u32 %v6307, 16
  %v6804 = vor.u32 %v6801, %v6802
  %v6805 = vsel %vm868, %v6797, %v6804
  %v6806 = vrot.slane %v6801, 4
  %v6808 = vshrl.u32 %v6308, 16
  %v6810 = vrot.slane %v6808, 7
  %v6811 = vshll.u32 %v6308, 16
  %v6813 = vor.u32 %v6810, %v6811
  %v6814 = vrot.slane %v6810, 4
  %v6816 = vshrl.u32 %v6309, 16
  %v6818 = vrot.slane %v6816, 7
  %v6819 = vshll.u32 %v6309, 16
  %v6821 = vor.u32 %v6818, %v6819
  %v6822 = vsel %vm868, %v6814, %v6821
  %v6823 = vrot.slane %v6818, 4
  %v6825 = vshrl.u32 %v6310, 16
  %v6827 = vrot.slane %v6825, 7
  %v6828 = vshll.u32 %v6310, 16
  %v6830 = vor.u32 %v6827, %v6828
  %v6831 = vrot.slane %v6827, 4
  %v6833 = vshrl.u32 %v6311, 16
  %v6835 = vrot.slane %v6833, 7
  %v6836 = vshll.u32 %v6311, 16
  %v6838 = vor.u32 %v6835, %v6836
  %v6839 = vsel %vm868, %v6831, %v6838
  %v6840 = vrot.slane %v6835, 4
  %v6842 = vshrl.u32 %v6312, 16
  %v6844 = vrot.slane %v6842, 7
  %v6845 = vshll.u32 %v6312, 16
  %v6847 = vor.u32 %v6844, %v6845
  %v6848 = vrot.slane %v6844, 4
  %v6850 = vshrl.u32 %v6313, 16
  %v6852 = vrot.slane %v6850, 7
  %v6853 = vshll.u32 %v6313, 16
  %v6855 = vor.u32 %v6852, %v6853
  %v6856 = vsel %vm868, %v6848, %v6855
  %v6857 = vrot.slane %v6852, 4
  %s6954 = scalar_lea.vmem [#allocation3], 12
  %vm6955 = vcmask 60416
  %vm6956 = vmand %vm6955, %vm763
  %v6957 = vld [vmem:[%s6954] sm:$0xf]
  %v6958 = vsel %vm6956, %v6320, %v6957
  %6959 = vst [vmem:[%s6954] sm:$0xf] %v6958
  %6960 = vst.msk [vmem:[%s6954 + $0x4] sm:$0xf] %vm5938, %v6329
  %v6961 = vld [vmem:[%s6954 + $0x8] sm:$0x1]
  %v6962 = vsel %vm5948, %v6330, %v6961
  %6963 = vst [vmem:[%s6954 + $0x8] sm:$0x1] %v6962
  %v6964 = vld [vmem:[%s6954 + $0xc] sm:$0xf]
  %v6965 = vsel %vm6956, %v6337, %v6964
  %6966 = vst [vmem:[%s6954 + $0xc] sm:$0xf] %v6965
  %6967 = vst.msk [vmem:[%s6954 + $0x10] sm:$0xf] %vm5938, %v6346
  %v6968 = vld [vmem:[%s6954 + $0x14] sm:$0x1]
  %v6969 = vsel %vm5948, %v6347, %v6968
  %6970 = vst [vmem:[%s6954 + $0x14] sm:$0x1] %v6969
  %v6971 = vld [vmem:[%s6954 + $0x18] sm:$0xf]
  %v6972 = vsel %vm6956, %v6354, %v6971
  %6973 = vst [vmem:[%s6954 + $0x18] sm:$0xf] %v6972
  %6974 = vst.msk [vmem:[%s6954 + $0x1c] sm:$0xf] %vm5938, %v6363
  %v6975 = vld [vmem:[%s6954 + $0x20] sm:$0x1]
  %v6976 = vsel %vm5948, %v6364, %v6975
  %6977 = vst [vmem:[%s6954 + $0x20] sm:$0x1] %v6976
  %v6978 = vld [vmem:[%s6954 + $0x24] sm:$0xf]
  %v6979 = vsel %vm6956, %v6371, %v6978
  %6980 = vst [vmem:[%s6954 + $0x24] sm:$0xf] %v6979
  %6981 = vst.msk [vmem:[%s6954 + $0x28] sm:$0xf] %vm5938, %v6380
  %v6982 = vld [vmem:[%s6954 + $0x2c] sm:$0x1]
  %v6983 = vsel %vm5948, %v6381, %v6982
  %6984 = vst [vmem:[%s6954 + $0x2c] sm:$0x1] %v6983
  %v6985 = vld [vmem:[%s6954 + $0x30] sm:$0xf]
  %v6986 = vsel %vm6956, %v6388, %v6985
  %6987 = vst [vmem:[%s6954 + $0x30] sm:$0xf] %v6986
  %6988 = vst.msk [vmem:[%s6954 + $0x34] sm:$0xf] %vm5938, %v6397
  %v6989 = vld [vmem:[%s6954 + $0x38] sm:$0x1]
  %v6990 = vsel %vm5948, %v6398, %v6989
  %6991 = vst [vmem:[%s6954 + $0x38] sm:$0x1] %v6990
  %v6992 = vld [vmem:[%s6954 + $0x3c] sm:$0xf]
  %v6993 = vsel %vm6956, %v6405, %v6992
  %6994 = vst [vmem:[%s6954 + $0x3c] sm:$0xf] %v6993
  %6995 = vst.msk [vmem:[%s6954 + $0x40] sm:$0xf] %vm5938, %v6414
  %v6996 = vld [vmem:[%s6954 + $0x44] sm:$0x1]
  %v6997 = vsel %vm5948, %v6415, %v6996
  %6998 = vst [vmem:[%s6954 + $0x44] sm:$0x1] %v6997
  %v6999 = vld [vmem:[%s6954 + $0x48] sm:$0xf]
  %v7000 = vsel %vm6956, %v6422, %v6999
  %7001 = vst [vmem:[%s6954 + $0x48] sm:$0xf] %v7000
  %7002 = vst.msk [vmem:[%s6954 + $0x4c] sm:$0xf] %vm5938, %v6431
  %v7003 = vld [vmem:[%s6954 + $0x50] sm:$0x1]
  %v7004 = vsel %vm5948, %v6432, %v7003
  %7005 = vst [vmem:[%s6954 + $0x50] sm:$0x1] %v7004
  %v7006 = vld [vmem:[%s6954 + $0x54] sm:$0xf]
  %v7007 = vsel %vm6956, %v6439, %v7006
  %7008 = vst [vmem:[%s6954 + $0x54] sm:$0xf] %v7007
  %7009 = vst.msk [vmem:[%s6954 + $0x58] sm:$0xf] %vm5938, %v6448
  %v7010 = vld [vmem:[%s6954 + $0x5c] sm:$0x1]
  %v7011 = vsel %vm5948, %v6449, %v7010
  %7012 = vst [vmem:[%s6954 + $0x5c] sm:$0x1] %v7011
  %v7013 = vld [vmem:[%s6954 + $0x60] sm:$0xf]
  %v7014 = vsel %vm6956, %v6456, %v7013
  %7015 = vst [vmem:[%s6954 + $0x60] sm:$0xf] %v7014
  %7016 = vst.msk [vmem:[%s6954 + $0x64] sm:$0xf] %vm5938, %v6465
  %v7017 = vld [vmem:[%s6954 + $0x68] sm:$0x1]
  %v7018 = vsel %vm5948, %v6466, %v7017
  %7019 = vst [vmem:[%s6954 + $0x68] sm:$0x1] %v7018
  %v7020 = vld [vmem:[%s6954 + $0x6c] sm:$0xf]
  %v7021 = vsel %vm6956, %v6473, %v7020
  %7022 = vst [vmem:[%s6954 + $0x6c] sm:$0xf] %v7021
  %7023 = vst.msk [vmem:[%s6954 + $0x70] sm:$0xf] %vm5938, %v6482
  %v7024 = vld [vmem:[%s6954 + $0x74] sm:$0x1]
  %v7025 = vsel %vm5948, %v6483, %v7024
  %7026 = vst [vmem:[%s6954 + $0x74] sm:$0x1] %v7025
  %v7027 = vld [vmem:[%s6954 + $0x78] sm:$0xf]
  %v7028 = vsel %vm6956, %v6490, %v7027
  %7029 = vst [vmem:[%s6954 + $0x78] sm:$0xf] %v7028
  %7030 = vst.msk [vmem:[%s6954 + $0x7c] sm:$0xf] %vm5938, %v6499
  %v7031 = vld [vmem:[%s6954 + $0x80] sm:$0x1]
  %v7032 = vsel %vm5948, %v6500, %v7031
  %7033 = vst [vmem:[%s6954 + $0x80] sm:$0x1] %v7032
  %v7034 = vld [vmem:[%s6954 + $0x84] sm:$0xf]
  %v7035 = vsel %vm6956, %v6507, %v7034
  %7036 = vst [vmem:[%s6954 + $0x84] sm:$0xf] %v7035
  %7037 = vst.msk [vmem:[%s6954 + $0x88] sm:$0xf] %vm5938, %v6516
  %v7038 = vld [vmem:[%s6954 + $0x8c] sm:$0x1]
  %v7039 = vsel %vm5948, %v6517, %v7038
  %7040 = vst [vmem:[%s6954 + $0x8c] sm:$0x1] %v7039
  %v7041 = vld [vmem:[%s6954 + $0x90] sm:$0xf]
  %v7042 = vsel %vm6956, %v6524, %v7041
  %7043 = vst [vmem:[%s6954 + $0x90] sm:$0xf] %v7042
  %7044 = vst.msk [vmem:[%s6954 + $0x94] sm:$0xf] %vm5938, %v6533
  %v7045 = vld [vmem:[%s6954 + $0x98] sm:$0x1]
  %v7046 = vsel %vm5948, %v6534, %v7045
  %7047 = vst [vmem:[%s6954 + $0x98] sm:$0x1] %v7046
  %v7048 = vld [vmem:[%s6954 + $0x9c] sm:$0xf]
  %v7049 = vsel %vm6956, %v6541, %v7048
  %7050 = vst [vmem:[%s6954 + $0x9c] sm:$0xf] %v7049
  %7051 = vst.msk [vmem:[%s6954 + $0xa0] sm:$0xf] %vm5938, %v6550
  %v7052 = vld [vmem:[%s6954 + $0xa4] sm:$0x1]
  %v7053 = vsel %vm5948, %v6551, %v7052
  %7054 = vst [vmem:[%s6954 + $0xa4] sm:$0x1] %v7053
  %v7055 = vld [vmem:[%s6954 + $0xa8] sm:$0xf]
  %v7056 = vsel %vm6956, %v6558, %v7055
  %7057 = vst [vmem:[%s6954 + $0xa8] sm:$0xf] %v7056
  %7058 = vst.msk [vmem:[%s6954 + $0xac] sm:$0xf] %vm5938, %v6567
  %v7059 = vld [vmem:[%s6954 + $0xb0] sm:$0x1]
  %v7060 = vsel %vm5948, %v6568, %v7059
  %7061 = vst [vmem:[%s6954 + $0xb0] sm:$0x1] %v7060
  %v7062 = vld [vmem:[%s6954 + $0xb4] sm:$0xf]
  %v7063 = vsel %vm6956, %v6575, %v7062
  %7064 = vst [vmem:[%s6954 + $0xb4] sm:$0xf] %v7063
  %7065 = vst.msk [vmem:[%s6954 + $0xb8] sm:$0xf] %vm5938, %v6584
  %v7066 = vld [vmem:[%s6954 + $0xbc] sm:$0x1]
  %v7067 = vsel %vm5948, %v6585, %v7066
  %7068 = vst [vmem:[%s6954 + $0xbc] sm:$0x1] %v7067
  %v7069 = vld [vmem:[%s6954 + $0xc0] sm:$0xf]
  %v7070 = vsel %vm6956, %v6592, %v7069
  %7071 = vst [vmem:[%s6954 + $0xc0] sm:$0xf] %v7070
  %7072 = vst.msk [vmem:[%s6954 + $0xc4] sm:$0xf] %vm5938, %v6601
  %v7073 = vld [vmem:[%s6954 + $0xc8] sm:$0x1]
  %v7074 = vsel %vm5948, %v6602, %v7073
  %7075 = vst [vmem:[%s6954 + $0xc8] sm:$0x1] %v7074
  %v7076 = vld [vmem:[%s6954 + $0xcc] sm:$0xf]
  %v7077 = vsel %vm6956, %v6609, %v7076
  %7078 = vst [vmem:[%s6954 + $0xcc] sm:$0xf] %v7077
  %7079 = vst.msk [vmem:[%s6954 + $0xd0] sm:$0xf] %vm5938, %v6618
  %v7080 = vld [vmem:[%s6954 + $0xd4] sm:$0x1]
  %v7081 = vsel %vm5948, %v6619, %v7080
  %7082 = vst [vmem:[%s6954 + $0xd4] sm:$0x1] %v7081
  %v7083 = vld [vmem:[%s6954 + $0xd8] sm:$0xf]
  %v7084 = vsel %vm6956, %v6626, %v7083
  %7085 = vst [vmem:[%s6954 + $0xd8] sm:$0xf] %v7084
  %7086 = vst.msk [vmem:[%s6954 + $0xdc] sm:$0xf] %vm5938, %v6635
  %v7087 = vld [vmem:[%s6954 + $0xe0] sm:$0x1]
  %v7088 = vsel %vm5948, %v6636, %v7087
  %7089 = vst [vmem:[%s6954 + $0xe0] sm:$0x1] %v7088
  %v7090 = vld [vmem:[%s6954 + $0xe4] sm:$0xf]
  %v7091 = vsel %vm6956, %v6643, %v7090
  %7092 = vst [vmem:[%s6954 + $0xe4] sm:$0xf] %v7091
  %7093 = vst.msk [vmem:[%s6954 + $0xe8] sm:$0xf] %vm5938, %v6652
  %v7094 = vld [vmem:[%s6954 + $0xec] sm:$0x1]
  %v7095 = vsel %vm5948, %v6653, %v7094
  %7096 = vst [vmem:[%s6954 + $0xec] sm:$0x1] %v7095
  %v7097 = vld [vmem:[%s6954 + $0xf0] sm:$0xf]
  %v7098 = vsel %vm6956, %v6660, %v7097
  %7099 = vst [vmem:[%s6954 + $0xf0] sm:$0xf] %v7098
  %7100 = vst.msk [vmem:[%s6954 + $0xf4] sm:$0xf] %vm5938, %v6669
  %v7101 = vld [vmem:[%s6954 + $0xf8] sm:$0x1]
  %v7102 = vsel %vm5948, %v6670, %v7101
  %7103 = vst [vmem:[%s6954 + $0xf8] sm:$0x1] %v7102
  %v7104 = vld [vmem:[%s6954 + $0xfc] sm:$0xf]
  %v7105 = vsel %vm6956, %v6677, %v7104
  %7106 = vst [vmem:[%s6954 + $0xfc] sm:$0xf] %v7105
  %7107 = vst.msk [vmem:[%s6954 + $0x100] sm:$0xf] %vm5938, %v6686
  %v7108 = vld [vmem:[%s6954 + $0x104] sm:$0x1]
  %v7109 = vsel %vm5948, %v6687, %v7108
  %7110 = vst [vmem:[%s6954 + $0x104] sm:$0x1] %v7109
  %v7111 = vld [vmem:[%s6954 + $0x108] sm:$0xf]
  %v7112 = vsel %vm6956, %v6694, %v7111
  %7113 = vst [vmem:[%s6954 + $0x108] sm:$0xf] %v7112
  %7114 = vst.msk [vmem:[%s6954 + $0x10c] sm:$0xf] %vm5938, %v6703
  %v7115 = vld [vmem:[%s6954 + $0x110] sm:$0x1]
  %v7116 = vsel %vm5948, %v6704, %v7115
  %7117 = vst [vmem:[%s6954 + $0x110] sm:$0x1] %v7116
  %v7118 = vld [vmem:[%s6954 + $0x114] sm:$0xf]
  %v7119 = vsel %vm6956, %v6711, %v7118
  %7120 = vst [vmem:[%s6954 + $0x114] sm:$0xf] %v7119
  %7121 = vst.msk [vmem:[%s6954 + $0x118] sm:$0xf] %vm5938, %v6720
  %v7122 = vld [vmem:[%s6954 + $0x11c] sm:$0x1]
  %v7123 = vsel %vm5948, %v6721, %v7122
  %7124 = vst [vmem:[%s6954 + $0x11c] sm:$0x1] %v7123
  %v7125 = vld [vmem:[%s6954 + $0x120] sm:$0xf]
  %v7126 = vsel %vm6956, %v6728, %v7125
  %7127 = vst [vmem:[%s6954 + $0x120] sm:$0xf] %v7126
  %7128 = vst.msk [vmem:[%s6954 + $0x124] sm:$0xf] %vm5938, %v6737
  %v7129 = vld [vmem:[%s6954 + $0x128] sm:$0x1]
  %v7130 = vsel %vm5948, %v6738, %v7129
  %7131 = vst [vmem:[%s6954 + $0x128] sm:$0x1] %v7130
  %v7132 = vld [vmem:[%s6954 + $0x12c] sm:$0xf]
  %v7133 = vsel %vm6956, %v6745, %v7132
  %7134 = vst [vmem:[%s6954 + $0x12c] sm:$0xf] %v7133
  %7135 = vst.msk [vmem:[%s6954 + $0x130] sm:$0xf] %vm5938, %v6754
  %v7136 = vld [vmem:[%s6954 + $0x134] sm:$0x1]
  %v7137 = vsel %vm5948, %v6755, %v7136
  %7138 = vst [vmem:[%s6954 + $0x134] sm:$0x1] %v7137
  %v7139 = vld [vmem:[%s6954 + $0x138] sm:$0xf]
  %v7140 = vsel %vm6956, %v6762, %v7139
  %7141 = vst [vmem:[%s6954 + $0x138] sm:$0xf] %v7140
  %7142 = vst.msk [vmem:[%s6954 + $0x13c] sm:$0xf] %vm5938, %v6771
  %v7143 = vld [vmem:[%s6954 + $0x140] sm:$0x1]
  %v7144 = vsel %vm5948, %v6772, %v7143
  %7145 = vst [vmem:[%s6954 + $0x140] sm:$0x1] %v7144
  %v7146 = vld [vmem:[%s6954 + $0x144] sm:$0xf]
  %v7147 = vsel %vm6956, %v6779, %v7146
  %7148 = vst [vmem:[%s6954 + $0x144] sm:$0xf] %v7147
  %7149 = vst.msk [vmem:[%s6954 + $0x148] sm:$0xf] %vm5938, %v6788
  %v7150 = vld [vmem:[%s6954 + $0x14c] sm:$0x1]
  %v7151 = vsel %vm5948, %v6789, %v7150
  %7152 = vst [vmem:[%s6954 + $0x14c] sm:$0x1] %v7151
  %v7153 = vld [vmem:[%s6954 + $0x150] sm:$0xf]
  %v7154 = vsel %vm6956, %v6796, %v7153
  %7155 = vst [vmem:[%s6954 + $0x150] sm:$0xf] %v7154
  %7156 = vst.msk [vmem:[%s6954 + $0x154] sm:$0xf] %vm5938, %v6805
  %v7157 = vld [vmem:[%s6954 + $0x158] sm:$0x1]
  %v7158 = vsel %vm5948, %v6806, %v7157
  %7159 = vst [vmem:[%s6954 + $0x158] sm:$0x1] %v7158
  %v7160 = vld [vmem:[%s6954 + $0x15c] sm:$0xf]
  %v7161 = vsel %vm6956, %v6813, %v7160
  %7162 = vst [vmem:[%s6954 + $0x15c] sm:$0xf] %v7161
  %7163 = vst.msk [vmem:[%s6954 + $0x160] sm:$0xf] %vm5938, %v6822
  %v7164 = vld [vmem:[%s6954 + $0x164] sm:$0x1]
  %v7165 = vsel %vm5948, %v6823, %v7164
  %7166 = vst [vmem:[%s6954 + $0x164] sm:$0x1] %v7165
  %v7167 = vld [vmem:[%s6954 + $0x168] sm:$0xf]
  %v7168 = vsel %vm6956, %v6830, %v7167
  %7169 = vst [vmem:[%s6954 + $0x168] sm:$0xf] %v7168
  %7170 = vst.msk [vmem:[%s6954 + $0x16c] sm:$0xf] %vm5938, %v6839
  %v7171 = vld [vmem:[%s6954 + $0x170] sm:$0x1]
  %v7172 = vsel %vm5948, %v6840, %v7171
  %7173 = vst [vmem:[%s6954 + $0x170] sm:$0x1] %v7172
  %v7174 = vld [vmem:[%s6954 + $0x174] sm:$0xf]
  %v7175 = vsel %vm6956, %v6847, %v7174
  %7176 = vst [vmem:[%s6954 + $0x174] sm:$0xf] %v7175
  %7177 = vst.msk [vmem:[%s6954 + $0x178] sm:$0xf] %vm5938, %v6856
  %v7178 = vld [vmem:[%s6954 + $0x17c] sm:$0x1]
  %v7179 = vsel %vm5948, %v6857, %v7178
  %7180 = vst [vmem:[%s6954 + $0x17c] sm:$0x1] %v7179
  %v7181 = vld [vmem:[#allocation3] sm:$0xf]
  %v7182 = vld [vmem:[#allocation3 + $0x4] sm:$0xf]
  %v7183 = vld [vmem:[#allocation3 + $0x8] sm:$0x1]
  %v7184 = vld [vmem:[#allocation3 + $0xc] sm:$0xf]
  %v7185 = vld [vmem:[#allocation3 + $0x10] sm:$0xf]
  %v7186 = vld [vmem:[#allocation3 + $0x14] sm:$0x1]
  %v7187 = vld [vmem:[#allocation3 + $0x18] sm:$0xf]
  %v7188 = vld [vmem:[#allocation3 + $0x1c] sm:$0xf]
  %v7189 = vld [vmem:[#allocation3 + $0x20] sm:$0x1]
  %v7190 = vld [vmem:[#allocation3 + $0x24] sm:$0xf]
  %v7191 = vld [vmem:[#allocation3 + $0x28] sm:$0xf]
  %v7192 = vld [vmem:[#allocation3 + $0x2c] sm:$0x1]
  %v7193 = vld [vmem:[#allocation3 + $0x30] sm:$0xf]
  %v7194 = vld [vmem:[#allocation3 + $0x34] sm:$0xf]
  %v7195 = vld [vmem:[#allocation3 + $0x38] sm:$0x1]
  %v7196 = vld [vmem:[#allocation3 + $0x3c] sm:$0xf]
  %v7197 = vld [vmem:[#allocation3 + $0x40] sm:$0xf]
  %v7198 = vld [vmem:[#allocation3 + $0x44] sm:$0x1]
  %v7199 = vld [vmem:[#allocation3 + $0x48] sm:$0xf]
  %v7200 = vld [vmem:[#allocation3 + $0x4c] sm:$0xf]
  %v7201 = vld [vmem:[#allocation3 + $0x50] sm:$0x1]
  %v7202 = vld [vmem:[#allocation3 + $0x54] sm:$0xf]
  %v7203 = vld [vmem:[#allocation3 + $0x58] sm:$0xf]
  %v7204 = vld [vmem:[#allocation3 + $0x5c] sm:$0x1]
  %v7205 = vld [vmem:[#allocation3 + $0x60] sm:$0xf]
  %v7206 = vld [vmem:[#allocation3 + $0x64] sm:$0xf]
  %v7207 = vld [vmem:[#allocation3 + $0x68] sm:$0x1]
  %v7208 = vld [vmem:[#allocation3 + $0x6c] sm:$0xf]
  %v7209 = vld [vmem:[#allocation3 + $0x70] sm:$0xf]
  %v7210 = vld [vmem:[#allocation3 + $0x74] sm:$0x1]
  %v7211 = vld [vmem:[#allocation3 + $0x78] sm:$0xf]
  %v7212 = vld [vmem:[#allocation3 + $0x7c] sm:$0xf]
  %v7213 = vld [vmem:[#allocation3 + $0x80] sm:$0x1]
  %v7214 = vld [vmem:[#allocation3 + $0x84] sm:$0xf]
  %v7215 = vld [vmem:[#allocation3 + $0x88] sm:$0xf]
  %v7216 = vld [vmem:[#allocation3 + $0x8c] sm:$0x1]
  %v7217 = vld [vmem:[#allocation3 + $0x90] sm:$0xf]
  %v7218 = vld [vmem:[#allocation3 + $0x94] sm:$0xf]
  %v7219 = vld [vmem:[#allocation3 + $0x98] sm:$0x1]
  %v7220 = vld [vmem:[#allocation3 + $0x9c] sm:$0xf]
  %v7221 = vld [vmem:[#allocation3 + $0xa0] sm:$0xf]
  %v7222 = vld [vmem:[#allocation3 + $0xa4] sm:$0x1]
  %v7223 = vld [vmem:[#allocation3 + $0xa8] sm:$0xf]
  %v7224 = vld [vmem:[#allocation3 + $0xac] sm:$0xf]
  %v7225 = vld [vmem:[#allocation3 + $0xb0] sm:$0x1]
  %v7226 = vld [vmem:[#allocation3 + $0xb4] sm:$0xf]
  %v7227 = vld [vmem:[#allocation3 + $0xb8] sm:$0xf]
  %v7228 = vld [vmem:[#allocation3 + $0xbc] sm:$0x1]
  %v7229 = vld [vmem:[#allocation3 + $0xc0] sm:$0xf]
  %v7230 = vld [vmem:[#allocation3 + $0xc4] sm:$0xf]
  %v7231 = vld [vmem:[#allocation3 + $0xc8] sm:$0x1]
  %v7232 = vld [vmem:[#allocation3 + $0xcc] sm:$0xf]
  %v7233 = vld [vmem:[#allocation3 + $0xd0] sm:$0xf]
  %v7234 = vld [vmem:[#allocation3 + $0xd4] sm:$0x1]
  %v7235 = vld [vmem:[#allocation3 + $0xd8] sm:$0xf]
  %v7236 = vld [vmem:[#allocation3 + $0xdc] sm:$0xf]
  %v7237 = vld [vmem:[#allocation3 + $0xe0] sm:$0x1]
  %v7238 = vld [vmem:[#allocation3 + $0xe4] sm:$0xf]
  %v7239 = vld [vmem:[#allocation3 + $0xe8] sm:$0xf]
  %v7240 = vld [vmem:[#allocation3 + $0xec] sm:$0x1]
  %v7241 = vld [vmem:[#allocation3 + $0xf0] sm:$0xf]
  %v7242 = vld [vmem:[#allocation3 + $0xf4] sm:$0xf]
  %v7243 = vld [vmem:[#allocation3 + $0xf8] sm:$0x1]
  %v7244 = vld [vmem:[#allocation3 + $0xfc] sm:$0xf]
  %v7245 = vld [vmem:[#allocation3 + $0x100] sm:$0xf]
  %v7246 = vld [vmem:[#allocation3 + $0x104] sm:$0x1]
  %v7247 = vld [vmem:[#allocation3 + $0x108] sm:$0xf]
  %v7248 = vld [vmem:[#allocation3 + $0x10c] sm:$0xf]
  %v7249 = vld [vmem:[#allocation3 + $0x110] sm:$0x1]
  %v7250 = vld [vmem:[#allocation3 + $0x114] sm:$0xf]
  %v7251 = vld [vmem:[#allocation3 + $0x118] sm:$0xf]
  %v7252 = vld [vmem:[#allocation3 + $0x11c] sm:$0x1]
  %v7253 = vld [vmem:[#allocation3 + $0x120] sm:$0xf]
  %v7254 = vld [vmem:[#allocation3 + $0x124] sm:$0xf]
  %v7255 = vld [vmem:[#allocation3 + $0x128] sm:$0x1]
  %v7256 = vld [vmem:[#allocation3 + $0x12c] sm:$0xf]
  %v7257 = vld [vmem:[#allocation3 + $0x130] sm:$0xf]
  %v7258 = vld [vmem:[#allocation3 + $0x134] sm:$0x1]
  %v7259 = vld [vmem:[#allocation3 + $0x138] sm:$0xf]
  %v7260 = vld [vmem:[#allocation3 + $0x13c] sm:$0xf]
  %v7261 = vld [vmem:[#allocation3 + $0x140] sm:$0x1]
  %v7262 = vld [vmem:[#allocation3 + $0x144] sm:$0xf]
  %v7263 = vld [vmem:[#allocation3 + $0x148] sm:$0xf]
  %v7264 = vld [vmem:[#allocation3 + $0x14c] sm:$0x1]
  %v7265 = vld [vmem:[#allocation3 + $0x150] sm:$0xf]
  %v7266 = vld [vmem:[#allocation3 + $0x154] sm:$0xf]
  %v7267 = vld [vmem:[#allocation3 + $0x158] sm:$0x1]
  %v7268 = vld [vmem:[#allocation3 + $0x15c] sm:$0xf]
  %v7269 = vld [vmem:[#allocation3 + $0x160] sm:$0xf]
  %v7270 = vld [vmem:[#allocation3 + $0x164] sm:$0x1]
  %v7271 = vld [vmem:[#allocation3 + $0x168] sm:$0xf]
  %v7272 = vld [vmem:[#allocation3 + $0x16c] sm:$0xf]
  %v7273 = vld [vmem:[#allocation3 + $0x170] sm:$0x1]
  %v7274 = vld [vmem:[#allocation3 + $0x174] sm:$0xf]
  %v7275 = vld [vmem:[#allocation3 + $0x178] sm:$0xf]
  %v7276 = vld [vmem:[#allocation3 + $0x17c] sm:$0x1]
  %v7277 = vsel 0, %v7181, 0
  %v7278 = vsel 0, %v7182, 0
  %v7279 = vsel 0, %v7183, 0
  %v7280 = vsel 1, %v7184, 0
  %v7281 = vsel 1, %v7185, 0
  %v7282 = vsel 1, %v7186, 0
  %v7283 = vsel 1, %v7187, 0
  %v7284 = vsel 1, %v7188, 0
  %v7285 = vsel 1, %v7189, 0
  %v7286 = vsel 1, %v7190, 0
  %v7287 = vsel 1, %v7191, 0
  %v7288 = vsel 1, %v7192, 0
  %v7289 = vsel 1, %v7193, 0
  %v7290 = vsel 1, %v7194, 0
  %v7291 = vsel 1, %v7195, 0
  %v7292 = vsel 1, %v7196, 0
  %v7293 = vsel 1, %v7197, 0
  %v7294 = vsel 1, %v7198, 0
  %v7295 = vsel 1, %v7199, 0
  %v7296 = vsel 1, %v7200, 0
  %v7297 = vsel 1, %v7201, 0
  %v7298 = vsel 1, %v7202, 0
  %v7299 = vsel 1, %v7203, 0
  %v7300 = vsel 1, %v7204, 0
  %v7301 = vsel 1, %v7205, 0
  %v7302 = vsel 1, %v7206, 0
  %v7303 = vsel 1, %v7207, 0
  %v7304 = vsel 1, %v7208, 0
  %v7305 = vsel 1, %v7209, 0
  %v7306 = vsel 1, %v7210, 0
  %v7307 = vsel 1, %v7211, 0
  %v7308 = vsel 1, %v7212, 0
  %v7309 = vsel 1, %v7213, 0
  %v7310 = vsel 1, %v7214, 0
  %v7311 = vsel 1, %v7215, 0
  %v7312 = vsel 1, %v7216, 0
  %v7313 = vsel 1, %v7217, 0
  %v7314 = vsel 1, %v7218, 0
  %v7315 = vsel 1, %v7219, 0
  %v7316 = vsel 1, %v7220, 0
  %v7317 = vsel 1, %v7221, 0
  %v7318 = vsel 1, %v7222, 0
  %v7319 = vsel 1, %v7223, 0
  %v7320 = vsel 1, %v7224, 0
  %v7321 = vsel 1, %v7225, 0
  %v7322 = vsel 1, %v7226, 0
  %v7323 = vsel 1, %v7227, 0
  %v7324 = vsel 1, %v7228, 0
  %v7325 = vsel 0, %v7229, 0
  %v7326 = vsel 0, %v7230, 0
  %v7327 = vsel 0, %v7231, 0
  %v7328 = vsel 1, %v7232, 0
  %v7329 = vsel 1, %v7233, 0
  %v7330 = vsel 1, %v7234, 0
  %v7331 = vsel 1, %v7235, 0
  %v7332 = vsel 1, %v7236, 0
  %v7333 = vsel 1, %v7237, 0
  %v7334 = vsel 1, %v7238, 0
  %v7335 = vsel 1, %v7239, 0
  %v7336 = vsel 1, %v7240, 0
  %v7337 = vsel 1, %v7241, 0
  %v7338 = vsel 1, %v7242, 0
  %v7339 = vsel 1, %v7243, 0
  %v7340 = vsel 1, %v7244, 0
  %v7341 = vsel 1, %v7245, 0
  %v7342 = vsel 1, %v7246, 0
  %v7343 = vsel 1, %v7247, 0
  %v7344 = vsel 1, %v7248, 0
  %v7345 = vsel 1, %v7249, 0
  %v7346 = vsel 1, %v7250, 0
  %v7347 = vsel 1, %v7251, 0
  %v7348 = vsel 1, %v7252, 0
  %v7349 = vsel 1, %v7253, 0
  %v7350 = vsel 1, %v7254, 0
  %v7351 = vsel 1, %v7255, 0
  %v7352 = vsel 1, %v7256, 0
  %v7353 = vsel 1, %v7257, 0
  %v7354 = vsel 1, %v7258, 0
  %v7355 = vsel 1, %v7259, 0
  %v7356 = vsel 1, %v7260, 0
  %v7357 = vsel 1, %v7261, 0
  %v7358 = vsel 1, %v7262, 0
  %v7359 = vsel 1, %v7263, 0
  %v7360 = vsel 1, %v7264, 0
  %v7361 = vsel 1, %v7265, 0
  %v7362 = vsel 1, %v7266, 0
  %v7363 = vsel 1, %v7267, 0
  %v7364 = vsel 1, %v7268, 0
  %v7365 = vsel 1, %v7269, 0
  %v7366 = vsel 1, %v7270, 0
  %v7367 = vsel 1, %v7271, 0
  %v7368 = vsel 1, %v7272, 0
  %v7369 = vsel 1, %v7273, 0
  %v7370 = vsel 1, %v7274, 0
  %v7371 = vsel 1, %v7275, 0
  %v7372 = vsel 1, %v7276, 0
  %v7373 = vld [vmem:[%s6954] sm:$0xf]
  %v7374 = vld [vmem:[%s6954 + $0x4] sm:$0xf]
  %v7375 = vld [vmem:[%s6954 + $0x8] sm:$0x1]
  %v7376 = vld [vmem:[%s6954 + $0xc] sm:$0xf]
  %v7377 = vld [vmem:[%s6954 + $0x10] sm:$0xf]
  %v7378 = vld [vmem:[%s6954 + $0x14] sm:$0x1]
  %v7379 = vld [vmem:[%s6954 + $0x18] sm:$0xf]
  %v7380 = vld [vmem:[%s6954 + $0x1c] sm:$0xf]
  %v7381 = vld [vmem:[%s6954 + $0x20] sm:$0x1]
  %v7382 = vld [vmem:[%s6954 + $0x24] sm:$0xf]
  %v7383 = vld [vmem:[%s6954 + $0x28] sm:$0xf]
  %v7384 = vld [vmem:[%s6954 + $0x2c] sm:$0x1]
  %v7385 = vld [vmem:[%s6954 + $0x30] sm:$0xf]
  %v7386 = vld [vmem:[%s6954 + $0x34] sm:$0xf]
  %v7387 = vld [vmem:[%s6954 + $0x38] sm:$0x1]
  %v7388 = vld [vmem:[%s6954 + $0x3c] sm:$0xf]
  %v7389 = vld [vmem:[%s6954 + $0x40] sm:$0xf]
  %v7390 = vld [vmem:[%s6954 + $0x44] sm:$0x1]
  %v7391 = vld [vmem:[%s6954 + $0x48] sm:$0xf]
  %v7392 = vld [vmem:[%s6954 + $0x4c] sm:$0xf]
  %v7393 = vld [vmem:[%s6954 + $0x50] sm:$0x1]
  %v7394 = vld [vmem:[%s6954 + $0x54] sm:$0xf]
  %v7395 = vld [vmem:[%s6954 + $0x58] sm:$0xf]
  %v7396 = vld [vmem:[%s6954 + $0x5c] sm:$0x1]
  %v7397 = vld [vmem:[%s6954 + $0x60] sm:$0xf]
  %v7398 = vld [vmem:[%s6954 + $0x64] sm:$0xf]
  %v7399 = vld [vmem:[%s6954 + $0x68] sm:$0x1]
  %v7400 = vld [vmem:[%s6954 + $0x6c] sm:$0xf]
  %v7401 = vld [vmem:[%s6954 + $0x70] sm:$0xf]
  %v7402 = vld [vmem:[%s6954 + $0x74] sm:$0x1]
  %v7403 = vld [vmem:[%s6954 + $0x78] sm:$0xf]
  %v7404 = vld [vmem:[%s6954 + $0x7c] sm:$0xf]
  %v7405 = vld [vmem:[%s6954 + $0x80] sm:$0x1]
  %v7406 = vld [vmem:[%s6954 + $0x84] sm:$0xf]
  %v7407 = vld [vmem:[%s6954 + $0x88] sm:$0xf]
  %v7408 = vld [vmem:[%s6954 + $0x8c] sm:$0x1]
  %v7409 = vld [vmem:[%s6954 + $0x90] sm:$0xf]
  %v7410 = vld [vmem:[%s6954 + $0x94] sm:$0xf]
  %v7411 = vld [vmem:[%s6954 + $0x98] sm:$0x1]
  %v7412 = vld [vmem:[%s6954 + $0x9c] sm:$0xf]
  %v7413 = vld [vmem:[%s6954 + $0xa0] sm:$0xf]
  %v7414 = vld [vmem:[%s6954 + $0xa4] sm:$0x1]
  %v7415 = vld [vmem:[%s6954 + $0xa8] sm:$0xf]
  %v7416 = vld [vmem:[%s6954 + $0xac] sm:$0xf]
  %v7417 = vld [vmem:[%s6954 + $0xb0] sm:$0x1]
  %v7418 = vld [vmem:[%s6954 + $0xb4] sm:$0xf]
  %v7419 = vld [vmem:[%s6954 + $0xb8] sm:$0xf]
  %v7420 = vld [vmem:[%s6954 + $0xbc] sm:$0x1]
  %v7421 = vld [vmem:[%s6954 + $0xc0] sm:$0xf]
  %v7422 = vld [vmem:[%s6954 + $0xc4] sm:$0xf]
  %v7423 = vld [vmem:[%s6954 + $0xc8] sm:$0x1]
  %v7424 = vld [vmem:[%s6954 + $0xcc] sm:$0xf]
  %v7425 = vld [vmem:[%s6954 + $0xd0] sm:$0xf]
  %v7426 = vld [vmem:[%s6954 + $0xd4] sm:$0x1]
  %v7427 = vld [vmem:[%s6954 + $0xd8] sm:$0xf]
  %v7428 = vld [vmem:[%s6954 + $0xdc] sm:$0xf]
  %v7429 = vld [vmem:[%s6954 + $0xe0] sm:$0x1]
  %v7430 = vld [vmem:[%s6954 + $0xe4] sm:$0xf]
  %v7431 = vld [vmem:[%s6954 + $0xe8] sm:$0xf]
  %v7432 = vld [vmem:[%s6954 + $0xec] sm:$0x1]
  %v7433 = vld [vmem:[%s6954 + $0xf0] sm:$0xf]
  %v7434 = vld [vmem:[%s6954 + $0xf4] sm:$0xf]
  %v7435 = vld [vmem:[%s6954 + $0xf8] sm:$0x1]
  %v7436 = vld [vmem:[%s6954 + $0xfc] sm:$0xf]
  %v7437 = vld [vmem:[%s6954 + $0x100] sm:$0xf]
  %v7438 = vld [vmem:[%s6954 + $0x104] sm:$0x1]
  %v7439 = vld [vmem:[%s6954 + $0x108] sm:$0xf]
  %v7440 = vld [vmem:[%s6954 + $0x10c] sm:$0xf]
  %v7441 = vld [vmem:[%s6954 + $0x110] sm:$0x1]
  %v7442 = vld [vmem:[%s6954 + $0x114] sm:$0xf]
  %v7443 = vld [vmem:[%s6954 + $0x118] sm:$0xf]
  %v7444 = vld [vmem:[%s6954 + $0x11c] sm:$0x1]
  %v7445 = vld [vmem:[%s6954 + $0x120] sm:$0xf]
  %v7446 = vld [vmem:[%s6954 + $0x124] sm:$0xf]
  %v7447 = vld [vmem:[%s6954 + $0x128] sm:$0x1]
  %v7448 = vld [vmem:[%s6954 + $0x12c] sm:$0xf]
  %v7449 = vld [vmem:[%s6954 + $0x130] sm:$0xf]
  %v7450 = vld [vmem:[%s6954 + $0x134] sm:$0x1]
  %v7451 = vld [vmem:[%s6954 + $0x138] sm:$0xf]
  %v7452 = vld [vmem:[%s6954 + $0x13c] sm:$0xf]
  %v7453 = vld [vmem:[%s6954 + $0x140] sm:$0x1]
  %v7454 = vld [vmem:[%s6954 + $0x144] sm:$0xf]
  %v7455 = vld [vmem:[%s6954 + $0x148] sm:$0xf]
  %v7456 = vld [vmem:[%s6954 + $0x14c] sm:$0x1]
  %v7457 = vld [vmem:[%s6954 + $0x150] sm:$0xf]
  %v7458 = vld [vmem:[%s6954 + $0x154] sm:$0xf]
  %v7459 = vld [vmem:[%s6954 + $0x158] sm:$0x1]
  %v7460 = vld [vmem:[%s6954 + $0x15c] sm:$0xf]
  %v7461 = vld [vmem:[%s6954 + $0x160] sm:$0xf]
  %v7462 = vld [vmem:[%s6954 + $0x164] sm:$0x1]
  %v7463 = vld [vmem:[%s6954 + $0x168] sm:$0xf]
  %v7464 = vld [vmem:[%s6954 + $0x16c] sm:$0xf]
  %v7465 = vld [vmem:[%s6954 + $0x170] sm:$0x1]
  %v7466 = vld [vmem:[%s6954 + $0x174] sm:$0xf]
  %v7467 = vld [vmem:[%s6954 + $0x178] sm:$0xf]
  %v7468 = vld [vmem:[%s6954 + $0x17c] sm:$0x1]
  %s7469 = scalar_lea.vmem [#allocation3], 24
  %v7470 = vld [vmem:[%s7469] sm:$0xf]
  %v7471 = vld [vmem:[%s7469 + $0x4] sm:$0xf]
  %v7472 = vld [vmem:[%s7469 + $0x8] sm:$0x1]
  %v7473 = vld [vmem:[%s7469 + $0xc] sm:$0xf]
  %v7474 = vld [vmem:[%s7469 + $0x10] sm:$0xf]
  %v7475 = vld [vmem:[%s7469 + $0x14] sm:$0x1]
  %v7476 = vld [vmem:[%s7469 + $0x18] sm:$0xf]
  %v7477 = vld [vmem:[%s7469 + $0x1c] sm:$0xf]
  %v7478 = vld [vmem:[%s7469 + $0x20] sm:$0x1]
  %v7479 = vld [vmem:[%s7469 + $0x24] sm:$0xf]
  %v7480 = vld [vmem:[%s7469 + $0x28] sm:$0xf]
  %v7481 = vld [vmem:[%s7469 + $0x2c] sm:$0x1]
  %v7482 = vld [vmem:[%s7469 + $0x30] sm:$0xf]
  %v7483 = vld [vmem:[%s7469 + $0x34] sm:$0xf]
  %v7484 = vld [vmem:[%s7469 + $0x38] sm:$0x1]
  %v7485 = vld [vmem:[%s7469 + $0x3c] sm:$0xf]
  %v7486 = vld [vmem:[%s7469 + $0x40] sm:$0xf]
  %v7487 = vld [vmem:[%s7469 + $0x44] sm:$0x1]
  %v7488 = vld [vmem:[%s7469 + $0x48] sm:$0xf]
  %v7489 = vld [vmem:[%s7469 + $0x4c] sm:$0xf]
  %v7490 = vld [vmem:[%s7469 + $0x50] sm:$0x1]
  %v7491 = vld [vmem:[%s7469 + $0x54] sm:$0xf]
  %v7492 = vld [vmem:[%s7469 + $0x58] sm:$0xf]
  %v7493 = vld [vmem:[%s7469 + $0x5c] sm:$0x1]
  %v7494 = vld [vmem:[%s7469 + $0x60] sm:$0xf]
  %v7495 = vld [vmem:[%s7469 + $0x64] sm:$0xf]
  %v7496 = vld [vmem:[%s7469 + $0x68] sm:$0x1]
  %v7497 = vld [vmem:[%s7469 + $0x6c] sm:$0xf]
  %v7498 = vld [vmem:[%s7469 + $0x70] sm:$0xf]
  %v7499 = vld [vmem:[%s7469 + $0x74] sm:$0x1]
  %v7500 = vld [vmem:[%s7469 + $0x78] sm:$0xf]
  %v7501 = vld [vmem:[%s7469 + $0x7c] sm:$0xf]
  %v7502 = vld [vmem:[%s7469 + $0x80] sm:$0x1]
  %v7503 = vld [vmem:[%s7469 + $0x84] sm:$0xf]
  %v7504 = vld [vmem:[%s7469 + $0x88] sm:$0xf]
  %v7505 = vld [vmem:[%s7469 + $0x8c] sm:$0x1]
  %v7506 = vld [vmem:[%s7469 + $0x90] sm:$0xf]
  %v7507 = vld [vmem:[%s7469 + $0x94] sm:$0xf]
  %v7508 = vld [vmem:[%s7469 + $0x98] sm:$0x1]
  %v7509 = vld [vmem:[%s7469 + $0x9c] sm:$0xf]
  %v7510 = vld [vmem:[%s7469 + $0xa0] sm:$0xf]
  %v7511 = vld [vmem:[%s7469 + $0xa4] sm:$0x1]
  %v7512 = vld [vmem:[%s7469 + $0xa8] sm:$0xf]
  %v7513 = vld [vmem:[%s7469 + $0xac] sm:$0xf]
  %v7514 = vld [vmem:[%s7469 + $0xb0] sm:$0x1]
  %v7515 = vld [vmem:[%s7469 + $0xb4] sm:$0xf]
  %v7516 = vld [vmem:[%s7469 + $0xb8] sm:$0xf]
  %v7517 = vld [vmem:[%s7469 + $0xbc] sm:$0x1]
  %v7518 = vld [vmem:[%s7469 + $0xc0] sm:$0xf]
  %v7519 = vld [vmem:[%s7469 + $0xc4] sm:$0xf]
  %v7520 = vld [vmem:[%s7469 + $0xc8] sm:$0x1]
  %v7521 = vld [vmem:[%s7469 + $0xcc] sm:$0xf]
  %v7522 = vld [vmem:[%s7469 + $0xd0] sm:$0xf]
  %v7523 = vld [vmem:[%s7469 + $0xd4] sm:$0x1]
  %v7524 = vld [vmem:[%s7469 + $0xd8] sm:$0xf]
  %v7525 = vld [vmem:[%s7469 + $0xdc] sm:$0xf]
  %v7526 = vld [vmem:[%s7469 + $0xe0] sm:$0x1]
  %v7527 = vld [vmem:[%s7469 + $0xe4] sm:$0xf]
  %v7528 = vld [vmem:[%s7469 + $0xe8] sm:$0xf]
  %v7529 = vld [vmem:[%s7469 + $0xec] sm:$0x1]
  %v7530 = vld [vmem:[%s7469 + $0xf0] sm:$0xf]
  %v7531 = vld [vmem:[%s7469 + $0xf4] sm:$0xf]
  %v7532 = vld [vmem:[%s7469 + $0xf8] sm:$0x1]
  %v7533 = vld [vmem:[%s7469 + $0xfc] sm:$0xf]
  %v7534 = vld [vmem:[%s7469 + $0x100] sm:$0xf]
  %v7535 = vld [vmem:[%s7469 + $0x104] sm:$0x1]
  %v7536 = vld [vmem:[%s7469 + $0x108] sm:$0xf]
  %v7537 = vld [vmem:[%s7469 + $0x10c] sm:$0xf]
  %v7538 = vld [vmem:[%s7469 + $0x110] sm:$0x1]
  %v7539 = vld [vmem:[%s7469 + $0x114] sm:$0xf]
  %v7540 = vld [vmem:[%s7469 + $0x118] sm:$0xf]
  %v7541 = vld [vmem:[%s7469 + $0x11c] sm:$0x1]
  %v7542 = vld [vmem:[%s7469 + $0x120] sm:$0xf]
  %v7543 = vld [vmem:[%s7469 + $0x124] sm:$0xf]
  %v7544 = vld [vmem:[%s7469 + $0x128] sm:$0x1]
  %v7545 = vld [vmem:[%s7469 + $0x12c] sm:$0xf]
  %v7546 = vld [vmem:[%s7469 + $0x130] sm:$0xf]
  %v7547 = vld [vmem:[%s7469 + $0x134] sm:$0x1]
  %v7548 = vld [vmem:[%s7469 + $0x138] sm:$0xf]
  %v7549 = vld [vmem:[%s7469 + $0x13c] sm:$0xf]
  %v7550 = vld [vmem:[%s7469 + $0x140] sm:$0x1]
  %v7551 = vld [vmem:[%s7469 + $0x144] sm:$0xf]
  %v7552 = vld [vmem:[%s7469 + $0x148] sm:$0xf]
  %v7553 = vld [vmem:[%s7469 + $0x14c] sm:$0x1]
  %v7554 = vld [vmem:[%s7469 + $0x150] sm:$0xf]
  %v7555 = vld [vmem:[%s7469 + $0x154] sm:$0xf]
  %v7556 = vld [vmem:[%s7469 + $0x158] sm:$0x1]
  %v7557 = vld [vmem:[%s7469 + $0x15c] sm:$0xf]
  %v7558 = vld [vmem:[%s7469 + $0x160] sm:$0xf]
  %v7559 = vld [vmem:[%s7469 + $0x164] sm:$0x1]
  %v7560 = vld [vmem:[%s7469 + $0x168] sm:$0xf]
  %v7561 = vld [vmem:[%s7469 + $0x16c] sm:$0xf]
  %v7562 = vld [vmem:[%s7469 + $0x170] sm:$0x1]
  %v7563 = vld [vmem:[%s7469 + $0x174] sm:$0xf]
  %v7564 = vld [vmem:[%s7469 + $0x178] sm:$0xf]
  %v7565 = vld [vmem:[%s7469 + $0x17c] sm:$0x1]
  %v7566 = vsel 1, %v7470, 0
  %v7567 = vsel 1, %v7471, 0
  %v7568 = vsel 1, %v7472, 0
  %v7569 = vsel 1, %v7473, 0
  %v7570 = vsel 1, %v7474, 0
  %v7571 = vsel 1, %v7475, 0
  %v7572 = vsel 1, %v7476, 0
  %v7573 = vsel 1, %v7477, 0
  %v7574 = vsel 1, %v7478, 0
  %v7575 = vsel 1, %v7479, 0
  %v7576 = vsel 1, %v7480, 0
  %v7577 = vsel 1, %v7481, 0
  %v7578 = vsel 1, %v7482, 0
  %v7579 = vsel 1, %v7483, 0
  %v7580 = vsel 1, %v7484, 0
  %v7581 = vsel 1, %v7485, 0
  %v7582 = vsel 1, %v7486, 0
  %v7583 = vsel 1, %v7487, 0
  %v7584 = vsel 1, %v7488, 0
  %v7585 = vsel 1, %v7489, 0
  %v7586 = vsel 1, %v7490, 0
  %v7587 = vsel 1, %v7491, 0
  %v7588 = vsel 1, %v7492, 0
  %v7589 = vsel 1, %v7493, 0
  %v7590 = vsel 1, %v7494, 0
  %v7591 = vsel 1, %v7495, 0
  %v7592 = vsel 1, %v7496, 0
  %v7593 = vsel 1, %v7497, 0
  %v7594 = vsel 1, %v7498, 0
  %v7595 = vsel 1, %v7499, 0
  %v7596 = vsel 1, %v7500, 0
  %v7597 = vsel 1, %v7501, 0
  %v7598 = vsel 1, %v7502, 0
  %v7599 = vsel 1, %v7503, 0
  %v7600 = vsel 1, %v7504, 0
  %v7601 = vsel 1, %v7505, 0
  %v7602 = vsel 1, %v7506, 0
  %v7603 = vsel 1, %v7507, 0
  %v7604 = vsel 1, %v7508, 0
  %v7605 = vsel 1, %v7509, 0
  %v7606 = vsel 1, %v7510, 0
  %v7607 = vsel 1, %v7511, 0
  %v7608 = vsel 1, %v7512, 0
  %v7609 = vsel 1, %v7513, 0
  %v7610 = vsel 1, %v7514, 0
  %v7611 = vsel 0, %v7515, 0
  %v7612 = vsel 0, %v7516, 0
  %v7613 = vsel 0, %v7517, 0
  %v7614 = vsel 1, %v7518, 0
  %v7615 = vsel 1, %v7519, 0
  %v7616 = vsel 1, %v7520, 0
  %v7617 = vsel 1, %v7521, 0
  %v7618 = vsel 1, %v7522, 0
  %v7619 = vsel 1, %v7523, 0
  %v7620 = vsel 1, %v7524, 0
  %v7621 = vsel 1, %v7525, 0
  %v7622 = vsel 1, %v7526, 0
  %v7623 = vsel 1, %v7527, 0
  %v7624 = vsel 1, %v7528, 0
  %v7625 = vsel 1, %v7529, 0
  %v7626 = vsel 1, %v7530, 0
  %v7627 = vsel 1, %v7531, 0
  %v7628 = vsel 1, %v7532, 0
  %v7629 = vsel 1, %v7533, 0
  %v7630 = vsel 1, %v7534, 0
  %v7631 = vsel 1, %v7535, 0
  %v7632 = vsel 1, %v7536, 0
  %v7633 = vsel 1, %v7537, 0
  %v7634 = vsel 1, %v7538, 0
  %v7635 = vsel 1, %v7539, 0
  %v7636 = vsel 1, %v7540, 0
  %v7637 = vsel 1, %v7541, 0
  %v7638 = vsel 1, %v7542, 0
  %v7639 = vsel 1, %v7543, 0
  %v7640 = vsel 1, %v7544, 0
  %v7641 = vsel 1, %v7545, 0
  %v7642 = vsel 1, %v7546, 0
  %v7643 = vsel 1, %v7547, 0
  %v7644 = vsel 1, %v7548, 0
  %v7645 = vsel 1, %v7549, 0
  %v7646 = vsel 1, %v7550, 0
  %v7647 = vsel 1, %v7551, 0
  %v7648 = vsel 1, %v7552, 0
  %v7649 = vsel 1, %v7553, 0
  %v7650 = vsel 1, %v7554, 0
  %v7651 = vsel 1, %v7555, 0
  %v7652 = vsel 1, %v7556, 0
  %v7653 = vsel 1, %v7557, 0
  %v7654 = vsel 1, %v7558, 0
  %v7655 = vsel 1, %v7559, 0
  %v7656 = vsel 1, %v7560, 0
  %v7657 = vsel 1, %v7561, 0
  %v7658 = vsel 1, %v7562, 0
  %v7659 = vsel 0, %v7563, 0
  %v7660 = vsel 0, %v7564, 0
  %v7661 = vsel 0, %v7565, 0
  %v7726 = vunpack.c.l.b16 %v7277
  %v7727 = vunpack.c.l.b16 %v7278
  %v7728 = vunpack.c.l.b16 %v7280
  %v7729 = vunpack.c.l.b16 %v7281
  %v7730 = vunpack.c.l.b16 %v7283
  %v7731 = vunpack.c.l.b16 %v7284
  %v7732 = vunpack.c.l.b16 %v7286
  %v7733 = vunpack.c.l.b16 %v7287
  %v7734 = vunpack.c.l.b16 %v7289
  %v7735 = vunpack.c.l.b16 %v7290
  %v7736 = vunpack.c.l.b16 %v7292
  %v7737 = vunpack.c.l.b16 %v7293
  %v7738 = vunpack.c.l.b16 %v7295
  %v7739 = vunpack.c.l.b16 %v7296
  %v7740 = vunpack.c.l.b16 %v7298
  %v7741 = vunpack.c.l.b16 %v7299
  %v7742 = vunpack.c.l.b16 %v7301
  %v7743 = vunpack.c.l.b16 %v7302
  %v7744 = vunpack.c.l.b16 %v7304
  %v7745 = vunpack.c.l.b16 %v7305
  %v7746 = vunpack.c.l.b16 %v7307
  %v7747 = vunpack.c.l.b16 %v7308
  %v7748 = vunpack.c.l.b16 %v7310
  %v7749 = vunpack.c.l.b16 %v7311
  %v7750 = vunpack.c.l.b16 %v7313
  %v7751 = vunpack.c.l.b16 %v7314
  %v7752 = vunpack.c.l.b16 %v7316
  %v7753 = vunpack.c.l.b16 %v7317
  %v7754 = vunpack.c.l.b16 %v7319
  %v7755 = vunpack.c.l.b16 %v7320
  %v7756 = vunpack.c.l.b16 %v7322
  %v7757 = vunpack.c.l.b16 %v7323
  %v7758 = vunpack.c.l.b16 %v7325
  %v7759 = vunpack.c.l.b16 %v7326
  %v7760 = vunpack.c.l.b16 %v7328
  %v7761 = vunpack.c.l.b16 %v7329
  %v7762 = vunpack.c.l.b16 %v7331
  %v7763 = vunpack.c.l.b16 %v7332
  %v7764 = vunpack.c.l.b16 %v7334
  %v7765 = vunpack.c.l.b16 %v7335
  %v7766 = vunpack.c.l.b16 %v7337
  %v7767 = vunpack.c.l.b16 %v7338
  %v7768 = vunpack.c.l.b16 %v7340
  %v7769 = vunpack.c.l.b16 %v7341
  %v7770 = vunpack.c.l.b16 %v7343
  %v7771 = vunpack.c.l.b16 %v7344
  %v7772 = vunpack.c.l.b16 %v7346
  %v7773 = vunpack.c.l.b16 %v7347
  %v7774 = vunpack.c.l.b16 %v7349
  %v7775 = vunpack.c.l.b16 %v7350
  %v7776 = vunpack.c.l.b16 %v7352
  %v7777 = vunpack.c.l.b16 %v7353
  %v7778 = vunpack.c.l.b16 %v7355
  %v7779 = vunpack.c.l.b16 %v7356
  %v7780 = vunpack.c.l.b16 %v7358
  %v7781 = vunpack.c.l.b16 %v7359
  %v7782 = vunpack.c.l.b16 %v7361
  %v7783 = vunpack.c.l.b16 %v7362
  %v7784 = vunpack.c.l.b16 %v7364
  %v7785 = vunpack.c.l.b16 %v7365
  %v7786 = vunpack.c.l.b16 %v7367
  %v7787 = vunpack.c.l.b16 %v7368
  %v7788 = vunpack.c.l.b16 %v7370
  %v7789 = vunpack.c.l.b16 %v7371
  %v7790 = vpack.c.b16 %v7727, %v7726
  %v7791 = vpack.c.b16 %v7729, %v7728
  %v7792 = vpack.c.b16 %v7731, %v7730
  %v7793 = vpack.c.b16 %v7733, %v7732
  %v7794 = vpack.c.b16 %v7735, %v7734
  %v7795 = vpack.c.b16 %v7737, %v7736
  %v7796 = vpack.c.b16 %v7739, %v7738
  %v7797 = vpack.c.b16 %v7741, %v7740
  %v7798 = vpack.c.b16 %v7743, %v7742
  %v7799 = vpack.c.b16 %v7745, %v7744
  %v7800 = vpack.c.b16 %v7747, %v7746
  %v7801 = vpack.c.b16 %v7749, %v7748
  %v7802 = vpack.c.b16 %v7751, %v7750
  %v7803 = vpack.c.b16 %v7753, %v7752
  %v7804 = vpack.c.b16 %v7755, %v7754
  %v7805 = vpack.c.b16 %v7757, %v7756
  %v7806 = vpack.c.b16 %v7759, %v7758
  %v7807 = vpack.c.b16 %v7761, %v7760
  %v7808 = vpack.c.b16 %v7763, %v7762
  %v7809 = vpack.c.b16 %v7765, %v7764
  %v7810 = vpack.c.b16 %v7767, %v7766
  %v7811 = vpack.c.b16 %v7769, %v7768
  %v7812 = vpack.c.b16 %v7771, %v7770
  %v7813 = vpack.c.b16 %v7773, %v7772
  %v7814 = vpack.c.b16 %v7775, %v7774
  %v7815 = vpack.c.b16 %v7777, %v7776
  %v7816 = vpack.c.b16 %v7779, %v7778
  %v7817 = vpack.c.b16 %v7781, %v7780
  %v7818 = vpack.c.b16 %v7783, %v7782
  %v7819 = vpack.c.b16 %v7785, %v7784
  %v7820 = vpack.c.b16 %v7787, %v7786
  %v7821 = vpack.c.b16 %v7789, %v7788
  %v7854 = vunpack.c.l.b16 %v7279
  %v7855 = vunpack.c.l.b16 %v7282
  %v7856 = vunpack.c.l.b16 %v7285
  %v7857 = vunpack.c.l.b16 %v7288
  %v7858 = vunpack.c.l.b16 %v7291
  %v7859 = vunpack.c.l.b16 %v7294
  %v7860 = vunpack.c.l.b16 %v7297
  %v7861 = vunpack.c.l.b16 %v7300
  %v7862 = vunpack.c.l.b16 %v7303
  %v7863 = vunpack.c.l.b16 %v7306
  %v7864 = vunpack.c.l.b16 %v7309
  %v7865 = vunpack.c.l.b16 %v7312
  %v7866 = vunpack.c.l.b16 %v7315
  %v7867 = vunpack.c.l.b16 %v7318
  %v7868 = vunpack.c.l.b16 %v7321
  %v7869 = vunpack.c.l.b16 %v7324
  %v7870 = vunpack.c.l.b16 %v7327
  %v7871 = vunpack.c.l.b16 %v7330
  %v7872 = vunpack.c.l.b16 %v7333
  %v7873 = vunpack.c.l.b16 %v7336
  %v7874 = vunpack.c.l.b16 %v7339
  %v7875 = vunpack.c.l.b16 %v7342
  %v7876 = vunpack.c.l.b16 %v7345
  %v7877 = vunpack.c.l.b16 %v7348
  %v7878 = vunpack.c.l.b16 %v7351
  %v7879 = vunpack.c.l.b16 %v7354
  %v7880 = vunpack.c.l.b16 %v7357
  %v7881 = vunpack.c.l.b16 %v7360
  %v7882 = vunpack.c.l.b16 %v7363
  %v7883 = vunpack.c.l.b16 %v7366
  %v7884 = vunpack.c.l.b16 %v7369
  %v7885 = vunpack.c.l.b16 %v7372
  %v7886 = vpack.c.b16 %v7854, %v7854
  %v7887 = vpack.c.b16 %v7855, %v7855
  %v7888 = vpack.c.b16 %v7856, %v7856
  %v7889 = vpack.c.b16 %v7857, %v7857
  %v7890 = vpack.c.b16 %v7858, %v7858
  %v7891 = vpack.c.b16 %v7859, %v7859
  %v7892 = vpack.c.b16 %v7860, %v7860
  %v7893 = vpack.c.b16 %v7861, %v7861
  %v7894 = vpack.c.b16 %v7862, %v7862
  %v7895 = vpack.c.b16 %v7863, %v7863
  %v7896 = vpack.c.b16 %v7864, %v7864
  %v7897 = vpack.c.b16 %v7865, %v7865
  %v7898 = vpack.c.b16 %v7866, %v7866
  %v7899 = vpack.c.b16 %v7867, %v7867
  %v7900 = vpack.c.b16 %v7868, %v7868
  %v7901 = vpack.c.b16 %v7869, %v7869
  %v7902 = vpack.c.b16 %v7870, %v7870
  %v7903 = vpack.c.b16 %v7871, %v7871
  %v7904 = vpack.c.b16 %v7872, %v7872
  %v7905 = vpack.c.b16 %v7873, %v7873
  %v7906 = vpack.c.b16 %v7874, %v7874
  %v7907 = vpack.c.b16 %v7875, %v7875
  %v7908 = vpack.c.b16 %v7876, %v7876
  %v7909 = vpack.c.b16 %v7877, %v7877
  %v7910 = vpack.c.b16 %v7878, %v7878
  %v7911 = vpack.c.b16 %v7879, %v7879
  %v7912 = vpack.c.b16 %v7880, %v7880
  %v7913 = vpack.c.b16 %v7881, %v7881
  %v7914 = vpack.c.b16 %v7882, %v7882
  %v7915 = vpack.c.b16 %v7883, %v7883
  %v7916 = vpack.c.b16 %v7884, %v7884
  %v7917 = vpack.c.b16 %v7885, %v7885
  %v7919 = vshrl.u32 %v7790, 16
  %v7921 = vshll.u32 %v7790, 16
  %v7923 = vrot.slane %v7921, 1
  %v7924 = vor.u32 %v7919, %v7923
  %v7926 = vshll.u32 %v7886, 16
  %v7928 = vrot.slane %v7926, 1
  %v7929 = vsel %vm2473, %v7924, %v7928
  %v7931 = vshrl.u32 %v7791, 16
  %v7933 = vshll.u32 %v7791, 16
  %v7935 = vrot.slane %v7933, 1
  %v7936 = vor.u32 %v7931, %v7935
  %v7938 = vshll.u32 %v7887, 16
  %v7940 = vrot.slane %v7938, 1
  %v7941 = vsel %vm2473, %v7936, %v7940
  %v7943 = vshrl.u32 %v7792, 16
  %v7945 = vshll.u32 %v7792, 16
  %v7947 = vrot.slane %v7945, 1
  %v7948 = vor.u32 %v7943, %v7947
  %v7950 = vshll.u32 %v7888, 16
  %v7952 = vrot.slane %v7950, 1
  %v7953 = vsel %vm2473, %v7948, %v7952
  %v7955 = vshrl.u32 %v7793, 16
  %v7957 = vshll.u32 %v7793, 16
  %v7959 = vrot.slane %v7957, 1
  %v7960 = vor.u32 %v7955, %v7959
  %v7962 = vshll.u32 %v7889, 16
  %v7964 = vrot.slane %v7962, 1
  %v7965 = vsel %vm2473, %v7960, %v7964
  %v7967 = vshrl.u32 %v7794, 16
  %v7969 = vshll.u32 %v7794, 16
  %v7971 = vrot.slane %v7969, 1
  %v7972 = vor.u32 %v7967, %v7971
  %v7974 = vshll.u32 %v7890, 16
  %v7976 = vrot.slane %v7974, 1
  %v7977 = vsel %vm2473, %v7972, %v7976
  %v7979 = vshrl.u32 %v7795, 16
  %v7981 = vshll.u32 %v7795, 16
  %v7983 = vrot.slane %v7981, 1
  %v7984 = vor.u32 %v7979, %v7983
  %v7986 = vshll.u32 %v7891, 16
  %v7988 = vrot.slane %v7986, 1
  %v7989 = vsel %vm2473, %v7984, %v7988
  %v7991 = vshrl.u32 %v7796, 16
  %v7993 = vshll.u32 %v7796, 16
  %v7995 = vrot.slane %v7993, 1
  %v7996 = vor.u32 %v7991, %v7995
  %v7998 = vshll.u32 %v7892, 16
  %v8000 = vrot.slane %v7998, 1
  %v8001 = vsel %vm2473, %v7996, %v8000
  %v8003 = vshrl.u32 %v7797, 16
  %v8005 = vshll.u32 %v7797, 16
  %v8007 = vrot.slane %v8005, 1
  %v8008 = vor.u32 %v8003, %v8007
  %v8010 = vshll.u32 %v7893, 16
  %v8012 = vrot.slane %v8010, 1
  %v8013 = vsel %vm2473, %v8008, %v8012
  %v8015 = vshrl.u32 %v7798, 16
  %v8017 = vshll.u32 %v7798, 16
  %v8019 = vrot.slane %v8017, 1
  %v8020 = vor.u32 %v8015, %v8019
  %v8022 = vshll.u32 %v7894, 16
  %v8024 = vrot.slane %v8022, 1
  %v8025 = vsel %vm2473, %v8020, %v8024
  %v8027 = vshrl.u32 %v7799, 16
  %v8029 = vshll.u32 %v7799, 16
  %v8031 = vrot.slane %v8029, 1
  %v8032 = vor.u32 %v8027, %v8031
  %v8034 = vshll.u32 %v7895, 16
  %v8036 = vrot.slane %v8034, 1
  %v8037 = vsel %vm2473, %v8032, %v8036
  %v8039 = vshrl.u32 %v7800, 16
  %v8041 = vshll.u32 %v7800, 16
  %v8043 = vrot.slane %v8041, 1
  %v8044 = vor.u32 %v8039, %v8043
  %v8046 = vshll.u32 %v7896, 16
  %v8048 = vrot.slane %v8046, 1
  %v8049 = vsel %vm2473, %v8044, %v8048
  %v8051 = vshrl.u32 %v7801, 16
  %v8053 = vshll.u32 %v7801, 16
  %v8055 = vrot.slane %v8053, 1
  %v8056 = vor.u32 %v8051, %v8055
  %v8058 = vshll.u32 %v7897, 16
  %v8060 = vrot.slane %v8058, 1
  %v8061 = vsel %vm2473, %v8056, %v8060
  %v8063 = vshrl.u32 %v7802, 16
  %v8065 = vshll.u32 %v7802, 16
  %v8067 = vrot.slane %v8065, 1
  %v8068 = vor.u32 %v8063, %v8067
  %v8070 = vshll.u32 %v7898, 16
  %v8072 = vrot.slane %v8070, 1
  %v8073 = vsel %vm2473, %v8068, %v8072
  %v8075 = vshrl.u32 %v7803, 16
  %v8077 = vshll.u32 %v7803, 16
  %v8079 = vrot.slane %v8077, 1
  %v8080 = vor.u32 %v8075, %v8079
  %v8082 = vshll.u32 %v7899, 16
  %v8084 = vrot.slane %v8082, 1
  %v8085 = vsel %vm2473, %v8080, %v8084
  %v8087 = vshrl.u32 %v7804, 16
  %v8089 = vshll.u32 %v7804, 16
  %v8091 = vrot.slane %v8089, 1
  %v8092 = vor.u32 %v8087, %v8091
  %v8094 = vshll.u32 %v7900, 16
  %v8096 = vrot.slane %v8094, 1
  %v8097 = vsel %vm2473, %v8092, %v8096
  %v8099 = vshrl.u32 %v7805, 16
  %v8101 = vshll.u32 %v7805, 16
  %v8103 = vrot.slane %v8101, 1
  %v8104 = vor.u32 %v8099, %v8103
  %v8106 = vshll.u32 %v7901, 16
  %v8108 = vrot.slane %v8106, 1
  %v8109 = vsel %vm2473, %v8104, %v8108
  %v8111 = vshrl.u32 %v7806, 16
  %v8113 = vshll.u32 %v7806, 16
  %v8115 = vrot.slane %v8113, 1
  %v8116 = vor.u32 %v8111, %v8115
  %v8118 = vshll.u32 %v7902, 16
  %v8120 = vrot.slane %v8118, 1
  %v8121 = vsel %vm2473, %v8116, %v8120
  %v8123 = vshrl.u32 %v7807, 16
  %v8125 = vshll.u32 %v7807, 16
  %v8127 = vrot.slane %v8125, 1
  %v8128 = vor.u32 %v8123, %v8127
  %v8130 = vshll.u32 %v7903, 16
  %v8132 = vrot.slane %v8130, 1
  %v8133 = vsel %vm2473, %v8128, %v8132
  %v8135 = vshrl.u32 %v7808, 16
  %v8137 = vshll.u32 %v7808, 16
  %v8139 = vrot.slane %v8137, 1
  %v8140 = vor.u32 %v8135, %v8139
  %v8142 = vshll.u32 %v7904, 16
  %v8144 = vrot.slane %v8142, 1
  %v8145 = vsel %vm2473, %v8140, %v8144
  %v8147 = vshrl.u32 %v7809, 16
  %v8149 = vshll.u32 %v7809, 16
  %v8151 = vrot.slane %v8149, 1
  %v8152 = vor.u32 %v8147, %v8151
  %v8154 = vshll.u32 %v7905, 16
  %v8156 = vrot.slane %v8154, 1
  %v8157 = vsel %vm2473, %v8152, %v8156
  %v8159 = vshrl.u32 %v7810, 16
  %v8161 = vshll.u32 %v7810, 16
  %v8163 = vrot.slane %v8161, 1
  %v8164 = vor.u32 %v8159, %v8163
  %v8166 = vshll.u32 %v7906, 16
  %v8168 = vrot.slane %v8166, 1
  %v8169 = vsel %vm2473, %v8164, %v8168
  %v8171 = vshrl.u32 %v7811, 16
  %v8173 = vshll.u32 %v7811, 16
  %v8175 = vrot.slane %v8173, 1
  %v8176 = vor.u32 %v8171, %v8175
  %v8178 = vshll.u32 %v7907, 16
  %v8180 = vrot.slane %v8178, 1
  %v8181 = vsel %vm2473, %v8176, %v8180
  %v8183 = vshrl.u32 %v7812, 16
  %v8185 = vshll.u32 %v7812, 16
  %v8187 = vrot.slane %v8185, 1
  %v8188 = vor.u32 %v8183, %v8187
  %v8190 = vshll.u32 %v7908, 16
  %v8192 = vrot.slane %v8190, 1
  %v8193 = vsel %vm2473, %v8188, %v8192
  %v8195 = vshrl.u32 %v7813, 16
  %v8197 = vshll.u32 %v7813, 16
  %v8199 = vrot.slane %v8197, 1
  %v8200 = vor.u32 %v8195, %v8199
  %v8202 = vshll.u32 %v7909, 16
  %v8204 = vrot.slane %v8202, 1
  %v8205 = vsel %vm2473, %v8200, %v8204
  %v8207 = vshrl.u32 %v7814, 16
  %v8209 = vshll.u32 %v7814, 16
  %v8211 = vrot.slane %v8209, 1
  %v8212 = vor.u32 %v8207, %v8211
  %v8214 = vshll.u32 %v7910, 16
  %v8216 = vrot.slane %v8214, 1
  %v8217 = vsel %vm2473, %v8212, %v8216
  %v8219 = vshrl.u32 %v7815, 16
  %v8221 = vshll.u32 %v7815, 16
  %v8223 = vrot.slane %v8221, 1
  %v8224 = vor.u32 %v8219, %v8223
  %v8226 = vshll.u32 %v7911, 16
  %v8228 = vrot.slane %v8226, 1
  %v8229 = vsel %vm2473, %v8224, %v8228
  %v8231 = vshrl.u32 %v7816, 16
  %v8233 = vshll.u32 %v7816, 16
  %v8235 = vrot.slane %v8233, 1
  %v8236 = vor.u32 %v8231, %v8235
  %v8238 = vshll.u32 %v7912, 16
  %v8240 = vrot.slane %v8238, 1
  %v8241 = vsel %vm2473, %v8236, %v8240
  %v8243 = vshrl.u32 %v7817, 16
  %v8245 = vshll.u32 %v7817, 16
  %v8247 = vrot.slane %v8245, 1
  %v8248 = vor.u32 %v8243, %v8247
  %v8250 = vshll.u32 %v7913, 16
  %v8252 = vrot.slane %v8250, 1
  %v8253 = vsel %vm2473, %v8248, %v8252
  %v8255 = vshrl.u32 %v7818, 16
  %v8257 = vshll.u32 %v7818, 16
  %v8259 = vrot.slane %v8257, 1
  %v8260 = vor.u32 %v8255, %v8259
  %v8262 = vshll.u32 %v7914, 16
  %v8264 = vrot.slane %v8262, 1
  %v8265 = vsel %vm2473, %v8260, %v8264
  %v8267 = vshrl.u32 %v7819, 16
  %v8269 = vshll.u32 %v7819, 16
  %v8271 = vrot.slane %v8269, 1
  %v8272 = vor.u32 %v8267, %v8271
  %v8274 = vshll.u32 %v7915, 16
  %v8276 = vrot.slane %v8274, 1
  %v8277 = vsel %vm2473, %v8272, %v8276
  %v8279 = vshrl.u32 %v7820, 16
  %v8281 = vshll.u32 %v7820, 16
  %v8283 = vrot.slane %v8281, 1
  %v8284 = vor.u32 %v8279, %v8283
  %v8286 = vshll.u32 %v7916, 16
  %v8288 = vrot.slane %v8286, 1
  %v8289 = vsel %vm2473, %v8284, %v8288
  %v8291 = vshrl.u32 %v7821, 16
  %v8293 = vshll.u32 %v7821, 16
  %v8295 = vrot.slane %v8293, 1
  %v8296 = vor.u32 %v8291, %v8295
  %v8298 = vshll.u32 %v7917, 16
  %v8300 = vrot.slane %v8298, 1
  %v8301 = vsel %vm2473, %v8296, %v8300
  %8302 = vrot.lane.b32.xlu0 %v7929, 8
  %v8303 = vpop.permute.xlu0 %8302
  %8304 = vrot.lane.b32.xlu0 %v7941, 8
  %v8305 = vpop.permute.xlu0 %8304
  %8306 = vrot.lane.b32.xlu0 %v7953, 8
  %v8307 = vpop.permute.xlu0 %8306
  %8308 = vrot.lane.b32.xlu0 %v7965, 8
  %v8309 = vpop.permute.xlu0 %8308
  %8310 = vrot.lane.b32.xlu0 %v7977, 8
  %v8311 = vpop.permute.xlu0 %8310
  %8312 = vrot.lane.b32.xlu0 %v7989, 8
  %v8313 = vpop.permute.xlu0 %8312
  %8314 = vrot.lane.b32.xlu0 %v8001, 8
  %v8315 = vpop.permute.xlu0 %8314
  %8316 = vrot.lane.b32.xlu0 %v8013, 8
  %v8317 = vpop.permute.xlu0 %8316
  %8318 = vrot.lane.b32.xlu0 %v8025, 8
  %v8319 = vpop.permute.xlu0 %8318
  %8320 = vrot.lane.b32.xlu0 %v8037, 8
  %v8321 = vpop.permute.xlu0 %8320
  %8322 = vrot.lane.b32.xlu0 %v8049, 8
  %v8323 = vpop.permute.xlu0 %8322
  %8324 = vrot.lane.b32.xlu0 %v8061, 8
  %v8325 = vpop.permute.xlu0 %8324
  %8326 = vrot.lane.b32.xlu0 %v8073, 8
  %v8327 = vpop.permute.xlu0 %8326
  %8328 = vrot.lane.b32.xlu0 %v8085, 8
  %v8329 = vpop.permute.xlu0 %8328
  %8330 = vrot.lane.b32.xlu0 %v8097, 8
  %v8331 = vpop.permute.xlu0 %8330
  %8332 = vrot.lane.b32.xlu0 %v8109, 8
  %v8333 = vpop.permute.xlu0 %8332
  %8334 = vrot.lane.b32.xlu0 %v8121, 8
  %v8335 = vpop.permute.xlu0 %8334
  %8336 = vrot.lane.b32.xlu0 %v8133, 8
  %v8337 = vpop.permute.xlu0 %8336
  %8338 = vrot.lane.b32.xlu0 %v8145, 8
  %v8339 = vpop.permute.xlu0 %8338
  %8340 = vrot.lane.b32.xlu0 %v8157, 8
  %v8341 = vpop.permute.xlu0 %8340
  %8342 = vrot.lane.b32.xlu0 %v8169, 8
  %v8343 = vpop.permute.xlu0 %8342
  %8344 = vrot.lane.b32.xlu0 %v8181, 8
  %v8345 = vpop.permute.xlu0 %8344
  %8346 = vrot.lane.b32.xlu0 %v8193, 8
  %v8347 = vpop.permute.xlu0 %8346
  %8348 = vrot.lane.b32.xlu0 %v8205, 8
  %v8349 = vpop.permute.xlu0 %8348
  %8350 = vrot.lane.b32.xlu0 %v8217, 8
  %v8351 = vpop.permute.xlu0 %8350
  %8352 = vrot.lane.b32.xlu0 %v8229, 8
  %v8353 = vpop.permute.xlu0 %8352
  %8354 = vrot.lane.b32.xlu0 %v8241, 8
  %v8355 = vpop.permute.xlu0 %8354
  %8356 = vrot.lane.b32.xlu0 %v8253, 8
  %v8357 = vpop.permute.xlu0 %8356
  %8358 = vrot.lane.b32.xlu0 %v8265, 8
  %v8359 = vpop.permute.xlu0 %8358
  %8360 = vrot.lane.b32.xlu0 %v8277, 8
  %v8361 = vpop.permute.xlu0 %8360
  %8362 = vrot.lane.b32.xlu0 %v8289, 8
  %v8363 = vpop.permute.xlu0 %8362
  %8364 = vrot.lane.b32.xlu0 %v8301, 8
  %v8365 = vpop.permute.xlu0 %8364
  %v8366 = vrot.slane %v7790, 1
  %v8367 = vrot.slane %v7886, 1
  %v8368 = vsel %vm2922, %v8366, %v8367
  %v8369 = vrot.slane %v7791, 1
  %v8370 = vrot.slane %v7887, 1
  %v8371 = vsel %vm2922, %v8369, %v8370
  %v8372 = vrot.slane %v7792, 1
  %v8373 = vrot.slane %v7888, 1
  %v8374 = vsel %vm2922, %v8372, %v8373
  %v8375 = vrot.slane %v7793, 1
  %v8376 = vrot.slane %v7889, 1
  %v8377 = vsel %vm2922, %v8375, %v8376
  %v8378 = vrot.slane %v7794, 1
  %v8379 = vrot.slane %v7890, 1
  %v8380 = vsel %vm2922, %v8378, %v8379
  %v8381 = vrot.slane %v7795, 1
  %v8382 = vrot.slane %v7891, 1
  %v8383 = vsel %vm2922, %v8381, %v8382
  %v8384 = vrot.slane %v7796, 1
  %v8385 = vrot.slane %v7892, 1
  %v8386 = vsel %vm2922, %v8384, %v8385
  %v8387 = vrot.slane %v7797, 1
  %v8388 = vrot.slane %v7893, 1
  %v8389 = vsel %vm2922, %v8387, %v8388
  %v8390 = vrot.slane %v7798, 1
  %v8391 = vrot.slane %v7894, 1
  %v8392 = vsel %vm2922, %v8390, %v8391
  %v8393 = vrot.slane %v7799, 1
  %v8394 = vrot.slane %v7895, 1
  %v8395 = vsel %vm2922, %v8393, %v8394
  %v8396 = vrot.slane %v7800, 1
  %v8397 = vrot.slane %v7896, 1
  %v8398 = vsel %vm2922, %v8396, %v8397
  %v8399 = vrot.slane %v7801, 1
  %v8400 = vrot.slane %v7897, 1
  %v8401 = vsel %vm2922, %v8399, %v8400
  %v8402 = vrot.slane %v7802, 1
  %v8403 = vrot.slane %v7898, 1
  %v8404 = vsel %vm2922, %v8402, %v8403
  %v8405 = vrot.slane %v7803, 1
  %v8406 = vrot.slane %v7899, 1
  %v8407 = vsel %vm2922, %v8405, %v8406
  %v8408 = vrot.slane %v7804, 1
  %v8409 = vrot.slane %v7900, 1
  %v8410 = vsel %vm2922, %v8408, %v8409
  %v8411 = vrot.slane %v7805, 1
  %v8412 = vrot.slane %v7901, 1
  %v8413 = vsel %vm2922, %v8411, %v8412
  %v8414 = vrot.slane %v7806, 1
  %v8415 = vrot.slane %v7902, 1
  %v8416 = vsel %vm2922, %v8414, %v8415
  %v8417 = vrot.slane %v7807, 1
  %v8418 = vrot.slane %v7903, 1
  %v8419 = vsel %vm2922, %v8417, %v8418
  %v8420 = vrot.slane %v7808, 1
  %v8421 = vrot.slane %v7904, 1
  %v8422 = vsel %vm2922, %v8420, %v8421
  %v8423 = vrot.slane %v7809, 1
  %v8424 = vrot.slane %v7905, 1
  %v8425 = vsel %vm2922, %v8423, %v8424
  %v8426 = vrot.slane %v7810, 1
  %v8427 = vrot.slane %v7906, 1
  %v8428 = vsel %vm2922, %v8426, %v8427
  %v8429 = vrot.slane %v7811, 1
  %v8430 = vrot.slane %v7907, 1
  %v8431 = vsel %vm2922, %v8429, %v8430
  %v8432 = vrot.slane %v7812, 1
  %v8433 = vrot.slane %v7908, 1
  %v8434 = vsel %vm2922, %v8432, %v8433
  %v8435 = vrot.slane %v7813, 1
  %v8436 = vrot.slane %v7909, 1
  %v8437 = vsel %vm2922, %v8435, %v8436
  %v8438 = vrot.slane %v7814, 1
  %v8439 = vrot.slane %v7910, 1
  %v8440 = vsel %vm2922, %v8438, %v8439
  %v8441 = vrot.slane %v7815, 1
  %v8442 = vrot.slane %v7911, 1
  %v8443 = vsel %vm2922, %v8441, %v8442
  %v8444 = vrot.slane %v7816, 1
  %v8445 = vrot.slane %v7912, 1
  %v8446 = vsel %vm2922, %v8444, %v8445
  %v8447 = vrot.slane %v7817, 1
  %v8448 = vrot.slane %v7913, 1
  %v8449 = vsel %vm2922, %v8447, %v8448
  %v8450 = vrot.slane %v7818, 1
  %v8451 = vrot.slane %v7914, 1
  %v8452 = vsel %vm2922, %v8450, %v8451
  %v8453 = vrot.slane %v7819, 1
  %v8454 = vrot.slane %v7915, 1
  %v8455 = vsel %vm2922, %v8453, %v8454
  %v8456 = vrot.slane %v7820, 1
  %v8457 = vrot.slane %v7916, 1
  %v8458 = vsel %vm2922, %v8456, %v8457
  %v8459 = vrot.slane %v7821, 1
  %v8460 = vrot.slane %v7917, 1
  %v8461 = vsel %vm2922, %v8459, %v8460
  %8462 = vrot.lane.b32.xlu0 %v8368, 16
  %v8463 = vpop.permute.xlu0 %8462
  %8464 = vrot.lane.b32.xlu0 %v8371, 16
  %v8465 = vpop.permute.xlu0 %8464
  %8466 = vrot.lane.b32.xlu0 %v8374, 16
  %v8467 = vpop.permute.xlu0 %8466
  %8468 = vrot.lane.b32.xlu0 %v8377, 16
  %v8469 = vpop.permute.xlu0 %8468
  %8470 = vrot.lane.b32.xlu0 %v8380, 16
  %v8471 = vpop.permute.xlu0 %8470
  %8472 = vrot.lane.b32.xlu0 %v8383, 16
  %v8473 = vpop.permute.xlu0 %8472
  %8474 = vrot.lane.b32.xlu0 %v8386, 16
  %v8475 = vpop.permute.xlu0 %8474
  %8476 = vrot.lane.b32.xlu0 %v8389, 16
  %v8477 = vpop.permute.xlu0 %8476
  %8478 = vrot.lane.b32.xlu0 %v8392, 16
  %v8479 = vpop.permute.xlu0 %8478
  %8480 = vrot.lane.b32.xlu0 %v8395, 16
  %v8481 = vpop.permute.xlu0 %8480
  %8482 = vrot.lane.b32.xlu0 %v8398, 16
  %v8483 = vpop.permute.xlu0 %8482
  %8484 = vrot.lane.b32.xlu0 %v8401, 16
  %v8485 = vpop.permute.xlu0 %8484
  %8486 = vrot.lane.b32.xlu0 %v8404, 16
  %v8487 = vpop.permute.xlu0 %8486
  %8488 = vrot.lane.b32.xlu0 %v8407, 16
  %v8489 = vpop.permute.xlu0 %8488
  %8490 = vrot.lane.b32.xlu0 %v8410, 16
  %v8491 = vpop.permute.xlu0 %8490
  %8492 = vrot.lane.b32.xlu0 %v8413, 16
  %v8493 = vpop.permute.xlu0 %8492
  %8494 = vrot.lane.b32.xlu0 %v8416, 16
  %v8495 = vpop.permute.xlu0 %8494
  %8496 = vrot.lane.b32.xlu0 %v8419, 16
  %v8497 = vpop.permute.xlu0 %8496
  %8498 = vrot.lane.b32.xlu0 %v8422, 16
  %v8499 = vpop.permute.xlu0 %8498
  %8500 = vrot.lane.b32.xlu0 %v8425, 16
  %v8501 = vpop.permute.xlu0 %8500
  %8502 = vrot.lane.b32.xlu0 %v8428, 16
  %v8503 = vpop.permute.xlu0 %8502
  %8504 = vrot.lane.b32.xlu0 %v8431, 16
  %v8505 = vpop.permute.xlu0 %8504
  %8506 = vrot.lane.b32.xlu0 %v8434, 16
  %v8507 = vpop.permute.xlu0 %8506
  %8508 = vrot.lane.b32.xlu0 %v8437, 16
  %v8509 = vpop.permute.xlu0 %8508
  %8510 = vrot.lane.b32.xlu0 %v8440, 16
  %v8511 = vpop.permute.xlu0 %8510
  %8512 = vrot.lane.b32.xlu0 %v8443, 16
  %v8513 = vpop.permute.xlu0 %8512
  %8514 = vrot.lane.b32.xlu0 %v8446, 16
  %v8515 = vpop.permute.xlu0 %8514
  %8516 = vrot.lane.b32.xlu0 %v8449, 16
  %v8517 = vpop.permute.xlu0 %8516
  %8518 = vrot.lane.b32.xlu0 %v8452, 16
  %v8519 = vpop.permute.xlu0 %8518
  %8520 = vrot.lane.b32.xlu0 %v8455, 16
  %v8521 = vpop.permute.xlu0 %8520
  %8522 = vrot.lane.b32.xlu0 %v8458, 16
  %v8523 = vpop.permute.xlu0 %8522
  %8524 = vrot.lane.b32.xlu0 %v8461, 16
  %v8525 = vpop.permute.xlu0 %8524
  %v8590 = vunpack.c.l.b16 %v7373
  %v8591 = vunpack.c.l.b16 %v7374
  %v8592 = vunpack.c.l.b16 %v7376
  %v8593 = vunpack.c.l.b16 %v7377
  %v8594 = vunpack.c.l.b16 %v7379
  %v8595 = vunpack.c.l.b16 %v7380
  %v8596 = vunpack.c.l.b16 %v7382
  %v8597 = vunpack.c.l.b16 %v7383
  %v8598 = vunpack.c.l.b16 %v7385
  %v8599 = vunpack.c.l.b16 %v7386
  %v8600 = vunpack.c.l.b16 %v7388
  %v8601 = vunpack.c.l.b16 %v7389
  %v8602 = vunpack.c.l.b16 %v7391
  %v8603 = vunpack.c.l.b16 %v7392
  %v8604 = vunpack.c.l.b16 %v7394
  %v8605 = vunpack.c.l.b16 %v7395
  %v8606 = vunpack.c.l.b16 %v7397
  %v8607 = vunpack.c.l.b16 %v7398
  %v8608 = vunpack.c.l.b16 %v7400
  %v8609 = vunpack.c.l.b16 %v7401
  %v8610 = vunpack.c.l.b16 %v7403
  %v8611 = vunpack.c.l.b16 %v7404
  %v8612 = vunpack.c.l.b16 %v7406
  %v8613 = vunpack.c.l.b16 %v7407
  %v8614 = vunpack.c.l.b16 %v7409
  %v8615 = vunpack.c.l.b16 %v7410
  %v8616 = vunpack.c.l.b16 %v7412
  %v8617 = vunpack.c.l.b16 %v7413
  %v8618 = vunpack.c.l.b16 %v7415
  %v8619 = vunpack.c.l.b16 %v7416
  %v8620 = vunpack.c.l.b16 %v7418
  %v8621 = vunpack.c.l.b16 %v7419
  %v8622 = vunpack.c.l.b16 %v7421
  %v8623 = vunpack.c.l.b16 %v7422
  %v8624 = vunpack.c.l.b16 %v7424
  %v8625 = vunpack.c.l.b16 %v7425
  %v8626 = vunpack.c.l.b16 %v7427
  %v8627 = vunpack.c.l.b16 %v7428
  %v8628 = vunpack.c.l.b16 %v7430
  %v8629 = vunpack.c.l.b16 %v7431
  %v8630 = vunpack.c.l.b16 %v7433
  %v8631 = vunpack.c.l.b16 %v7434
  %v8632 = vunpack.c.l.b16 %v7436
  %v8633 = vunpack.c.l.b16 %v7437
  %v8634 = vunpack.c.l.b16 %v7439
  %v8635 = vunpack.c.l.b16 %v7440
  %v8636 = vunpack.c.l.b16 %v7442
  %v8637 = vunpack.c.l.b16 %v7443
  %v8638 = vunpack.c.l.b16 %v7445
  %v8639 = vunpack.c.l.b16 %v7446
  %v8640 = vunpack.c.l.b16 %v7448
  %v8641 = vunpack.c.l.b16 %v7449
  %v8642 = vunpack.c.l.b16 %v7451
  %v8643 = vunpack.c.l.b16 %v7452
  %v8644 = vunpack.c.l.b16 %v7454
  %v8645 = vunpack.c.l.b16 %v7455
  %v8646 = vunpack.c.l.b16 %v7457
  %v8647 = vunpack.c.l.b16 %v7458
  %v8648 = vunpack.c.l.b16 %v7460
  %v8649 = vunpack.c.l.b16 %v7461
  %v8650 = vunpack.c.l.b16 %v7463
  %v8651 = vunpack.c.l.b16 %v7464
  %v8652 = vunpack.c.l.b16 %v7466
  %v8653 = vunpack.c.l.b16 %v7467
  %v8654 = vpack.c.b16 %v8591, %v8590
  %v8655 = vpack.c.b16 %v8593, %v8592
  %v8656 = vpack.c.b16 %v8595, %v8594
  %v8657 = vpack.c.b16 %v8597, %v8596
  %v8658 = vpack.c.b16 %v8599, %v8598
  %v8659 = vpack.c.b16 %v8601, %v8600
  %v8660 = vpack.c.b16 %v8603, %v8602
  %v8661 = vpack.c.b16 %v8605, %v8604
  %v8662 = vpack.c.b16 %v8607, %v8606
  %v8663 = vpack.c.b16 %v8609, %v8608
  %v8664 = vpack.c.b16 %v8611, %v8610
  %v8665 = vpack.c.b16 %v8613, %v8612
  %v8666 = vpack.c.b16 %v8615, %v8614
  %v8667 = vpack.c.b16 %v8617, %v8616
  %v8668 = vpack.c.b16 %v8619, %v8618
  %v8669 = vpack.c.b16 %v8621, %v8620
  %v8670 = vpack.c.b16 %v8623, %v8622
  %v8671 = vpack.c.b16 %v8625, %v8624
  %v8672 = vpack.c.b16 %v8627, %v8626
  %v8673 = vpack.c.b16 %v8629, %v8628
  %v8674 = vpack.c.b16 %v8631, %v8630
  %v8675 = vpack.c.b16 %v8633, %v8632
  %v8676 = vpack.c.b16 %v8635, %v8634
  %v8677 = vpack.c.b16 %v8637, %v8636
  %v8678 = vpack.c.b16 %v8639, %v8638
  %v8679 = vpack.c.b16 %v8641, %v8640
  %v8680 = vpack.c.b16 %v8643, %v8642
  %v8681 = vpack.c.b16 %v8645, %v8644
  %v8682 = vpack.c.b16 %v8647, %v8646
  %v8683 = vpack.c.b16 %v8649, %v8648
  %v8684 = vpack.c.b16 %v8651, %v8650
  %v8685 = vpack.c.b16 %v8653, %v8652
  %8686 = vrot.lane.b32.xlu0 %v8654, 24
  %v8687 = vpop.permute.xlu0 %8686
  %8688 = vrot.lane.b32.xlu0 %v8655, 24
  %v8689 = vpop.permute.xlu0 %8688
  %8690 = vrot.lane.b32.xlu0 %v8656, 24
  %v8691 = vpop.permute.xlu0 %8690
  %8692 = vrot.lane.b32.xlu0 %v8657, 24
  %v8693 = vpop.permute.xlu0 %8692
  %8694 = vrot.lane.b32.xlu0 %v8658, 24
  %v8695 = vpop.permute.xlu0 %8694
  %8696 = vrot.lane.b32.xlu0 %v8659, 24
  %v8697 = vpop.permute.xlu0 %8696
  %8698 = vrot.lane.b32.xlu0 %v8660, 24
  %v8699 = vpop.permute.xlu0 %8698
  %8700 = vrot.lane.b32.xlu0 %v8661, 24
  %v8701 = vpop.permute.xlu0 %8700
  %8702 = vrot.lane.b32.xlu0 %v8662, 24
  %v8703 = vpop.permute.xlu0 %8702
  %8704 = vrot.lane.b32.xlu0 %v8663, 24
  %v8705 = vpop.permute.xlu0 %8704
  %8706 = vrot.lane.b32.xlu0 %v8664, 24
  %v8707 = vpop.permute.xlu0 %8706
  %8708 = vrot.lane.b32.xlu0 %v8665, 24
  %v8709 = vpop.permute.xlu0 %8708
  %8710 = vrot.lane.b32.xlu0 %v8666, 24
  %v8711 = vpop.permute.xlu0 %8710
  %8712 = vrot.lane.b32.xlu0 %v8667, 24
  %v8713 = vpop.permute.xlu0 %8712
  %8714 = vrot.lane.b32.xlu0 %v8668, 24
  %v8715 = vpop.permute.xlu0 %8714
  %8716 = vrot.lane.b32.xlu0 %v8669, 24
  %v8717 = vpop.permute.xlu0 %8716
  %8718 = vrot.lane.b32.xlu0 %v8670, 24
  %v8719 = vpop.permute.xlu0 %8718
  %8720 = vrot.lane.b32.xlu0 %v8671, 24
  %v8721 = vpop.permute.xlu0 %8720
  %8722 = vrot.lane.b32.xlu0 %v8672, 24
  %v8723 = vpop.permute.xlu0 %8722
  %8724 = vrot.lane.b32.xlu0 %v8673, 24
  %v8725 = vpop.permute.xlu0 %8724
  %8726 = vrot.lane.b32.xlu0 %v8674, 24
  %v8727 = vpop.permute.xlu0 %8726
  %8728 = vrot.lane.b32.xlu0 %v8675, 24
  %v8729 = vpop.permute.xlu0 %8728
  %8730 = vrot.lane.b32.xlu0 %v8676, 24
  %v8731 = vpop.permute.xlu0 %8730
  %8732 = vrot.lane.b32.xlu0 %v8677, 24
  %v8733 = vpop.permute.xlu0 %8732
  %8734 = vrot.lane.b32.xlu0 %v8678, 24
  %v8735 = vpop.permute.xlu0 %8734
  %8736 = vrot.lane.b32.xlu0 %v8679, 24
  %v8737 = vpop.permute.xlu0 %8736
  %8738 = vrot.lane.b32.xlu0 %v8680, 24
  %v8739 = vpop.permute.xlu0 %8738
  %8740 = vrot.lane.b32.xlu0 %v8681, 24
  %v8741 = vpop.permute.xlu0 %8740
  %8742 = vrot.lane.b32.xlu0 %v8682, 24
  %v8743 = vpop.permute.xlu0 %8742
  %8744 = vrot.lane.b32.xlu0 %v8683, 24
  %v8745 = vpop.permute.xlu0 %8744
  %8746 = vrot.lane.b32.xlu0 %v8684, 24
  %v8747 = vpop.permute.xlu0 %8746
  %8748 = vrot.lane.b32.xlu0 %v8685, 24
  %v8749 = vpop.permute.xlu0 %8748
  %v8782 = vunpack.c.l.b16 %v7375
  %v8783 = vunpack.c.l.b16 %v7378
  %v8784 = vunpack.c.l.b16 %v7381
  %v8785 = vunpack.c.l.b16 %v7384
  %v8786 = vunpack.c.l.b16 %v7387
  %v8787 = vunpack.c.l.b16 %v7390
  %v8788 = vunpack.c.l.b16 %v7393
  %v8789 = vunpack.c.l.b16 %v7396
  %v8790 = vunpack.c.l.b16 %v7399
  %v8791 = vunpack.c.l.b16 %v7402
  %v8792 = vunpack.c.l.b16 %v7405
  %v8793 = vunpack.c.l.b16 %v7408
  %v8794 = vunpack.c.l.b16 %v7411
  %v8795 = vunpack.c.l.b16 %v7414
  %v8796 = vunpack.c.l.b16 %v7417
  %v8797 = vunpack.c.l.b16 %v7420
  %v8798 = vunpack.c.l.b16 %v7423
  %v8799 = vunpack.c.l.b16 %v7426
  %v8800 = vunpack.c.l.b16 %v7429
  %v8801 = vunpack.c.l.b16 %v7432
  %v8802 = vunpack.c.l.b16 %v7435
  %v8803 = vunpack.c.l.b16 %v7438
  %v8804 = vunpack.c.l.b16 %v7441
  %v8805 = vunpack.c.l.b16 %v7444
  %v8806 = vunpack.c.l.b16 %v7447
  %v8807 = vunpack.c.l.b16 %v7450
  %v8808 = vunpack.c.l.b16 %v7453
  %v8809 = vunpack.c.l.b16 %v7456
  %v8810 = vunpack.c.l.b16 %v7459
  %v8811 = vunpack.c.l.b16 %v7462
  %v8812 = vunpack.c.l.b16 %v7465
  %v8813 = vunpack.c.l.b16 %v7468
  %v8814 = vpack.c.b16 %v8782, %v8782
  %v8815 = vpack.c.b16 %v8783, %v8783
  %v8816 = vpack.c.b16 %v8784, %v8784
  %v8817 = vpack.c.b16 %v8785, %v8785
  %v8818 = vpack.c.b16 %v8786, %v8786
  %v8819 = vpack.c.b16 %v8787, %v8787
  %v8820 = vpack.c.b16 %v8788, %v8788
  %v8821 = vpack.c.b16 %v8789, %v8789
  %v8822 = vpack.c.b16 %v8790, %v8790
  %v8823 = vpack.c.b16 %v8791, %v8791
  %v8824 = vpack.c.b16 %v8792, %v8792
  %v8825 = vpack.c.b16 %v8793, %v8793
  %v8826 = vpack.c.b16 %v8794, %v8794
  %v8827 = vpack.c.b16 %v8795, %v8795
  %v8828 = vpack.c.b16 %v8796, %v8796
  %v8829 = vpack.c.b16 %v8797, %v8797
  %v8830 = vpack.c.b16 %v8798, %v8798
  %v8831 = vpack.c.b16 %v8799, %v8799
  %v8832 = vpack.c.b16 %v8800, %v8800
  %v8833 = vpack.c.b16 %v8801, %v8801
  %v8834 = vpack.c.b16 %v8802, %v8802
  %v8835 = vpack.c.b16 %v8803, %v8803
  %v8836 = vpack.c.b16 %v8804, %v8804
  %v8837 = vpack.c.b16 %v8805, %v8805
  %v8838 = vpack.c.b16 %v8806, %v8806
  %v8839 = vpack.c.b16 %v8807, %v8807
  %v8840 = vpack.c.b16 %v8808, %v8808
  %v8841 = vpack.c.b16 %v8809, %v8809
  %v8842 = vpack.c.b16 %v8810, %v8810
  %v8843 = vpack.c.b16 %v8811, %v8811
  %v8844 = vpack.c.b16 %v8812, %v8812
  %v8845 = vpack.c.b16 %v8813, %v8813
  %v8847 = vshrl.u32 %v8654, 16
  %v8849 = vshll.u32 %v8654, 16
  %v8851 = vrot.slane %v8849, 1
  %v8852 = vor.u32 %v8847, %v8851
  %v8854 = vshll.u32 %v8814, 16
  %v8856 = vrot.slane %v8854, 1
  %v8857 = vsel %vm2473, %v8852, %v8856
  %v8859 = vshrl.u32 %v8655, 16
  %v8861 = vshll.u32 %v8655, 16
  %v8863 = vrot.slane %v8861, 1
  %v8864 = vor.u32 %v8859, %v8863
  %v8866 = vshll.u32 %v8815, 16
  %v8868 = vrot.slane %v8866, 1
  %v8869 = vsel %vm2473, %v8864, %v8868
  %v8871 = vshrl.u32 %v8656, 16
  %v8873 = vshll.u32 %v8656, 16
  %v8875 = vrot.slane %v8873, 1
  %v8876 = vor.u32 %v8871, %v8875
  %v8878 = vshll.u32 %v8816, 16
  %v8880 = vrot.slane %v8878, 1
  %v8881 = vsel %vm2473, %v8876, %v8880
  %v8883 = vshrl.u32 %v8657, 16
  %v8885 = vshll.u32 %v8657, 16
  %v8887 = vrot.slane %v8885, 1
  %v8888 = vor.u32 %v8883, %v8887
  %v8890 = vshll.u32 %v8817, 16
  %v8892 = vrot.slane %v8890, 1
  %v8893 = vsel %vm2473, %v8888, %v8892
  %v8895 = vshrl.u32 %v8658, 16
  %v8897 = vshll.u32 %v8658, 16
  %v8899 = vrot.slane %v8897, 1
  %v8900 = vor.u32 %v8895, %v8899
  %v8902 = vshll.u32 %v8818, 16
  %v8904 = vrot.slane %v8902, 1
  %v8905 = vsel %vm2473, %v8900, %v8904
  %v8907 = vshrl.u32 %v8659, 16
  %v8909 = vshll.u32 %v8659, 16
  %v8911 = vrot.slane %v8909, 1
  %v8912 = vor.u32 %v8907, %v8911
  %v8914 = vshll.u32 %v8819, 16
  %v8916 = vrot.slane %v8914, 1
  %v8917 = vsel %vm2473, %v8912, %v8916
  %v8919 = vshrl.u32 %v8660, 16
  %v8921 = vshll.u32 %v8660, 16
  %v8923 = vrot.slane %v8921, 1
  %v8924 = vor.u32 %v8919, %v8923
  %v8926 = vshll.u32 %v8820, 16
  %v8928 = vrot.slane %v8926, 1
  %v8929 = vsel %vm2473, %v8924, %v8928
  %v8931 = vshrl.u32 %v8661, 16
  %v8933 = vshll.u32 %v8661, 16
  %v8935 = vrot.slane %v8933, 1
  %v8936 = vor.u32 %v8931, %v8935
  %v8938 = vshll.u32 %v8821, 16
  %v8940 = vrot.slane %v8938, 1
  %v8941 = vsel %vm2473, %v8936, %v8940
  %v8943 = vshrl.u32 %v8662, 16
  %v8945 = vshll.u32 %v8662, 16
  %v8947 = vrot.slane %v8945, 1
  %v8948 = vor.u32 %v8943, %v8947
  %v8950 = vshll.u32 %v8822, 16
  %v8952 = vrot.slane %v8950, 1
  %v8953 = vsel %vm2473, %v8948, %v8952
  %v8955 = vshrl.u32 %v8663, 16
  %v8957 = vshll.u32 %v8663, 16
  %v8959 = vrot.slane %v8957, 1
  %v8960 = vor.u32 %v8955, %v8959
  %v8962 = vshll.u32 %v8823, 16
  %v8964 = vrot.slane %v8962, 1
  %v8965 = vsel %vm2473, %v8960, %v8964
  %v8967 = vshrl.u32 %v8664, 16
  %v8969 = vshll.u32 %v8664, 16
  %v8971 = vrot.slane %v8969, 1
  %v8972 = vor.u32 %v8967, %v8971
  %v8974 = vshll.u32 %v8824, 16
  %v8976 = vrot.slane %v8974, 1
  %v8977 = vsel %vm2473, %v8972, %v8976
  %v8979 = vshrl.u32 %v8665, 16
  %v8981 = vshll.u32 %v8665, 16
  %v8983 = vrot.slane %v8981, 1
  %v8984 = vor.u32 %v8979, %v8983
  %v8986 = vshll.u32 %v8825, 16
  %v8988 = vrot.slane %v8986, 1
  %v8989 = vsel %vm2473, %v8984, %v8988
  %v8991 = vshrl.u32 %v8666, 16
  %v8993 = vshll.u32 %v8666, 16
  %v8995 = vrot.slane %v8993, 1
  %v8996 = vor.u32 %v8991, %v8995
  %v8998 = vshll.u32 %v8826, 16
  %v9000 = vrot.slane %v8998, 1
  %v9001 = vsel %vm2473, %v8996, %v9000
  %v9003 = vshrl.u32 %v8667, 16
  %v9005 = vshll.u32 %v8667, 16
  %v9007 = vrot.slane %v9005, 1
  %v9008 = vor.u32 %v9003, %v9007
  %v9010 = vshll.u32 %v8827, 16
  %v9012 = vrot.slane %v9010, 1
  %v9013 = vsel %vm2473, %v9008, %v9012
  %v9015 = vshrl.u32 %v8668, 16
  %v9017 = vshll.u32 %v8668, 16
  %v9019 = vrot.slane %v9017, 1
  %v9020 = vor.u32 %v9015, %v9019
  %v9022 = vshll.u32 %v8828, 16
  %v9024 = vrot.slane %v9022, 1
  %v9025 = vsel %vm2473, %v9020, %v9024
  %v9027 = vshrl.u32 %v8669, 16
  %v9029 = vshll.u32 %v8669, 16
  %v9031 = vrot.slane %v9029, 1
  %v9032 = vor.u32 %v9027, %v9031
  %v9034 = vshll.u32 %v8829, 16
  %v9036 = vrot.slane %v9034, 1
  %v9037 = vsel %vm2473, %v9032, %v9036
  %v9039 = vshrl.u32 %v8670, 16
  %v9041 = vshll.u32 %v8670, 16
  %v9043 = vrot.slane %v9041, 1
  %v9044 = vor.u32 %v9039, %v9043
  %v9046 = vshll.u32 %v8830, 16
  %v9048 = vrot.slane %v9046, 1
  %v9049 = vsel %vm2473, %v9044, %v9048
  %v9051 = vshrl.u32 %v8671, 16
  %v9053 = vshll.u32 %v8671, 16
  %v9055 = vrot.slane %v9053, 1
  %v9056 = vor.u32 %v9051, %v9055
  %v9058 = vshll.u32 %v8831, 16
  %v9060 = vrot.slane %v9058, 1
  %v9061 = vsel %vm2473, %v9056, %v9060
  %v9063 = vshrl.u32 %v8672, 16
  %v9065 = vshll.u32 %v8672, 16
  %v9067 = vrot.slane %v9065, 1
  %v9068 = vor.u32 %v9063, %v9067
  %v9070 = vshll.u32 %v8832, 16
  %v9072 = vrot.slane %v9070, 1
  %v9073 = vsel %vm2473, %v9068, %v9072
  %v9075 = vshrl.u32 %v8673, 16
  %v9077 = vshll.u32 %v8673, 16
  %v9079 = vrot.slane %v9077, 1
  %v9080 = vor.u32 %v9075, %v9079
  %v9082 = vshll.u32 %v8833, 16
  %v9084 = vrot.slane %v9082, 1
  %v9085 = vsel %vm2473, %v9080, %v9084
  %v9087 = vshrl.u32 %v8674, 16
  %v9089 = vshll.u32 %v8674, 16
  %v9091 = vrot.slane %v9089, 1
  %v9092 = vor.u32 %v9087, %v9091
  %v9094 = vshll.u32 %v8834, 16
  %v9096 = vrot.slane %v9094, 1
  %v9097 = vsel %vm2473, %v9092, %v9096
  %v9099 = vshrl.u32 %v8675, 16
  %v9101 = vshll.u32 %v8675, 16
  %v9103 = vrot.slane %v9101, 1
  %v9104 = vor.u32 %v9099, %v9103
  %v9106 = vshll.u32 %v8835, 16
  %v9108 = vrot.slane %v9106, 1
  %v9109 = vsel %vm2473, %v9104, %v9108
  %v9111 = vshrl.u32 %v8676, 16
  %v9113 = vshll.u32 %v8676, 16
  %v9115 = vrot.slane %v9113, 1
  %v9116 = vor.u32 %v9111, %v9115
  %v9118 = vshll.u32 %v8836, 16
  %v9120 = vrot.slane %v9118, 1
  %v9121 = vsel %vm2473, %v9116, %v9120
  %v9123 = vshrl.u32 %v8677, 16
  %v9125 = vshll.u32 %v8677, 16
  %v9127 = vrot.slane %v9125, 1
  %v9128 = vor.u32 %v9123, %v9127
  %v9130 = vshll.u32 %v8837, 16
  %v9132 = vrot.slane %v9130, 1
  %v9133 = vsel %vm2473, %v9128, %v9132
  %v9135 = vshrl.u32 %v8678, 16
  %v9137 = vshll.u32 %v8678, 16
  %v9139 = vrot.slane %v9137, 1
  %v9140 = vor.u32 %v9135, %v9139
  %v9142 = vshll.u32 %v8838, 16
  %v9144 = vrot.slane %v9142, 1
  %v9145 = vsel %vm2473, %v9140, %v9144
  %v9147 = vshrl.u32 %v8679, 16
  %v9149 = vshll.u32 %v8679, 16
  %v9151 = vrot.slane %v9149, 1
  %v9152 = vor.u32 %v9147, %v9151
  %v9154 = vshll.u32 %v8839, 16
  %v9156 = vrot.slane %v9154, 1
  %v9157 = vsel %vm2473, %v9152, %v9156
  %v9159 = vshrl.u32 %v8680, 16
  %v9161 = vshll.u32 %v8680, 16
  %v9163 = vrot.slane %v9161, 1
  %v9164 = vor.u32 %v9159, %v9163
  %v9166 = vshll.u32 %v8840, 16
  %v9168 = vrot.slane %v9166, 1
  %v9169 = vsel %vm2473, %v9164, %v9168
  %v9171 = vshrl.u32 %v8681, 16
  %v9173 = vshll.u32 %v8681, 16
  %v9175 = vrot.slane %v9173, 1
  %v9176 = vor.u32 %v9171, %v9175
  %v9178 = vshll.u32 %v8841, 16
  %v9180 = vrot.slane %v9178, 1
  %v9181 = vsel %vm2473, %v9176, %v9180
  %v9183 = vshrl.u32 %v8682, 16
  %v9185 = vshll.u32 %v8682, 16
  %v9187 = vrot.slane %v9185, 1
  %v9188 = vor.u32 %v9183, %v9187
  %v9190 = vshll.u32 %v8842, 16
  %v9192 = vrot.slane %v9190, 1
  %v9193 = vsel %vm2473, %v9188, %v9192
  %v9195 = vshrl.u32 %v8683, 16
  %v9197 = vshll.u32 %v8683, 16
  %v9199 = vrot.slane %v9197, 1
  %v9200 = vor.u32 %v9195, %v9199
  %v9202 = vshll.u32 %v8843, 16
  %v9204 = vrot.slane %v9202, 1
  %v9205 = vsel %vm2473, %v9200, %v9204
  %v9207 = vshrl.u32 %v8684, 16
  %v9209 = vshll.u32 %v8684, 16
  %v9211 = vrot.slane %v9209, 1
  %v9212 = vor.u32 %v9207, %v9211
  %v9214 = vshll.u32 %v8844, 16
  %v9216 = vrot.slane %v9214, 1
  %v9217 = vsel %vm2473, %v9212, %v9216
  %v9219 = vshrl.u32 %v8685, 16
  %v9221 = vshll.u32 %v8685, 16
  %v9223 = vrot.slane %v9221, 1
  %v9224 = vor.u32 %v9219, %v9223
  %v9226 = vshll.u32 %v8845, 16
  %v9228 = vrot.slane %v9226, 1
  %v9229 = vsel %vm2473, %v9224, %v9228
  %9230 = vrot.lane.b32.xlu0 %v8857, 32
  %v9231 = vpop.permute.xlu0 %9230
  %9232 = vrot.lane.b32.xlu0 %v8869, 32
  %v9233 = vpop.permute.xlu0 %9232
  %9234 = vrot.lane.b32.xlu0 %v8881, 32
  %v9235 = vpop.permute.xlu0 %9234
  %9236 = vrot.lane.b32.xlu0 %v8893, 32
  %v9237 = vpop.permute.xlu0 %9236
  %9238 = vrot.lane.b32.xlu0 %v8905, 32
  %v9239 = vpop.permute.xlu0 %9238
  %9240 = vrot.lane.b32.xlu0 %v8917, 32
  %v9241 = vpop.permute.xlu0 %9240
  %9242 = vrot.lane.b32.xlu0 %v8929, 32
  %v9243 = vpop.permute.xlu0 %9242
  %9244 = vrot.lane.b32.xlu0 %v8941, 32
  %v9245 = vpop.permute.xlu0 %9244
  %9246 = vrot.lane.b32.xlu0 %v8953, 32
  %v9247 = vpop.permute.xlu0 %9246
  %9248 = vrot.lane.b32.xlu0 %v8965, 32
  %v9249 = vpop.permute.xlu0 %9248
  %9250 = vrot.lane.b32.xlu0 %v8977, 32
  %v9251 = vpop.permute.xlu0 %9250
  %9252 = vrot.lane.b32.xlu0 %v8989, 32
  %v9253 = vpop.permute.xlu0 %9252
  %9254 = vrot.lane.b32.xlu0 %v9001, 32
  %v9255 = vpop.permute.xlu0 %9254
  %9256 = vrot.lane.b32.xlu0 %v9013, 32
  %v9257 = vpop.permute.xlu0 %9256
  %9258 = vrot.lane.b32.xlu0 %v9025, 32
  %v9259 = vpop.permute.xlu0 %9258
  %9260 = vrot.lane.b32.xlu0 %v9037, 32
  %v9261 = vpop.permute.xlu0 %9260
  %9262 = vrot.lane.b32.xlu0 %v9049, 32
  %v9263 = vpop.permute.xlu0 %9262
  %9264 = vrot.lane.b32.xlu0 %v9061, 32
  %v9265 = vpop.permute.xlu0 %9264
  %9266 = vrot.lane.b32.xlu0 %v9073, 32
  %v9267 = vpop.permute.xlu0 %9266
  %9268 = vrot.lane.b32.xlu0 %v9085, 32
  %v9269 = vpop.permute.xlu0 %9268
  %9270 = vrot.lane.b32.xlu0 %v9097, 32
  %v9271 = vpop.permute.xlu0 %9270
  %9272 = vrot.lane.b32.xlu0 %v9109, 32
  %v9273 = vpop.permute.xlu0 %9272
  %9274 = vrot.lane.b32.xlu0 %v9121, 32
  %v9275 = vpop.permute.xlu0 %9274
  %9276 = vrot.lane.b32.xlu0 %v9133, 32
  %v9277 = vpop.permute.xlu0 %9276
  %9278 = vrot.lane.b32.xlu0 %v9145, 32
  %v9279 = vpop.permute.xlu0 %9278
  %9280 = vrot.lane.b32.xlu0 %v9157, 32
  %v9281 = vpop.permute.xlu0 %9280
  %9282 = vrot.lane.b32.xlu0 %v9169, 32
  %v9283 = vpop.permute.xlu0 %9282
  %9284 = vrot.lane.b32.xlu0 %v9181, 32
  %v9285 = vpop.permute.xlu0 %9284
  %9286 = vrot.lane.b32.xlu0 %v9193, 32
  %v9287 = vpop.permute.xlu0 %9286
  %9288 = vrot.lane.b32.xlu0 %v9205, 32
  %v9289 = vpop.permute.xlu0 %9288
  %9290 = vrot.lane.b32.xlu0 %v9217, 32
  %v9291 = vpop.permute.xlu0 %9290
  %9292 = vrot.lane.b32.xlu0 %v9229, 32
  %v9293 = vpop.permute.xlu0 %9292
  %v9294 = vrot.slane %v8654, 1
  %v9295 = vrot.slane %v8814, 1
  %v9296 = vsel %vm2922, %v9294, %v9295
  %v9297 = vrot.slane %v8655, 1
  %v9298 = vrot.slane %v8815, 1
  %v9299 = vsel %vm2922, %v9297, %v9298
  %v9300 = vrot.slane %v8656, 1
  %v9301 = vrot.slane %v8816, 1
  %v9302 = vsel %vm2922, %v9300, %v9301
  %v9303 = vrot.slane %v8657, 1
  %v9304 = vrot.slane %v8817, 1
  %v9305 = vsel %vm2922, %v9303, %v9304
  %v9306 = vrot.slane %v8658, 1
  %v9307 = vrot.slane %v8818, 1
  %v9308 = vsel %vm2922, %v9306, %v9307
  %v9309 = vrot.slane %v8659, 1
  %v9310 = vrot.slane %v8819, 1
  %v9311 = vsel %vm2922, %v9309, %v9310
  %v9312 = vrot.slane %v8660, 1
  %v9313 = vrot.slane %v8820, 1
  %v9314 = vsel %vm2922, %v9312, %v9313
  %v9315 = vrot.slane %v8661, 1
  %v9316 = vrot.slane %v8821, 1
  %v9317 = vsel %vm2922, %v9315, %v9316
  %v9318 = vrot.slane %v8662, 1
  %v9319 = vrot.slane %v8822, 1
  %v9320 = vsel %vm2922, %v9318, %v9319
  %v9321 = vrot.slane %v8663, 1
  %v9322 = vrot.slane %v8823, 1
  %v9323 = vsel %vm2922, %v9321, %v9322
  %v9324 = vrot.slane %v8664, 1
  %v9325 = vrot.slane %v8824, 1
  %v9326 = vsel %vm2922, %v9324, %v9325
  %v9327 = vrot.slane %v8665, 1
  %v9328 = vrot.slane %v8825, 1
  %v9329 = vsel %vm2922, %v9327, %v9328
  %v9330 = vrot.slane %v8666, 1
  %v9331 = vrot.slane %v8826, 1
  %v9332 = vsel %vm2922, %v9330, %v9331
  %v9333 = vrot.slane %v8667, 1
  %v9334 = vrot.slane %v8827, 1
  %v9335 = vsel %vm2922, %v9333, %v9334
  %v9336 = vrot.slane %v8668, 1
  %v9337 = vrot.slane %v8828, 1
  %v9338 = vsel %vm2922, %v9336, %v9337
  %v9339 = vrot.slane %v8669, 1
  %v9340 = vrot.slane %v8829, 1
  %v9341 = vsel %vm2922, %v9339, %v9340
  %v9342 = vrot.slane %v8670, 1
  %v9343 = vrot.slane %v8830, 1
  %v9344 = vsel %vm2922, %v9342, %v9343
  %v9345 = vrot.slane %v8671, 1
  %v9346 = vrot.slane %v8831, 1
  %v9347 = vsel %vm2922, %v9345, %v9346
  %v9348 = vrot.slane %v8672, 1
  %v9349 = vrot.slane %v8832, 1
  %v9350 = vsel %vm2922, %v9348, %v9349
  %v9351 = vrot.slane %v8673, 1
  %v9352 = vrot.slane %v8833, 1
  %v9353 = vsel %vm2922, %v9351, %v9352
  %v9354 = vrot.slane %v8674, 1
  %v9355 = vrot.slane %v8834, 1
  %v9356 = vsel %vm2922, %v9354, %v9355
  %v9357 = vrot.slane %v8675, 1
  %v9358 = vrot.slane %v8835, 1
  %v9359 = vsel %vm2922, %v9357, %v9358
  %v9360 = vrot.slane %v8676, 1
  %v9361 = vrot.slane %v8836, 1
  %v9362 = vsel %vm2922, %v9360, %v9361
  %v9363 = vrot.slane %v8677, 1
  %v9364 = vrot.slane %v8837, 1
  %v9365 = vsel %vm2922, %v9363, %v9364
  %v9366 = vrot.slane %v8678, 1
  %v9367 = vrot.slane %v8838, 1
  %v9368 = vsel %vm2922, %v9366, %v9367
  %v9369 = vrot.slane %v8679, 1
  %v9370 = vrot.slane %v8839, 1
  %v9371 = vsel %vm2922, %v9369, %v9370
  %v9372 = vrot.slane %v8680, 1
  %v9373 = vrot.slane %v8840, 1
  %v9374 = vsel %vm2922, %v9372, %v9373
  %v9375 = vrot.slane %v8681, 1
  %v9376 = vrot.slane %v8841, 1
  %v9377 = vsel %vm2922, %v9375, %v9376
  %v9378 = vrot.slane %v8682, 1
  %v9379 = vrot.slane %v8842, 1
  %v9380 = vsel %vm2922, %v9378, %v9379
  %v9381 = vrot.slane %v8683, 1
  %v9382 = vrot.slane %v8843, 1
  %v9383 = vsel %vm2922, %v9381, %v9382
  %v9384 = vrot.slane %v8684, 1
  %v9385 = vrot.slane %v8844, 1
  %v9386 = vsel %vm2922, %v9384, %v9385
  %v9387 = vrot.slane %v8685, 1
  %v9388 = vrot.slane %v8845, 1
  %v9389 = vsel %vm2922, %v9387, %v9388
  %9390 = vrot.lane.b32.xlu0 %v9296, 40
  %v9391 = vpop.permute.xlu0 %9390
  %9392 = vrot.lane.b32.xlu0 %v9299, 40
  %v9393 = vpop.permute.xlu0 %9392
  %9394 = vrot.lane.b32.xlu0 %v9302, 40
  %v9395 = vpop.permute.xlu0 %9394
  %9396 = vrot.lane.b32.xlu0 %v9305, 40
  %v9397 = vpop.permute.xlu0 %9396
  %9398 = vrot.lane.b32.xlu0 %v9308, 40
  %v9399 = vpop.permute.xlu0 %9398
  %9400 = vrot.lane.b32.xlu0 %v9311, 40
  %v9401 = vpop.permute.xlu0 %9400
  %9402 = vrot.lane.b32.xlu0 %v9314, 40
  %v9403 = vpop.permute.xlu0 %9402
  %9404 = vrot.lane.b32.xlu0 %v9317, 40
  %v9405 = vpop.permute.xlu0 %9404
  %9406 = vrot.lane.b32.xlu0 %v9320, 40
  %v9407 = vpop.permute.xlu0 %9406
  %9408 = vrot.lane.b32.xlu0 %v9323, 40
  %v9409 = vpop.permute.xlu0 %9408
  %9410 = vrot.lane.b32.xlu0 %v9326, 40
  %v9411 = vpop.permute.xlu0 %9410
  %9412 = vrot.lane.b32.xlu0 %v9329, 40
  %v9413 = vpop.permute.xlu0 %9412
  %9414 = vrot.lane.b32.xlu0 %v9332, 40
  %v9415 = vpop.permute.xlu0 %9414
  %9416 = vrot.lane.b32.xlu0 %v9335, 40
  %v9417 = vpop.permute.xlu0 %9416
  %9418 = vrot.lane.b32.xlu0 %v9338, 40
  %v9419 = vpop.permute.xlu0 %9418
  %9420 = vrot.lane.b32.xlu0 %v9341, 40
  %v9421 = vpop.permute.xlu0 %9420
  %9422 = vrot.lane.b32.xlu0 %v9344, 40
  %v9423 = vpop.permute.xlu0 %9422
  %9424 = vrot.lane.b32.xlu0 %v9347, 40
  %v9425 = vpop.permute.xlu0 %9424
  %9426 = vrot.lane.b32.xlu0 %v9350, 40
  %v9427 = vpop.permute.xlu0 %9426
  %9428 = vrot.lane.b32.xlu0 %v9353, 40
  %v9429 = vpop.permute.xlu0 %9428
  %9430 = vrot.lane.b32.xlu0 %v9356, 40
  %v9431 = vpop.permute.xlu0 %9430
  %9432 = vrot.lane.b32.xlu0 %v9359, 40
  %v9433 = vpop.permute.xlu0 %9432
  %9434 = vrot.lane.b32.xlu0 %v9362, 40
  %v9435 = vpop.permute.xlu0 %9434
  %9436 = vrot.lane.b32.xlu0 %v9365, 40
  %v9437 = vpop.permute.xlu0 %9436
  %9438 = vrot.lane.b32.xlu0 %v9368, 40
  %v9439 = vpop.permute.xlu0 %9438
  %9440 = vrot.lane.b32.xlu0 %v9371, 40
  %v9441 = vpop.permute.xlu0 %9440
  %9442 = vrot.lane.b32.xlu0 %v9374, 40
  %v9443 = vpop.permute.xlu0 %9442
  %9444 = vrot.lane.b32.xlu0 %v9377, 40
  %v9445 = vpop.permute.xlu0 %9444
  %9446 = vrot.lane.b32.xlu0 %v9380, 40
  %v9447 = vpop.permute.xlu0 %9446
  %9448 = vrot.lane.b32.xlu0 %v9383, 40
  %v9449 = vpop.permute.xlu0 %9448
  %9450 = vrot.lane.b32.xlu0 %v9386, 40
  %v9451 = vpop.permute.xlu0 %9450
  %9452 = vrot.lane.b32.xlu0 %v9389, 40
  %v9453 = vpop.permute.xlu0 %9452
  %v9518 = vunpack.c.l.b16 %v7566
  %v9519 = vunpack.c.l.b16 %v7567
  %v9520 = vunpack.c.l.b16 %v7569
  %v9521 = vunpack.c.l.b16 %v7570
  %v9522 = vunpack.c.l.b16 %v7572
  %v9523 = vunpack.c.l.b16 %v7573
  %v9524 = vunpack.c.l.b16 %v7575
  %v9525 = vunpack.c.l.b16 %v7576
  %v9526 = vunpack.c.l.b16 %v7578
  %v9527 = vunpack.c.l.b16 %v7579
  %v9528 = vunpack.c.l.b16 %v7581
  %v9529 = vunpack.c.l.b16 %v7582
  %v9530 = vunpack.c.l.b16 %v7584
  %v9531 = vunpack.c.l.b16 %v7585
  %v9532 = vunpack.c.l.b16 %v7587
  %v9533 = vunpack.c.l.b16 %v7588
  %v9534 = vunpack.c.l.b16 %v7590
  %v9535 = vunpack.c.l.b16 %v7591
  %v9536 = vunpack.c.l.b16 %v7593
  %v9537 = vunpack.c.l.b16 %v7594
  %v9538 = vunpack.c.l.b16 %v7596
  %v9539 = vunpack.c.l.b16 %v7597
  %v9540 = vunpack.c.l.b16 %v7599
  %v9541 = vunpack.c.l.b16 %v7600
  %v9542 = vunpack.c.l.b16 %v7602
  %v9543 = vunpack.c.l.b16 %v7603
  %v9544 = vunpack.c.l.b16 %v7605
  %v9545 = vunpack.c.l.b16 %v7606
  %v9546 = vunpack.c.l.b16 %v7608
  %v9547 = vunpack.c.l.b16 %v7609
  %v9548 = vunpack.c.l.b16 %v7611
  %v9549 = vunpack.c.l.b16 %v7612
  %v9550 = vunpack.c.l.b16 %v7614
  %v9551 = vunpack.c.l.b16 %v7615
  %v9552 = vunpack.c.l.b16 %v7617
  %v9553 = vunpack.c.l.b16 %v7618
  %v9554 = vunpack.c.l.b16 %v7620
  %v9555 = vunpack.c.l.b16 %v7621
  %v9556 = vunpack.c.l.b16 %v7623
  %v9557 = vunpack.c.l.b16 %v7624
  %v9558 = vunpack.c.l.b16 %v7626
  %v9559 = vunpack.c.l.b16 %v7627
  %v9560 = vunpack.c.l.b16 %v7629
  %v9561 = vunpack.c.l.b16 %v7630
  %v9562 = vunpack.c.l.b16 %v7632
  %v9563 = vunpack.c.l.b16 %v7633
  %v9564 = vunpack.c.l.b16 %v7635
  %v9565 = vunpack.c.l.b16 %v7636
  %v9566 = vunpack.c.l.b16 %v7638
  %v9567 = vunpack.c.l.b16 %v7639
  %v9568 = vunpack.c.l.b16 %v7641
  %v9569 = vunpack.c.l.b16 %v7642
  %v9570 = vunpack.c.l.b16 %v7644
  %v9571 = vunpack.c.l.b16 %v7645
  %v9572 = vunpack.c.l.b16 %v7647
  %v9573 = vunpack.c.l.b16 %v7648
  %v9574 = vunpack.c.l.b16 %v7650
  %v9575 = vunpack.c.l.b16 %v7651
  %v9576 = vunpack.c.l.b16 %v7653
  %v9577 = vunpack.c.l.b16 %v7654
  %v9578 = vunpack.c.l.b16 %v7656
  %v9579 = vunpack.c.l.b16 %v7657
  %v9580 = vunpack.c.l.b16 %v7659
  %v9581 = vunpack.c.l.b16 %v7660
  %v9582 = vpack.c.b16 %v9519, %v9518
  %v9583 = vpack.c.b16 %v9521, %v9520
  %v9584 = vpack.c.b16 %v9523, %v9522
  %v9585 = vpack.c.b16 %v9525, %v9524
  %v9586 = vpack.c.b16 %v9527, %v9526
  %v9587 = vpack.c.b16 %v9529, %v9528
  %v9588 = vpack.c.b16 %v9531, %v9530
  %v9589 = vpack.c.b16 %v9533, %v9532
  %v9590 = vpack.c.b16 %v9535, %v9534
  %v9591 = vpack.c.b16 %v9537, %v9536
  %v9592 = vpack.c.b16 %v9539, %v9538
  %v9593 = vpack.c.b16 %v9541, %v9540
  %v9594 = vpack.c.b16 %v9543, %v9542
  %v9595 = vpack.c.b16 %v9545, %v9544
  %v9596 = vpack.c.b16 %v9547, %v9546
  %v9597 = vpack.c.b16 %v9549, %v9548
  %v9598 = vpack.c.b16 %v9551, %v9550
  %v9599 = vpack.c.b16 %v9553, %v9552
  %v9600 = vpack.c.b16 %v9555, %v9554
  %v9601 = vpack.c.b16 %v9557, %v9556
  %v9602 = vpack.c.b16 %v9559, %v9558
  %v9603 = vpack.c.b16 %v9561, %v9560
  %v9604 = vpack.c.b16 %v9563, %v9562
  %v9605 = vpack.c.b16 %v9565, %v9564
  %v9606 = vpack.c.b16 %v9567, %v9566
  %v9607 = vpack.c.b16 %v9569, %v9568
  %v9608 = vpack.c.b16 %v9571, %v9570
  %v9609 = vpack.c.b16 %v9573, %v9572
  %v9610 = vpack.c.b16 %v9575, %v9574
  %v9611 = vpack.c.b16 %v9577, %v9576
  %v9612 = vpack.c.b16 %v9579, %v9578
  %v9613 = vpack.c.b16 %v9581, %v9580
  %9614 = vrot.lane.b32.xlu0 %v9582, 48
  %v9615 = vpop.permute.xlu0 %9614
  %9616 = vrot.lane.b32.xlu0 %v9583, 48
  %v9617 = vpop.permute.xlu0 %9616
  %9618 = vrot.lane.b32.xlu0 %v9584, 48
  %v9619 = vpop.permute.xlu0 %9618
  %9620 = vrot.lane.b32.xlu0 %v9585, 48
  %v9621 = vpop.permute.xlu0 %9620
  %9622 = vrot.lane.b32.xlu0 %v9586, 48
  %v9623 = vpop.permute.xlu0 %9622
  %9624 = vrot.lane.b32.xlu0 %v9587, 48
  %v9625 = vpop.permute.xlu0 %9624
  %9626 = vrot.lane.b32.xlu0 %v9588, 48
  %v9627 = vpop.permute.xlu0 %9626
  %9628 = vrot.lane.b32.xlu0 %v9589, 48
  %v9629 = vpop.permute.xlu0 %9628
  %9630 = vrot.lane.b32.xlu0 %v9590, 48
  %v9631 = vpop.permute.xlu0 %9630
  %9632 = vrot.lane.b32.xlu0 %v9591, 48
  %v9633 = vpop.permute.xlu0 %9632
  %9634 = vrot.lane.b32.xlu0 %v9592, 48
  %v9635 = vpop.permute.xlu0 %9634
  %9636 = vrot.lane.b32.xlu0 %v9593, 48
  %v9637 = vpop.permute.xlu0 %9636
  %9638 = vrot.lane.b32.xlu0 %v9594, 48
  %v9639 = vpop.permute.xlu0 %9638
  %9640 = vrot.lane.b32.xlu0 %v9595, 48
  %v9641 = vpop.permute.xlu0 %9640
  %9642 = vrot.lane.b32.xlu0 %v9596, 48
  %v9643 = vpop.permute.xlu0 %9642
  %9644 = vrot.lane.b32.xlu0 %v9597, 48
  %v9645 = vpop.permute.xlu0 %9644
  %9646 = vrot.lane.b32.xlu0 %v9598, 48
  %v9647 = vpop.permute.xlu0 %9646
  %9648 = vrot.lane.b32.xlu0 %v9599, 48
  %v9649 = vpop.permute.xlu0 %9648
  %9650 = vrot.lane.b32.xlu0 %v9600, 48
  %v9651 = vpop.permute.xlu0 %9650
  %9652 = vrot.lane.b32.xlu0 %v9601, 48
  %v9653 = vpop.permute.xlu0 %9652
  %9654 = vrot.lane.b32.xlu0 %v9602, 48
  %v9655 = vpop.permute.xlu0 %9654
  %9656 = vrot.lane.b32.xlu0 %v9603, 48
  %v9657 = vpop.permute.xlu0 %9656
  %9658 = vrot.lane.b32.xlu0 %v9604, 48
  %v9659 = vpop.permute.xlu0 %9658
  %9660 = vrot.lane.b32.xlu0 %v9605, 48
  %v9661 = vpop.permute.xlu0 %9660
  %9662 = vrot.lane.b32.xlu0 %v9606, 48
  %v9663 = vpop.permute.xlu0 %9662
  %9664 = vrot.lane.b32.xlu0 %v9607, 48
  %v9665 = vpop.permute.xlu0 %9664
  %9666 = vrot.lane.b32.xlu0 %v9608, 48
  %v9667 = vpop.permute.xlu0 %9666
  %9668 = vrot.lane.b32.xlu0 %v9609, 48
  %v9669 = vpop.permute.xlu0 %9668
  %9670 = vrot.lane.b32.xlu0 %v9610, 48
  %v9671 = vpop.permute.xlu0 %9670
  %9672 = vrot.lane.b32.xlu0 %v9611, 48
  %v9673 = vpop.permute.xlu0 %9672
  %9674 = vrot.lane.b32.xlu0 %v9612, 48
  %v9675 = vpop.permute.xlu0 %9674
  %9676 = vrot.lane.b32.xlu0 %v9613, 48
  %v9677 = vpop.permute.xlu0 %9676
  %v9710 = vunpack.c.l.b16 %v7568
  %v9711 = vunpack.c.l.b16 %v7571
  %v9712 = vunpack.c.l.b16 %v7574
  %v9713 = vunpack.c.l.b16 %v7577
  %v9714 = vunpack.c.l.b16 %v7580
  %v9715 = vunpack.c.l.b16 %v7583
  %v9716 = vunpack.c.l.b16 %v7586
  %v9717 = vunpack.c.l.b16 %v7589
  %v9718 = vunpack.c.l.b16 %v7592
  %v9719 = vunpack.c.l.b16 %v7595
  %v9720 = vunpack.c.l.b16 %v7598
  %v9721 = vunpack.c.l.b16 %v7601
  %v9722 = vunpack.c.l.b16 %v7604
  %v9723 = vunpack.c.l.b16 %v7607
  %v9724 = vunpack.c.l.b16 %v7610
  %v9725 = vunpack.c.l.b16 %v7613
  %v9726 = vunpack.c.l.b16 %v7616
  %v9727 = vunpack.c.l.b16 %v7619
  %v9728 = vunpack.c.l.b16 %v7622
  %v9729 = vunpack.c.l.b16 %v7625
  %v9730 = vunpack.c.l.b16 %v7628
  %v9731 = vunpack.c.l.b16 %v7631
  %v9732 = vunpack.c.l.b16 %v7634
  %v9733 = vunpack.c.l.b16 %v7637
  %v9734 = vunpack.c.l.b16 %v7640
  %v9735 = vunpack.c.l.b16 %v7643
  %v9736 = vunpack.c.l.b16 %v7646
  %v9737 = vunpack.c.l.b16 %v7649
  %v9738 = vunpack.c.l.b16 %v7652
  %v9739 = vunpack.c.l.b16 %v7655
  %v9740 = vunpack.c.l.b16 %v7658
  %v9741 = vunpack.c.l.b16 %v7661
  %v9742 = vpack.c.b16 %v9710, %v9710
  %v9743 = vpack.c.b16 %v9711, %v9711
  %v9744 = vpack.c.b16 %v9712, %v9712
  %v9745 = vpack.c.b16 %v9713, %v9713
  %v9746 = vpack.c.b16 %v9714, %v9714
  %v9747 = vpack.c.b16 %v9715, %v9715
  %v9748 = vpack.c.b16 %v9716, %v9716
  %v9749 = vpack.c.b16 %v9717, %v9717
  %v9750 = vpack.c.b16 %v9718, %v9718
  %v9751 = vpack.c.b16 %v9719, %v9719
  %v9752 = vpack.c.b16 %v9720, %v9720
  %v9753 = vpack.c.b16 %v9721, %v9721
  %v9754 = vpack.c.b16 %v9722, %v9722
  %v9755 = vpack.c.b16 %v9723, %v9723
  %v9756 = vpack.c.b16 %v9724, %v9724
  %v9757 = vpack.c.b16 %v9725, %v9725
  %v9758 = vpack.c.b16 %v9726, %v9726
  %v9759 = vpack.c.b16 %v9727, %v9727
  %v9760 = vpack.c.b16 %v9728, %v9728
  %v9761 = vpack.c.b16 %v9729, %v9729
  %v9762 = vpack.c.b16 %v9730, %v9730
  %v9763 = vpack.c.b16 %v9731, %v9731
  %v9764 = vpack.c.b16 %v9732, %v9732
  %v9765 = vpack.c.b16 %v9733, %v9733
  %v9766 = vpack.c.b16 %v9734, %v9734
  %v9767 = vpack.c.b16 %v9735, %v9735
  %v9768 = vpack.c.b16 %v9736, %v9736
  %v9769 = vpack.c.b16 %v9737, %v9737
  %v9770 = vpack.c.b16 %v9738, %v9738
  %v9771 = vpack.c.b16 %v9739, %v9739
  %v9772 = vpack.c.b16 %v9740, %v9740
  %v9773 = vpack.c.b16 %v9741, %v9741
  %v9775 = vshrl.u32 %v9582, 16
  %v9777 = vshll.u32 %v9582, 16
  %v9779 = vrot.slane %v9777, 1
  %v9780 = vor.u32 %v9775, %v9779
  %v9782 = vshll.u32 %v9742, 16
  %v9784 = vrot.slane %v9782, 1
  %v9785 = vsel %vm2473, %v9780, %v9784
  %v9787 = vshrl.u32 %v9583, 16
  %v9789 = vshll.u32 %v9583, 16
  %v9791 = vrot.slane %v9789, 1
  %v9792 = vor.u32 %v9787, %v9791
  %v9794 = vshll.u32 %v9743, 16
  %v9796 = vrot.slane %v9794, 1
  %v9797 = vsel %vm2473, %v9792, %v9796
  %v9799 = vshrl.u32 %v9584, 16
  %v9801 = vshll.u32 %v9584, 16
  %v9803 = vrot.slane %v9801, 1
  %v9804 = vor.u32 %v9799, %v9803
  %v9806 = vshll.u32 %v9744, 16
  %v9808 = vrot.slane %v9806, 1
  %v9809 = vsel %vm2473, %v9804, %v9808
  %v9811 = vshrl.u32 %v9585, 16
  %v9813 = vshll.u32 %v9585, 16
  %v9815 = vrot.slane %v9813, 1
  %v9816 = vor.u32 %v9811, %v9815
  %v9818 = vshll.u32 %v9745, 16
  %v9820 = vrot.slane %v9818, 1
  %v9821 = vsel %vm2473, %v9816, %v9820
  %v9823 = vshrl.u32 %v9586, 16
  %v9825 = vshll.u32 %v9586, 16
  %v9827 = vrot.slane %v9825, 1
  %v9828 = vor.u32 %v9823, %v9827
  %v9830 = vshll.u32 %v9746, 16
  %v9832 = vrot.slane %v9830, 1
  %v9833 = vsel %vm2473, %v9828, %v9832
  %v9835 = vshrl.u32 %v9587, 16
  %v9837 = vshll.u32 %v9587, 16
  %v9839 = vrot.slane %v9837, 1
  %v9840 = vor.u32 %v9835, %v9839
  %v9842 = vshll.u32 %v9747, 16
  %v9844 = vrot.slane %v9842, 1
  %v9845 = vsel %vm2473, %v9840, %v9844
  %v9847 = vshrl.u32 %v9588, 16
  %v9849 = vshll.u32 %v9588, 16
  %v9851 = vrot.slane %v9849, 1
  %v9852 = vor.u32 %v9847, %v9851
  %v9854 = vshll.u32 %v9748, 16
  %v9856 = vrot.slane %v9854, 1
  %v9857 = vsel %vm2473, %v9852, %v9856
  %v9859 = vshrl.u32 %v9589, 16
  %v9861 = vshll.u32 %v9589, 16
  %v9863 = vrot.slane %v9861, 1
  %v9864 = vor.u32 %v9859, %v9863
  %v9866 = vshll.u32 %v9749, 16
  %v9868 = vrot.slane %v9866, 1
  %v9869 = vsel %vm2473, %v9864, %v9868
  %v9871 = vshrl.u32 %v9590, 16
  %v9873 = vshll.u32 %v9590, 16
  %v9875 = vrot.slane %v9873, 1
  %v9876 = vor.u32 %v9871, %v9875
  %v9878 = vshll.u32 %v9750, 16
  %v9880 = vrot.slane %v9878, 1
  %v9881 = vsel %vm2473, %v9876, %v9880
  %v9883 = vshrl.u32 %v9591, 16
  %v9885 = vshll.u32 %v9591, 16
  %v9887 = vrot.slane %v9885, 1
  %v9888 = vor.u32 %v9883, %v9887
  %v9890 = vshll.u32 %v9751, 16
  %v9892 = vrot.slane %v9890, 1
  %v9893 = vsel %vm2473, %v9888, %v9892
  %v9895 = vshrl.u32 %v9592, 16
  %v9897 = vshll.u32 %v9592, 16
  %v9899 = vrot.slane %v9897, 1
  %v9900 = vor.u32 %v9895, %v9899
  %v9902 = vshll.u32 %v9752, 16
  %v9904 = vrot.slane %v9902, 1
  %v9905 = vsel %vm2473, %v9900, %v9904
  %v9907 = vshrl.u32 %v9593, 16
  %v9909 = vshll.u32 %v9593, 16
  %v9911 = vrot.slane %v9909, 1
  %v9912 = vor.u32 %v9907, %v9911
  %v9914 = vshll.u32 %v9753, 16
  %v9916 = vrot.slane %v9914, 1
  %v9917 = vsel %vm2473, %v9912, %v9916
  %v9919 = vshrl.u32 %v9594, 16
  %v9921 = vshll.u32 %v9594, 16
  %v9923 = vrot.slane %v9921, 1
  %v9924 = vor.u32 %v9919, %v9923
  %v9926 = vshll.u32 %v9754, 16
  %v9928 = vrot.slane %v9926, 1
  %v9929 = vsel %vm2473, %v9924, %v9928
  %v9931 = vshrl.u32 %v9595, 16
  %v9933 = vshll.u32 %v9595, 16
  %v9935 = vrot.slane %v9933, 1
  %v9936 = vor.u32 %v9931, %v9935
  %v9938 = vshll.u32 %v9755, 16
  %v9940 = vrot.slane %v9938, 1
  %v9941 = vsel %vm2473, %v9936, %v9940
  %v9943 = vshrl.u32 %v9596, 16
  %v9945 = vshll.u32 %v9596, 16
  %v9947 = vrot.slane %v9945, 1
  %v9948 = vor.u32 %v9943, %v9947
  %v9950 = vshll.u32 %v9756, 16
  %v9952 = vrot.slane %v9950, 1
  %v9953 = vsel %vm2473, %v9948, %v9952
  %v9955 = vshrl.u32 %v9597, 16
  %v9957 = vshll.u32 %v9597, 16
  %v9959 = vrot.slane %v9957, 1
  %v9960 = vor.u32 %v9955, %v9959
  %v9962 = vshll.u32 %v9757, 16
  %v9964 = vrot.slane %v9962, 1
  %v9965 = vsel %vm2473, %v9960, %v9964
  %v9967 = vshrl.u32 %v9598, 16
  %v9969 = vshll.u32 %v9598, 16
  %v9971 = vrot.slane %v9969, 1
  %v9972 = vor.u32 %v9967, %v9971
  %v9974 = vshll.u32 %v9758, 16
  %v9976 = vrot.slane %v9974, 1
  %v9977 = vsel %vm2473, %v9972, %v9976
  %v9979 = vshrl.u32 %v9599, 16
  %v9981 = vshll.u32 %v9599, 16
  %v9983 = vrot.slane %v9981, 1
  %v9984 = vor.u32 %v9979, %v9983
  %v9986 = vshll.u32 %v9759, 16
  %v9988 = vrot.slane %v9986, 1
  %v9989 = vsel %vm2473, %v9984, %v9988
  %v9991 = vshrl.u32 %v9600, 16
  %v9993 = vshll.u32 %v9600, 16
  %v9995 = vrot.slane %v9993, 1
  %v9996 = vor.u32 %v9991, %v9995
  %v9998 = vshll.u32 %v9760, 16
  %v10000 = vrot.slane %v9998, 1
  %v10001 = vsel %vm2473, %v9996, %v10000
  %v10003 = vshrl.u32 %v9601, 16
  %v10005 = vshll.u32 %v9601, 16
  %v10007 = vrot.slane %v10005, 1
  %v10008 = vor.u32 %v10003, %v10007
  %v10010 = vshll.u32 %v9761, 16
  %v10012 = vrot.slane %v10010, 1
  %v10013 = vsel %vm2473, %v10008, %v10012
  %v10015 = vshrl.u32 %v9602, 16
  %v10017 = vshll.u32 %v9602, 16
  %v10019 = vrot.slane %v10017, 1
  %v10020 = vor.u32 %v10015, %v10019
  %v10022 = vshll.u32 %v9762, 16
  %v10024 = vrot.slane %v10022, 1
  %v10025 = vsel %vm2473, %v10020, %v10024
  %v10027 = vshrl.u32 %v9603, 16
  %v10029 = vshll.u32 %v9603, 16
  %v10031 = vrot.slane %v10029, 1
  %v10032 = vor.u32 %v10027, %v10031
  %v10034 = vshll.u32 %v9763, 16
  %v10036 = vrot.slane %v10034, 1
  %v10037 = vsel %vm2473, %v10032, %v10036
  %v10039 = vshrl.u32 %v9604, 16
  %v10041 = vshll.u32 %v9604, 16
  %v10043 = vrot.slane %v10041, 1
  %v10044 = vor.u32 %v10039, %v10043
  %v10046 = vshll.u32 %v9764, 16
  %v10048 = vrot.slane %v10046, 1
  %v10049 = vsel %vm2473, %v10044, %v10048
  %v10051 = vshrl.u32 %v9605, 16
  %v10053 = vshll.u32 %v9605, 16
  %v10055 = vrot.slane %v10053, 1
  %v10056 = vor.u32 %v10051, %v10055
  %v10058 = vshll.u32 %v9765, 16
  %v10060 = vrot.slane %v10058, 1
  %v10061 = vsel %vm2473, %v10056, %v10060
  %v10063 = vshrl.u32 %v9606, 16
  %v10065 = vshll.u32 %v9606, 16
  %v10067 = vrot.slane %v10065, 1
  %v10068 = vor.u32 %v10063, %v10067
  %v10070 = vshll.u32 %v9766, 16
  %v10072 = vrot.slane %v10070, 1
  %v10073 = vsel %vm2473, %v10068, %v10072
  %v10075 = vshrl.u32 %v9607, 16
  %v10077 = vshll.u32 %v9607, 16
  %v10079 = vrot.slane %v10077, 1
  %v10080 = vor.u32 %v10075, %v10079
  %v10082 = vshll.u32 %v9767, 16
  %v10084 = vrot.slane %v10082, 1
  %v10085 = vsel %vm2473, %v10080, %v10084
  %v10087 = vshrl.u32 %v9608, 16
  %v10089 = vshll.u32 %v9608, 16
  %v10091 = vrot.slane %v10089, 1
  %v10092 = vor.u32 %v10087, %v10091
  %v10094 = vshll.u32 %v9768, 16
  %v10096 = vrot.slane %v10094, 1
  %v10097 = vsel %vm2473, %v10092, %v10096
  %v10099 = vshrl.u32 %v9609, 16
  %v10101 = vshll.u32 %v9609, 16
  %v10103 = vrot.slane %v10101, 1
  %v10104 = vor.u32 %v10099, %v10103
  %v10106 = vshll.u32 %v9769, 16
  %v10108 = vrot.slane %v10106, 1
  %v10109 = vsel %vm2473, %v10104, %v10108
  %v10111 = vshrl.u32 %v9610, 16
  %v10113 = vshll.u32 %v9610, 16
  %v10115 = vrot.slane %v10113, 1
  %v10116 = vor.u32 %v10111, %v10115
  %v10118 = vshll.u32 %v9770, 16
  %v10120 = vrot.slane %v10118, 1
  %v10121 = vsel %vm2473, %v10116, %v10120
  %v10123 = vshrl.u32 %v9611, 16
  %v10125 = vshll.u32 %v9611, 16
  %v10127 = vrot.slane %v10125, 1
  %v10128 = vor.u32 %v10123, %v10127
  %v10130 = vshll.u32 %v9771, 16
  %v10132 = vrot.slane %v10130, 1
  %v10133 = vsel %vm2473, %v10128, %v10132
  %v10135 = vshrl.u32 %v9612, 16
  %v10137 = vshll.u32 %v9612, 16
  %v10139 = vrot.slane %v10137, 1
  %v10140 = vor.u32 %v10135, %v10139
  %v10142 = vshll.u32 %v9772, 16
  %v10144 = vrot.slane %v10142, 1
  %v10145 = vsel %vm2473, %v10140, %v10144
  %v10147 = vshrl.u32 %v9613, 16
  %v10149 = vshll.u32 %v9613, 16
  %v10151 = vrot.slane %v10149, 1
  %v10152 = vor.u32 %v10147, %v10151
  %v10154 = vshll.u32 %v9773, 16
  %v10156 = vrot.slane %v10154, 1
  %v10157 = vsel %vm2473, %v10152, %v10156
  %10158 = vrot.lane.b32.xlu0 %v9785, 56
  %v10159 = vpop.permute.xlu0 %10158
  %10160 = vrot.lane.b32.xlu0 %v9797, 56
  %v10161 = vpop.permute.xlu0 %10160
  %10162 = vrot.lane.b32.xlu0 %v9809, 56
  %v10163 = vpop.permute.xlu0 %10162
  %10164 = vrot.lane.b32.xlu0 %v9821, 56
  %v10165 = vpop.permute.xlu0 %10164
  %10166 = vrot.lane.b32.xlu0 %v9833, 56
  %v10167 = vpop.permute.xlu0 %10166
  %10168 = vrot.lane.b32.xlu0 %v9845, 56
  %v10169 = vpop.permute.xlu0 %10168
  %10170 = vrot.lane.b32.xlu0 %v9857, 56
  %v10171 = vpop.permute.xlu0 %10170
  %10172 = vrot.lane.b32.xlu0 %v9869, 56
  %v10173 = vpop.permute.xlu0 %10172
  %10174 = vrot.lane.b32.xlu0 %v9881, 56
  %v10175 = vpop.permute.xlu0 %10174
  %10176 = vrot.lane.b32.xlu0 %v9893, 56
  %v10177 = vpop.permute.xlu0 %10176
  %10178 = vrot.lane.b32.xlu0 %v9905, 56
  %v10179 = vpop.permute.xlu0 %10178
  %10180 = vrot.lane.b32.xlu0 %v9917, 56
  %v10181 = vpop.permute.xlu0 %10180
  %10182 = vrot.lane.b32.xlu0 %v9929, 56
  %v10183 = vpop.permute.xlu0 %10182
  %10184 = vrot.lane.b32.xlu0 %v9941, 56
  %v10185 = vpop.permute.xlu0 %10184
  %10186 = vrot.lane.b32.xlu0 %v9953, 56
  %v10187 = vpop.permute.xlu0 %10186
  %10188 = vrot.lane.b32.xlu0 %v9965, 56
  %v10189 = vpop.permute.xlu0 %10188
  %10190 = vrot.lane.b32.xlu0 %v9977, 56
  %v10191 = vpop.permute.xlu0 %10190
  %10192 = vrot.lane.b32.xlu0 %v9989, 56
  %v10193 = vpop.permute.xlu0 %10192
  %10194 = vrot.lane.b32.xlu0 %v10001, 56
  %v10195 = vpop.permute.xlu0 %10194
  %10196 = vrot.lane.b32.xlu0 %v10013, 56
  %v10197 = vpop.permute.xlu0 %10196
  %10198 = vrot.lane.b32.xlu0 %v10025, 56
  %v10199 = vpop.permute.xlu0 %10198
  %10200 = vrot.lane.b32.xlu0 %v10037, 56
  %v10201 = vpop.permute.xlu0 %10200
  %10202 = vrot.lane.b32.xlu0 %v10049, 56
  %v10203 = vpop.permute.xlu0 %10202
  %10204 = vrot.lane.b32.xlu0 %v10061, 56
  %v10205 = vpop.permute.xlu0 %10204
  %10206 = vrot.lane.b32.xlu0 %v10073, 56
  %v10207 = vpop.permute.xlu0 %10206
  %10208 = vrot.lane.b32.xlu0 %v10085, 56
  %v10209 = vpop.permute.xlu0 %10208
  %10210 = vrot.lane.b32.xlu0 %v10097, 56
  %v10211 = vpop.permute.xlu0 %10210
  %10212 = vrot.lane.b32.xlu0 %v10109, 56
  %v10213 = vpop.permute.xlu0 %10212
  %10214 = vrot.lane.b32.xlu0 %v10121, 56
  %v10215 = vpop.permute.xlu0 %10214
  %10216 = vrot.lane.b32.xlu0 %v10133, 56
  %v10217 = vpop.permute.xlu0 %10216
  %10218 = vrot.lane.b32.xlu0 %v10145, 56
  %v10219 = vpop.permute.xlu0 %10218
  %10220 = vrot.lane.b32.xlu0 %v10157, 56
  %v10221 = vpop.permute.xlu0 %10220
  %v10222 = vrot.slane %v9582, 1
  %v10223 = vrot.slane %v9742, 1
  %v10224 = vsel %vm2922, %v10222, %v10223
  %v10225 = vrot.slane %v9583, 1
  %v10226 = vrot.slane %v9743, 1
  %v10227 = vsel %vm2922, %v10225, %v10226
  %v10228 = vrot.slane %v9584, 1
  %v10229 = vrot.slane %v9744, 1
  %v10230 = vsel %vm2922, %v10228, %v10229
  %v10231 = vrot.slane %v9585, 1
  %v10232 = vrot.slane %v9745, 1
  %v10233 = vsel %vm2922, %v10231, %v10232
  %v10234 = vrot.slane %v9586, 1
  %v10235 = vrot.slane %v9746, 1
  %v10236 = vsel %vm2922, %v10234, %v10235
  %v10237 = vrot.slane %v9587, 1
  %v10238 = vrot.slane %v9747, 1
  %v10239 = vsel %vm2922, %v10237, %v10238
  %v10240 = vrot.slane %v9588, 1
  %v10241 = vrot.slane %v9748, 1
  %v10242 = vsel %vm2922, %v10240, %v10241
  %v10243 = vrot.slane %v9589, 1
  %v10244 = vrot.slane %v9749, 1
  %v10245 = vsel %vm2922, %v10243, %v10244
  %v10246 = vrot.slane %v9590, 1
  %v10247 = vrot.slane %v9750, 1
  %v10248 = vsel %vm2922, %v10246, %v10247
  %v10249 = vrot.slane %v9591, 1
  %v10250 = vrot.slane %v9751, 1
  %v10251 = vsel %vm2922, %v10249, %v10250
  %v10252 = vrot.slane %v9592, 1
  %v10253 = vrot.slane %v9752, 1
  %v10254 = vsel %vm2922, %v10252, %v10253
  %v10255 = vrot.slane %v9593, 1
  %v10256 = vrot.slane %v9753, 1
  %v10257 = vsel %vm2922, %v10255, %v10256
  %v10258 = vrot.slane %v9594, 1
  %v10259 = vrot.slane %v9754, 1
  %v10260 = vsel %vm2922, %v10258, %v10259
  %v10261 = vrot.slane %v9595, 1
  %v10262 = vrot.slane %v9755, 1
  %v10263 = vsel %vm2922, %v10261, %v10262
  %v10264 = vrot.slane %v9596, 1
  %v10265 = vrot.slane %v9756, 1
  %v10266 = vsel %vm2922, %v10264, %v10265
  %v10267 = vrot.slane %v9597, 1
  %v10268 = vrot.slane %v9757, 1
  %v10269 = vsel %vm2922, %v10267, %v10268
  %v10270 = vrot.slane %v9598, 1
  %v10271 = vrot.slane %v9758, 1
  %v10272 = vsel %vm2922, %v10270, %v10271
  %v10273 = vrot.slane %v9599, 1
  %v10274 = vrot.slane %v9759, 1
  %v10275 = vsel %vm2922, %v10273, %v10274
  %v10276 = vrot.slane %v9600, 1
  %v10277 = vrot.slane %v9760, 1
  %v10278 = vsel %vm2922, %v10276, %v10277
  %v10279 = vrot.slane %v9601, 1
  %v10280 = vrot.slane %v9761, 1
  %v10281 = vsel %vm2922, %v10279, %v10280
  %v10282 = vrot.slane %v9602, 1
  %v10283 = vrot.slane %v9762, 1
  %v10284 = vsel %vm2922, %v10282, %v10283
  %v10285 = vrot.slane %v9603, 1
  %v10286 = vrot.slane %v9763, 1
  %v10287 = vsel %vm2922, %v10285, %v10286
  %v10288 = vrot.slane %v9604, 1
  %v10289 = vrot.slane %v9764, 1
  %v10290 = vsel %vm2922, %v10288, %v10289
  %v10291 = vrot.slane %v9605, 1
  %v10292 = vrot.slane %v9765, 1
  %v10293 = vsel %vm2922, %v10291, %v10292
  %v10294 = vrot.slane %v9606, 1
  %v10295 = vrot.slane %v9766, 1
  %v10296 = vsel %vm2922, %v10294, %v10295
  %v10297 = vrot.slane %v9607, 1
  %v10298 = vrot.slane %v9767, 1
  %v10299 = vsel %vm2922, %v10297, %v10298
  %v10300 = vrot.slane %v9608, 1
  %v10301 = vrot.slane %v9768, 1
  %v10302 = vsel %vm2922, %v10300, %v10301
  %v10303 = vrot.slane %v9609, 1
  %v10304 = vrot.slane %v9769, 1
  %v10305 = vsel %vm2922, %v10303, %v10304
  %v10306 = vrot.slane %v9610, 1
  %v10307 = vrot.slane %v9770, 1
  %v10308 = vsel %vm2922, %v10306, %v10307
  %v10309 = vrot.slane %v9611, 1
  %v10310 = vrot.slane %v9771, 1
  %v10311 = vsel %vm2922, %v10309, %v10310
  %v10312 = vrot.slane %v9612, 1
  %v10313 = vrot.slane %v9772, 1
  %v10314 = vsel %vm2922, %v10312, %v10313
  %v10315 = vrot.slane %v9613, 1
  %v10316 = vrot.slane %v9773, 1
  %v10317 = vsel %vm2922, %v10315, %v10316
  %10318 = vrot.lane.b32.xlu0 %v10224, 64
  %v10319 = vpop.permute.xlu0 %10318
  %10320 = vrot.lane.b32.xlu0 %v10227, 64
  %v10321 = vpop.permute.xlu0 %10320
  %10322 = vrot.lane.b32.xlu0 %v10230, 64
  %v10323 = vpop.permute.xlu0 %10322
  %10324 = vrot.lane.b32.xlu0 %v10233, 64
  %v10325 = vpop.permute.xlu0 %10324
  %10326 = vrot.lane.b32.xlu0 %v10236, 64
  %v10327 = vpop.permute.xlu0 %10326
  %10328 = vrot.lane.b32.xlu0 %v10239, 64
  %v10329 = vpop.permute.xlu0 %10328
  %10330 = vrot.lane.b32.xlu0 %v10242, 64
  %v10331 = vpop.permute.xlu0 %10330
  %10332 = vrot.lane.b32.xlu0 %v10245, 64
  %v10333 = vpop.permute.xlu0 %10332
  %10334 = vrot.lane.b32.xlu0 %v10248, 64
  %v10335 = vpop.permute.xlu0 %10334
  %10336 = vrot.lane.b32.xlu0 %v10251, 64
  %v10337 = vpop.permute.xlu0 %10336
  %10338 = vrot.lane.b32.xlu0 %v10254, 64
  %v10339 = vpop.permute.xlu0 %10338
  %10340 = vrot.lane.b32.xlu0 %v10257, 64
  %v10341 = vpop.permute.xlu0 %10340
  %10342 = vrot.lane.b32.xlu0 %v10260, 64
  %v10343 = vpop.permute.xlu0 %10342
  %10344 = vrot.lane.b32.xlu0 %v10263, 64
  %v10345 = vpop.permute.xlu0 %10344
  %10346 = vrot.lane.b32.xlu0 %v10266, 64
  %v10347 = vpop.permute.xlu0 %10346
  %10348 = vrot.lane.b32.xlu0 %v10269, 64
  %v10349 = vpop.permute.xlu0 %10348
  %10350 = vrot.lane.b32.xlu0 %v10272, 64
  %v10351 = vpop.permute.xlu0 %10350
  %10352 = vrot.lane.b32.xlu0 %v10275, 64
  %v10353 = vpop.permute.xlu0 %10352
  %10354 = vrot.lane.b32.xlu0 %v10278, 64
  %v10355 = vpop.permute.xlu0 %10354
  %10356 = vrot.lane.b32.xlu0 %v10281, 64
  %v10357 = vpop.permute.xlu0 %10356
  %10358 = vrot.lane.b32.xlu0 %v10284, 64
  %v10359 = vpop.permute.xlu0 %10358
  %10360 = vrot.lane.b32.xlu0 %v10287, 64
  %v10361 = vpop.permute.xlu0 %10360
  %10362 = vrot.lane.b32.xlu0 %v10290, 64
  %v10363 = vpop.permute.xlu0 %10362
  %10364 = vrot.lane.b32.xlu0 %v10293, 64
  %v10365 = vpop.permute.xlu0 %10364
  %10366 = vrot.lane.b32.xlu0 %v10296, 64
  %v10367 = vpop.permute.xlu0 %10366
  %10368 = vrot.lane.b32.xlu0 %v10299, 64
  %v10369 = vpop.permute.xlu0 %10368
  %10370 = vrot.lane.b32.xlu0 %v10302, 64
  %v10371 = vpop.permute.xlu0 %10370
  %10372 = vrot.lane.b32.xlu0 %v10305, 64
  %v10373 = vpop.permute.xlu0 %10372
  %10374 = vrot.lane.b32.xlu0 %v10308, 64
  %v10375 = vpop.permute.xlu0 %10374
  %10376 = vrot.lane.b32.xlu0 %v10311, 64
  %v10377 = vpop.permute.xlu0 %10376
  %10378 = vrot.lane.b32.xlu0 %v10314, 64
  %v10379 = vpop.permute.xlu0 %10378
  %10380 = vrot.lane.b32.xlu0 %v10317, 64
  %v10381 = vpop.permute.xlu0 %10380
  %v10383 = vsel %vm5003, %v7790, %v8303
  %v10385 = vsel %vm5003, %v7791, %v8305
  %v10387 = vsel %vm5003, %v7792, %v8307
  %v10389 = vsel %vm5003, %v7793, %v8309
  %v10391 = vsel %vm5003, %v7794, %v8311
  %v10393 = vsel %vm5003, %v7795, %v8313
  %v10395 = vsel %vm5003, %v7796, %v8315
  %v10397 = vsel %vm5003, %v7797, %v8317
  %v10399 = vsel %vm5003, %v7798, %v8319
  %v10401 = vsel %vm5003, %v7799, %v8321
  %v10403 = vsel %vm5003, %v7800, %v8323
  %v10405 = vsel %vm5003, %v7801, %v8325
  %v10407 = vsel %vm5003, %v7802, %v8327
  %v10409 = vsel %vm5003, %v7803, %v8329
  %v10411 = vsel %vm5003, %v7804, %v8331
  %v10413 = vsel %vm5003, %v7805, %v8333
  %v10415 = vsel %vm5003, %v7806, %v8335
  %v10417 = vsel %vm5003, %v7807, %v8337
  %v10419 = vsel %vm5003, %v7808, %v8339
  %v10421 = vsel %vm5003, %v7809, %v8341
  %v10423 = vsel %vm5003, %v7810, %v8343
  %v10425 = vsel %vm5003, %v7811, %v8345
  %v10427 = vsel %vm5003, %v7812, %v8347
  %v10429 = vsel %vm5003, %v7813, %v8349
  %v10431 = vsel %vm5003, %v7814, %v8351
  %v10433 = vsel %vm5003, %v7815, %v8353
  %v10435 = vsel %vm5003, %v7816, %v8355
  %v10437 = vsel %vm5003, %v7817, %v8357
  %v10439 = vsel %vm5003, %v7818, %v8359
  %v10441 = vsel %vm5003, %v7819, %v8361
  %v10443 = vsel %vm5003, %v7820, %v8363
  %v10445 = vsel %vm5003, %v7821, %v8365
  %v10447 = vsel %vm5133, %v10383, %v8463
  %v10449 = vsel %vm5133, %v10385, %v8465
  %v10451 = vsel %vm5133, %v10387, %v8467
  %v10453 = vsel %vm5133, %v10389, %v8469
  %v10455 = vsel %vm5133, %v10391, %v8471
  %v10457 = vsel %vm5133, %v10393, %v8473
  %v10459 = vsel %vm5133, %v10395, %v8475
  %v10461 = vsel %vm5133, %v10397, %v8477
  %v10463 = vsel %vm5133, %v10399, %v8479
  %v10465 = vsel %vm5133, %v10401, %v8481
  %v10467 = vsel %vm5133, %v10403, %v8483
  %v10469 = vsel %vm5133, %v10405, %v8485
  %v10471 = vsel %vm5133, %v10407, %v8487
  %v10473 = vsel %vm5133, %v10409, %v8489
  %v10475 = vsel %vm5133, %v10411, %v8491
  %v10477 = vsel %vm5133, %v10413, %v8493
  %v10479 = vsel %vm5133, %v10415, %v8495
  %v10481 = vsel %vm5133, %v10417, %v8497
  %v10483 = vsel %vm5133, %v10419, %v8499
  %v10485 = vsel %vm5133, %v10421, %v8501
  %v10487 = vsel %vm5133, %v10423, %v8503
  %v10489 = vsel %vm5133, %v10425, %v8505
  %v10491 = vsel %vm5133, %v10427, %v8507
  %v10493 = vsel %vm5133, %v10429, %v8509
  %v10495 = vsel %vm5133, %v10431, %v8511
  %v10497 = vsel %vm5133, %v10433, %v8513
  %v10499 = vsel %vm5133, %v10435, %v8515
  %v10501 = vsel %vm5133, %v10437, %v8517
  %v10503 = vsel %vm5133, %v10439, %v8519
  %v10505 = vsel %vm5133, %v10441, %v8521
  %v10507 = vsel %vm5133, %v10443, %v8523
  %v10509 = vsel %vm5133, %v10445, %v8525
  %v10511 = vsel %vm5263, %v10447, %v8687
  %v10513 = vsel %vm5263, %v10449, %v8689
  %v10515 = vsel %vm5263, %v10451, %v8691
  %v10517 = vsel %vm5263, %v10453, %v8693
  %v10519 = vsel %vm5263, %v10455, %v8695
  %v10521 = vsel %vm5263, %v10457, %v8697
  %v10523 = vsel %vm5263, %v10459, %v8699
  %v10525 = vsel %vm5263, %v10461, %v8701
  %v10527 = vsel %vm5263, %v10463, %v8703
  %v10529 = vsel %vm5263, %v10465, %v8705
  %v10531 = vsel %vm5263, %v10467, %v8707
  %v10533 = vsel %vm5263, %v10469, %v8709
  %v10535 = vsel %vm5263, %v10471, %v8711
  %v10537 = vsel %vm5263, %v10473, %v8713
  %v10539 = vsel %vm5263, %v10475, %v8715
  %v10541 = vsel %vm5263, %v10477, %v8717
  %v10543 = vsel %vm5263, %v10479, %v8719
  %v10545 = vsel %vm5263, %v10481, %v8721
  %v10547 = vsel %vm5263, %v10483, %v8723
  %v10549 = vsel %vm5263, %v10485, %v8725
  %v10551 = vsel %vm5263, %v10487, %v8727
  %v10553 = vsel %vm5263, %v10489, %v8729
  %v10555 = vsel %vm5263, %v10491, %v8731
  %v10557 = vsel %vm5263, %v10493, %v8733
  %v10559 = vsel %vm5263, %v10495, %v8735
  %v10561 = vsel %vm5263, %v10497, %v8737
  %v10563 = vsel %vm5263, %v10499, %v8739
  %v10565 = vsel %vm5263, %v10501, %v8741
  %v10567 = vsel %vm5263, %v10503, %v8743
  %v10569 = vsel %vm5263, %v10505, %v8745
  %v10571 = vsel %vm5263, %v10507, %v8747
  %v10573 = vsel %vm5263, %v10509, %v8749
  %v10575 = vsel %vm5393, %v10511, %v9231
  %v10577 = vsel %vm5393, %v10513, %v9233
  %v10579 = vsel %vm5393, %v10515, %v9235
  %v10581 = vsel %vm5393, %v10517, %v9237
  %v10583 = vsel %vm5393, %v10519, %v9239
  %v10585 = vsel %vm5393, %v10521, %v9241
  %v10587 = vsel %vm5393, %v10523, %v9243
  %v10589 = vsel %vm5393, %v10525, %v9245
  %v10591 = vsel %vm5393, %v10527, %v9247
  %v10593 = vsel %vm5393, %v10529, %v9249
  %v10595 = vsel %vm5393, %v10531, %v9251
  %v10597 = vsel %vm5393, %v10533, %v9253
  %v10599 = vsel %vm5393, %v10535, %v9255
  %v10601 = vsel %vm5393, %v10537, %v9257
  %v10603 = vsel %vm5393, %v10539, %v9259
  %v10605 = vsel %vm5393, %v10541, %v9261
  %v10607 = vsel %vm5393, %v10543, %v9263
  %v10609 = vsel %vm5393, %v10545, %v9265
  %v10611 = vsel %vm5393, %v10547, %v9267
  %v10613 = vsel %vm5393, %v10549, %v9269
  %v10615 = vsel %vm5393, %v10551, %v9271
  %v10617 = vsel %vm5393, %v10553, %v9273
  %v10619 = vsel %vm5393, %v10555, %v9275
  %v10621 = vsel %vm5393, %v10557, %v9277
  %v10623 = vsel %vm5393, %v10559, %v9279
  %v10625 = vsel %vm5393, %v10561, %v9281
  %v10627 = vsel %vm5393, %v10563, %v9283
  %v10629 = vsel %vm5393, %v10565, %v9285
  %v10631 = vsel %vm5393, %v10567, %v9287
  %v10633 = vsel %vm5393, %v10569, %v9289
  %v10635 = vsel %vm5393, %v10571, %v9291
  %v10637 = vsel %vm5393, %v10573, %v9293
  %vm10638 = vcmask 326656
  %v10640 = vsel %vm10638, %v10575, %v9391
  %v10642 = vsel %vm10638, %v10577, %v9393
  %v10644 = vsel %vm10638, %v10579, %v9395
  %v10646 = vsel %vm10638, %v10581, %v9397
  %v10648 = vsel %vm10638, %v10583, %v9399
  %v10650 = vsel %vm10638, %v10585, %v9401
  %v10652 = vsel %vm10638, %v10587, %v9403
  %v10654 = vsel %vm10638, %v10589, %v9405
  %v10656 = vsel %vm10638, %v10591, %v9407
  %v10658 = vsel %vm10638, %v10593, %v9409
  %v10660 = vsel %vm10638, %v10595, %v9411
  %v10662 = vsel %vm10638, %v10597, %v9413
  %v10664 = vsel %vm10638, %v10599, %v9415
  %v10666 = vsel %vm10638, %v10601, %v9417
  %v10668 = vsel %vm10638, %v10603, %v9419
  %v10670 = vsel %vm10638, %v10605, %v9421
  %v10672 = vsel %vm10638, %v10607, %v9423
  %v10674 = vsel %vm10638, %v10609, %v9425
  %v10676 = vsel %vm10638, %v10611, %v9427
  %v10678 = vsel %vm10638, %v10613, %v9429
  %v10680 = vsel %vm10638, %v10615, %v9431
  %v10682 = vsel %vm10638, %v10617, %v9433
  %v10684 = vsel %vm10638, %v10619, %v9435
  %v10686 = vsel %vm10638, %v10621, %v9437
  %v10688 = vsel %vm10638, %v10623, %v9439
  %v10690 = vsel %vm10638, %v10625, %v9441
  %v10692 = vsel %vm10638, %v10627, %v9443
  %v10694 = vsel %vm10638, %v10629, %v9445
  %v10696 = vsel %vm10638, %v10631, %v9447
  %v10698 = vsel %vm10638, %v10633, %v9449
  %v10700 = vsel %vm10638, %v10635, %v9451
  %v10702 = vsel %vm10638, %v10637, %v9453
  %vm10703 = vcmask 392192
  %v10705 = vsel %vm10703, %v10640, %v9615
  %v10707 = vsel %vm10703, %v10642, %v9617
  %v10709 = vsel %vm10703, %v10644, %v9619
  %v10711 = vsel %vm10703, %v10646, %v9621
  %v10713 = vsel %vm10703, %v10648, %v9623
  %v10715 = vsel %vm10703, %v10650, %v9625
  %v10717 = vsel %vm10703, %v10652, %v9627
  %v10719 = vsel %vm10703, %v10654, %v9629
  %v10721 = vsel %vm10703, %v10656, %v9631
  %v10723 = vsel %vm10703, %v10658, %v9633
  %v10725 = vsel %vm10703, %v10660, %v9635
  %v10727 = vsel %vm10703, %v10662, %v9637
  %v10729 = vsel %vm10703, %v10664, %v9639
  %v10731 = vsel %vm10703, %v10666, %v9641
  %v10733 = vsel %vm10703, %v10668, %v9643
  %v10735 = vsel %vm10703, %v10670, %v9645
  %v10737 = vsel %vm10703, %v10672, %v9647
  %v10739 = vsel %vm10703, %v10674, %v9649
  %v10741 = vsel %vm10703, %v10676, %v9651
  %v10743 = vsel %vm10703, %v10678, %v9653
  %v10745 = vsel %vm10703, %v10680, %v9655
  %v10747 = vsel %vm10703, %v10682, %v9657
  %v10749 = vsel %vm10703, %v10684, %v9659
  %v10751 = vsel %vm10703, %v10686, %v9661
  %v10753 = vsel %vm10703, %v10688, %v9663
  %v10755 = vsel %vm10703, %v10690, %v9665
  %v10757 = vsel %vm10703, %v10692, %v9667
  %v10759 = vsel %vm10703, %v10694, %v9669
  %v10761 = vsel %vm10703, %v10696, %v9671
  %v10763 = vsel %vm10703, %v10698, %v9673
  %v10765 = vsel %vm10703, %v10700, %v9675
  %v10767 = vsel %vm10703, %v10702, %v9677
  %vm10768 = vcmask 457728
  %v10770 = vsel %vm10768, %v10705, %v10159
  %v10772 = vsel %vm10768, %v10707, %v10161
  %v10774 = vsel %vm10768, %v10709, %v10163
  %v10776 = vsel %vm10768, %v10711, %v10165
  %v10778 = vsel %vm10768, %v10713, %v10167
  %v10780 = vsel %vm10768, %v10715, %v10169
  %v10782 = vsel %vm10768, %v10717, %v10171
  %v10784 = vsel %vm10768, %v10719, %v10173
  %v10786 = vsel %vm10768, %v10721, %v10175
  %v10788 = vsel %vm10768, %v10723, %v10177
  %v10790 = vsel %vm10768, %v10725, %v10179
  %v10792 = vsel %vm10768, %v10727, %v10181
  %v10794 = vsel %vm10768, %v10729, %v10183
  %v10796 = vsel %vm10768, %v10731, %v10185
  %v10798 = vsel %vm10768, %v10733, %v10187
  %v10800 = vsel %vm10768, %v10735, %v10189
  %v10802 = vsel %vm10768, %v10737, %v10191
  %v10804 = vsel %vm10768, %v10739, %v10193
  %v10806 = vsel %vm10768, %v10741, %v10195
  %v10808 = vsel %vm10768, %v10743, %v10197
  %v10810 = vsel %vm10768, %v10745, %v10199
  %v10812 = vsel %vm10768, %v10747, %v10201
  %v10814 = vsel %vm10768, %v10749, %v10203
  %v10816 = vsel %vm10768, %v10751, %v10205
  %v10818 = vsel %vm10768, %v10753, %v10207
  %v10820 = vsel %vm10768, %v10755, %v10209
  %v10822 = vsel %vm10768, %v10757, %v10211
  %v10824 = vsel %vm10768, %v10759, %v10213
  %v10826 = vsel %vm10768, %v10761, %v10215
  %v10828 = vsel %vm10768, %v10763, %v10217
  %v10830 = vsel %vm10768, %v10765, %v10219
  %v10832 = vsel %vm10768, %v10767, %v10221
  %vm10833 = vcmask 523264
  %v10835 = vsel %vm10833, %v10770, %v10319
  %v10837 = vsel %vm10833, %v10772, %v10321
  %v10839 = vsel %vm10833, %v10774, %v10323
  %v10841 = vsel %vm10833, %v10776, %v10325
  %v10843 = vsel %vm10833, %v10778, %v10327
  %v10845 = vsel %vm10833, %v10780, %v10329
  %v10847 = vsel %vm10833, %v10782, %v10331
  %v10849 = vsel %vm10833, %v10784, %v10333
  %v10851 = vsel %vm10833, %v10786, %v10335
  %v10853 = vsel %vm10833, %v10788, %v10337
  %v10855 = vsel %vm10833, %v10790, %v10339
  %v10857 = vsel %vm10833, %v10792, %v10341
  %v10859 = vsel %vm10833, %v10794, %v10343
  %v10861 = vsel %vm10833, %v10796, %v10345
  %v10863 = vsel %vm10833, %v10798, %v10347
  %v10865 = vsel %vm10833, %v10800, %v10349
  %v10867 = vsel %vm10833, %v10802, %v10351
  %v10869 = vsel %vm10833, %v10804, %v10353
  %v10871 = vsel %vm10833, %v10806, %v10355
  %v10873 = vsel %vm10833, %v10808, %v10357
  %v10875 = vsel %vm10833, %v10810, %v10359
  %v10877 = vsel %vm10833, %v10812, %v10361
  %v10879 = vsel %vm10833, %v10814, %v10363
  %v10881 = vsel %vm10833, %v10816, %v10365
  %v10883 = vsel %vm10833, %v10818, %v10367
  %v10885 = vsel %vm10833, %v10820, %v10369
  %v10887 = vsel %vm10833, %v10822, %v10371
  %v10889 = vsel %vm10833, %v10824, %v10373
  %v10891 = vsel %vm10833, %v10826, %v10375
  %v10893 = vsel %vm10833, %v10828, %v10377
  %v10895 = vsel %vm10833, %v10830, %v10379
  %v10897 = vsel %vm10833, %v10832, %v10381
  %v10898 = vld [vmem:[%s3] sm:$0xf]
  %v10899 = vld [vmem:[%s3 + $0x4] sm:$0xf]
  %v10900 = vld [vmem:[%s3 + $0x8] sm:$0xf]
  %v10901 = vld [vmem:[%s3 + $0xc] sm:$0xf]
  %v10902 = vld [vmem:[%s3 + $0x10] sm:$0xf]
  %v10903 = vld [vmem:[%s3 + $0x14] sm:$0xf]
  %v10904 = vld [vmem:[%s3 + $0x18] sm:$0xf]
  %v10905 = vld [vmem:[%s3 + $0x1c] sm:$0xf]
  %v10906 = vld [vmem:[%s3 + $0x20] sm:$0xf]
  %v10907 = vld [vmem:[%s4] sm:$0x1]
  %v10909 = vlaneseq
  %v10910 = vshrl.u32 %v10909, 7
  %v10911 = vsub.s32 0, %v10910
  %v10912 = vrot.slane %v10907, %v10911
  %v10923 = vunpack.c.l.b16 %v10898
  %v10924 = vunpack.c.l.b16 %v10899
  %v10925 = vunpack.c.l.b16 %v10900
  %v10926 = vunpack.c.l.b16 %v10901
  %v10927 = vunpack.c.l.b16 %v10902
  %v10928 = vunpack.c.l.b16 %v10903
  %v10929 = vunpack.c.l.b16 %v10904
  %v10930 = vunpack.c.l.b16 %v10905
  %v10931 = vunpack.c.l.b16 %v10906
  %v10932 = vpack.c.b16 %v10924, %v10923
  %v10933 = vpack.c.b16 %v10926, %v10925
  %v10934 = vpack.c.b16 %v10928, %v10927
  %v10935 = vpack.c.b16 %v10930, %v10929
  %v10936 = vpack.c.b16 %v10931, %v10931
  %vm10941 = vcmask 588800
  %v10942 = vsel %vm10941, %v10835, 0
  %v10944 = vsel %vm10941, %v10837, 0
  %v10946 = vsel %vm10941, %v10839, 0
  %v10948 = vsel %vm10941, %v10841, 0
  %v10950 = vsel %vm10941, %v10843, 0
  %v10952 = vsel %vm10941, %v10845, 0
  %v10954 = vsel %vm10941, %v10847, 0
  %v10956 = vsel %vm10941, %v10849, 0
  %v10958 = vsel %vm10941, %v10851, 0
  %v10960 = vsel %vm10941, %v10853, 0
  %v10962 = vsel %vm10941, %v10855, 0
  %v10964 = vsel %vm10941, %v10857, 0
  %v10966 = vsel %vm10941, %v10859, 0
  %v10968 = vsel %vm10941, %v10861, 0
  %v10970 = vsel %vm10941, %v10863, 0
  %v10972 = vsel %vm10941, %v10865, 0
  %v10974 = vsel %vm10941, %v10867, 0
  %v10976 = vsel %vm10941, %v10869, 0
  %v10978 = vsel %vm10941, %v10871, 0
  %v10980 = vsel %vm10941, %v10873, 0
  %v10982 = vsel %vm10941, %v10875, 0
  %v10984 = vsel %vm10941, %v10877, 0
  %v10986 = vsel %vm10941, %v10879, 0
  %v10988 = vsel %vm10941, %v10881, 0
  %v10990 = vsel %vm10941, %v10883, 0
  %v10992 = vsel %vm10941, %v10885, 0
  %v10994 = vsel %vm10941, %v10887, 0
  %v10996 = vsel %vm10941, %v10889, 0
  %v10998 = vsel %vm10941, %v10891, 0
  %v11000 = vsel %vm10941, %v10893, 0
  %v11002 = vsel %vm10941, %v10895, 0
  %v11004 = vsel %vm10941, %v10897, 0
  %vm11006 = vcmask 1043456
  %v11008 = vsel %vm11006, %v10936, 0
  %11010 = vmatprep.subr.bf16.mxu0 0
  %11011 = vmatpush1.bf16.msra.mxu0 %v10932
  %11012 = vmatprep.subr.bf16.mxu0 0
  %11013 = vmatpush1.bf16.msra.mxu0 %v10933
  %11014 = vmatprep.subr.bf16.mxu0 0
  %11015 = vmatpush1.bf16.msra.mxu0 %v10934
  %11016 = vmatprep.subr.bf16.mxu0 0
  %11017 = vmatpush1.bf16.msra.mxu0 %v10935
  %11018 = vmatprep.subr.bf16.mxu0 0
  %11019 = vmatpush1.bf16.msra.mxu0 %v11008
  %11020 = vmatprep.subr.bf16.mxu0 0
  %11021 = vmatpush1.bf16.msra.mxu0 0
  %11022 = vmatprep.subr.bf16.mxu0 0
  %11023 = vmatpush1.bf16.msra.mxu0 0
  %11024 = vmatprep.subr.bf16.mxu0 0
  %11025 = vmatpush1.bf16.msra.mxu0 0
  %11026 = vmatprep.subr.bf16.mxu0 0
  %11027 = vmatpush1.bf16.msra.mxu0 0
  %11028 = vmatprep.subr.bf16.mxu0 0
  %11029 = vmatpush1.bf16.msra.mxu0 0
  %11030 = vmatprep.subr.bf16.mxu0 0
  %11031 = vmatpush1.bf16.msra.mxu0 0
  %11032 = vmatprep.subr.bf16.mxu0 0
  %11033 = vmatpush1.bf16.msra.mxu0 0
  %11034 = vmatprep.subr.bf16.mxu0 0
  %11035 = vmatpush1.bf16.msra.mxu0 0
  %11036 = vmatprep.subr.bf16.mxu0 0
  %11037 = vmatpush1.bf16.msra.mxu0 0
  %11038 = vmatprep.subr.bf16.mxu0 0
  %11039 = vmatpush1.bf16.msra.mxu0 0
  %11040 = vmatprep.subr.bf16.mxu0 0
  %11041 = vmatpush1.bf16.msra.mxu0 0
  %11042 = vmatprep.mubr.bf16.mxu0 0
  %11043 = vmatmul.mubr.bf16.gmra.mrb[0].mxu0 %v10942
  %v11044 = vpop.f32.mrb[0].mxu0
  %v11045 = vadd.f32 %v10912, %v11044
  %v11046 = vpop.f32.mrb[0].mxu0
  %v11047 = vpop.f32.mrb[0].mxu0
  %v11048 = vadd.f32 %v10912, %v11047
  %v11049 = vpop.f32.mrb[0].mxu0
  %11050 = vmatprep.mubr.bf16.mxu0 0
  %11051 = vmatmul.mubr.bf16.gmra.mrb[0].mxu0 %v10944
  %v11052 = vpop.f32.mrb[0].mxu0
  %v11053 = vadd.f32 %v10912, %v11052
  %v11054 = vpop.f32.mrb[0].mxu0
  %v11055 = vpop.f32.mrb[0].mxu0
  %v11056 = vadd.f32 %v10912, %v11055
  %v11057 = vpop.f32.mrb[0].mxu0
  %11058 = vmatprep.mubr.bf16.mxu0 0
  %11059 = vmatmul.mubr.bf16.gmra.mrb[0].mxu0 %v10946
  %v11060 = vpop.f32.mrb[0].mxu0
  %v11061 = vadd.f32 %v10912, %v11060
  %v11062 = vpop.f32.mrb[0].mxu0
  %v11063 = vpop.f32.mrb[0].mxu0
  %v11064 = vadd.f32 %v10912, %v11063
  %v11065 = vpop.f32.mrb[0].mxu0
  %11066 = vmatprep.mubr.bf16.mxu0 0
  %11067 = vmatmul.mubr.bf16.gmra.mrb[0].mxu0 %v10948
  %v11068 = vpop.f32.mrb[0].mxu0
  %v11069 = vadd.f32 %v10912, %v11068
  %v11070 = vpop.f32.mrb[0].mxu0
  %v11071 = vpop.f32.mrb[0].mxu0
  %v11072 = vadd.f32 %v10912, %v11071
  %v11073 = vpop.f32.mrb[0].mxu0
  %11074 = vmatprep.mubr.bf16.mxu0 0
  %11075 = vmatmul.mubr.bf16.gmra.mrb[0].mxu0 %v10950
  %v11076 = vpop.f32.mrb[0].mxu0
  %v11077 = vadd.f32 %v10912, %v11076
  %v11078 = vpop.f32.mrb[0].mxu0
  %v11079 = vpop.f32.mrb[0].mxu0
  %v11080 = vadd.f32 %v10912, %v11079
  %v11081 = vpop.f32.mrb[0].mxu0
  %11082 = vmatprep.mubr.bf16.mxu0 0
  %11083 = vmatmul.mubr.bf16.gmra.mrb[0].mxu0 %v10952
  %v11084 = vpop.f32.mrb[0].mxu0
  %v11085 = vadd.f32 %v10912, %v11084
  %v11086 = vpop.f32.mrb[0].mxu0
  %v11087 = vpop.f32.mrb[0].mxu0
  %v11088 = vadd.f32 %v10912, %v11087
  %v11089 = vpop.f32.mrb[0].mxu0
  %11090 = vmatprep.mubr.bf16.mxu0 0
  %11091 = vmatmul.mubr.bf16.gmra.mrb[0].mxu0 %v10954
  %v11092 = vpop.f32.mrb[0].mxu0
  %v11093 = vadd.f32 %v10912, %v11092
  %v11094 = vpop.f32.mrb[0].mxu0
  %v11095 = vpop.f32.mrb[0].mxu0
  %v11096 = vadd.f32 %v10912, %v11095
  %v11097 = vpop.f32.mrb[0].mxu0
  %11098 = vmatprep.mubr.bf16.mxu0 0
  %11099 = vmatmul.mubr.bf16.gmra.mrb[0].mxu0 %v10956
  %v11100 = vpop.f32.mrb[0].mxu0
  %v11101 = vadd.f32 %v10912, %v11100
  %v11102 = vpop.f32.mrb[0].mxu0
  %v11103 = vpop.f32.mrb[0].mxu0
  %v11104 = vadd.f32 %v10912, %v11103
  %v11105 = vpop.f32.mrb[0].mxu0
  %11106 = vmatprep.mubr.bf16.mxu0 0
  %11107 = vmatmul.mubr.bf16.gmra.mrb[0].mxu0 %v10958
  %v11108 = vpop.f32.mrb[0].mxu0
  %v11109 = vadd.f32 %v10912, %v11108
  %v11110 = vpop.f32.mrb[0].mxu0
  %v11111 = vpop.f32.mrb[0].mxu0
  %v11112 = vadd.f32 %v10912, %v11111
  %v11113 = vpop.f32.mrb[0].mxu0
  %11114 = vmatprep.mubr.bf16.mxu0 0
  %11115 = vmatmul.mubr.bf16.gmra.mrb[0].mxu0 %v10960
  %v11116 = vpop.f32.mrb[0].mxu0
  %v11117 = vadd.f32 %v10912, %v11116
  %v11118 = vpop.f32.mrb[0].mxu0
  %v11119 = vpop.f32.mrb[0].mxu0
  %v11120 = vadd.f32 %v10912, %v11119
  %v11121 = vpop.f32.mrb[0].mxu0
  %11122 = vmatprep.mubr.bf16.mxu0 0
  %11123 = vmatmul.mubr.bf16.gmra.mrb[0].mxu0 %v10962
  %v11124 = vpop.f32.mrb[0].mxu0
  %v11125 = vadd.f32 %v10912, %v11124
  %v11126 = vpop.f32.mrb[0].mxu0
  %v11127 = vpop.f32.mrb[0].mxu0
  %v11128 = vadd.f32 %v10912, %v11127
  %v11129 = vpop.f32.mrb[0].mxu0
  %11130 = vmatprep.mubr.bf16.mxu0 0
  %11131 = vmatmul.mubr.bf16.gmra.mrb[0].mxu0 %v10964
  %v11132 = vpop.f32.mrb[0].mxu0
  %v11133 = vadd.f32 %v10912, %v11132
  %v11134 = vpop.f32.mrb[0].mxu0
  %v11135 = vpop.f32.mrb[0].mxu0
  %v11136 = vadd.f32 %v10912, %v11135
  %v11137 = vpop.f32.mrb[0].mxu0
  %11138 = vmatprep.mubr.bf16.mxu0 0
  %11139 = vmatmul.mubr.bf16.gmra.mrb[0].mxu0 %v10966
  %v11140 = vpop.f32.mrb[0].mxu0
  %v11141 = vadd.f32 %v10912, %v11140
  %v11142 = vpop.f32.mrb[0].mxu0
  %v11143 = vpop.f32.mrb[0].mxu0
  %v11144 = vadd.f32 %v10912, %v11143
  %v11145 = vpop.f32.mrb[0].mxu0
  %11146 = vmatprep.mubr.bf16.mxu0 0
  %11147 = vmatmul.mubr.bf16.gmra.mrb[0].mxu0 %v10968
  %v11148 = vpop.f32.mrb[0].mxu0
  %v11149 = vadd.f32 %v10912, %v11148
  %v11150 = vpop.f32.mrb[0].mxu0
  %v11151 = vpop.f32.mrb[0].mxu0
  %v11152 = vadd.f32 %v10912, %v11151
  %v11153 = vpop.f32.mrb[0].mxu0
  %11154 = vmatprep.mubr.bf16.mxu0 0
  %11155 = vmatmul.mubr.bf16.gmra.mrb[0].mxu0 %v10970
  %v11156 = vpop.f32.mrb[0].mxu0
  %v11157 = vadd.f32 %v10912, %v11156
  %v11158 = vpop.f32.mrb[0].mxu0
  %v11159 = vpop.f32.mrb[0].mxu0
  %v11160 = vadd.f32 %v10912, %v11159
  %v11161 = vpop.f32.mrb[0].mxu0
  %11162 = vmatprep.mubr.bf16.mxu0 0
  %11163 = vmatmul.mubr.bf16.gmra.mrb[0].mxu0 %v10972
  %v11164 = vpop.f32.mrb[0].mxu0
  %v11165 = vadd.f32 %v10912, %v11164
  %v11166 = vpop.f32.mrb[0].mxu0
  %v11167 = vpop.f32.mrb[0].mxu0
  %v11168 = vadd.f32 %v10912, %v11167
  %v11169 = vpop.f32.mrb[0].mxu0
  %11170 = vmatprep.mubr.bf16.mxu0 0
  %11171 = vmatmul.mubr.bf16.gmra.mrb[0].mxu0 %v10974
  %v11172 = vpop.f32.mrb[0].mxu0
  %v11173 = vadd.f32 %v10912, %v11172
  %v11174 = vpop.f32.mrb[0].mxu0
  %v11175 = vpop.f32.mrb[0].mxu0
  %v11176 = vadd.f32 %v10912, %v11175
  %v11177 = vpop.f32.mrb[0].mxu0
  %11178 = vmatprep.mubr.bf16.mxu0 0
  %11179 = vmatmul.mubr.bf16.gmra.mrb[0].mxu0 %v10976
  %v11180 = vpop.f32.mrb[0].mxu0
  %v11181 = vadd.f32 %v10912, %v11180
  %v11182 = vpop.f32.mrb[0].mxu0
  %v11183 = vpop.f32.mrb[0].mxu0
  %v11184 = vadd.f32 %v10912, %v11183
  %v11185 = vpop.f32.mrb[0].mxu0
  %11186 = vmatprep.mubr.bf16.mxu0 0
  %11187 = vmatmul.mubr.bf16.gmra.mrb[0].mxu0 %v10978
  %v11188 = vpop.f32.mrb[0].mxu0
  %v11189 = vadd.f32 %v10912, %v11188
  %v11190 = vpop.f32.mrb[0].mxu0
  %v11191 = vpop.f32.mrb[0].mxu0
  %v11192 = vadd.f32 %v10912, %v11191
  %v11193 = vpop.f32.mrb[0].mxu0
  %11194 = vmatprep.mubr.bf16.mxu0 0
  %11195 = vmatmul.mubr.bf16.gmra.mrb[0].mxu0 %v10980
  %v11196 = vpop.f32.mrb[0].mxu0
  %v11197 = vadd.f32 %v10912, %v11196
  %v11198 = vpop.f32.mrb[0].mxu0
  %v11199 = vpop.f32.mrb[0].mxu0
  %v11200 = vadd.f32 %v10912, %v11199
  %v11201 = vpop.f32.mrb[0].mxu0
  %11202 = vmatprep.mubr.bf16.mxu0 0
  %11203 = vmatmul.mubr.bf16.gmra.mrb[0].mxu0 %v10982
  %v11204 = vpop.f32.mrb[0].mxu0
  %v11205 = vadd.f32 %v10912, %v11204
  %v11206 = vpop.f32.mrb[0].mxu0
  %v11207 = vpop.f32.mrb[0].mxu0
  %v11208 = vadd.f32 %v10912, %v11207
  %v11209 = vpop.f32.mrb[0].mxu0
  %11210 = vmatprep.mubr.bf16.mxu0 0
  %11211 = vmatmul.mubr.bf16.gmra.mrb[0].mxu0 %v10984
  %v11212 = vpop.f32.mrb[0].mxu0
  %v11213 = vadd.f32 %v10912, %v11212
  %v11214 = vpop.f32.mrb[0].mxu0
  %v11215 = vpop.f32.mrb[0].mxu0
  %v11216 = vadd.f32 %v10912, %v11215
  %v11217 = vpop.f32.mrb[0].mxu0
  %11218 = vmatprep.mubr.bf16.mxu0 0
  %11219 = vmatmul.mubr.bf16.gmra.mrb[0].mxu0 %v10986
  %v11220 = vpop.f32.mrb[0].mxu0
  %v11221 = vadd.f32 %v10912, %v11220
  %v11222 = vpop.f32.mrb[0].mxu0
  %v11223 = vpop.f32.mrb[0].mxu0
  %v11224 = vadd.f32 %v10912, %v11223
  %v11225 = vpop.f32.mrb[0].mxu0
  %11226 = vmatprep.mubr.bf16.mxu0 0
  %11227 = vmatmul.mubr.bf16.gmra.mrb[0].mxu0 %v10988
  %v11228 = vpop.f32.mrb[0].mxu0
  %v11229 = vadd.f32 %v10912, %v11228
  %v11230 = vpop.f32.mrb[0].mxu0
  %v11231 = vpop.f32.mrb[0].mxu0
  %v11232 = vadd.f32 %v10912, %v11231
  %v11233 = vpop.f32.mrb[0].mxu0
  %11234 = vmatprep.mubr.bf16.mxu0 0
  %11235 = vmatmul.mubr.bf16.gmra.mrb[0].mxu0 %v10990
  %v11236 = vpop.f32.mrb[0].mxu0
  %v11237 = vadd.f32 %v10912, %v11236
  %v11238 = vpop.f32.mrb[0].mxu0
  %v11239 = vpop.f32.mrb[0].mxu0
  %v11240 = vadd.f32 %v10912, %v11239
  %v11241 = vpop.f32.mrb[0].mxu0
  %11242 = vmatprep.mubr.bf16.mxu0 0
  %11243 = vmatmul.mubr.bf16.gmra.mrb[0].mxu0 %v10992
  %v11244 = vpop.f32.mrb[0].mxu0
  %v11245 = vadd.f32 %v10912, %v11244
  %v11246 = vpop.f32.mrb[0].mxu0
  %v11247 = vpop.f32.mrb[0].mxu0
  %v11248 = vadd.f32 %v10912, %v11247
  %v11249 = vpop.f32.mrb[0].mxu0
  %11250 = vmatprep.mubr.bf16.mxu0 0
  %11251 = vmatmul.mubr.bf16.gmra.mrb[0].mxu0 %v10994
  %v11252 = vpop.f32.mrb[0].mxu0
  %v11253 = vadd.f32 %v10912, %v11252
  %v11254 = vpop.f32.mrb[0].mxu0
  %v11255 = vpop.f32.mrb[0].mxu0
  %v11256 = vadd.f32 %v10912, %v11255
  %v11257 = vpop.f32.mrb[0].mxu0
  %11258 = vmatprep.mubr.bf16.mxu0 0
  %11259 = vmatmul.mubr.bf16.gmra.mrb[0].mxu0 %v10996
  %v11260 = vpop.f32.mrb[0].mxu0
  %v11261 = vadd.f32 %v10912, %v11260
  %v11262 = vpop.f32.mrb[0].mxu0
  %v11263 = vpop.f32.mrb[0].mxu0
  %v11264 = vadd.f32 %v10912, %v11263
  %v11265 = vpop.f32.mrb[0].mxu0
  %11266 = vmatprep.mubr.bf16.mxu0 0
  %11267 = vmatmul.mubr.bf16.gmra.mrb[0].mxu0 %v10998
  %v11268 = vpop.f32.mrb[0].mxu0
  %v11269 = vadd.f32 %v10912, %v11268
  %v11270 = vpop.f32.mrb[0].mxu0
  %v11271 = vpop.f32.mrb[0].mxu0
  %v11272 = vadd.f32 %v10912, %v11271
  %v11273 = vpop.f32.mrb[0].mxu0
  %11274 = vmatprep.mubr.bf16.mxu0 0
  %11275 = vmatmul.mubr.bf16.gmra.mrb[0].mxu0 %v11000
  %v11276 = vpop.f32.mrb[0].mxu0
  %v11277 = vadd.f32 %v10912, %v11276
  %v11278 = vpop.f32.mrb[0].mxu0
  %v11279 = vpop.f32.mrb[0].mxu0
  %v11280 = vadd.f32 %v10912, %v11279
  %v11281 = vpop.f32.mrb[0].mxu0
  %11282 = vmatprep.mubr.bf16.mxu0 0
  %11283 = vmatmul.mubr.bf16.gmra.mrb[0].mxu0 %v11002
  %v11284 = vpop.f32.mrb[0].mxu0
  %v11285 = vadd.f32 %v10912, %v11284
  %v11286 = vpop.f32.mrb[0].mxu0
  %v11287 = vpop.f32.mrb[0].mxu0
  %v11288 = vadd.f32 %v10912, %v11287
  %v11289 = vpop.f32.mrb[0].mxu0
  %11290 = vmatprep.mubr.bf16.mxu0 0
  %11291 = vmatmul.mubr.bf16.gmra.mrb[0].mxu0 %v11004
  %v11292 = vpop.f32.mrb[0].mxu0
  %v11293 = vadd.f32 %v10912, %v11292
  %v11294 = vpop.f32.mrb[0].mxu0
  %v11295 = vpop.f32.mrb[0].mxu0
  %v11296 = vadd.f32 %v10912, %v11295
  %v11297 = vpop.f32.mrb[0].mxu0
  %11298 = vdwg.mxu0
  %v11299 = vmax.f32 %v11045, 0.0
  %v11300 = vmax.f32 %v11048, 0.0
  %v11301 = vmax.f32 %v11053, 0.0
  %v11302 = vmax.f32 %v11056, 0.0
  %v11303 = vmax.f32 %v11061, 0.0
  %v11304 = vmax.f32 %v11064, 0.0
  %v11305 = vmax.f32 %v11069, 0.0
  %v11306 = vmax.f32 %v11072, 0.0
  %v11307 = vmax.f32 %v11077, 0.0
  %v11308 = vmax.f32 %v11080, 0.0
  %v11309 = vmax.f32 %v11085, 0.0
  %v11310 = vmax.f32 %v11088, 0.0
  %v11311 = vmax.f32 %v11093, 0.0
  %v11312 = vmax.f32 %v11096, 0.0
  %v11313 = vmax.f32 %v11101, 0.0
  %v11314 = vmax.f32 %v11104, 0.0
  %v11315 = vmax.f32 %v11109, 0.0
  %v11316 = vmax.f32 %v11112, 0.0
  %v11317 = vmax.f32 %v11117, 0.0
  %v11318 = vmax.f32 %v11120, 0.0
  %v11319 = vmax.f32 %v11125, 0.0
  %v11320 = vmax.f32 %v11128, 0.0
  %v11321 = vmax.f32 %v11133, 0.0
  %v11322 = vmax.f32 %v11136, 0.0
  %v11323 = vmax.f32 %v11141, 0.0
  %v11324 = vmax.f32 %v11144, 0.0
  %v11325 = vmax.f32 %v11149, 0.0
  %v11326 = vmax.f32 %v11152, 0.0
  %v11327 = vmax.f32 %v11157, 0.0
  %v11328 = vmax.f32 %v11160, 0.0
  %v11329 = vmax.f32 %v11165, 0.0
  %v11330 = vmax.f32 %v11168, 0.0
  %v11331 = vmax.f32 %v11173, 0.0
  %v11332 = vmax.f32 %v11176, 0.0
  %v11333 = vmax.f32 %v11181, 0.0
  %v11334 = vmax.f32 %v11184, 0.0
  %v11335 = vmax.f32 %v11189, 0.0
  %v11336 = vmax.f32 %v11192, 0.0
  %v11337 = vmax.f32 %v11197, 0.0
  %v11338 = vmax.f32 %v11200, 0.0
  %v11339 = vmax.f32 %v11205, 0.0
  %v11340 = vmax.f32 %v11208, 0.0
  %v11341 = vmax.f32 %v11213, 0.0
  %v11342 = vmax.f32 %v11216, 0.0
  %v11343 = vmax.f32 %v11221, 0.0
  %v11344 = vmax.f32 %v11224, 0.0
  %v11345 = vmax.f32 %v11229, 0.0
  %v11346 = vmax.f32 %v11232, 0.0
  %v11347 = vmax.f32 %v11237, 0.0
  %v11348 = vmax.f32 %v11240, 0.0
  %v11349 = vmax.f32 %v11245, 0.0
  %v11350 = vmax.f32 %v11248, 0.0
  %v11351 = vmax.f32 %v11253, 0.0
  %v11352 = vmax.f32 %v11256, 0.0
  %v11353 = vmax.f32 %v11261, 0.0
  %v11354 = vmax.f32 %v11264, 0.0
  %v11355 = vmax.f32 %v11269, 0.0
  %v11356 = vmax.f32 %v11272, 0.0
  %v11357 = vmax.f32 %v11277, 0.0
  %v11358 = vmax.f32 %v11280, 0.0
  %v11359 = vmax.f32 %v11285, 0.0
  %v11360 = vmax.f32 %v11288, 0.0
  %v11361 = vmax.f32 %v11293, 0.0
  %v11362 = vmax.f32 %v11296, 0.0
  %v11363 = vadd.f32 %v11299, %v395
  %v11364 = vadd.f32 %v11300, %v398
  %v11365 = vadd.f32 %v11301, %v403
  %v11366 = vadd.f32 %v11302, %v406
  %v11367 = vadd.f32 %v11303, %v411
  %v11368 = vadd.f32 %v11304, %v414
  %v11369 = vadd.f32 %v11305, %v419
  %v11370 = vadd.f32 %v11306, %v422
  %v11371 = vadd.f32 %v11307, %v427
  %v11372 = vadd.f32 %v11308, %v430
  %v11373 = vadd.f32 %v11309, %v435
  %v11374 = vadd.f32 %v11310, %v438
  %v11375 = vadd.f32 %v11311, %v443
  %v11376 = vadd.f32 %v11312, %v446
  %v11377 = vadd.f32 %v11313, %v451
  %v11378 = vadd.f32 %v11314, %v454
  %v11379 = vadd.f32 %v11315, %v459
  %v11380 = vadd.f32 %v11316, %v462
  %v11381 = vadd.f32 %v11317, %v467
  %v11382 = vadd.f32 %v11318, %v470
  %v11383 = vadd.f32 %v11319, %v475
  %v11384 = vadd.f32 %v11320, %v478
  %v11385 = vadd.f32 %v11321, %v483
  %v11386 = vadd.f32 %v11322, %v486
  %v11387 = vadd.f32 %v11323, %v491
  %v11388 = vadd.f32 %v11324, %v494
  %v11389 = vadd.f32 %v11325, %v499
  %v11390 = vadd.f32 %v11326, %v502
  %v11391 = vadd.f32 %v11327, %v507
  %v11392 = vadd.f32 %v11328, %v510
  %v11393 = vadd.f32 %v11329, %v515
  %v11394 = vadd.f32 %v11330, %v518
  %v11395 = vadd.f32 %v11331, %v523
  %v11396 = vadd.f32 %v11332, %v526
  %v11397 = vadd.f32 %v11333, %v531
  %v11398 = vadd.f32 %v11334, %v534
  %v11399 = vadd.f32 %v11335, %v539
  %v11400 = vadd.f32 %v11336, %v542
  %v11401 = vadd.f32 %v11337, %v547
  %v11402 = vadd.f32 %v11338, %v550
  %v11403 = vadd.f32 %v11339, %v555
  %v11404 = vadd.f32 %v11340, %v558
  %v11405 = vadd.f32 %v11341, %v563
  %v11406 = vadd.f32 %v11342, %v566
  %v11407 = vadd.f32 %v11343, %v571
  %v11408 = vadd.f32 %v11344, %v574
  %v11409 = vadd.f32 %v11345, %v579
  %v11410 = vadd.f32 %v11346, %v582
  %v11411 = vadd.f32 %v11347, %v587
  %v11412 = vadd.f32 %v11348, %v590
  %v11413 = vadd.f32 %v11349, %v595
  %v11414 = vadd.f32 %v11350, %v598
  %v11415 = vadd.f32 %v11351, %v603
  %v11416 = vadd.f32 %v11352, %v606
  %v11417 = vadd.f32 %v11353, %v611
  %v11418 = vadd.f32 %v11354, %v614
  %v11419 = vadd.f32 %v11355, %v619
  %v11420 = vadd.f32 %v11356, %v622
  %v11421 = vadd.f32 %v11357, %v627
  %v11422 = vadd.f32 %v11358, %v630
  %v11423 = vadd.f32 %v11359, %v635
  %v11424 = vadd.f32 %v11360, %v638
  %v11425 = vadd.f32 %v11361, %v643
  %v11426 = vadd.f32 %v11362, %v646
  %11427 = vst.msk [vmem:[%s7] sm:$0xff] %vm5003, %v11363
  %11428 = vst.msk [vmem:[%s7 + $0x8] sm:$0xff] %vm5003, %v11364
  %11429 = vst.msk [vmem:[%s7 + $0x10] sm:$0xff] %vm5003, %v11365
  %11430 = vst.msk [vmem:[%s7 + $0x18] sm:$0xff] %vm5003, %v11366
  %11431 = vst.msk [vmem:[%s7 + $0x20] sm:$0xff] %vm5003, %v11367
  %11432 = vst.msk [vmem:[%s7 + $0x28] sm:$0xff] %vm5003, %v11368
  %11433 = vst.msk [vmem:[%s7 + $0x30] sm:$0xff] %vm5003, %v11369
  %11434 = vst.msk [vmem:[%s7 + $0x38] sm:$0xff] %vm5003, %v11370
  %11435 = vst.msk [vmem:[%s7 + $0x40] sm:$0xff] %vm5003, %v11371
  %11436 = vst.msk [vmem:[%s7 + $0x48] sm:$0xff] %vm5003, %v11372
  %11437 = vst.msk [vmem:[%s7 + $0x50] sm:$0xff] %vm5003, %v11373
  %11438 = vst.msk [vmem:[%s7 + $0x58] sm:$0xff] %vm5003, %v11374
  %11439 = vst.msk [vmem:[%s7 + $0x60] sm:$0xff] %vm5003, %v11375
  %11440 = vst.msk [vmem:[%s7 + $0x68] sm:$0xff] %vm5003, %v11376
  %11441 = vst.msk [vmem:[%s7 + $0x70] sm:$0xff] %vm5003, %v11377
  %11442 = vst.msk [vmem:[%s7 + $0x78] sm:$0xff] %vm5003, %v11378
  %11443 = vst.msk [vmem:[%s7 + $0x80] sm:$0xff] %vm5003, %v11379
  %11444 = vst.msk [vmem:[%s7 + $0x88] sm:$0xff] %vm5003, %v11380
  %11445 = vst.msk [vmem:[%s7 + $0x90] sm:$0xff] %vm5003, %v11381
  %11446 = vst.msk [vmem:[%s7 + $0x98] sm:$0xff] %vm5003, %v11382
  %11447 = vst.msk [vmem:[%s7 + $0xa0] sm:$0xff] %vm5003, %v11383
  %11448 = vst.msk [vmem:[%s7 + $0xa8] sm:$0xff] %vm5003, %v11384
  %11449 = vst.msk [vmem:[%s7 + $0xb0] sm:$0xff] %vm5003, %v11385
  %11450 = vst.msk [vmem:[%s7 + $0xb8] sm:$0xff] %vm5003, %v11386
  %11451 = vst.msk [vmem:[%s7 + $0xc0] sm:$0xff] %vm5003, %v11387
  %11452 = vst.msk [vmem:[%s7 + $0xc8] sm:$0xff] %vm5003, %v11388
  %11453 = vst.msk [vmem:[%s7 + $0xd0] sm:$0xff] %vm5003, %v11389
  %11454 = vst.msk [vmem:[%s7 + $0xd8] sm:$0xff] %vm5003, %v11390
  %11455 = vst.msk [vmem:[%s7 + $0xe0] sm:$0xff] %vm5003, %v11391
  %11456 = vst.msk [vmem:[%s7 + $0xe8] sm:$0xff] %vm5003, %v11392
  %11457 = vst.msk [vmem:[%s7 + $0xf0] sm:$0xff] %vm5003, %v11393
  %11458 = vst.msk [vmem:[%s7 + $0xf8] sm:$0xff] %vm5003, %v11394
  %11459 = vst.msk [vmem:[%s7 + $0x100] sm:$0xff] %vm5003, %v11395
  %11460 = vst.msk [vmem:[%s7 + $0x108] sm:$0xff] %vm5003, %v11396
  %11461 = vst.msk [vmem:[%s7 + $0x110] sm:$0xff] %vm5003, %v11397
  %11462 = vst.msk [vmem:[%s7 + $0x118] sm:$0xff] %vm5003, %v11398
  %11463 = vst.msk [vmem:[%s7 + $0x120] sm:$0xff] %vm5003, %v11399
  %11464 = vst.msk [vmem:[%s7 + $0x128] sm:$0xff] %vm5003, %v11400
  %11465 = vst.msk [vmem:[%s7 + $0x130] sm:$0xff] %vm5003, %v11401
  %11466 = vst.msk [vmem:[%s7 + $0x138] sm:$0xff] %vm5003, %v11402
  %11467 = vst.msk [vmem:[%s7 + $0x140] sm:$0xff] %vm5003, %v11403
  %11468 = vst.msk [vmem:[%s7 + $0x148] sm:$0xff] %vm5003, %v11404
  %11469 = vst.msk [vmem:[%s7 + $0x150] sm:$0xff] %vm5003, %v11405
  %11470 = vst.msk [vmem:[%s7 + $0x158] sm:$0xff] %vm5003, %v11406
  %11471 = vst.msk [vmem:[%s7 + $0x160] sm:$0xff] %vm5003, %v11407
  %11472 = vst.msk [vmem:[%s7 + $0x168] sm:$0xff] %vm5003, %v11408
  %11473 = vst.msk [vmem:[%s7 + $0x170] sm:$0xff] %vm5003, %v11409
  %11474 = vst.msk [vmem:[%s7 + $0x178] sm:$0xff] %vm5003, %v11410
  %11475 = vst.msk [vmem:[%s7 + $0x180] sm:$0xff] %vm5003, %v11411
  %11476 = vst.msk [vmem:[%s7 + $0x188] sm:$0xff] %vm5003, %v11412
  %11477 = vst.msk [vmem:[%s7 + $0x190] sm:$0xff] %vm5003, %v11413
  %11478 = vst.msk [vmem:[%s7 + $0x198] sm:$0xff] %vm5003, %v11414
  %11479 = vst.msk [vmem:[%s7 + $0x1a0] sm:$0xff] %vm5003, %v11415
  %11480 = vst.msk [vmem:[%s7 + $0x1a8] sm:$0xff] %vm5003, %v11416
  %11481 = vst.msk [vmem:[%s7 + $0x1b0] sm:$0xff] %vm5003, %v11417
  %11482 = vst.msk [vmem:[%s7 + $0x1b8] sm:$0xff] %vm5003, %v11418
  %11483 = vst.msk [vmem:[%s7 + $0x1c0] sm:$0xff] %vm5003, %v11419
  %11484 = vst.msk [vmem:[%s7 + $0x1c8] sm:$0xff] %vm5003, %v11420
  %11485 = vst.msk [vmem:[%s7 + $0x1d0] sm:$0xff] %vm5003, %v11421
  %11486 = vst.msk [vmem:[%s7 + $0x1d8] sm:$0xff] %vm5003, %v11422
  %11487 = vst.msk [vmem:[%s7 + $0x1e0] sm:$0xff] %vm5003, %v11423
  %11488 = vst.msk [vmem:[%s7 + $0x1e8] sm:$0xff] %vm5003, %v11424
  %11489 = vst.msk [vmem:[%s7 + $0x1f0] sm:$0xff] %vm5003, %v11425
  %11490 = vst.msk [vmem:[%s7 + $0x1f8] sm:$0xff] %vm5003, %v11426
  // Predicated region
  $region30: #{_lambda_.1} parent=0 // pred_check
    _
  $region31: #{_lambda_.1} parent=0 // pred_check_branch
    %11492 = sbr.rel (0) target = $region33
  $region32: #{_lambda_.1} parent=0 // pred_region
    _
  $region33: #{_lambda_.1} parent=0 // pred_fallthru
    _
  // Predicated region
  $region34: #{_lambda_.1} parent=0 // pred_check
    _
  $region35: #{_lambda_.1} parent=0 // pred_check_branch
    %11494 = sbr.rel (0) target = $region37
  $region36: #{_lambda_.1} parent=0 // pred_region
    _
  $region37: #{_lambda_.1} parent=0 // pred_fallthru
    _

</llo_original>
